<compile_context>
chip_gen: v7x
topology: tpu7x:2x2x1
jax: 0.10.0
libtpu: 0.0.40
codegen_flags: <defaults>
</compile_context>

<pallas_src>
import functools

import numpy as np
import jax
import jax.numpy as jnp
from jax.experimental import pallas as pl
from jax.experimental.pallas import tpu as pltpu

NEG_SLOPE = 0.01   # nn.LeakyReLU default negative_slope
BN_EPS = 1e-5      # nn.BatchNorm2d default eps
PATCH = 16         # Conv2d(3, 64, kernel_size=16, stride=16)
KIN = 3 * PATCH * PATCH


def _round_up(x, m):
    return ((x + m - 1) // m) * m


def _leaky(x):
    return jnp.where(x >= 0, x, NEG_SLOPE * x)


def _dot(a, b):
    # f32 operands, f32 accumulation, full precision on the MXU.
    return jnp.dot(a, b, preferred_element_type=jnp.float32,
                   precision=jax.lax.Precision.HIGHEST)


def _bn_train(x, gamma, beta, n_true, mask=None):
    """BatchNorm2d in training mode: batch stats over rows (= batch*H*W).

    Two-pass variance (robust to cancellation), folded 2-op apply
    (x*scale + shift). `mask` (N,1) excludes padded rows from the statistics;
    None means every row is valid (trace-time choice, no runtime cost).
    """
    inv_n = 1.0 / float(n_true)
    xm = x if mask is None else x * mask
    mu = jnp.sum(xm, axis=0, keepdims=True) * inv_n
    d = x - mu
    dd = d * d if mask is None else (d * d) * mask
    var = jnp.sum(dd, axis=0, keepdims=True) * inv_n
    scale = jax.lax.rsqrt(var + BN_EPS) * gamma
    shift = beta - mu * scale
    return x * scale + shift


# Packed small-parameter row indices inside `vec_ref` (shape (16, Cmax), f32):
#   0: b1(128, zero-padded)  1: g1(128)  2: be1(128)
#   3: b2(128)               4: g2(128)  5: be2(128)
#   6: b3(256)               7: g3(256)  8: be3(256)
#   9: b4 + bl' (nfp)       10: gf(nfp) 11: bf(nfp)
#  12: wl'[0] (nfp)         13: wl'[1] (nfp)        14,15: zero padding
def _glimpse_loc_kernel(gp_ref, loc_ref, w1_ref, w2_ref, w3_ref, w4_ref,
                        vec_ref, out_ref, h1_ref, *, tile, n_true, n_pad):
    i = pl.program_id(0)
    v = vec_ref
    nfp = out_ref.shape[1]

    # ---- streaming phase: layer-1 matmul on one row tile -> persistent scratch ----
    x1 = _dot(gp_ref[...], w1_ref[...]) + v[0:1, 0:128]
    x1 = _leaky(x1)
    r0 = pl.multiple_of(i * tile, tile)
    h1_ref[pl.ds(r0, tile), :] = x1

    # ---- final phase (last grid step): whole-batch BN + layers 2..4 + fcl + final ----
    @pl.when(i == pl.num_programs(0) - 1)
    def _():
        if n_pad != n_true:
            rows = jax.lax.broadcasted_iota(jnp.int32, (n_pad, 1), 0)
            mask = (rows < n_true).astype(jnp.float32)
        else:
            mask = None

        x = _bn_train(h1_ref[...], v[1:2, 0:128], v[2:3, 0:128], n_true, mask)

        x = _leaky(_dot(x, w2_ref[...]) + v[3:4, 0:128])
        x = _bn_train(x, v[4:5, 0:128], v[5:6, 0:128], n_true, mask)

        x = _leaky(_dot(x, w3_ref[...]) + v[6:7, 0:256])
        x = _bn_train(x, v[7:8, 0:256], v[8:9, 0:256], n_true, mask)

        x = _dot(x, w4_ref[...]) + v[9:10, 0:nfp]          # bias = b4 + folded bl

        # fcl: K=2 contraction as two VPU broadcast multiply-adds (no MXU op).
        lf = loc_ref[:, 0:1] * v[12:13, 0:nfp] + loc_ref[:, 1:2] * v[13:14, 0:nfp]

        y = _leaky(x + lf)
        out_ref[...] = _bn_train(y, v[10:11, 0:nfp], v[11:12, 0:nfp], n_true, mask)


def _vmem_limit_bytes():
    """Per-generation VMEM cap: ~3/4 of physical (≈48 MiB v7x, ≈96 MiB v5e/v6e)."""
    try:
        cap = int(pltpu.get_tpu_info().vmem_capacity_bytes)
    except Exception:
        cap = 64 * 2**20          # conservative fallback (v7x physical)
    return max(32 * 2**20, (cap * 3) // 4)


def glimpse_loc_forward(g_nchw, l_nchw, params, maxloc, *, row_tile=256):
    B, cg, H, W = g_nchw.shape
    assert cg == 3 and H % PATCH == 0 and W % PATCH == 0
    Hg, Wg = H // PATCH, W // PATCH
    N = B * Hg * Wg
    nf = params["w4"].shape[1]
    nfp = _round_up(nf, 128)                 # lane-dense output channels
    cmax = max(256, nfp)

    tile = min(_round_up(row_tile, 8), _round_up(N, 8))
    n_pad = _round_up(N, tile)
    num_tiles = n_pad // tile

    # Patch extraction with a single 6-D transpose directly from NCHW.
    # Patch order (c, ky, kx) == PyTorch Conv2d weight flattening order.
    gp = g_nchw.astype(jnp.float32).reshape(B, 3, Hg, PATCH, Wg, PATCH)
    gp = jnp.transpose(gp, (0, 2, 4, 1, 3, 5)).reshape(N, KIN)
    gp = jnp.pad(gp, ((0, n_pad - N), (0, 0)))
    lp = jnp.transpose(l_nchw, (0, 2, 3, 1)).reshape(N, 2).astype(jnp.float32)
    lp = jnp.pad(lp, ((0, n_pad - N), (0, 0)))

    # Layer-1 channel padding 64 -> 128 (lane-dense layer-1 elementwise work).
    w1 = jnp.pad(params["w1"].astype(jnp.float32), ((0, 0), (0, 128 - 64)))
    w2 = jnp.pad(params["w2"].astype(jnp.float32), ((0, 128 - 64), (0, 0)))
    w3 = params["w3"].astype(jnp.float32)
    w4 = jnp.pad(params["w4"].astype(jnp.float32), ((0, 0), (0, nfp - nf)))

    # Fold `l*2/maxloc - 1` into the fcl weights (host-side, no recompile on maxloc),
    # and fold the resulting bias into the fcg output bias.
    scale = 2.0 / float(maxloc)
    wl_s = params["wl"].astype(jnp.float32) * scale                          # (2, nf)
    bl_s = params["bl"] - jnp.sum(params["wl"], axis=0, keepdims=True)       # (1, nf)

    # Pack all tiny (1, C) params into one lane-padded f32 array -> one DMA.
    def row(vec):
        vec = jnp.asarray(vec, jnp.float32).reshape(1, -1)
        return jnp.pad(vec, ((0, 0), (0, cmax - vec.shape[1])))

    vecs = jnp.concatenate([
        row(params["b1"]), row(params["g1"]), row(params["be1"]),     # padded -> 0 past c=64
        row(params["b2"]), row(params["g2"]), row(params["be2"]),
        row(params["b3"]), row(params["g3"]), row(params["be3"]),
        row(params["b4"] + bl_s), row(params["gf"]), row(params["bf"]),
        row(wl_s[0:1, :]), row(wl_s[1:2, :]),
        jnp.zeros((2, cmax), jnp.float32),                            # pad to 16 rows
    ], axis=0)

    vmem_limit = _vmem_limit_bytes()

    # Whole-batch-resident footprint guard (final step keeps activations in VMEM).
    weights_bytes = 4 * (w1.size + w2.size + w3.size + w4.size + vecs.size)
    stream_bytes = 2 * tile * KIN * 4                       # double-buffered gp tile
    resident_bytes = 4 * (n_pad * 128 + n_pad * nfp + n_pad * 2)   # scratch + out + loc
    act_bytes = 3 * n_pad * max(256, nfp) * 4               # layers 2-4 temporaries (rough)
    need = weights_bytes + stream_bytes + resident_bytes + act_bytes
    if need > vmem_limit:
        raise ValueError(
            f"GlimpseLoc fused kernel needs ~{need/2**20:.1f} MiB VMEM "
            f"(> {vmem_limit/2**20:.1f} MiB limit); reduce the batch or split "
            "into a BN-stats pass + normalize pass.")

    kernel = functools.partial(_glimpse_loc_kernel, tile=tile, n_true=N, n_pad=n_pad)

    grid_spec = pltpu.PrefetchScalarGridSpec(
        num_scalar_prefetch=0,
        grid=(num_tiles,),
        in_specs=[
            pl.BlockSpec((tile, KIN), lambda i: (i, 0)),     # gp: streamed row tiles
            pl.BlockSpec((n_pad, 2), lambda i: (0, 0)),      # loc: resident
            pl.BlockSpec((KIN, 128), lambda i: (0, 0)),      # w1
            pl.BlockSpec((128, 128), lambda i: (0, 0)),      # w2
            pl.BlockSpec((128, 256), lambda i: (0, 0)),      # w3
            pl.BlockSpec((256, nfp), lambda i: (0, 0)),      # w4
            pl.BlockSpec((16, cmax), lambda i: (0, 0)),      # packed small params
        ],
        out_specs=pl.BlockSpec((n_pad, nfp), lambda i: (0, 0)),  # resident, written last step
        scratch_shapes=[pltpu.VMEM((n_pad, 128), jnp.float32)],  # persistent layer-1 acts
    )

    out = pl.pallas_call(
        kernel,
        out_shape=jax.ShapeDtypeStruct((n_pad, nfp), jnp.float32),
        grid_spec=grid_spec,
        compiler_params=pltpu.CompilerParams(
            dimension_semantics=("arbitrary",),     # scratch/output carried across the axis
            vmem_limit_bytes=int(vmem_limit)),
    )(gp, lp, w1, w2, w3, w4, vecs)

    out = out[:N, :nf]
    # Back to NCHW: (N, nf) -> (B, Hg, Wg, nf) -> (B, nf, Hg, Wg)
    return jnp.transpose(out.reshape(B, Hg, Wg, nf), (0, 3, 1, 2))


def init_params(key, nf):
    """Deterministic synthetic params (conv weights: uniform(+-1/sqrt(fan_in)),
    BatchNorm affine gamma=1, beta=0 — PyTorch default init)."""
    p = {}
    keys = jax.random.split(key, 10)

    def conv(kw, kb, cin, cout):
        bound = 1.0 / np.sqrt(cin)
        w = jax.random.uniform(kw, (cin, cout), jnp.float32, -bound, bound)
        b = jax.random.uniform(kb, (1, cout), jnp.float32, -bound, bound)
        return w, b

    p["w1"], p["b1"] = conv(keys[0], keys[1], KIN, 64)     # Conv2d(3,64,16,s=16)
    p["w2"], p["b2"] = conv(keys[2], keys[3], 64, 128)     # Conv2d(64,128,1)
    p["w3"], p["b3"] = conv(keys[4], keys[5], 128, 256)    # Conv2d(128,256,1)
    p["w4"], p["b4"] = conv(keys[6], keys[7], 256, nf)     # Conv2d(256,nf,1)
    p["wl"], p["bl"] = conv(keys[8], keys[9], 2, nf)       # Conv2d(2,nf,1)
    for name, c in (("1", 64), ("2", 128), ("3", 256)):
        p["g" + name] = jnp.ones((1, c), jnp.float32)
        p["be" + name] = jnp.zeros((1, c), jnp.float32)
    p["gf"] = jnp.ones((1, nf), jnp.float32)
    p["bf"] = jnp.zeros((1, nf), jnp.float32)
    return p


def reference_forward(g_nchw, l_nchw, params, maxloc):
    """Pure numpy float64 reference of the same math (for sanity check)."""
    p = {k: np.asarray(v, np.float64) for k, v in params.items()}
    B, _, H, W = g_nchw.shape
    Hg, Wg = H // PATCH, W // PATCH
    N = B * Hg * Wg
    g = np.asarray(g_nchw, np.float64)
    gp = g.reshape(B, 3, Hg, PATCH, Wg, PATCH).transpose(0, 2, 4, 1, 3, 5).reshape(N, -1)
    lp = np.asarray(l_nchw, np.float64).transpose(0, 2, 3, 1).reshape(N, 2)

    def leaky(x):
        return np.where(x >= 0, x, NEG_SLOPE * x)

    def bn(x, g_, b_):
        mu = x.mean(0, keepdims=True)
        var = ((x - mu) ** 2).mean(0, keepdims=True)
        return (x - mu) / np.sqrt(var + BN_EPS) * g_ + b_

    x = gp @ p["w1"] + p["b1"]; x = bn(leaky(x), p["g1"], p["be1"])
    x = x @ p["w2"] + p["b2"]; x = bn(leaky(x), p["g2"], p["be2"])
    x = x @ p["w3"] + p["b3"]; x = bn(leaky(x), p["g3"], p["be3"])
    x = x @ p["w4"] + p["b4"]
    l = lp * (2.0 / maxloc) - 1.0
    lf = l @ p["wl"] + p["bl"]
    y = bn(leaky(x + lf), p["gf"], p["bf"])
    nf = y.shape[1]
    return y.reshape(B, Hg, Wg, nf).transpose(0, 3, 1, 2)


if __name__ == "__main__":
    nf = 128
    maxloc = 32.0
    B, H, W = 3, 48, 48                       # glimpse feature map -> (B, nf, 3, 3)
    Hg, Wg = H // PATCH, W // PATCH           # N = 27 rows -> exercises streaming + row mask

    key = jax.random.PRNGKey(0)
    kg, kl, kp = jax.random.split(key, 3)
    g = jax.random.normal(kg, (B, 3, H, W), jnp.float32)                             # NCHW glimpse
    l = jax.random.randint(kl, (B, 2, Hg, Wg), 0, int(maxloc)).astype(jnp.float32)   # NCHW locations
    params = init_params(kp, nf)

    # row_tile=16 -> 2 grid steps at this small size (exercises the streaming path).
    out = jax.block_until_ready(glimpse_loc_forward(g, l, params, maxloc, row_tile=16))
    assert out.shape == (B, nf, Hg, Wg)

    ref = reference_forward(np.asarray(g), np.asarray(l), params, maxloc)
    np.testing.assert_allclose(np.asarray(out), ref, rtol=2e-2, atol=2e-2)

    print("KERNEL_OK")
</pallas_src>

<mosaic_0001>
module attributes {stable_mosaic.version = 11 : i64} {
  func.func @_glimpse_loc_kernel(%arg0: i32, %arg1: memref<16x768xf32, #tpu.memory_space<vmem>>, %arg2: memref<32x2xf32, #tpu.memory_space<vmem>>, %arg3: memref<768x128xf32, #tpu.memory_space<vmem>>, %arg4: memref<128x128xf32, #tpu.memory_space<vmem>>, %arg5: memref<128x256xf32, #tpu.memory_space<vmem>>, %arg6: memref<256x128xf32, #tpu.memory_space<vmem>>, %arg7: memref<16x256xf32, #tpu.memory_space<vmem>>, %arg8: memref<32x128xf32, #tpu.memory_space<vmem>>, %arg9: memref<32x128xf32, #tpu.memory_space<vmem>>) attributes {dimension_semantics = [#tpu.dimension_semantics<arbitrary>], iteration_bounds = array<i64: 2>, scalar_prefetch = 0 : i64, scratch_operands = 1 : i64, tpu.core_type = #tpu.core_type<tc>, window_params = [{transform_indices = @transform_0, window_bounds = array<i64: 16, 768>}, {pipeline_mode = #tpu.pipeline_mode<synchronous>, transform_indices = @transform_1, window_bounds = array<i64: 32, 2>}, {pipeline_mode = #tpu.pipeline_mode<synchronous>, transform_indices = @transform_2, window_bounds = array<i64: 768, 128>}, {pipeline_mode = #tpu.pipeline_mode<synchronous>, transform_indices = @transform_3, window_bounds = array<i64: 128, 128>}, {pipeline_mode = #tpu.pipeline_mode<synchronous>, transform_indices = @transform_4, window_bounds = array<i64: 128, 256>}, {pipeline_mode = #tpu.pipeline_mode<synchronous>, transform_indices = @transform_5, window_bounds = array<i64: 256, 128>}, {pipeline_mode = #tpu.pipeline_mode<synchronous>, transform_indices = @transform_6, window_bounds = array<i64: 16, 256>}, {pipeline_mode = #tpu.pipeline_mode<synchronous>, transform_indices = @transform_7, window_bounds = array<i64: 32, 128>}]} {
    %c0 = arith.constant 0 : index
    %c0_0 = arith.constant 0 : index
    %0 = vector.load %arg1[%c0, %c0_0] : memref<16x768xf32, #tpu.memory_space<vmem>>, vector<16x768xf32>
    %c0_1 = arith.constant 0 : index
    %c0_2 = arith.constant 0 : index
    %1 = vector.load %arg3[%c0_1, %c0_2] : memref<768x128xf32, #tpu.memory_space<vmem>>, vector<768x128xf32>
    %cst = arith.constant dense<0.000000e+00> : vector<16x128xf32>
    %2 = tpu.matmul %0, %1, %cst {dimension_numbers = #tpu.dot_dimension_numbers<[1], [0], [0], [1], [0, 0, 1, 1], [], []>, precision = #tpu.contract_precision<fp32>} : vector<16x768xf32>, vector<768x128xf32>, vector<16x128xf32> -> vector<16x128xf32>
    %c0_3 = arith.constant 0 : index
    %c0_4 = arith.constant 0 : index
    %3 = vector.load %arg7[%c0_3, %c0_4] : memref<16x256xf32, #tpu.memory_space<vmem>>, vector<1x128xf32>
    %4 = vector.broadcast %3 : vector<1x128xf32> to vector<16x128xf32>
    %5 = arith.addf %2, %4 : vector<16x128xf32>
    %cst_5 = arith.constant 0.000000e+00 : f32
    %6 = vector.broadcast %cst_5 : f32 to vector<16x128xf32>
    %7 = arith.cmpf oge, %5, %6 : vector<16x128xf32>
    %cst_6 = arith.constant 0.00999999977 : f32
    %8 = vector.broadcast %cst_6 : f32 to vector<16x128xf32>
    %9 = arith.mulf %8, %5 : vector<16x128xf32>
    %10 = arith.select %7, %5, %9 : vector<16x128xi1>, vector<16x128xf32>
    %c16_i32 = arith.constant 16 : i32
    %11 = arith.muli %arg0, %c16_i32 : i32
    %12 = tpu.assume_multiple %11, 16 : i32
    %13 = arith.index_cast %12 : i32 to index
    %c0_7 = arith.constant 0 : index
    %14 = vector.load %arg9[%13, %c0_7] : memref<32x128xf32, #tpu.memory_space<vmem>>, vector<16x128xf32>
    tpu.vector_store %arg9[%13, %c0_7], %10 {strides = array<i32>} : memref<32x128xf32, #tpu.memory_space<vmem>>, vector<16x128xf32>,
    %c1_i32 = arith.constant 1 : i32
    %15 = arith.cmpi eq, %arg0, %c1_i32 : i32
    %16 = arith.extui %15 : i1 to i32
    %c0_i32 = arith.constant 0 : i32
    %17 = arith.cmpi ne, %16, %c0_i32 : i32
    scf.if %17 {
      %18 = tpu.iota {dimensions = array<i32: 0>} : vector<32x1xi32>
      %c27_i32 = arith.constant 27 : i32
      %19 = vector.broadcast %c27_i32 : i32 to vector<32x1xi32>
      %20 = arith.cmpi slt, %18, %19 : vector<32x1xi32>
      %21 = arith.extui %20 : vector<32x1xi1> to vector<32x1xi32>
      %22 = arith.sitofp %21 : vector<32x1xi32> to vector<32x1xf32>
      %c0_8 = arith.constant 0 : index
      %c0_9 = arith.constant 0 : index
      %23 = vector.load %arg9[%c0_8, %c0_9] : memref<32x128xf32, #tpu.memory_space<vmem>>, vector<32x128xf32>
      %c1 = arith.constant 1 : index
      %c0_10 = arith.constant 0 : index
      %24 = vector.load %arg7[%c1, %c0_10] : memref<16x256xf32, #tpu.memory_space<vmem>>, vector<1x128xf32>
      %c2 = arith.constant 2 : index
      %c0_11 = arith.constant 0 : index
      %25 = vector.load %arg7[%c2, %c0_11] : memref<16x256xf32, #tpu.memory_space<vmem>>, vector<1x128xf32>
      %26 = vector.broadcast %22 : vector<32x1xf32> to vector<32x128xf32>
      %27 = arith.mulf %23, %26 : vector<32x128xf32>
      %cst_12 = arith.constant dense<0.000000e+00> : vector<128xf32>
      %28 = vector.multi_reduction <add>, %27, %cst_12 [0] : vector<32x128xf32> to vector<128xf32>
      %29 = vector.shape_cast %28 : vector<128xf32> to vector<1x128xf32>
      %cst_13 = arith.constant 0.0370370373 : f32
      %30 = vector.broadcast %cst_13 : f32 to vector<1x128xf32>
      %31 = arith.mulf %29, %30 : vector<1x128xf32>
      %32 = vector.broadcast %31 : vector<1x128xf32> to vector<32x128xf32>
      %33 = arith.subf %23, %32 : vector<32x128xf32>
      %34 = arith.mulf %33, %33 : vector<32x128xf32>
      %35 = vector.broadcast %22 : vector<32x1xf32> to vector<32x128xf32>
      %36 = arith.mulf %34, %35 : vector<32x128xf32>
      %cst_14 = arith.constant dense<0.000000e+00> : vector<128xf32>
      %37 = vector.multi_reduction <add>, %36, %cst_14 [0] : vector<32x128xf32> to vector<128xf32>
      %38 = vector.shape_cast %37 : vector<128xf32> to vector<1x128xf32>
      %cst_15 = arith.constant 0.0370370373 : f32
      %39 = vector.broadcast %cst_15 : f32 to vector<1x128xf32>
      %40 = arith.mulf %38, %39 : vector<1x128xf32>
      %cst_16 = arith.constant 9.99999974E-6 : f32
      %41 = vector.broadcast %cst_16 : f32 to vector<1x128xf32>
      %42 = arith.addf %40, %41 : vector<1x128xf32>
      %43 = math.rsqrt %42 : vector<1x128xf32>
      %44 = arith.mulf %43, %24 : vector<1x128xf32>
      %45 = arith.mulf %31, %44 : vector<1x128xf32>
      %46 = arith.subf %25, %45 : vector<1x128xf32>
      %47 = vector.broadcast %44 : vector<1x128xf32> to vector<32x128xf32>
      %48 = arith.mulf %23, %47 : vector<32x128xf32>
      %49 = vector.broadcast %46 : vector<1x128xf32> to vector<32x128xf32>
      %50 = arith.addf %48, %49 : vector<32x128xf32>
      %c0_17 = arith.constant 0 : index
      %c0_18 = arith.constant 0 : index
      %51 = vector.load %arg4[%c0_17, %c0_18] : memref<128x128xf32, #tpu.memory_space<vmem>>, vector<128x128xf32>
      %cst_19 = arith.constant dense<0.000000e+00> : vector<32x128xf32>
      %52 = tpu.matmul %50, %51, %cst_19 {dimension_numbers = #tpu.dot_dimension_numbers<[1], [0], [0], [1], [0, 0, 1, 1], [], []>, precision = #tpu.contract_precision<fp32>} : vector<32x128xf32>, vector<128x128xf32>, vector<32x128xf32> -> vector<32x128xf32>
      %c3 = arith.constant 3 : index
      %c0_20 = arith.constant 0 : index
      %53 = vector.load %arg7[%c3, %c0_20] : memref<16x256xf32, #tpu.memory_space<vmem>>, vector<1x128xf32>
      %54 = vector.broadcast %53 : vector<1x128xf32> to vector<32x128xf32>
      %55 = arith.addf %52, %54 : vector<32x128xf32>
      %cst_21 = arith.constant 0.000000e+00 : f32
      %56 = vector.broadcast %cst_21 : f32 to vector<32x128xf32>
      %57 = arith.cmpf oge, %55, %56 : vector<32x128xf32>
      %cst_22 = arith.constant 0.00999999977 : f32
      %58 = vector.broadcast %cst_22 : f32 to vector<32x128xf32>
      %59 = arith.mulf %58, %55 : vector<32x128xf32>
      %60 = arith.select %57, %55, %59 : vector<32x128xi1>, vector<32x128xf32>
      %c4 = arith.constant 4 : index
      %c0_23 = arith.constant 0 : index
      %61 = vector.load %arg7[%c4, %c0_23] : memref<16x256xf32, #tpu.memory_space<vmem>>, vector<1x128xf32>
      %c5 = arith.constant 5 : index
      %c0_24 = arith.constant 0 : index
      %62 = vector.load %arg7[%c5, %c0_24] : memref<16x256xf32, #tpu.memory_space<vmem>>, vector<1x128xf32>
      %63 = vector.broadcast %22 : vector<32x1xf32> to vector<32x128xf32>
      %64 = arith.mulf %60, %63 : vector<32x128xf32>
      %cst_25 = arith.constant dense<0.000000e+00> : vector<128xf32>
      %65 = vector.multi_reduction <add>, %64, %cst_25 [0] : vector<32x128xf32> to vector<128xf32>
      %66 = vector.shape_cast %65 : vector<128xf32> to vector<1x128xf32>
      %cst_26 = arith.constant 0.0370370373 : f32
      %67 = vector.broadcast %cst_26 : f32 to vector<1x128xf32>
      %68 = arith.mulf %66, %67 : vector<1x128xf32>
      %69 = vector.broadcast %68 : vector<1x128xf32> to vector<32x128xf32>
      %70 = arith.subf %60, %69 : vector<32x128xf32>
      %71 = arith.mulf %70, %70 : vector<32x128xf32>
      %72 = vector.broadcast %22 : vector<32x1xf32> to vector<32x128xf32>
      %73 = arith.mulf %71, %72 : vector<32x128xf32>
      %cst_27 = arith.constant dense<0.000000e+00> : vector<128xf32>
      %74 = vector.multi_reduction <add>, %73, %cst_27 [0] : vector<32x128xf32> to vector<128xf32>
      %75 = vector.shape_cast %74 : vector<128xf32> to vector<1x128xf32>
      %cst_28 = arith.constant 0.0370370373 : f32
      %76 = vector.broadcast %cst_28 : f32 to vector<1x128xf32>
      %77 = arith.mulf %75, %76 : vector<1x128xf32>
      %cst_29 = arith.constant 9.99999974E-6 : f32
      %78 = vector.broadcast %cst_29 : f32 to vector<1x128xf32>
      %79 = arith.addf %77, %78 : vector<1x128xf32>
      %80 = math.rsqrt %79 : vector<1x128xf32>
      %81 = arith.mulf %80, %61 : vector<1x128xf32>
      %82 = arith.mulf %68, %81 : vector<1x128xf32>
      %83 = arith.subf %62, %82 : vector<1x128xf32>
      %84 = vector.broadcast %81 : vector<1x128xf32> to vector<32x128xf32>
      %85 = arith.mulf %60, %84 : vector<32x128xf32>
      %86 = vector.broadcast %83 : vector<1x128xf32> to vector<32x128xf32>
      %87 = arith.addf %85, %86 : vector<32x128xf32>
      %c0_30 = arith.constant 0 : index
      %c0_31 = arith.constant 0 : index
      %88 = vector.load %arg5[%c0_30, %c0_31] : memref<128x256xf32, #tpu.memory_space<vmem>>, vector<128x256xf32>
      %cst_32 = arith.constant dense<0.000000e+00> : vector<32x256xf32>
      %89 = tpu.matmul %87, %88, %cst_32 {dimension_numbers = #tpu.dot_dimension_numbers<[1], [0], [0], [1], [0, 0, 1, 1], [], []>, precision = #tpu.contract_precision<fp32>} : vector<32x128xf32>, vector<128x256xf32>, vector<32x256xf32> -> vector<32x256xf32>
      %c6 = arith.constant 6 : index
      %c0_33 = arith.constant 0 : index
      %90 = vector.load %arg7[%c6, %c0_33] : memref<16x256xf32, #tpu.memory_space<vmem>>, vector<1x256xf32>
      %91 = vector.broadcast %90 : vector<1x256xf32> to vector<32x256xf32>
      %92 = arith.addf %89, %91 : vector<32x256xf32>
      %cst_34 = arith.constant 0.000000e+00 : f32
      %93 = vector.broadcast %cst_34 : f32 to vector<32x256xf32>
      %94 = arith.cmpf oge, %92, %93 : vector<32x256xf32>
      %cst_35 = arith.constant 0.00999999977 : f32
      %95 = vector.broadcast %cst_35 : f32 to vector<32x256xf32>
      %96 = arith.mulf %95, %92 : vector<32x256xf32>
      %97 = arith.select %94, %92, %96 : vector<32x256xi1>, vector<32x256xf32>
      %c7 = arith.constant 7 : index
      %c0_36 = arith.constant 0 : index
      %98 = vector.load %arg7[%c7, %c0_36] : memref<16x256xf32, #tpu.memory_space<vmem>>, vector<1x256xf32>
      %c8 = arith.constant 8 : index
      %c0_37 = arith.constant 0 : index
      %99 = vector.load %arg7[%c8, %c0_37] : memref<16x256xf32, #tpu.memory_space<vmem>>, vector<1x256xf32>
      %100 = vector.broadcast %22 : vector<32x1xf32> to vector<32x256xf32>
      %101 = arith.mulf %97, %100 : vector<32x256xf32>
      %cst_38 = arith.constant dense<0.000000e+00> : vector<256xf32>
      %102 = vector.multi_reduction <add>, %101, %cst_38 [0] : vector<32x256xf32> to vector<256xf32>
      %103 = vector.shape_cast %102 : vector<256xf32> to vector<1x256xf32>
      %cst_39 = arith.constant 0.0370370373 : f32
      %104 = vector.broadcast %cst_39 : f32 to vector<1x256xf32>
      %105 = arith.mulf %103, %104 : vector<1x256xf32>
      %106 = vector.broadcast %105 : vector<1x256xf32> to vector<32x256xf32>
      %107 = arith.subf %97, %106 : vector<32x256xf32>
      %108 = arith.mulf %107, %107 : vector<32x256xf32>
      %109 = vector.broadcast %22 : vector<32x1xf32> to vector<32x256xf32>
      %110 = arith.mulf %108, %109 : vector<32x256xf32>
      %cst_40 = arith.constant dense<0.000000e+00> : vector<256xf32>
      %111 = vector.multi_reduction <add>, %110, %cst_40 [0] : vector<32x256xf32> to vector<256xf32>
      %112 = vector.shape_cast %111 : vector<256xf32> to vector<1x256xf32>
      %cst_41 = arith.constant 0.0370370373 : f32
      %113 = vector.broadcast %cst_41 : f32 to vector<1x256xf32>
      %114 = arith.mulf %112, %113 : vector<1x256xf32>
      %cst_42 = arith.constant 9.99999974E-6 : f32
      %115 = vector.broadcast %cst_42 : f32 to vector<1x256xf32>
      %116 = arith.addf %114, %115 : vector<1x256xf32>
      %117 = math.rsqrt %116 : vector<1x256xf32>
      %118 = arith.mulf %117, %98 : vector<1x256xf32>
      %119 = arith.mulf %105, %118 : vector<1x256xf32>
      %120 = arith.subf %99, %119 : vector<1x256xf32>
      %121 = vector.broadcast %118 : vector<1x256xf32> to vector<32x256xf32>
      %122 = arith.mulf %97, %121 : vector<32x256xf32>
      %123 = vector.broadcast %120 : vector<1x256xf32> to vector<32x256xf32>
      %124 = arith.addf %122, %123 : vector<32x256xf32>
      %c0_43 = arith.constant 0 : index
      %c0_44 = arith.constant 0 : index
      %125 = vector.load %arg6[%c0_43, %c0_44] : memref<256x128xf32, #tpu.memory_space<vmem>>, vector<256x128xf32>
      %cst_45 = arith.constant dense<0.000000e+00> : vector<32x128xf32>
      %126 = tpu.matmul %124, %125, %cst_45 {dimension_numbers = #tpu.dot_dimension_numbers<[1], [0], [0], [1], [0, 0, 1, 1], [], []>, precision = #tpu.contract_precision<fp32>} : vector<32x256xf32>, vector<256x128xf32>, vector<32x128xf32> -> vector<32x128xf32>
      %c9 = arith.constant 9 : index
      %c0_46 = arith.constant 0 : index
      %127 = vector.load %arg7[%c9, %c0_46] : memref<16x256xf32, #tpu.memory_space<vmem>>, vector<1x128xf32>
      %128 = vector.broadcast %127 : vector<1x128xf32> to vector<32x128xf32>
      %129 = arith.addf %126, %128 : vector<32x128xf32>
      %c0_47 = arith.constant 0 : index
      %c0_48 = arith.constant 0 : index
      %130 = vector.load %arg2[%c0_47, %c0_48] : memref<32x2xf32, #tpu.memory_space<vmem>>, vector<32x1xf32>
      %c12 = arith.constant 12 : index
      %c0_49 = arith.constant 0 : index
      %131 = vector.load %arg7[%c12, %c0_49] : memref<16x256xf32, #tpu.memory_space<vmem>>, vector<1x128xf32>
      %132 = vector.broadcast %130 : vector<32x1xf32> to vector<32x128xf32>
      %133 = vector.broadcast %131 : vector<1x128xf32> to vector<32x128xf32>
      %134 = arith.mulf %132, %133 : vector<32x128xf32>
      %c0_50 = arith.constant 0 : index
      %c1_51 = arith.constant 1 : index
      %135 = vector.load %arg2[%c0_50, %c1_51] : memref<32x2xf32, #tpu.memory_space<vmem>>, vector<32x1xf32>
      %c13 = arith.constant 13 : index
      %c0_52 = arith.constant 0 : index
      %136 = vector.load %arg7[%c13, %c0_52] : memref<16x256xf32, #tpu.memory_space<vmem>>, vector<1x128xf32>
      %137 = vector.broadcast %135 : vector<32x1xf32> to vector<32x128xf32>
      %138 = vector.broadcast %136 : vector<1x128xf32> to vector<32x128xf32>
      %139 = arith.mulf %137, %138 : vector<32x128xf32>
      %140 = arith.addf %134, %139 : vector<32x128xf32>
      %141 = arith.addf %129, %140 : vector<32x128xf32>
      %cst_53 = arith.constant 0.000000e+00 : f32
      %142 = vector.broadcast %cst_53 : f32 to vector<32x128xf32>
      %143 = arith.cmpf oge, %141, %142 : vector<32x128xf32>
      %cst_54 = arith.constant 0.00999999977 : f32
      %144 = vector.broadcast %cst_54 : f32 to vector<32x128xf32>
      %145 = arith.mulf %144, %141 : vector<32x128xf32>
      %146 = arith.select %143, %141, %145 : vector<32x128xi1>, vector<32x128xf32>
      %c10 = arith.constant 10 : index
      %c0_55 = arith.constant 0 : index
      %147 = vector.load %arg7[%c10, %c0_55] : memref<16x256xf32, #tpu.memory_space<vmem>>, vector<1x128xf32>
      %c11 = arith.constant 11 : index
      %c0_56 = arith.constant 0 : index
      %148 = vector.load %arg7[%c11, %c0_56] : memref<16x256xf32, #tpu.memory_space<vmem>>, vector<1x128xf32>
      %149 = vector.broadcast %22 : vector<32x1xf32> to vector<32x128xf32>
      %150 = arith.mulf %146, %149 : vector<32x128xf32>
      %cst_57 = arith.constant dense<0.000000e+00> : vector<128xf32>
      %151 = vector.multi_reduction <add>, %150, %cst_57 [0] : vector<32x128xf32> to vector<128xf32>
      %152 = vector.shape_cast %151 : vector<128xf32> to vector<1x128xf32>
      %cst_58 = arith.constant 0.0370370373 : f32
      %153 = vector.broadcast %cst_58 : f32 to vector<1x128xf32>
      %154 = arith.mulf %152, %153 : vector<1x128xf32>
      %155 = vector.broadcast %154 : vector<1x128xf32> to vector<32x128xf32>
      %156 = arith.subf %146, %155 : vector<32x128xf32>
      %157 = arith.mulf %156, %156 : vector<32x128xf32>
      %158 = vector.broadcast %22 : vector<32x1xf32> to vector<32x128xf32>
      %159 = arith.mulf %157, %158 : vector<32x128xf32>
      %cst_59 = arith.constant dense<0.000000e+00> : vector<128xf32>
      %160 = vector.multi_reduction <add>, %159, %cst_59 [0] : vector<32x128xf32> to vector<128xf32>
      %161 = vector.shape_cast %160 : vector<128xf32> to vector<1x128xf32>
      %cst_60 = arith.constant 0.0370370373 : f32
      %162 = vector.broadcast %cst_60 : f32 to vector<1x128xf32>
      %163 = arith.mulf %161, %162 : vector<1x128xf32>
      %cst_61 = arith.constant 9.99999974E-6 : f32
      %164 = vector.broadcast %cst_61 : f32 to vector<1x128xf32>
      %165 = arith.addf %163, %164 : vector<1x128xf32>
      %166 = math.rsqrt %165 : vector<1x128xf32>
      %167 = arith.mulf %166, %147 : vector<1x128xf32>
      %168 = arith.mulf %154, %167 : vector<1x128xf32>
      %169 = arith.subf %148, %168 : vector<1x128xf32>
      %170 = vector.broadcast %167 : vector<1x128xf32> to vector<32x128xf32>
      %171 = arith.mulf %146, %170 : vector<32x128xf32>
      %172 = vector.broadcast %169 : vector<1x128xf32> to vector<32x128xf32>
      %173 = arith.addf %171, %172 : vector<32x128xf32>
      %c0_62 = arith.constant 0 : index
      %c0_63 = arith.constant 0 : index
      %174 = vector.load %arg8[%c0_62, %c0_63] : memref<32x128xf32, #tpu.memory_space<vmem>>, vector<32x128xf32>
      tpu.vector_store %arg8[%c0_62, %c0_63], %173 {strides = array<i32>} : memref<32x128xf32, #tpu.memory_space<vmem>>, vector<32x128xf32>,
    } else {
    }
    return
  }
  func.func @transform_0(%arg0: i32) -> (i32, i32) {
    %c0_i32 = arith.constant 0 : i32
    %c0_i32_0 = arith.constant 0 : i32
    return %arg0, %c0_i32 : i32, i32
  }
  func.func @transform_1(%arg0: i32) -> (i32, i32) {
    %c0_i32 = arith.constant 0 : i32
    %c0_i32_0 = arith.constant 0 : i32
    %c0_i32_1 = arith.constant 0 : i32
    return %c0_i32, %c0_i32_0 : i32, i32
  }
  func.func @transform_2(%arg0: i32) -> (i32, i32) {
    %c0_i32 = arith.constant 0 : i32
    %c0_i32_0 = arith.constant 0 : i32
    %c0_i32_1 = arith.constant 0 : i32
    return %c0_i32, %c0_i32_0 : i32, i32
  }
  func.func @transform_3(%arg0: i32) -> (i32, i32) {
    %c0_i32 = arith.constant 0 : i32
    %c0_i32_0 = arith.constant 0 : i32
    %c0_i32_1 = arith.constant 0 : i32
    return %c0_i32, %c0_i32_0 : i32, i32
  }
  func.func @transform_4(%arg0: i32) -> (i32, i32) {
    %c0_i32 = arith.constant 0 : i32
    %c0_i32_0 = arith.constant 0 : i32
    %c0_i32_1 = arith.constant 0 : i32
    return %c0_i32, %c0_i32_0 : i32, i32
  }
  func.func @transform_5(%arg0: i32) -> (i32, i32) {
    %c0_i32 = arith.constant 0 : i32
    %c0_i32_0 = arith.constant 0 : i32
    %c0_i32_1 = arith.constant 0 : i32
    return %c0_i32, %c0_i32_0 : i32, i32
  }
  func.func @transform_6(%arg0: i32) -> (i32, i32) {
    %c0_i32 = arith.constant 0 : i32
    %c0_i32_0 = arith.constant 0 : i32
    %c0_i32_1 = arith.constant 0 : i32
    return %c0_i32, %c0_i32_0 : i32, i32
  }
  func.func @transform_7(%arg0: i32) -> (i32, i32) {
    %c0_i32 = arith.constant 0 : i32
    %c0_i32_0 = arith.constant 0 : i32
    %c0_i32_1 = arith.constant 0 : i32
    return %c0_i32, %c0_i32_0 : i32, i32
  }
}

</mosaic_0001>

<llo_original>
// kernel: tpu_custom_call.1
$region0: #{tpu_custom_call.1}
  #allocation0 [shape = 'u32[]', space=smem, size = 0x4, offset = 0x4, fixed_abs, tag = 'smem constant byte address 0x4 - core index']
  #allocation1 [shape = 'u32[144,128]{1,0:T(1,128)}', space=vmem, size = 0x12000, scoped, tag = 'internal scratch']
  #allocation2 [shape = 'f32[32,128]{1,0:T(8,128)}', space=vmem, size = 0x4000, scoped, tag = 'scratch operand']
  %s0 = inlined_call_operand.hbm [shape: f32[32,768], index: 0, kind: input, shape index: {}]
  %s1 = inlined_call_operand.vmem [shape: f32[32,2], index: 1, kind: input, shape index: {}]
  %s2 = inlined_call_operand.hbm [shape: f32[768,128], index: 2, kind: input, shape index: {}]
  %s3 = inlined_call_operand.hbm [shape: f32[128,128], index: 3, kind: input, shape index: {}]
  %s4 = inlined_call_operand.hbm [shape: f32[128,256], index: 4, kind: input, shape index: {}]
  %s5 = inlined_call_operand.hbm [shape: f32[256,128], index: 5, kind: input, shape index: {}]
  %s6 = inlined_call_operand.vmem [shape: f32[16,256], index: 6, kind: input, shape index: {}]
  %s7 = inlined_call_operand.hbm [shape: f32[32,128], index: 7, kind: output, shape index: {}]
  %s8 = sld [smem:[#allocation0]]
  $region85: #{tpu_custom_call.1} parent=0
    _
  %s10 = ssub.s32 1, %s8
  %s11 = scalar_select 0, %s10, %s8
  $region1: #{tpu_custom_call.1} parent=0
    #allocation3 [shape = 'u8[98304]{0}', space=vmem, size = 0x18000, scoped, tag = 'input window, operand 0']
    #allocation4 [shape = 's32[2]{0}', space=sflag, size = 0x8, scoped, tag = 'scoped memory for tpu_custom_call.1']
    #allocation5 [shape = 's32[2]{0}', space=sflag, size = 0x8, scoped, tag = 'scoped memory for tpu_custom_call.1']
    #allocation6 [shape = 'u8[393216]{0}', space=vmem, size = 0x60000, scoped, tag = 'input window, operand 2, single buffered']
    #allocation7 [shape = 's32[1]{0}', space=sflag, size = 0x4, scoped, tag = 'scoped memory for tpu_custom_call.1']
    #allocation8 [shape = 'u8[65536]{0}', space=vmem, size = 0x10000, scoped, tag = 'input window, operand 3, single buffered']
    #allocation9 [shape = 'u8[131072]{0}', space=vmem, size = 0x20000, scoped, tag = 'input window, operand 4, single buffered']
    #allocation10 [shape = 's32[1]{0}', space=sflag, size = 0x4, scoped, tag = 'scoped memory for tpu_custom_call.1']
    #allocation11 [shape = 'u8[131072]{0}', space=vmem, size = 0x20000, scoped, tag = 'input window, operand 5, single buffered']
    #allocation12 [shape = 'u8[16384]{0}', space=vmem, size = 0x4000, scoped, tag = 'output window, operand 0, single buffered']
    %12 = vsyncpa [#allocation4], 0
    %s13 = scalar_lea.sflag [#allocation4], 1
    %14 = vsyncpa %s13, 0
    %15 = vsyncpa [#allocation7], 0
    %16 = vsyncpa [#allocation10], 0
    %17 = vsyncpa [#allocation5], 0
    loop: start=0, step=1, limit=4
    $region2: #{tpu_custom_call.1} parent=1 // loop_pre_header
      _
    $region3: #{tpu_custom_call.1} parent=1 // loop_header
      %s19 = sphi 0, %s23
      %p20 = scmp.ge.s32.totalorder %s19, 4
      %s29 = sphi 0, %s31
      %s32 = sphi 0, %s29
      %s33 = sphi 0, %s32
      %s49 = sphi 0, %s33
      %s53 = sphi 0, %s53
      %s55 = sphi 0, %s53
      %s56 = sphi 0, %s55
      %s70 = sphi 0, %s56
      %s74 = sphi 0, %s74
      %s76 = sphi 0, %s74
      %s77 = sphi 0, %s76
      %s91 = sphi 0, %s77
      %s95 = sphi 0, %s95
      %s97 = sphi 0, %s95
      %s98 = sphi 0, %s97
      %s112 = sphi 0, %s98
      %s116 = sphi 0, %s116
      %s118 = sphi 0, %s116
      %s119 = sphi 0, %s118
      %s133 = sphi 0, %s119
      %s137 = sphi 0, %s137
      %s139 = sphi 0, %s137
      %s140 = sphi 0, %s139
      %s154 = sphi 0, %s140
      %s158 = sphi 0, %s158
      %s160 = sphi 0, %s158
      %s161 = sphi 0, %s160
      %s175 = sphi 0, %s161
      %s179 = sphi 0, %s179
      %s181 = sphi 0, %s179
      %s182 = sphi 0, %s181
      %s196 = sphi 0, %s182
    $region4: #{tpu_custom_call.1} parent=1 // loop_header_branch
      %22 = sbr.rel (%p20) target = $region8
    $region5: #{tpu_custom_call.1} parent=1 // loop_body
      %s24 = ssub.s32 %s19, 1
      %s25 = ssub.s32 %s19, 2
      %s26 = sadd.s32 %s19, 1
      %s27 = ssub.s32 %s19, %s26
      %p28 = scmp.eq.s32.totalorder %s27, 0
      %s30 = sadd.s32 %s29, 1
      %s31 = scalar_select %p28, %s29, %s30
      %p34 = pneg %p28
      %p35 = scmp.eq.s32.totalorder %s19, 1
      %p36 = por %p34, %p35
      %p37 = scmp.ne.s32.totalorder %s29, %s32
      %p38 = scmp.eq.s32.totalorder %s19, 0
      %p39 = por %p37, %p38
      %p40 = scmp.ne.s32.totalorder %s29, %s32
      %p41 = scmp.eq.s32.totalorder %s24, 1
      %p42 = por %p40, %p41
      %p43 = scmp.ne.s32.totalorder %s32, %s33
      %p44 = scmp.eq.s32.totalorder %s24, 0
      %p45 = por %p43, %p44
      %p46 = scmp.ne.s32.totalorder %s32, %s33
      %p47 = scmp.eq.s32.totalorder %s25, 1
      %p48 = por %p46, %p47
      %p50 = scmp.ne.s32.totalorder %s33, %s49
      %p51 = scmp.eq.s32.totalorder %s25, 0
      %p52 = por %p50, %p51
      %s54 = sadd.s32 %s53, 1
      %p57 = scmp.eq.s32.totalorder %s19, 1
      %p58 = scmp.ne.s32.totalorder %s53, %s55
      %p59 = scmp.eq.s32.totalorder %s19, 0
      %p60 = por %p58, %p59
      %p61 = scmp.ne.s32.totalorder %s53, %s55
      %p62 = scmp.eq.s32.totalorder %s24, 1
      %p63 = por %p61, %p62
      %p64 = scmp.ne.s32.totalorder %s55, %s56
      %p65 = scmp.eq.s32.totalorder %s24, 0
      %p66 = por %p64, %p65
      %p67 = scmp.ne.s32.totalorder %s55, %s56
      %p68 = scmp.eq.s32.totalorder %s25, 1
      %p69 = por %p67, %p68
      %p71 = scmp.ne.s32.totalorder %s56, %s70
      %p72 = scmp.eq.s32.totalorder %s25, 0
      %p73 = por %p71, %p72
      %s75 = sadd.s32 %s74, 1
      %p78 = scmp.eq.s32.totalorder %s19, 1
      %p79 = scmp.ne.s32.totalorder %s74, %s76
      %p80 = scmp.eq.s32.totalorder %s19, 0
      %p81 = por %p79, %p80
      %p82 = scmp.ne.s32.totalorder %s74, %s76
      %p83 = scmp.eq.s32.totalorder %s24, 1
      %p84 = por %p82, %p83
      %p85 = scmp.ne.s32.totalorder %s76, %s77
      %p86 = scmp.eq.s32.totalorder %s24, 0
      %p87 = por %p85, %p86
      %p88 = scmp.ne.s32.totalorder %s76, %s77
      %p89 = scmp.eq.s32.totalorder %s25, 1
      %p90 = por %p88, %p89
      %p92 = scmp.ne.s32.totalorder %s77, %s91
      %p93 = scmp.eq.s32.totalorder %s25, 0
      %p94 = por %p92, %p93
      %s96 = sadd.s32 %s95, 1
      %p99 = scmp.eq.s32.totalorder %s19, 1
      %p100 = scmp.ne.s32.totalorder %s95, %s97
      %p101 = scmp.eq.s32.totalorder %s19, 0
      %p102 = por %p100, %p101
      %p103 = scmp.ne.s32.totalorder %s95, %s97
      %p104 = scmp.eq.s32.totalorder %s24, 1
      %p105 = por %p103, %p104
      %p106 = scmp.ne.s32.totalorder %s97, %s98
      %p107 = scmp.eq.s32.totalorder %s24, 0
      %p108 = por %p106, %p107
      %p109 = scmp.ne.s32.totalorder %s97, %s98
      %p110 = scmp.eq.s32.totalorder %s25, 1
      %p111 = por %p109, %p110
      %p113 = scmp.ne.s32.totalorder %s98, %s112
      %p114 = scmp.eq.s32.totalorder %s25, 0
      %p115 = por %p113, %p114
      %s117 = sadd.s32 %s116, 1
      %p120 = scmp.eq.s32.totalorder %s19, 1
      %p121 = scmp.ne.s32.totalorder %s116, %s118
      %p122 = scmp.eq.s32.totalorder %s19, 0
      %p123 = por %p121, %p122
      %p124 = scmp.ne.s32.totalorder %s116, %s118
      %p125 = scmp.eq.s32.totalorder %s24, 1
      %p126 = por %p124, %p125
      %p127 = scmp.ne.s32.totalorder %s118, %s119
      %p128 = scmp.eq.s32.totalorder %s24, 0
      %p129 = por %p127, %p128
      %p130 = scmp.ne.s32.totalorder %s118, %s119
      %p131 = scmp.eq.s32.totalorder %s25, 1
      %p132 = por %p130, %p131
      %p134 = scmp.ne.s32.totalorder %s119, %s133
      %p135 = scmp.eq.s32.totalorder %s25, 0
      %p136 = por %p134, %p135
      %s138 = sadd.s32 %s137, 1
      %p141 = scmp.eq.s32.totalorder %s19, 1
      %p142 = scmp.ne.s32.totalorder %s137, %s139
      %p143 = scmp.eq.s32.totalorder %s19, 0
      %p144 = por %p142, %p143
      %p145 = scmp.ne.s32.totalorder %s137, %s139
      %p146 = scmp.eq.s32.totalorder %s24, 1
      %p147 = por %p145, %p146
      %p148 = scmp.ne.s32.totalorder %s139, %s140
      %p149 = scmp.eq.s32.totalorder %s24, 0
      %p150 = por %p148, %p149
      %p151 = scmp.ne.s32.totalorder %s139, %s140
      %p152 = scmp.eq.s32.totalorder %s25, 1
      %p153 = por %p151, %p152
      %p155 = scmp.ne.s32.totalorder %s140, %s154
      %p156 = scmp.eq.s32.totalorder %s25, 0
      %p157 = por %p155, %p156
      %s159 = sadd.s32 %s158, 1
      %p162 = scmp.eq.s32.totalorder %s19, 1
      %p163 = scmp.ne.s32.totalorder %s158, %s160
      %p164 = scmp.eq.s32.totalorder %s19, 0
      %p165 = por %p163, %p164
      %p166 = scmp.ne.s32.totalorder %s158, %s160
      %p167 = scmp.eq.s32.totalorder %s24, 1
      %p168 = por %p166, %p167
      %p169 = scmp.ne.s32.totalorder %s160, %s161
      %p170 = scmp.eq.s32.totalorder %s24, 0
      %p171 = por %p169, %p170
      %p172 = scmp.ne.s32.totalorder %s160, %s161
      %p173 = scmp.eq.s32.totalorder %s25, 1
      %p174 = por %p172, %p173
      %p176 = scmp.ne.s32.totalorder %s161, %s175
      %p177 = scmp.eq.s32.totalorder %s25, 0
      %p178 = por %p176, %p177
      %s180 = sadd.s32 %s179, 1
      %p183 = scmp.eq.s32.totalorder %s19, 1
      %p184 = scmp.ne.s32.totalorder %s179, %s181
      %p185 = scmp.eq.s32.totalorder %s19, 0
      %p186 = por %p184, %p185
      %p187 = scmp.ne.s32.totalorder %s179, %s181
      %p188 = scmp.eq.s32.totalorder %s24, 1
      %p189 = por %p187, %p188
      %p190 = scmp.ne.s32.totalorder %s181, %s182
      %p191 = scmp.eq.s32.totalorder %s24, 0
      %p192 = por %p190, %p191
      %p193 = scmp.ne.s32.totalorder %s181, %s182
      %p194 = scmp.eq.s32.totalorder %s25, 1
      %p195 = por %p193, %p194
      %p197 = scmp.ne.s32.totalorder %s182, %s196
      %p198 = scmp.eq.s32.totalorder %s25, 0
      %p199 = por %p197, %p198
      %p200 = scmp.le.s32.totalorder 1, %s19
      %p201 = scmp.lt.s32.totalorder %s19, 3
      %p202 = pnand %p200, %p201
      %p203 = pneg %p202
      // Predicated region
      $region9: #{tpu_custom_call.1} parent=5 // pred_check
        _
      $region10: #{tpu_custom_call.1} parent=5 // pred_check_branch
        %205 = sbr.rel (%p202) target = $region12
      $region11: #{tpu_custom_call.1} parent=5 // pred_region
        %s206 = ssub.s32 %s19, 1
        // Predicated region
        $region13: #{tpu_custom_call.1} parent=11 // pred_check
          %p207 = pneg %p66
        $region14: #{tpu_custom_call.1} parent=11 // pred_check_branch
          %209 = sbr.rel (%p207) target = $region16
        $region15: #{tpu_custom_call.1} parent=11 // pred_region
          _
        $region16: #{tpu_custom_call.1} parent=11 // pred_fallthru
          _
        // Predicated region
        $region17: #{tpu_custom_call.1} parent=11 // pred_check
          %p210 = pneg %p87
        $region18: #{tpu_custom_call.1} parent=11 // pred_check_branch
          %212 = sbr.rel (%p210) target = $region20
        $region19: #{tpu_custom_call.1} parent=11 // pred_region
          %s214 = ssub.s32 12288, 12288
          %215 = vsyncadd [#allocation7], %s214
          %s216 = sshll.u32 [#allocation6], 4
          %s217 = int_to_ptr.vmem [resolvable:$true] %s216
          %222 = dma.hbm_to_vmem [thread:$0]  %s2, 12288, %s217, [#allocation7], 128, 128, 8
        $region20: #{tpu_custom_call.1} parent=11 // pred_fallthru
          _
        // Predicated region
        $region21: #{tpu_custom_call.1} parent=11 // pred_check
          %p223 = pneg %p108
        $region22: #{tpu_custom_call.1} parent=11 // pred_check_branch
          %225 = sbr.rel (%p223) target = $region24
        $region23: #{tpu_custom_call.1} parent=11 // pred_region
          %s227 = ssub.s32 2048, 2048
          %228 = vsyncadd [#allocation7], %s227
          %s229 = sshll.u32 [#allocation8], 4
          %s230 = int_to_ptr.vmem [resolvable:$true] %s229
          %235 = dma.hbm_to_vmem [thread:$0]  %s3, 2048, %s230, [#allocation7], 128, 128, 8
        $region24: #{tpu_custom_call.1} parent=11 // pred_fallthru
          _
        // Predicated region
        $region25: #{tpu_custom_call.1} parent=11 // pred_check
          %p236 = pneg %p129
        $region26: #{tpu_custom_call.1} parent=11 // pred_check_branch
          %238 = sbr.rel (%p236) target = $region28
        $region27: #{tpu_custom_call.1} parent=11 // pred_region
          %s240 = ssub.s32 4096, 4096
          %241 = vsyncadd [#allocation10], %s240
          %s242 = sshll.u32 [#allocation9], 4
          %s243 = int_to_ptr.vmem [resolvable:$true] %s242
          %248 = dma.hbm_to_vmem [thread:$0]  %s4, 4096, %s243, [#allocation10], 256, 256, 16
        $region28: #{tpu_custom_call.1} parent=11 // pred_fallthru
          _
        // Predicated region
        $region29: #{tpu_custom_call.1} parent=11 // pred_check
          %p249 = pneg %p150
        $region30: #{tpu_custom_call.1} parent=11 // pred_check_branch
          %251 = sbr.rel (%p249) target = $region32
        $region31: #{tpu_custom_call.1} parent=11 // pred_region
          %s253 = ssub.s32 4096, 4096
          %254 = vsyncadd [#allocation10], %s253
          %s255 = sshll.u32 [#allocation11], 4
          %s256 = int_to_ptr.vmem [resolvable:$true] %s255
          %261 = dma.hbm_to_vmem [thread:$0]  %s5, 4096, %s256, [#allocation10], 128, 128, 8
        $region32: #{tpu_custom_call.1} parent=11 // pred_fallthru
          _
        // Predicated region
        $region33: #{tpu_custom_call.1} parent=11 // pred_check
          %p262 = pneg %p171
        $region34: #{tpu_custom_call.1} parent=11 // pred_check_branch
          %264 = sbr.rel (%p262) target = $region36
        $region35: #{tpu_custom_call.1} parent=11 // pred_region
          _
        $region36: #{tpu_custom_call.1} parent=11 // pred_fallthru
          _
      $region12: #{tpu_custom_call.1} parent=5 // pred_fallthru
        _
      %p265 = scmp.lt.s32.totalorder %s19, 2
      // Predicated region
      $region37: #{tpu_custom_call.1} parent=5 // pred_check
        %p266 = pneg %p265
      $region38: #{tpu_custom_call.1} parent=5 // pred_check_branch
        %268 = sbr.rel (%p266) target = $region40
      $region39: #{tpu_custom_call.1} parent=5 // pred_region
        // Predicated region
        $region41: #{tpu_custom_call.1} parent=39 // pred_check
          %p269 = pneg %p39
        $region42: #{tpu_custom_call.1} parent=39 // pred_check_branch
          %271 = sbr.rel (%p269) target = $region44
        $region43: #{tpu_custom_call.1} parent=39 // pred_region
          %s272 = sand.u32 %s29, 1
          %s273 = scalar_lea.sflag [#allocation4], %s272
          %s274 = sand.u32 %s29, 1
          %s275 = smul.addr %s274, 96
          %s276 = scalar_lea.vmem [#allocation3], %s275
          %s277 = smul.u32 2, %s19
          %s279 = ssub.s32 1536, 1536
          %280 = vsyncadd %s273, %s279
          %s281 = smul.addr %s277, 6
          %s282 = smul.addr %s281, 128
          %s283 = scalar_lea.hbm %s0, %s282
          %s284 = sshll.u32 %s276, 4
          %s285 = int_to_ptr.vmem [resolvable:$true] %s284
          %290 = dma.hbm_to_vmem [thread:$0]  %s283, 1536, %s285, %s273, 768, 768, 48
        $region44: #{tpu_custom_call.1} parent=39 // pred_fallthru
          _
      $region40: #{tpu_custom_call.1} parent=5 // pred_fallthru
        _
      %p291 = scmp.le.s32.totalorder 1, %s19
      %p292 = scmp.lt.s32.totalorder %s19, 3
      %p293 = pnand %p291, %p292
      %p294 = pneg %p293
      // Predicated region
      $region45: #{tpu_custom_call.1} parent=5 // pred_check
        _
      $region46: #{tpu_custom_call.1} parent=5 // pred_check_branch
        %296 = sbr.rel (%p293) target = $region48
      $region47: #{tpu_custom_call.1} parent=5 // pred_region
        %s297 = ssub.s32 %s19, 1
        %s298 = sand.u32 %s32, 1
        %s299 = scalar_lea.sflag [#allocation4], %s298
        %s300 = sand.u32 %s32, 1
        %s301 = smul.addr %s300, 96
        %s302 = scalar_lea.vmem [#allocation3], %s301
        // Predicated region
        $region49: #{tpu_custom_call.1} parent=47 // pred_check
          %p303 = pneg %p45
        $region50: #{tpu_custom_call.1} parent=47 // pred_check_branch
          %305 = sbr.rel (%p303) target = $region52
        $region51: #{tpu_custom_call.1} parent=47 // pred_region
          %306 = dma.done %s299, 1536
        $region52: #{tpu_custom_call.1} parent=47 // pred_fallthru
          _
        // Predicated region
        $region53: #{tpu_custom_call.1} parent=47 // pred_check
          %p307 = pneg %p87
        $region54: #{tpu_custom_call.1} parent=47 // pred_check_branch
          %309 = sbr.rel (%p307) target = $region56
        $region55: #{tpu_custom_call.1} parent=47 // pred_region
          %310 = dma.done [#allocation7], 12288
        $region56: #{tpu_custom_call.1} parent=47 // pred_fallthru
          _
        // Predicated region
        $region57: #{tpu_custom_call.1} parent=47 // pred_check
          %p311 = pneg %p108
        $region58: #{tpu_custom_call.1} parent=47 // pred_check_branch
          %313 = sbr.rel (%p311) target = $region60
        $region59: #{tpu_custom_call.1} parent=47 // pred_region
          %314 = dma.done [#allocation7], 2048
        $region60: #{tpu_custom_call.1} parent=47 // pred_fallthru
          _
        // Predicated region
        $region61: #{tpu_custom_call.1} parent=47 // pred_check
          %p315 = pneg %p129
        $region62: #{tpu_custom_call.1} parent=47 // pred_check_branch
          %317 = sbr.rel (%p315) target = $region64
        $region63: #{tpu_custom_call.1} parent=47 // pred_region
          %318 = dma.done [#allocation10], 4096
        $region64: #{tpu_custom_call.1} parent=47 // pred_fallthru
          _
        // Predicated region
        $region65: #{tpu_custom_call.1} parent=47 // pred_check
          %p319 = pneg %p150
        $region66: #{tpu_custom_call.1} parent=47 // pred_check_branch
          %321 = sbr.rel (%p319) target = $region68
        $region67: #{tpu_custom_call.1} parent=47 // pred_region
          %322 = dma.done [#allocation10], 4096
        $region68: #{tpu_custom_call.1} parent=47 // pred_fallthru
          _
        %s323 = sand.u32 %s32, 1
        %s324 = scalar_lea.sflag [#allocation4], %s323
        %s325 = sand.u32 %s32, 1
        %s326 = smul.addr %s325, 96
        %s327 = scalar_lea.vmem [#allocation3], %s326
        %p328 = pneg %p45
        %p329 = pneg %p42
        %p330 = pneg %p66
        %p331 = pneg %p63
        %p332 = pneg %p87
        %p333 = pneg %p84
        %p334 = pneg %p108
        %p335 = pneg %p105
        %p336 = pneg %p129
        %p337 = pneg %p126
        %p338 = pneg %p150
        %p339 = pneg %p147
        %p340 = pneg %p171
        %p341 = pneg %p168
        %p342 = pneg %p192
        %p343 = pneg %p189
        %s344 = smul.u32 2, %s24
        %v345 = vld [vmem:[%s302] sm:$0xff]
        %v346 = vld [vmem:[%s302 + $0x8] sm:$0xff]
        %v347 = vld [vmem:[%s302 + $0x10] sm:$0xff]
        %v348 = vld [vmem:[%s302 + $0x18] sm:$0xff]
        %v349 = vld [vmem:[%s302 + $0x20] sm:$0xff]
        %v350 = vld [vmem:[%s302 + $0x28] sm:$0xff]
        %v351 = vld [vmem:[%s302 + $0x30] sm:$0xff]
        %v352 = vld [vmem:[%s302 + $0x38] sm:$0xff]
        %v353 = vld [vmem:[%s302 + $0x40] sm:$0xff]
        %v354 = vld [vmem:[%s302 + $0x48] sm:$0xff]
        %v355 = vld [vmem:[%s302 + $0x50] sm:$0xff]
        %v356 = vld [vmem:[%s302 + $0x58] sm:$0xff]
        %v357 = vld [vmem:[#allocation6] sm:$0xff]
        %v358 = vld [vmem:[#allocation6 + $0x8] sm:$0xff]
        %v359 = vld [vmem:[#allocation6 + $0x10] sm:$0xff]
        %v360 = vld [vmem:[#allocation6 + $0x18] sm:$0xff]
        %v361 = vld [vmem:[#allocation6 + $0x20] sm:$0xff]
        %v362 = vld [vmem:[#allocation6 + $0x28] sm:$0xff]
        %v363 = vld [vmem:[#allocation6 + $0x30] sm:$0xff]
        %v364 = vld [vmem:[#allocation6 + $0x38] sm:$0xff]
        %v365 = vld [vmem:[#allocation6 + $0x40] sm:$0xff]
        %v366 = vld [vmem:[#allocation6 + $0x48] sm:$0xff]
        %v367 = vld [vmem:[#allocation6 + $0x50] sm:$0xff]
        %v368 = vld [vmem:[#allocation6 + $0x58] sm:$0xff]
        %v369 = vld [vmem:[#allocation6 + $0x60] sm:$0xff]
        %v370 = vld [vmem:[#allocation6 + $0x68] sm:$0xff]
        %v371 = vld [vmem:[#allocation6 + $0x70] sm:$0xff]
        %v372 = vld [vmem:[#allocation6 + $0x78] sm:$0xff]
        %v373 = vld [vmem:[#allocation6 + $0x80] sm:$0xff]
        %v374 = vld [vmem:[#allocation6 + $0x88] sm:$0xff]
        %v375 = vld [vmem:[#allocation6 + $0x90] sm:$0xff]
        %v376 = vld [vmem:[#allocation6 + $0x98] sm:$0xff]
        %v377 = vld [vmem:[#allocation6 + $0xa0] sm:$0xff]
        %v378 = vld [vmem:[#allocation6 + $0xa8] sm:$0xff]
        %v379 = vld [vmem:[#allocation6 + $0xb0] sm:$0xff]
        %v380 = vld [vmem:[#allocation6 + $0xb8] sm:$0xff]
        %v381 = vld [vmem:[#allocation6 + $0xc0] sm:$0xff]
        %v382 = vld [vmem:[#allocation6 + $0xc8] sm:$0xff]
        %v383 = vld [vmem:[#allocation6 + $0xd0] sm:$0xff]
        %v384 = vld [vmem:[#allocation6 + $0xd8] sm:$0xff]
        %v385 = vld [vmem:[#allocation6 + $0xe0] sm:$0xff]
        %v386 = vld [vmem:[#allocation6 + $0xe8] sm:$0xff]
        %v387 = vld [vmem:[#allocation6 + $0xf0] sm:$0xff]
        %v388 = vld [vmem:[#allocation6 + $0xf8] sm:$0xff]
        %v389 = vld [vmem:[#allocation6 + $0x100] sm:$0xff]
        %v390 = vld [vmem:[#allocation6 + $0x108] sm:$0xff]
        %v391 = vld [vmem:[#allocation6 + $0x110] sm:$0xff]
        %v392 = vld [vmem:[#allocation6 + $0x118] sm:$0xff]
        %v393 = vld [vmem:[#allocation6 + $0x120] sm:$0xff]
        %v394 = vld [vmem:[#allocation6 + $0x128] sm:$0xff]
        %v395 = vld [vmem:[#allocation6 + $0x130] sm:$0xff]
        %v396 = vld [vmem:[#allocation6 + $0x138] sm:$0xff]
        %v397 = vld [vmem:[#allocation6 + $0x140] sm:$0xff]
        %v398 = vld [vmem:[#allocation6 + $0x148] sm:$0xff]
        %v399 = vld [vmem:[#allocation6 + $0x150] sm:$0xff]
        %v400 = vld [vmem:[#allocation6 + $0x158] sm:$0xff]
        %v401 = vld [vmem:[#allocation6 + $0x160] sm:$0xff]
        %v402 = vld [vmem:[#allocation6 + $0x168] sm:$0xff]
        %v403 = vld [vmem:[#allocation6 + $0x170] sm:$0xff]
        %v404 = vld [vmem:[#allocation6 + $0x178] sm:$0xff]
        %v405 = vld [vmem:[#allocation6 + $0x180] sm:$0xff]
        %v406 = vld [vmem:[#allocation6 + $0x188] sm:$0xff]
        %v407 = vld [vmem:[#allocation6 + $0x190] sm:$0xff]
        %v408 = vld [vmem:[#allocation6 + $0x198] sm:$0xff]
        %v409 = vld [vmem:[#allocation6 + $0x1a0] sm:$0xff]
        %v410 = vld [vmem:[#allocation6 + $0x1a8] sm:$0xff]
        %v411 = vld [vmem:[#allocation6 + $0x1b0] sm:$0xff]
        %v412 = vld [vmem:[#allocation6 + $0x1b8] sm:$0xff]
        %v413 = vld [vmem:[#allocation6 + $0x1c0] sm:$0xff]
        %v414 = vld [vmem:[#allocation6 + $0x1c8] sm:$0xff]
        %v415 = vld [vmem:[#allocation6 + $0x1d0] sm:$0xff]
        %v416 = vld [vmem:[#allocation6 + $0x1d8] sm:$0xff]
        %v417 = vld [vmem:[#allocation6 + $0x1e0] sm:$0xff]
        %v418 = vld [vmem:[#allocation6 + $0x1e8] sm:$0xff]
        %v419 = vld [vmem:[#allocation6 + $0x1f0] sm:$0xff]
        %v420 = vld [vmem:[#allocation6 + $0x1f8] sm:$0xff]
        %v421 = vld [vmem:[#allocation6 + $0x200] sm:$0xff]
        %v422 = vld [vmem:[#allocation6 + $0x208] sm:$0xff]
        %v423 = vld [vmem:[#allocation6 + $0x210] sm:$0xff]
        %v424 = vld [vmem:[#allocation6 + $0x218] sm:$0xff]
        %v425 = vld [vmem:[#allocation6 + $0x220] sm:$0xff]
        %v426 = vld [vmem:[#allocation6 + $0x228] sm:$0xff]
        %v427 = vld [vmem:[#allocation6 + $0x230] sm:$0xff]
        %v428 = vld [vmem:[#allocation6 + $0x238] sm:$0xff]
        %v429 = vld [vmem:[#allocation6 + $0x240] sm:$0xff]
        %v430 = vld [vmem:[#allocation6 + $0x248] sm:$0xff]
        %v431 = vld [vmem:[#allocation6 + $0x250] sm:$0xff]
        %v432 = vld [vmem:[#allocation6 + $0x258] sm:$0xff]
        %v433 = vld [vmem:[#allocation6 + $0x260] sm:$0xff]
        %v434 = vld [vmem:[#allocation6 + $0x268] sm:$0xff]
        %v435 = vld [vmem:[#allocation6 + $0x270] sm:$0xff]
        %v436 = vld [vmem:[#allocation6 + $0x278] sm:$0xff]
        %v437 = vld [vmem:[#allocation6 + $0x280] sm:$0xff]
        %v438 = vld [vmem:[#allocation6 + $0x288] sm:$0xff]
        %v439 = vld [vmem:[#allocation6 + $0x290] sm:$0xff]
        %v440 = vld [vmem:[#allocation6 + $0x298] sm:$0xff]
        %v441 = vld [vmem:[#allocation6 + $0x2a0] sm:$0xff]
        %v442 = vld [vmem:[#allocation6 + $0x2a8] sm:$0xff]
        %v443 = vld [vmem:[#allocation6 + $0x2b0] sm:$0xff]
        %v444 = vld [vmem:[#allocation6 + $0x2b8] sm:$0xff]
        %v445 = vld [vmem:[#allocation6 + $0x2c0] sm:$0xff]
        %v446 = vld [vmem:[#allocation6 + $0x2c8] sm:$0xff]
        %v447 = vld [vmem:[#allocation6 + $0x2d0] sm:$0xff]
        %v448 = vld [vmem:[#allocation6 + $0x2d8] sm:$0xff]
        %v449 = vld [vmem:[#allocation6 + $0x2e0] sm:$0xff]
        %v450 = vld [vmem:[#allocation6 + $0x2e8] sm:$0xff]
        %v451 = vld [vmem:[#allocation6 + $0x2f0] sm:$0xff]
        %v452 = vld [vmem:[#allocation6 + $0x2f8] sm:$0xff]
        %v453 = vld [vmem:[%s6] ss:$0 sm:$0xff]
        %454 = vmatprep.subr.mxu0 0.0
        %v455 = vand.u32 %v357, 4294901760
        %456 = vmatpush1.msra.mxu0 %v455
        %457 = vmatprep.subr.mxu0 0.0
        %v458 = vand.u32 %v358, 4294901760
        %459 = vmatpush1.msra.mxu0 %v458
        %460 = vmatprep.subr.mxu0 0.0
        %v461 = vand.u32 %v359, 4294901760
        %462 = vmatpush1.msra.mxu0 %v461
        %463 = vmatprep.subr.mxu0 0.0
        %v464 = vand.u32 %v360, 4294901760
        %465 = vmatpush1.msra.mxu0 %v464
        %466 = vmatprep.subr.mxu0 0.0
        %v467 = vand.u32 %v361, 4294901760
        %468 = vmatpush1.msra.mxu0 %v467
        %469 = vmatprep.subr.mxu0 0.0
        %v470 = vand.u32 %v362, 4294901760
        %471 = vmatpush1.msra.mxu0 %v470
        %472 = vmatprep.subr.mxu0 0.0
        %v473 = vand.u32 %v363, 4294901760
        %474 = vmatpush1.msra.mxu0 %v473
        %475 = vmatprep.subr.mxu0 0.0
        %v476 = vand.u32 %v364, 4294901760
        %477 = vmatpush1.msra.mxu0 %v476
        %478 = vmatprep.subr.mxu0 0.0
        %v479 = vand.u32 %v365, 4294901760
        %480 = vmatpush1.msra.mxu0 %v479
        %481 = vmatprep.subr.mxu0 0.0
        %v482 = vand.u32 %v366, 4294901760
        %483 = vmatpush1.msra.mxu0 %v482
        %484 = vmatprep.subr.mxu0 0.0
        %v485 = vand.u32 %v367, 4294901760
        %486 = vmatpush1.msra.mxu0 %v485
        %487 = vmatprep.subr.mxu0 0.0
        %v488 = vand.u32 %v368, 4294901760
        %489 = vmatpush1.msra.mxu0 %v488
        %490 = vmatprep.subr.mxu0 0.0
        %v491 = vand.u32 %v369, 4294901760
        %492 = vmatpush1.msra.mxu0 %v491
        %493 = vmatprep.subr.mxu0 0.0
        %v494 = vand.u32 %v370, 4294901760
        %495 = vmatpush1.msra.mxu0 %v494
        %496 = vmatprep.subr.mxu0 0.0
        %v497 = vand.u32 %v371, 4294901760
        %498 = vmatpush1.msra.mxu0 %v497
        %499 = vmatprep.subr.mxu0 0.0
        %v500 = vand.u32 %v372, 4294901760
        %501 = vmatpush1.msra.mxu0 %v500
        %502 = vmatprep.subr.mxu0 0.0
        %v503 = vand.u32 %v373, 4294901760
        %504 = vmatpush1.msra.mxu0 %v503
        %505 = vmatprep.subr.mxu0 0.0
        %v506 = vand.u32 %v374, 4294901760
        %507 = vmatpush1.msra.mxu0 %v506
        %508 = vmatprep.subr.mxu0 0.0
        %v509 = vand.u32 %v375, 4294901760
        %510 = vmatpush1.msra.mxu0 %v509
        %511 = vmatprep.subr.mxu0 0.0
        %v512 = vand.u32 %v376, 4294901760
        %513 = vmatpush1.msra.mxu0 %v512
        %514 = vmatprep.subr.mxu0 0.0
        %v515 = vand.u32 %v377, 4294901760
        %516 = vmatpush1.msra.mxu0 %v515
        %517 = vmatprep.subr.mxu0 0.0
        %v518 = vand.u32 %v378, 4294901760
        %519 = vmatpush1.msra.mxu0 %v518
        %520 = vmatprep.subr.mxu0 0.0
        %v521 = vand.u32 %v379, 4294901760
        %522 = vmatpush1.msra.mxu0 %v521
        %523 = vmatprep.subr.mxu0 0.0
        %v524 = vand.u32 %v380, 4294901760
        %525 = vmatpush1.msra.mxu0 %v524
        %526 = vmatprep.subr.mxu0 0.0
        %v527 = vand.u32 %v381, 4294901760
        %528 = vmatpush1.msra.mxu0 %v527
        %529 = vmatprep.subr.mxu0 0.0
        %v530 = vand.u32 %v382, 4294901760
        %531 = vmatpush1.msra.mxu0 %v530
        %532 = vmatprep.subr.mxu0 0.0
        %v533 = vand.u32 %v383, 4294901760
        %534 = vmatpush1.msra.mxu0 %v533
        %535 = vmatprep.subr.mxu0 0.0
        %v536 = vand.u32 %v384, 4294901760
        %537 = vmatpush1.msra.mxu0 %v536
        %538 = vmatprep.subr.mxu0 0.0
        %v539 = vand.u32 %v385, 4294901760
        %540 = vmatpush1.msra.mxu0 %v539
        %541 = vmatprep.subr.mxu0 0.0
        %v542 = vand.u32 %v386, 4294901760
        %543 = vmatpush1.msra.mxu0 %v542
        %544 = vmatprep.subr.mxu0 0.0
        %v545 = vand.u32 %v387, 4294901760
        %546 = vmatpush1.msra.mxu0 %v545
        %547 = vmatprep.subr.mxu0 0.0
        %v548 = vand.u32 %v388, 4294901760
        %549 = vmatpush1.msra.mxu0 %v548
        %v550 = vand.u32 %v346, 4294901760
        %v551 = vsub.f32 %v346, %v550
        %v552 = vand.u32 %v551, 4294901760
        %v553 = vsub.f32 %v551, %v552
        %v554 = vand.u32 %v553, 4294901760
        %555 = vmatprep.mubr.f32.mxu0 %v554
        %v556 = vand.u32 %v345, 4294901760
        %v557 = vsub.f32 %v345, %v556
        %v558 = vand.u32 %v557, 4294901760
        %v559 = vsub.f32 %v557, %v558
        %v560 = vand.u32 %v559, 4294901760
        %561 = vmatmul.mubr.f32.gmra.mrb[0].mxu0 %v560
        %v562 = vpop.f32.mrb[0].mxu0
        %v563 = vadd.f32 %v453, %v562
        %v564 = vpop.f32.mrb[0].mxu0
        %v565 = vand.u32 %v352, 4294901760
        %v566 = vsub.f32 %v352, %v565
        %v567 = vand.u32 %v566, 4294901760
        %v568 = vsub.f32 %v566, %v567
        %v569 = vand.u32 %v568, 4294901760
        %570 = vmatprep.mubr.f32.mxu0 %v569
        %v571 = vand.u32 %v351, 4294901760
        %v572 = vsub.f32 %v351, %v571
        %v573 = vand.u32 %v572, 4294901760
        %v574 = vsub.f32 %v572, %v573
        %v575 = vand.u32 %v574, 4294901760
        %576 = vmatmul.mubr.f32.gmra.mrb[0].mxu0 %v575
        %v577 = vpop.f32.mrb[0].mxu0
        %v578 = vadd.f32 %v453, %v577
        %v579 = vpop.f32.mrb[0].mxu0
        %580 = vdwg.mxu0
        %581 = vmatprep.subr.mxu0 0.0
        %v582 = vand.u32 %v357, 4294901760
        %v583 = vsub.f32 %v357, %v582
        %v584 = vand.u32 %v583, 4294901760
        %v585 = vsub.f32 %v583, %v584
        %v586 = vand.u32 %v585, 4294901760
        %587 = vmatpush1.msra.mxu0 %v586
        %588 = vmatprep.subr.mxu0 0.0
        %v589 = vand.u32 %v358, 4294901760
        %v590 = vsub.f32 %v358, %v589
        %v591 = vand.u32 %v590, 4294901760
        %v592 = vsub.f32 %v590, %v591
        %v593 = vand.u32 %v592, 4294901760
        %594 = vmatpush1.msra.mxu0 %v593
        %595 = vmatprep.subr.mxu0 0.0
        %v596 = vand.u32 %v359, 4294901760
        %v597 = vsub.f32 %v359, %v596
        %v598 = vand.u32 %v597, 4294901760
        %v599 = vsub.f32 %v597, %v598
        %v600 = vand.u32 %v599, 4294901760
        %601 = vmatpush1.msra.mxu0 %v600
        %602 = vmatprep.subr.mxu0 0.0
        %v603 = vand.u32 %v360, 4294901760
        %v604 = vsub.f32 %v360, %v603
        %v605 = vand.u32 %v604, 4294901760
        %v606 = vsub.f32 %v604, %v605
        %v607 = vand.u32 %v606, 4294901760
        %608 = vmatpush1.msra.mxu0 %v607
        %609 = vmatprep.subr.mxu0 0.0
        %v610 = vand.u32 %v361, 4294901760
        %v611 = vsub.f32 %v361, %v610
        %v612 = vand.u32 %v611, 4294901760
        %v613 = vsub.f32 %v611, %v612
        %v614 = vand.u32 %v613, 4294901760
        %615 = vmatpush1.msra.mxu0 %v614
        %616 = vmatprep.subr.mxu0 0.0
        %v617 = vand.u32 %v362, 4294901760
        %v618 = vsub.f32 %v362, %v617
        %v619 = vand.u32 %v618, 4294901760
        %v620 = vsub.f32 %v618, %v619
        %v621 = vand.u32 %v620, 4294901760
        %622 = vmatpush1.msra.mxu0 %v621
        %623 = vmatprep.subr.mxu0 0.0
        %v624 = vand.u32 %v363, 4294901760
        %v625 = vsub.f32 %v363, %v624
        %v626 = vand.u32 %v625, 4294901760
        %v627 = vsub.f32 %v625, %v626
        %v628 = vand.u32 %v627, 4294901760
        %629 = vmatpush1.msra.mxu0 %v628
        %630 = vmatprep.subr.mxu0 0.0
        %v631 = vand.u32 %v364, 4294901760
        %v632 = vsub.f32 %v364, %v631
        %v633 = vand.u32 %v632, 4294901760
        %v634 = vsub.f32 %v632, %v633
        %v635 = vand.u32 %v634, 4294901760
        %636 = vmatpush1.msra.mxu0 %v635
        %637 = vmatprep.subr.mxu0 0.0
        %v638 = vand.u32 %v365, 4294901760
        %v639 = vsub.f32 %v365, %v638
        %v640 = vand.u32 %v639, 4294901760
        %v641 = vsub.f32 %v639, %v640
        %v642 = vand.u32 %v641, 4294901760
        %643 = vmatpush1.msra.mxu0 %v642
        %644 = vmatprep.subr.mxu0 0.0
        %v645 = vand.u32 %v366, 4294901760
        %v646 = vsub.f32 %v366, %v645
        %v647 = vand.u32 %v646, 4294901760
        %v648 = vsub.f32 %v646, %v647
        %v649 = vand.u32 %v648, 4294901760
        %650 = vmatpush1.msra.mxu0 %v649
        %651 = vmatprep.subr.mxu0 0.0
        %v652 = vand.u32 %v367, 4294901760
        %v653 = vsub.f32 %v367, %v652
        %v654 = vand.u32 %v653, 4294901760
        %v655 = vsub.f32 %v653, %v654
        %v656 = vand.u32 %v655, 4294901760
        %657 = vmatpush1.msra.mxu0 %v656
        %658 = vmatprep.subr.mxu0 0.0
        %v659 = vand.u32 %v368, 4294901760
        %v660 = vsub.f32 %v368, %v659
        %v661 = vand.u32 %v660, 4294901760
        %v662 = vsub.f32 %v660, %v661
        %v663 = vand.u32 %v662, 4294901760
        %664 = vmatpush1.msra.mxu0 %v663
        %665 = vmatprep.subr.mxu0 0.0
        %v666 = vand.u32 %v369, 4294901760
        %v667 = vsub.f32 %v369, %v666
        %v668 = vand.u32 %v667, 4294901760
        %v669 = vsub.f32 %v667, %v668
        %v670 = vand.u32 %v669, 4294901760
        %671 = vmatpush1.msra.mxu0 %v670
        %672 = vmatprep.subr.mxu0 0.0
        %v673 = vand.u32 %v370, 4294901760
        %v674 = vsub.f32 %v370, %v673
        %v675 = vand.u32 %v674, 4294901760
        %v676 = vsub.f32 %v674, %v675
        %v677 = vand.u32 %v676, 4294901760
        %678 = vmatpush1.msra.mxu0 %v677
        %679 = vmatprep.subr.mxu0 0.0
        %v680 = vand.u32 %v371, 4294901760
        %v681 = vsub.f32 %v371, %v680
        %v682 = vand.u32 %v681, 4294901760
        %v683 = vsub.f32 %v681, %v682
        %v684 = vand.u32 %v683, 4294901760
        %685 = vmatpush1.msra.mxu0 %v684
        %686 = vmatprep.subr.mxu0 0.0
        %v687 = vand.u32 %v372, 4294901760
        %v688 = vsub.f32 %v372, %v687
        %v689 = vand.u32 %v688, 4294901760
        %v690 = vsub.f32 %v688, %v689
        %v691 = vand.u32 %v690, 4294901760
        %692 = vmatpush1.msra.mxu0 %v691
        %693 = vmatprep.subr.mxu0 0.0
        %v694 = vand.u32 %v373, 4294901760
        %v695 = vsub.f32 %v373, %v694
        %v696 = vand.u32 %v695, 4294901760
        %v697 = vsub.f32 %v695, %v696
        %v698 = vand.u32 %v697, 4294901760
        %699 = vmatpush1.msra.mxu0 %v698
        %700 = vmatprep.subr.mxu0 0.0
        %v701 = vand.u32 %v374, 4294901760
        %v702 = vsub.f32 %v374, %v701
        %v703 = vand.u32 %v702, 4294901760
        %v704 = vsub.f32 %v702, %v703
        %v705 = vand.u32 %v704, 4294901760
        %706 = vmatpush1.msra.mxu0 %v705
        %707 = vmatprep.subr.mxu0 0.0
        %v708 = vand.u32 %v375, 4294901760
        %v709 = vsub.f32 %v375, %v708
        %v710 = vand.u32 %v709, 4294901760
        %v711 = vsub.f32 %v709, %v710
        %v712 = vand.u32 %v711, 4294901760
        %713 = vmatpush1.msra.mxu0 %v712
        %714 = vmatprep.subr.mxu0 0.0
        %v715 = vand.u32 %v376, 4294901760
        %v716 = vsub.f32 %v376, %v715
        %v717 = vand.u32 %v716, 4294901760
        %v718 = vsub.f32 %v716, %v717
        %v719 = vand.u32 %v718, 4294901760
        %720 = vmatpush1.msra.mxu0 %v719
        %721 = vmatprep.subr.mxu0 0.0
        %v722 = vand.u32 %v377, 4294901760
        %v723 = vsub.f32 %v377, %v722
        %v724 = vand.u32 %v723, 4294901760
        %v725 = vsub.f32 %v723, %v724
        %v726 = vand.u32 %v725, 4294901760
        %727 = vmatpush1.msra.mxu0 %v726
        %728 = vmatprep.subr.mxu0 0.0
        %v729 = vand.u32 %v378, 4294901760
        %v730 = vsub.f32 %v378, %v729
        %v731 = vand.u32 %v730, 4294901760
        %v732 = vsub.f32 %v730, %v731
        %v733 = vand.u32 %v732, 4294901760
        %734 = vmatpush1.msra.mxu0 %v733
        %735 = vmatprep.subr.mxu0 0.0
        %v736 = vand.u32 %v379, 4294901760
        %v737 = vsub.f32 %v379, %v736
        %v738 = vand.u32 %v737, 4294901760
        %v739 = vsub.f32 %v737, %v738
        %v740 = vand.u32 %v739, 4294901760
        %741 = vmatpush1.msra.mxu0 %v740
        %742 = vmatprep.subr.mxu0 0.0
        %v743 = vand.u32 %v380, 4294901760
        %v744 = vsub.f32 %v380, %v743
        %v745 = vand.u32 %v744, 4294901760
        %v746 = vsub.f32 %v744, %v745
        %v747 = vand.u32 %v746, 4294901760
        %748 = vmatpush1.msra.mxu0 %v747
        %749 = vmatprep.subr.mxu0 0.0
        %v750 = vand.u32 %v381, 4294901760
        %v751 = vsub.f32 %v381, %v750
        %v752 = vand.u32 %v751, 4294901760
        %v753 = vsub.f32 %v751, %v752
        %v754 = vand.u32 %v753, 4294901760
        %755 = vmatpush1.msra.mxu0 %v754
        %756 = vmatprep.subr.mxu0 0.0
        %v757 = vand.u32 %v382, 4294901760
        %v758 = vsub.f32 %v382, %v757
        %v759 = vand.u32 %v758, 4294901760
        %v760 = vsub.f32 %v758, %v759
        %v761 = vand.u32 %v760, 4294901760
        %762 = vmatpush1.msra.mxu0 %v761
        %763 = vmatprep.subr.mxu0 0.0
        %v764 = vand.u32 %v383, 4294901760
        %v765 = vsub.f32 %v383, %v764
        %v766 = vand.u32 %v765, 4294901760
        %v767 = vsub.f32 %v765, %v766
        %v768 = vand.u32 %v767, 4294901760
        %769 = vmatpush1.msra.mxu0 %v768
        %770 = vmatprep.subr.mxu0 0.0
        %v771 = vand.u32 %v384, 4294901760
        %v772 = vsub.f32 %v384, %v771
        %v773 = vand.u32 %v772, 4294901760
        %v774 = vsub.f32 %v772, %v773
        %v775 = vand.u32 %v774, 4294901760
        %776 = vmatpush1.msra.mxu0 %v775
        %777 = vmatprep.subr.mxu0 0.0
        %v778 = vand.u32 %v385, 4294901760
        %v779 = vsub.f32 %v385, %v778
        %v780 = vand.u32 %v779, 4294901760
        %v781 = vsub.f32 %v779, %v780
        %v782 = vand.u32 %v781, 4294901760
        %783 = vmatpush1.msra.mxu0 %v782
        %784 = vmatprep.subr.mxu0 0.0
        %v785 = vand.u32 %v386, 4294901760
        %v786 = vsub.f32 %v386, %v785
        %v787 = vand.u32 %v786, 4294901760
        %v788 = vsub.f32 %v786, %v787
        %v789 = vand.u32 %v788, 4294901760
        %790 = vmatpush1.msra.mxu0 %v789
        %791 = vmatprep.subr.mxu0 0.0
        %v792 = vand.u32 %v387, 4294901760
        %v793 = vsub.f32 %v387, %v792
        %v794 = vand.u32 %v793, 4294901760
        %v795 = vsub.f32 %v793, %v794
        %v796 = vand.u32 %v795, 4294901760
        %797 = vmatpush1.msra.mxu0 %v796
        %798 = vmatprep.subr.mxu0 0.0
        %v799 = vand.u32 %v388, 4294901760
        %v800 = vsub.f32 %v388, %v799
        %v801 = vand.u32 %v800, 4294901760
        %v802 = vsub.f32 %v800, %v801
        %v803 = vand.u32 %v802, 4294901760
        %804 = vmatpush1.msra.mxu0 %v803
        %v805 = vand.u32 %v346, 4294901760
        %806 = vmatprep.mubr.f32.mxu0 %v805
        %v807 = vand.u32 %v345, 4294901760
        %808 = vmatmul.mubr.f32.gmra.mrb[0].mxu0 %v807
        %v809 = vpop.f32.mrb[0].mxu0
        %v810 = vadd.f32 %v563, %v809
        %v811 = vpop.f32.mrb[0].mxu0
        %v812 = vand.u32 %v352, 4294901760
        %813 = vmatprep.mubr.f32.mxu0 %v812
        %v814 = vand.u32 %v351, 4294901760
        %815 = vmatmul.mubr.f32.gmra.mrb[0].mxu0 %v814
        %v816 = vpop.f32.mrb[0].mxu0
        %v817 = vadd.f32 %v578, %v816
        %v818 = vpop.f32.mrb[0].mxu0
        %819 = vdwg.mxu0
        %820 = vmatprep.subr.mxu0 0.0
        %v821 = vand.u32 %v357, 4294901760
        %v822 = vsub.f32 %v357, %v821
        %823 = vmatpush1.msra.mxu0 %v822
        %824 = vmatprep.subr.mxu0 0.0
        %v825 = vand.u32 %v358, 4294901760
        %v826 = vsub.f32 %v358, %v825
        %827 = vmatpush1.msra.mxu0 %v826
        %828 = vmatprep.subr.mxu0 0.0
        %v829 = vand.u32 %v359, 4294901760
        %v830 = vsub.f32 %v359, %v829
        %831 = vmatpush1.msra.mxu0 %v830
        %832 = vmatprep.subr.mxu0 0.0
        %v833 = vand.u32 %v360, 4294901760
        %v834 = vsub.f32 %v360, %v833
        %835 = vmatpush1.msra.mxu0 %v834
        %836 = vmatprep.subr.mxu0 0.0
        %v837 = vand.u32 %v361, 4294901760
        %v838 = vsub.f32 %v361, %v837
        %839 = vmatpush1.msra.mxu0 %v838
        %840 = vmatprep.subr.mxu0 0.0
        %v841 = vand.u32 %v362, 4294901760
        %v842 = vsub.f32 %v362, %v841
        %843 = vmatpush1.msra.mxu0 %v842
        %844 = vmatprep.subr.mxu0 0.0
        %v845 = vand.u32 %v363, 4294901760
        %v846 = vsub.f32 %v363, %v845
        %847 = vmatpush1.msra.mxu0 %v846
        %848 = vmatprep.subr.mxu0 0.0
        %v849 = vand.u32 %v364, 4294901760
        %v850 = vsub.f32 %v364, %v849
        %851 = vmatpush1.msra.mxu0 %v850
        %852 = vmatprep.subr.mxu0 0.0
        %v853 = vand.u32 %v365, 4294901760
        %v854 = vsub.f32 %v365, %v853
        %855 = vmatpush1.msra.mxu0 %v854
        %856 = vmatprep.subr.mxu0 0.0
        %v857 = vand.u32 %v366, 4294901760
        %v858 = vsub.f32 %v366, %v857
        %859 = vmatpush1.msra.mxu0 %v858
        %860 = vmatprep.subr.mxu0 0.0
        %v861 = vand.u32 %v367, 4294901760
        %v862 = vsub.f32 %v367, %v861
        %863 = vmatpush1.msra.mxu0 %v862
        %864 = vmatprep.subr.mxu0 0.0
        %v865 = vand.u32 %v368, 4294901760
        %v866 = vsub.f32 %v368, %v865
        %867 = vmatpush1.msra.mxu0 %v866
        %868 = vmatprep.subr.mxu0 0.0
        %v869 = vand.u32 %v369, 4294901760
        %v870 = vsub.f32 %v369, %v869
        %871 = vmatpush1.msra.mxu0 %v870
        %872 = vmatprep.subr.mxu0 0.0
        %v873 = vand.u32 %v370, 4294901760
        %v874 = vsub.f32 %v370, %v873
        %875 = vmatpush1.msra.mxu0 %v874
        %876 = vmatprep.subr.mxu0 0.0
        %v877 = vand.u32 %v371, 4294901760
        %v878 = vsub.f32 %v371, %v877
        %879 = vmatpush1.msra.mxu0 %v878
        %880 = vmatprep.subr.mxu0 0.0
        %v881 = vand.u32 %v372, 4294901760
        %v882 = vsub.f32 %v372, %v881
        %883 = vmatpush1.msra.mxu0 %v882
        %884 = vmatprep.subr.mxu0 0.0
        %v885 = vand.u32 %v373, 4294901760
        %v886 = vsub.f32 %v373, %v885
        %887 = vmatpush1.msra.mxu0 %v886
        %888 = vmatprep.subr.mxu0 0.0
        %v889 = vand.u32 %v374, 4294901760
        %v890 = vsub.f32 %v374, %v889
        %891 = vmatpush1.msra.mxu0 %v890
        %892 = vmatprep.subr.mxu0 0.0
        %v893 = vand.u32 %v375, 4294901760
        %v894 = vsub.f32 %v375, %v893
        %895 = vmatpush1.msra.mxu0 %v894
        %896 = vmatprep.subr.mxu0 0.0
        %v897 = vand.u32 %v376, 4294901760
        %v898 = vsub.f32 %v376, %v897
        %899 = vmatpush1.msra.mxu0 %v898
        %900 = vmatprep.subr.mxu0 0.0
        %v901 = vand.u32 %v377, 4294901760
        %v902 = vsub.f32 %v377, %v901
        %903 = vmatpush1.msra.mxu0 %v902
        %904 = vmatprep.subr.mxu0 0.0
        %v905 = vand.u32 %v378, 4294901760
        %v906 = vsub.f32 %v378, %v905
        %907 = vmatpush1.msra.mxu0 %v906
        %908 = vmatprep.subr.mxu0 0.0
        %v909 = vand.u32 %v379, 4294901760
        %v910 = vsub.f32 %v379, %v909
        %911 = vmatpush1.msra.mxu0 %v910
        %912 = vmatprep.subr.mxu0 0.0
        %v913 = vand.u32 %v380, 4294901760
        %v914 = vsub.f32 %v380, %v913
        %915 = vmatpush1.msra.mxu0 %v914
        %916 = vmatprep.subr.mxu0 0.0
        %v917 = vand.u32 %v381, 4294901760
        %v918 = vsub.f32 %v381, %v917
        %919 = vmatpush1.msra.mxu0 %v918
        %920 = vmatprep.subr.mxu0 0.0
        %v921 = vand.u32 %v382, 4294901760
        %v922 = vsub.f32 %v382, %v921
        %923 = vmatpush1.msra.mxu0 %v922
        %924 = vmatprep.subr.mxu0 0.0
        %v925 = vand.u32 %v383, 4294901760
        %v926 = vsub.f32 %v383, %v925
        %927 = vmatpush1.msra.mxu0 %v926
        %928 = vmatprep.subr.mxu0 0.0
        %v929 = vand.u32 %v384, 4294901760
        %v930 = vsub.f32 %v384, %v929
        %931 = vmatpush1.msra.mxu0 %v930
        %932 = vmatprep.subr.mxu0 0.0
        %v933 = vand.u32 %v385, 4294901760
        %v934 = vsub.f32 %v385, %v933
        %935 = vmatpush1.msra.mxu0 %v934
        %936 = vmatprep.subr.mxu0 0.0
        %v937 = vand.u32 %v386, 4294901760
        %v938 = vsub.f32 %v386, %v937
        %939 = vmatpush1.msra.mxu0 %v938
        %940 = vmatprep.subr.mxu0 0.0
        %v941 = vand.u32 %v387, 4294901760
        %v942 = vsub.f32 %v387, %v941
        %943 = vmatpush1.msra.mxu0 %v942
        %944 = vmatprep.subr.mxu0 0.0
        %v945 = vand.u32 %v388, 4294901760
        %v946 = vsub.f32 %v388, %v945
        %947 = vmatpush1.msra.mxu0 %v946
        %v948 = vand.u32 %v346, 4294901760
        %v949 = vsub.f32 %v346, %v948
        %950 = vmatprep.mubr.f32.mxu0 %v949
        %v951 = vand.u32 %v345, 4294901760
        %v952 = vsub.f32 %v345, %v951
        %953 = vmatmul.mubr.f32.gmra.mrb[0].mxu0 %v952
        %v954 = vpop.f32.mrb[0].mxu0
        %v955 = vadd.f32 %v810, %v954
        %v956 = vpop.f32.mrb[0].mxu0
        %v957 = vand.u32 %v352, 4294901760
        %v958 = vsub.f32 %v352, %v957
        %959 = vmatprep.mubr.f32.mxu0 %v958
        %v960 = vand.u32 %v351, 4294901760
        %v961 = vsub.f32 %v351, %v960
        %962 = vmatmul.mubr.f32.gmra.mrb[0].mxu0 %v961
        %v963 = vpop.f32.mrb[0].mxu0
        %v964 = vadd.f32 %v817, %v963
        %v965 = vpop.f32.mrb[0].mxu0
        %966 = vdwg.mxu0
        %967 = vmatprep.subr.mxu0 0.0
        %v968 = vand.u32 %v357, 4294901760
        %969 = vmatpush1.msra.mxu0 %v968
        %970 = vmatprep.subr.mxu0 0.0
        %v971 = vand.u32 %v358, 4294901760
        %972 = vmatpush1.msra.mxu0 %v971
        %973 = vmatprep.subr.mxu0 0.0
        %v974 = vand.u32 %v359, 4294901760
        %975 = vmatpush1.msra.mxu0 %v974
        %976 = vmatprep.subr.mxu0 0.0
        %v977 = vand.u32 %v360, 4294901760
        %978 = vmatpush1.msra.mxu0 %v977
        %979 = vmatprep.subr.mxu0 0.0
        %v980 = vand.u32 %v361, 4294901760
        %981 = vmatpush1.msra.mxu0 %v980
        %982 = vmatprep.subr.mxu0 0.0
        %v983 = vand.u32 %v362, 4294901760
        %984 = vmatpush1.msra.mxu0 %v983
        %985 = vmatprep.subr.mxu0 0.0
        %v986 = vand.u32 %v363, 4294901760
        %987 = vmatpush1.msra.mxu0 %v986
        %988 = vmatprep.subr.mxu0 0.0
        %v989 = vand.u32 %v364, 4294901760
        %990 = vmatpush1.msra.mxu0 %v989
        %991 = vmatprep.subr.mxu0 0.0
        %v992 = vand.u32 %v365, 4294901760
        %993 = vmatpush1.msra.mxu0 %v992
        %994 = vmatprep.subr.mxu0 0.0
        %v995 = vand.u32 %v366, 4294901760
        %996 = vmatpush1.msra.mxu0 %v995
        %997 = vmatprep.subr.mxu0 0.0
        %v998 = vand.u32 %v367, 4294901760
        %999 = vmatpush1.msra.mxu0 %v998
        %1000 = vmatprep.subr.mxu0 0.0
        %v1001 = vand.u32 %v368, 4294901760
        %1002 = vmatpush1.msra.mxu0 %v1001
        %1003 = vmatprep.subr.mxu0 0.0
        %v1004 = vand.u32 %v369, 4294901760
        %1005 = vmatpush1.msra.mxu0 %v1004
        %1006 = vmatprep.subr.mxu0 0.0
        %v1007 = vand.u32 %v370, 4294901760
        %1008 = vmatpush1.msra.mxu0 %v1007
        %1009 = vmatprep.subr.mxu0 0.0
        %v1010 = vand.u32 %v371, 4294901760
        %1011 = vmatpush1.msra.mxu0 %v1010
        %1012 = vmatprep.subr.mxu0 0.0
        %v1013 = vand.u32 %v372, 4294901760
        %1014 = vmatpush1.msra.mxu0 %v1013
        %1015 = vmatprep.subr.mxu0 0.0
        %v1016 = vand.u32 %v373, 4294901760
        %1017 = vmatpush1.msra.mxu0 %v1016
        %1018 = vmatprep.subr.mxu0 0.0
        %v1019 = vand.u32 %v374, 4294901760
        %1020 = vmatpush1.msra.mxu0 %v1019
        %1021 = vmatprep.subr.mxu0 0.0
        %v1022 = vand.u32 %v375, 4294901760
        %1023 = vmatpush1.msra.mxu0 %v1022
        %1024 = vmatprep.subr.mxu0 0.0
        %v1025 = vand.u32 %v376, 4294901760
        %1026 = vmatpush1.msra.mxu0 %v1025
        %1027 = vmatprep.subr.mxu0 0.0
        %v1028 = vand.u32 %v377, 4294901760
        %1029 = vmatpush1.msra.mxu0 %v1028
        %1030 = vmatprep.subr.mxu0 0.0
        %v1031 = vand.u32 %v378, 4294901760
        %1032 = vmatpush1.msra.mxu0 %v1031
        %1033 = vmatprep.subr.mxu0 0.0
        %v1034 = vand.u32 %v379, 4294901760
        %1035 = vmatpush1.msra.mxu0 %v1034
        %1036 = vmatprep.subr.mxu0 0.0
        %v1037 = vand.u32 %v380, 4294901760
        %1038 = vmatpush1.msra.mxu0 %v1037
        %1039 = vmatprep.subr.mxu0 0.0
        %v1040 = vand.u32 %v381, 4294901760
        %1041 = vmatpush1.msra.mxu0 %v1040
        %1042 = vmatprep.subr.mxu0 0.0
        %v1043 = vand.u32 %v382, 4294901760
        %1044 = vmatpush1.msra.mxu0 %v1043
        %1045 = vmatprep.subr.mxu0 0.0
        %v1046 = vand.u32 %v383, 4294901760
        %1047 = vmatpush1.msra.mxu0 %v1046
        %1048 = vmatprep.subr.mxu0 0.0
        %v1049 = vand.u32 %v384, 4294901760
        %1050 = vmatpush1.msra.mxu0 %v1049
        %1051 = vmatprep.subr.mxu0 0.0
        %v1052 = vand.u32 %v385, 4294901760
        %1053 = vmatpush1.msra.mxu0 %v1052
        %1054 = vmatprep.subr.mxu0 0.0
        %v1055 = vand.u32 %v386, 4294901760
        %1056 = vmatpush1.msra.mxu0 %v1055
        %1057 = vmatprep.subr.mxu0 0.0
        %v1058 = vand.u32 %v387, 4294901760
        %1059 = vmatpush1.msra.mxu0 %v1058
        %1060 = vmatprep.subr.mxu0 0.0
        %v1061 = vand.u32 %v388, 4294901760
        %1062 = vmatpush1.msra.mxu0 %v1061
        %v1063 = vand.u32 %v346, 4294901760
        %v1064 = vsub.f32 %v346, %v1063
        %v1065 = vand.u32 %v1064, 4294901760
        %1066 = vmatprep.mubr.f32.mxu0 %v1065
        %v1067 = vand.u32 %v345, 4294901760
        %v1068 = vsub.f32 %v345, %v1067
        %v1069 = vand.u32 %v1068, 4294901760
        %1070 = vmatmul.mubr.f32.gmra.mrb[0].mxu0 %v1069
        %v1071 = vpop.f32.mrb[0].mxu0
        %v1072 = vadd.f32 %v955, %v1071
        %v1073 = vpop.f32.mrb[0].mxu0
        %v1074 = vand.u32 %v352, 4294901760
        %v1075 = vsub.f32 %v352, %v1074
        %v1076 = vand.u32 %v1075, 4294901760
        %1077 = vmatprep.mubr.f32.mxu0 %v1076
        %v1078 = vand.u32 %v351, 4294901760
        %v1079 = vsub.f32 %v351, %v1078
        %v1080 = vand.u32 %v1079, 4294901760
        %1081 = vmatmul.mubr.f32.gmra.mrb[0].mxu0 %v1080
        %v1082 = vpop.f32.mrb[0].mxu0
        %v1083 = vadd.f32 %v964, %v1082
        %v1084 = vpop.f32.mrb[0].mxu0
        %1085 = vdwg.mxu0
        %1086 = vmatprep.subr.mxu0 0.0
        %v1087 = vand.u32 %v357, 4294901760
        %v1088 = vsub.f32 %v357, %v1087
        %v1089 = vand.u32 %v1088, 4294901760
        %1090 = vmatpush1.msra.mxu0 %v1089
        %1091 = vmatprep.subr.mxu0 0.0
        %v1092 = vand.u32 %v358, 4294901760
        %v1093 = vsub.f32 %v358, %v1092
        %v1094 = vand.u32 %v1093, 4294901760
        %1095 = vmatpush1.msra.mxu0 %v1094
        %1096 = vmatprep.subr.mxu0 0.0
        %v1097 = vand.u32 %v359, 4294901760
        %v1098 = vsub.f32 %v359, %v1097
        %v1099 = vand.u32 %v1098, 4294901760
        %1100 = vmatpush1.msra.mxu0 %v1099
        %1101 = vmatprep.subr.mxu0 0.0
        %v1102 = vand.u32 %v360, 4294901760
        %v1103 = vsub.f32 %v360, %v1102
        %v1104 = vand.u32 %v1103, 4294901760
        %1105 = vmatpush1.msra.mxu0 %v1104
        %1106 = vmatprep.subr.mxu0 0.0
        %v1107 = vand.u32 %v361, 4294901760
        %v1108 = vsub.f32 %v361, %v1107
        %v1109 = vand.u32 %v1108, 4294901760
        %1110 = vmatpush1.msra.mxu0 %v1109
        %1111 = vmatprep.subr.mxu0 0.0
        %v1112 = vand.u32 %v362, 4294901760
        %v1113 = vsub.f32 %v362, %v1112
        %v1114 = vand.u32 %v1113, 4294901760
        %1115 = vmatpush1.msra.mxu0 %v1114
        %1116 = vmatprep.subr.mxu0 0.0
        %v1117 = vand.u32 %v363, 4294901760
        %v1118 = vsub.f32 %v363, %v1117
        %v1119 = vand.u32 %v1118, 4294901760
        %1120 = vmatpush1.msra.mxu0 %v1119
        %1121 = vmatprep.subr.mxu0 0.0
        %v1122 = vand.u32 %v364, 4294901760
        %v1123 = vsub.f32 %v364, %v1122
        %v1124 = vand.u32 %v1123, 4294901760
        %1125 = vmatpush1.msra.mxu0 %v1124
        %1126 = vmatprep.subr.mxu0 0.0
        %v1127 = vand.u32 %v365, 4294901760
        %v1128 = vsub.f32 %v365, %v1127
        %v1129 = vand.u32 %v1128, 4294901760
        %1130 = vmatpush1.msra.mxu0 %v1129
        %1131 = vmatprep.subr.mxu0 0.0
        %v1132 = vand.u32 %v366, 4294901760
        %v1133 = vsub.f32 %v366, %v1132
        %v1134 = vand.u32 %v1133, 4294901760
        %1135 = vmatpush1.msra.mxu0 %v1134
        %1136 = vmatprep.subr.mxu0 0.0
        %v1137 = vand.u32 %v367, 4294901760
        %v1138 = vsub.f32 %v367, %v1137
        %v1139 = vand.u32 %v1138, 4294901760
        %1140 = vmatpush1.msra.mxu0 %v1139
        %1141 = vmatprep.subr.mxu0 0.0
        %v1142 = vand.u32 %v368, 4294901760
        %v1143 = vsub.f32 %v368, %v1142
        %v1144 = vand.u32 %v1143, 4294901760
        %1145 = vmatpush1.msra.mxu0 %v1144
        %1146 = vmatprep.subr.mxu0 0.0
        %v1147 = vand.u32 %v369, 4294901760
        %v1148 = vsub.f32 %v369, %v1147
        %v1149 = vand.u32 %v1148, 4294901760
        %1150 = vmatpush1.msra.mxu0 %v1149
        %1151 = vmatprep.subr.mxu0 0.0
        %v1152 = vand.u32 %v370, 4294901760
        %v1153 = vsub.f32 %v370, %v1152
        %v1154 = vand.u32 %v1153, 4294901760
        %1155 = vmatpush1.msra.mxu0 %v1154
        %1156 = vmatprep.subr.mxu0 0.0
        %v1157 = vand.u32 %v371, 4294901760
        %v1158 = vsub.f32 %v371, %v1157
        %v1159 = vand.u32 %v1158, 4294901760
        %1160 = vmatpush1.msra.mxu0 %v1159
        %1161 = vmatprep.subr.mxu0 0.0
        %v1162 = vand.u32 %v372, 4294901760
        %v1163 = vsub.f32 %v372, %v1162
        %v1164 = vand.u32 %v1163, 4294901760
        %1165 = vmatpush1.msra.mxu0 %v1164
        %1166 = vmatprep.subr.mxu0 0.0
        %v1167 = vand.u32 %v373, 4294901760
        %v1168 = vsub.f32 %v373, %v1167
        %v1169 = vand.u32 %v1168, 4294901760
        %1170 = vmatpush1.msra.mxu0 %v1169
        %1171 = vmatprep.subr.mxu0 0.0
        %v1172 = vand.u32 %v374, 4294901760
        %v1173 = vsub.f32 %v374, %v1172
        %v1174 = vand.u32 %v1173, 4294901760
        %1175 = vmatpush1.msra.mxu0 %v1174
        %1176 = vmatprep.subr.mxu0 0.0
        %v1177 = vand.u32 %v375, 4294901760
        %v1178 = vsub.f32 %v375, %v1177
        %v1179 = vand.u32 %v1178, 4294901760
        %1180 = vmatpush1.msra.mxu0 %v1179
        %1181 = vmatprep.subr.mxu0 0.0
        %v1182 = vand.u32 %v376, 4294901760
        %v1183 = vsub.f32 %v376, %v1182
        %v1184 = vand.u32 %v1183, 4294901760
        %1185 = vmatpush1.msra.mxu0 %v1184
        %1186 = vmatprep.subr.mxu0 0.0
        %v1187 = vand.u32 %v377, 4294901760
        %v1188 = vsub.f32 %v377, %v1187
        %v1189 = vand.u32 %v1188, 4294901760
        %1190 = vmatpush1.msra.mxu0 %v1189
        %1191 = vmatprep.subr.mxu0 0.0
        %v1192 = vand.u32 %v378, 4294901760
        %v1193 = vsub.f32 %v378, %v1192
        %v1194 = vand.u32 %v1193, 4294901760
        %1195 = vmatpush1.msra.mxu0 %v1194
        %1196 = vmatprep.subr.mxu0 0.0
        %v1197 = vand.u32 %v379, 4294901760
        %v1198 = vsub.f32 %v379, %v1197
        %v1199 = vand.u32 %v1198, 4294901760
        %1200 = vmatpush1.msra.mxu0 %v1199
        %1201 = vmatprep.subr.mxu0 0.0
        %v1202 = vand.u32 %v380, 4294901760
        %v1203 = vsub.f32 %v380, %v1202
        %v1204 = vand.u32 %v1203, 4294901760
        %1205 = vmatpush1.msra.mxu0 %v1204
        %1206 = vmatprep.subr.mxu0 0.0
        %v1207 = vand.u32 %v381, 4294901760
        %v1208 = vsub.f32 %v381, %v1207
        %v1209 = vand.u32 %v1208, 4294901760
        %1210 = vmatpush1.msra.mxu0 %v1209
        %1211 = vmatprep.subr.mxu0 0.0
        %v1212 = vand.u32 %v382, 4294901760
        %v1213 = vsub.f32 %v382, %v1212
        %v1214 = vand.u32 %v1213, 4294901760
        %1215 = vmatpush1.msra.mxu0 %v1214
        %1216 = vmatprep.subr.mxu0 0.0
        %v1217 = vand.u32 %v383, 4294901760
        %v1218 = vsub.f32 %v383, %v1217
        %v1219 = vand.u32 %v1218, 4294901760
        %1220 = vmatpush1.msra.mxu0 %v1219
        %1221 = vmatprep.subr.mxu0 0.0
        %v1222 = vand.u32 %v384, 4294901760
        %v1223 = vsub.f32 %v384, %v1222
        %v1224 = vand.u32 %v1223, 4294901760
        %1225 = vmatpush1.msra.mxu0 %v1224
        %1226 = vmatprep.subr.mxu0 0.0
        %v1227 = vand.u32 %v385, 4294901760
        %v1228 = vsub.f32 %v385, %v1227
        %v1229 = vand.u32 %v1228, 4294901760
        %1230 = vmatpush1.msra.mxu0 %v1229
        %1231 = vmatprep.subr.mxu0 0.0
        %v1232 = vand.u32 %v386, 4294901760
        %v1233 = vsub.f32 %v386, %v1232
        %v1234 = vand.u32 %v1233, 4294901760
        %1235 = vmatpush1.msra.mxu0 %v1234
        %1236 = vmatprep.subr.mxu0 0.0
        %v1237 = vand.u32 %v387, 4294901760
        %v1238 = vsub.f32 %v387, %v1237
        %v1239 = vand.u32 %v1238, 4294901760
        %1240 = vmatpush1.msra.mxu0 %v1239
        %1241 = vmatprep.subr.mxu0 0.0
        %v1242 = vand.u32 %v388, 4294901760
        %v1243 = vsub.f32 %v388, %v1242
        %v1244 = vand.u32 %v1243, 4294901760
        %1245 = vmatpush1.msra.mxu0 %v1244
        %v1246 = vand.u32 %v346, 4294901760
        %1247 = vmatprep.mubr.f32.mxu0 %v1246
        %v1248 = vand.u32 %v345, 4294901760
        %1249 = vmatmul.mubr.f32.gmra.mrb[0].mxu0 %v1248
        %v1250 = vpop.f32.mrb[0].mxu0
        %v1251 = vadd.f32 %v1072, %v1250
        %v1252 = vpop.f32.mrb[0].mxu0
        %v1253 = vand.u32 %v352, 4294901760
        %1254 = vmatprep.mubr.f32.mxu0 %v1253
        %v1255 = vand.u32 %v351, 4294901760
        %1256 = vmatmul.mubr.f32.gmra.mrb[0].mxu0 %v1255
        %v1257 = vpop.f32.mrb[0].mxu0
        %v1258 = vadd.f32 %v1083, %v1257
        %v1259 = vpop.f32.mrb[0].mxu0
        %1260 = vdwg.mxu0
        %1261 = vmatprep.subr.mxu0 0.0
        %v1262 = vand.u32 %v357, 4294901760
        %1263 = vmatpush1.msra.mxu0 %v1262
        %1264 = vmatprep.subr.mxu0 0.0
        %v1265 = vand.u32 %v358, 4294901760
        %1266 = vmatpush1.msra.mxu0 %v1265
        %1267 = vmatprep.subr.mxu0 0.0
        %v1268 = vand.u32 %v359, 4294901760
        %1269 = vmatpush1.msra.mxu0 %v1268
        %1270 = vmatprep.subr.mxu0 0.0
        %v1271 = vand.u32 %v360, 4294901760
        %1272 = vmatpush1.msra.mxu0 %v1271
        %1273 = vmatprep.subr.mxu0 0.0
        %v1274 = vand.u32 %v361, 4294901760
        %1275 = vmatpush1.msra.mxu0 %v1274
        %1276 = vmatprep.subr.mxu0 0.0
        %v1277 = vand.u32 %v362, 4294901760
        %1278 = vmatpush1.msra.mxu0 %v1277
        %1279 = vmatprep.subr.mxu0 0.0
        %v1280 = vand.u32 %v363, 4294901760
        %1281 = vmatpush1.msra.mxu0 %v1280
        %1282 = vmatprep.subr.mxu0 0.0
        %v1283 = vand.u32 %v364, 4294901760
        %1284 = vmatpush1.msra.mxu0 %v1283
        %1285 = vmatprep.subr.mxu0 0.0
        %v1286 = vand.u32 %v365, 4294901760
        %1287 = vmatpush1.msra.mxu0 %v1286
        %1288 = vmatprep.subr.mxu0 0.0
        %v1289 = vand.u32 %v366, 4294901760
        %1290 = vmatpush1.msra.mxu0 %v1289
        %1291 = vmatprep.subr.mxu0 0.0
        %v1292 = vand.u32 %v367, 4294901760
        %1293 = vmatpush1.msra.mxu0 %v1292
        %1294 = vmatprep.subr.mxu0 0.0
        %v1295 = vand.u32 %v368, 4294901760
        %1296 = vmatpush1.msra.mxu0 %v1295
        %1297 = vmatprep.subr.mxu0 0.0
        %v1298 = vand.u32 %v369, 4294901760
        %1299 = vmatpush1.msra.mxu0 %v1298
        %1300 = vmatprep.subr.mxu0 0.0
        %v1301 = vand.u32 %v370, 4294901760
        %1302 = vmatpush1.msra.mxu0 %v1301
        %1303 = vmatprep.subr.mxu0 0.0
        %v1304 = vand.u32 %v371, 4294901760
        %1305 = vmatpush1.msra.mxu0 %v1304
        %1306 = vmatprep.subr.mxu0 0.0
        %v1307 = vand.u32 %v372, 4294901760
        %1308 = vmatpush1.msra.mxu0 %v1307
        %1309 = vmatprep.subr.mxu0 0.0
        %v1310 = vand.u32 %v373, 4294901760
        %1311 = vmatpush1.msra.mxu0 %v1310
        %1312 = vmatprep.subr.mxu0 0.0
        %v1313 = vand.u32 %v374, 4294901760
        %1314 = vmatpush1.msra.mxu0 %v1313
        %1315 = vmatprep.subr.mxu0 0.0
        %v1316 = vand.u32 %v375, 4294901760
        %1317 = vmatpush1.msra.mxu0 %v1316
        %1318 = vmatprep.subr.mxu0 0.0
        %v1319 = vand.u32 %v376, 4294901760
        %1320 = vmatpush1.msra.mxu0 %v1319
        %1321 = vmatprep.subr.mxu0 0.0
        %v1322 = vand.u32 %v377, 4294901760
        %1323 = vmatpush1.msra.mxu0 %v1322
        %1324 = vmatprep.subr.mxu0 0.0
        %v1325 = vand.u32 %v378, 4294901760
        %1326 = vmatpush1.msra.mxu0 %v1325
        %1327 = vmatprep.subr.mxu0 0.0
        %v1328 = vand.u32 %v379, 4294901760
        %1329 = vmatpush1.msra.mxu0 %v1328
        %1330 = vmatprep.subr.mxu0 0.0
        %v1331 = vand.u32 %v380, 4294901760
        %1332 = vmatpush1.msra.mxu0 %v1331
        %1333 = vmatprep.subr.mxu0 0.0
        %v1334 = vand.u32 %v381, 4294901760
        %1335 = vmatpush1.msra.mxu0 %v1334
        %1336 = vmatprep.subr.mxu0 0.0
        %v1337 = vand.u32 %v382, 4294901760
        %1338 = vmatpush1.msra.mxu0 %v1337
        %1339 = vmatprep.subr.mxu0 0.0
        %v1340 = vand.u32 %v383, 4294901760
        %1341 = vmatpush1.msra.mxu0 %v1340
        %1342 = vmatprep.subr.mxu0 0.0
        %v1343 = vand.u32 %v384, 4294901760
        %1344 = vmatpush1.msra.mxu0 %v1343
        %1345 = vmatprep.subr.mxu0 0.0
        %v1346 = vand.u32 %v385, 4294901760
        %1347 = vmatpush1.msra.mxu0 %v1346
        %1348 = vmatprep.subr.mxu0 0.0
        %v1349 = vand.u32 %v386, 4294901760
        %1350 = vmatpush1.msra.mxu0 %v1349
        %1351 = vmatprep.subr.mxu0 0.0
        %v1352 = vand.u32 %v387, 4294901760
        %1353 = vmatpush1.msra.mxu0 %v1352
        %1354 = vmatprep.subr.mxu0 0.0
        %v1355 = vand.u32 %v388, 4294901760
        %1356 = vmatpush1.msra.mxu0 %v1355
        %v1357 = vand.u32 %v346, 4294901760
        %1358 = vmatprep.mubr.f32.mxu0 %v1357
        %v1359 = vand.u32 %v345, 4294901760
        %1360 = vmatmul.mubr.f32.gmra.mrb[0].mxu0 %v1359
        %v1361 = vpop.f32.mrb[0].mxu0
        %v1362 = vadd.f32 %v1251, %v1361
        %v1363 = vpop.f32.mrb[0].mxu0
        %v1364 = vand.u32 %v352, 4294901760
        %1365 = vmatprep.mubr.f32.mxu0 %v1364
        %v1366 = vand.u32 %v351, 4294901760
        %1367 = vmatmul.mubr.f32.gmra.mrb[0].mxu0 %v1366
        %v1368 = vpop.f32.mrb[0].mxu0
        %v1369 = vadd.f32 %v1258, %v1368
        %v1370 = vpop.f32.mrb[0].mxu0
        %1371 = vdwg.mxu0
        %1372 = vmatprep.subr.mxu0 0.0
        %v1373 = vand.u32 %v389, 4294901760
        %1374 = vmatpush1.msra.mxu0 %v1373
        %1375 = vmatprep.subr.mxu0 0.0
        %v1376 = vand.u32 %v390, 4294901760
        %1377 = vmatpush1.msra.mxu0 %v1376
        %1378 = vmatprep.subr.mxu0 0.0
        %v1379 = vand.u32 %v391, 4294901760
        %1380 = vmatpush1.msra.mxu0 %v1379
        %1381 = vmatprep.subr.mxu0 0.0
        %v1382 = vand.u32 %v392, 4294901760
        %1383 = vmatpush1.msra.mxu0 %v1382
        %1384 = vmatprep.subr.mxu0 0.0
        %v1385 = vand.u32 %v393, 4294901760
        %1386 = vmatpush1.msra.mxu0 %v1385
        %1387 = vmatprep.subr.mxu0 0.0
        %v1388 = vand.u32 %v394, 4294901760
        %1389 = vmatpush1.msra.mxu0 %v1388
        %1390 = vmatprep.subr.mxu0 0.0
        %v1391 = vand.u32 %v395, 4294901760
        %1392 = vmatpush1.msra.mxu0 %v1391
        %1393 = vmatprep.subr.mxu0 0.0
        %v1394 = vand.u32 %v396, 4294901760
        %1395 = vmatpush1.msra.mxu0 %v1394
        %1396 = vmatprep.subr.mxu0 0.0
        %v1397 = vand.u32 %v397, 4294901760
        %1398 = vmatpush1.msra.mxu0 %v1397
        %1399 = vmatprep.subr.mxu0 0.0
        %v1400 = vand.u32 %v398, 4294901760
        %1401 = vmatpush1.msra.mxu0 %v1400
        %1402 = vmatprep.subr.mxu0 0.0
        %v1403 = vand.u32 %v399, 4294901760
        %1404 = vmatpush1.msra.mxu0 %v1403
        %1405 = vmatprep.subr.mxu0 0.0
        %v1406 = vand.u32 %v400, 4294901760
        %1407 = vmatpush1.msra.mxu0 %v1406
        %1408 = vmatprep.subr.mxu0 0.0
        %v1409 = vand.u32 %v401, 4294901760
        %1410 = vmatpush1.msra.mxu0 %v1409
        %1411 = vmatprep.subr.mxu0 0.0
        %v1412 = vand.u32 %v402, 4294901760
        %1413 = vmatpush1.msra.mxu0 %v1412
        %1414 = vmatprep.subr.mxu0 0.0
        %v1415 = vand.u32 %v403, 4294901760
        %1416 = vmatpush1.msra.mxu0 %v1415
        %1417 = vmatprep.subr.mxu0 0.0
        %v1418 = vand.u32 %v404, 4294901760
        %1419 = vmatpush1.msra.mxu0 %v1418
        %1420 = vmatprep.subr.mxu0 0.0
        %v1421 = vand.u32 %v405, 4294901760
        %1422 = vmatpush1.msra.mxu0 %v1421
        %1423 = vmatprep.subr.mxu0 0.0
        %v1424 = vand.u32 %v406, 4294901760
        %1425 = vmatpush1.msra.mxu0 %v1424
        %1426 = vmatprep.subr.mxu0 0.0
        %v1427 = vand.u32 %v407, 4294901760
        %1428 = vmatpush1.msra.mxu0 %v1427
        %1429 = vmatprep.subr.mxu0 0.0
        %v1430 = vand.u32 %v408, 4294901760
        %1431 = vmatpush1.msra.mxu0 %v1430
        %1432 = vmatprep.subr.mxu0 0.0
        %v1433 = vand.u32 %v409, 4294901760
        %1434 = vmatpush1.msra.mxu0 %v1433
        %1435 = vmatprep.subr.mxu0 0.0
        %v1436 = vand.u32 %v410, 4294901760
        %1437 = vmatpush1.msra.mxu0 %v1436
        %1438 = vmatprep.subr.mxu0 0.0
        %v1439 = vand.u32 %v411, 4294901760
        %1440 = vmatpush1.msra.mxu0 %v1439
        %1441 = vmatprep.subr.mxu0 0.0
        %v1442 = vand.u32 %v412, 4294901760
        %1443 = vmatpush1.msra.mxu0 %v1442
        %1444 = vmatprep.subr.mxu0 0.0
        %v1445 = vand.u32 %v413, 4294901760
        %1446 = vmatpush1.msra.mxu0 %v1445
        %1447 = vmatprep.subr.mxu0 0.0
        %v1448 = vand.u32 %v414, 4294901760
        %1449 = vmatpush1.msra.mxu0 %v1448
        %1450 = vmatprep.subr.mxu0 0.0
        %v1451 = vand.u32 %v415, 4294901760
        %1452 = vmatpush1.msra.mxu0 %v1451
        %1453 = vmatprep.subr.mxu0 0.0
        %v1454 = vand.u32 %v416, 4294901760
        %1455 = vmatpush1.msra.mxu0 %v1454
        %1456 = vmatprep.subr.mxu0 0.0
        %v1457 = vand.u32 %v417, 4294901760
        %1458 = vmatpush1.msra.mxu0 %v1457
        %1459 = vmatprep.subr.mxu0 0.0
        %v1460 = vand.u32 %v418, 4294901760
        %1461 = vmatpush1.msra.mxu0 %v1460
        %1462 = vmatprep.subr.mxu0 0.0
        %v1463 = vand.u32 %v419, 4294901760
        %1464 = vmatpush1.msra.mxu0 %v1463
        %1465 = vmatprep.subr.mxu0 0.0
        %v1466 = vand.u32 %v420, 4294901760
        %1467 = vmatpush1.msra.mxu0 %v1466
        %v1468 = vand.u32 %v348, 4294901760
        %v1469 = vsub.f32 %v348, %v1468
        %v1470 = vand.u32 %v1469, 4294901760
        %v1471 = vsub.f32 %v1469, %v1470
        %v1472 = vand.u32 %v1471, 4294901760
        %1473 = vmatprep.mubr.f32.mxu0 %v1472
        %v1474 = vand.u32 %v347, 4294901760
        %v1475 = vsub.f32 %v347, %v1474
        %v1476 = vand.u32 %v1475, 4294901760
        %v1477 = vsub.f32 %v1475, %v1476
        %v1478 = vand.u32 %v1477, 4294901760
        %1479 = vmatmul.mubr.f32.gmra.mrb[0].mxu0 %v1478
        %v1480 = vpop.f32.mrb[0].mxu0
        %v1481 = vadd.f32 %v1362, %v1480
        %v1482 = vpop.f32.mrb[0].mxu0
        %v1483 = vand.u32 %v354, 4294901760
        %v1484 = vsub.f32 %v354, %v1483
        %v1485 = vand.u32 %v1484, 4294901760
        %v1486 = vsub.f32 %v1484, %v1485
        %v1487 = vand.u32 %v1486, 4294901760
        %1488 = vmatprep.mubr.f32.mxu0 %v1487
        %v1489 = vand.u32 %v353, 4294901760
        %v1490 = vsub.f32 %v353, %v1489
        %v1491 = vand.u32 %v1490, 4294901760
        %v1492 = vsub.f32 %v1490, %v1491
        %v1493 = vand.u32 %v1492, 4294901760
        %1494 = vmatmul.mubr.f32.gmra.mrb[0].mxu0 %v1493
        %v1495 = vpop.f32.mrb[0].mxu0
        %v1496 = vadd.f32 %v1369, %v1495
        %v1497 = vpop.f32.mrb[0].mxu0
        %1498 = vdwg.mxu0
        %1499 = vmatprep.subr.mxu0 0.0
        %v1500 = vand.u32 %v389, 4294901760
        %v1501 = vsub.f32 %v389, %v1500
        %v1502 = vand.u32 %v1501, 4294901760
        %v1503 = vsub.f32 %v1501, %v1502
        %v1504 = vand.u32 %v1503, 4294901760
        %1505 = vmatpush1.msra.mxu0 %v1504
        %1506 = vmatprep.subr.mxu0 0.0
        %v1507 = vand.u32 %v390, 4294901760
        %v1508 = vsub.f32 %v390, %v1507
        %v1509 = vand.u32 %v1508, 4294901760
        %v1510 = vsub.f32 %v1508, %v1509
        %v1511 = vand.u32 %v1510, 4294901760
        %1512 = vmatpush1.msra.mxu0 %v1511
        %1513 = vmatprep.subr.mxu0 0.0
        %v1514 = vand.u32 %v391, 4294901760
        %v1515 = vsub.f32 %v391, %v1514
        %v1516 = vand.u32 %v1515, 4294901760
        %v1517 = vsub.f32 %v1515, %v1516
        %v1518 = vand.u32 %v1517, 4294901760
        %1519 = vmatpush1.msra.mxu0 %v1518
        %1520 = vmatprep.subr.mxu0 0.0
        %v1521 = vand.u32 %v392, 4294901760
        %v1522 = vsub.f32 %v392, %v1521
        %v1523 = vand.u32 %v1522, 4294901760
        %v1524 = vsub.f32 %v1522, %v1523
        %v1525 = vand.u32 %v1524, 4294901760
        %1526 = vmatpush1.msra.mxu0 %v1525
        %1527 = vmatprep.subr.mxu0 0.0
        %v1528 = vand.u32 %v393, 4294901760
        %v1529 = vsub.f32 %v393, %v1528
        %v1530 = vand.u32 %v1529, 4294901760
        %v1531 = vsub.f32 %v1529, %v1530
        %v1532 = vand.u32 %v1531, 4294901760
        %1533 = vmatpush1.msra.mxu0 %v1532
        %1534 = vmatprep.subr.mxu0 0.0
        %v1535 = vand.u32 %v394, 4294901760
        %v1536 = vsub.f32 %v394, %v1535
        %v1537 = vand.u32 %v1536, 4294901760
        %v1538 = vsub.f32 %v1536, %v1537
        %v1539 = vand.u32 %v1538, 4294901760
        %1540 = vmatpush1.msra.mxu0 %v1539
        %1541 = vmatprep.subr.mxu0 0.0
        %v1542 = vand.u32 %v395, 4294901760
        %v1543 = vsub.f32 %v395, %v1542
        %v1544 = vand.u32 %v1543, 4294901760
        %v1545 = vsub.f32 %v1543, %v1544
        %v1546 = vand.u32 %v1545, 4294901760
        %1547 = vmatpush1.msra.mxu0 %v1546
        %1548 = vmatprep.subr.mxu0 0.0
        %v1549 = vand.u32 %v396, 4294901760
        %v1550 = vsub.f32 %v396, %v1549
        %v1551 = vand.u32 %v1550, 4294901760
        %v1552 = vsub.f32 %v1550, %v1551
        %v1553 = vand.u32 %v1552, 4294901760
        %1554 = vmatpush1.msra.mxu0 %v1553
        %1555 = vmatprep.subr.mxu0 0.0
        %v1556 = vand.u32 %v397, 4294901760
        %v1557 = vsub.f32 %v397, %v1556
        %v1558 = vand.u32 %v1557, 4294901760
        %v1559 = vsub.f32 %v1557, %v1558
        %v1560 = vand.u32 %v1559, 4294901760
        %1561 = vmatpush1.msra.mxu0 %v1560
        %1562 = vmatprep.subr.mxu0 0.0
        %v1563 = vand.u32 %v398, 4294901760
        %v1564 = vsub.f32 %v398, %v1563
        %v1565 = vand.u32 %v1564, 4294901760
        %v1566 = vsub.f32 %v1564, %v1565
        %v1567 = vand.u32 %v1566, 4294901760
        %1568 = vmatpush1.msra.mxu0 %v1567
        %1569 = vmatprep.subr.mxu0 0.0
        %v1570 = vand.u32 %v399, 4294901760
        %v1571 = vsub.f32 %v399, %v1570
        %v1572 = vand.u32 %v1571, 4294901760
        %v1573 = vsub.f32 %v1571, %v1572
        %v1574 = vand.u32 %v1573, 4294901760
        %1575 = vmatpush1.msra.mxu0 %v1574
        %1576 = vmatprep.subr.mxu0 0.0
        %v1577 = vand.u32 %v400, 4294901760
        %v1578 = vsub.f32 %v400, %v1577
        %v1579 = vand.u32 %v1578, 4294901760
        %v1580 = vsub.f32 %v1578, %v1579
        %v1581 = vand.u32 %v1580, 4294901760
        %1582 = vmatpush1.msra.mxu0 %v1581
        %1583 = vmatprep.subr.mxu0 0.0
        %v1584 = vand.u32 %v401, 4294901760
        %v1585 = vsub.f32 %v401, %v1584
        %v1586 = vand.u32 %v1585, 4294901760
        %v1587 = vsub.f32 %v1585, %v1586
        %v1588 = vand.u32 %v1587, 4294901760
        %1589 = vmatpush1.msra.mxu0 %v1588
        %1590 = vmatprep.subr.mxu0 0.0
        %v1591 = vand.u32 %v402, 4294901760
        %v1592 = vsub.f32 %v402, %v1591
        %v1593 = vand.u32 %v1592, 4294901760
        %v1594 = vsub.f32 %v1592, %v1593
        %v1595 = vand.u32 %v1594, 4294901760
        %1596 = vmatpush1.msra.mxu0 %v1595
        %1597 = vmatprep.subr.mxu0 0.0
        %v1598 = vand.u32 %v403, 4294901760
        %v1599 = vsub.f32 %v403, %v1598
        %v1600 = vand.u32 %v1599, 4294901760
        %v1601 = vsub.f32 %v1599, %v1600
        %v1602 = vand.u32 %v1601, 4294901760
        %1603 = vmatpush1.msra.mxu0 %v1602
        %1604 = vmatprep.subr.mxu0 0.0
        %v1605 = vand.u32 %v404, 4294901760
        %v1606 = vsub.f32 %v404, %v1605
        %v1607 = vand.u32 %v1606, 4294901760
        %v1608 = vsub.f32 %v1606, %v1607
        %v1609 = vand.u32 %v1608, 4294901760
        %1610 = vmatpush1.msra.mxu0 %v1609
        %1611 = vmatprep.subr.mxu0 0.0
        %v1612 = vand.u32 %v405, 4294901760
        %v1613 = vsub.f32 %v405, %v1612
        %v1614 = vand.u32 %v1613, 4294901760
        %v1615 = vsub.f32 %v1613, %v1614
        %v1616 = vand.u32 %v1615, 4294901760
        %1617 = vmatpush1.msra.mxu0 %v1616
        %1618 = vmatprep.subr.mxu0 0.0
        %v1619 = vand.u32 %v406, 4294901760
        %v1620 = vsub.f32 %v406, %v1619
        %v1621 = vand.u32 %v1620, 4294901760
        %v1622 = vsub.f32 %v1620, %v1621
        %v1623 = vand.u32 %v1622, 4294901760
        %1624 = vmatpush1.msra.mxu0 %v1623
        %1625 = vmatprep.subr.mxu0 0.0
        %v1626 = vand.u32 %v407, 4294901760
        %v1627 = vsub.f32 %v407, %v1626
        %v1628 = vand.u32 %v1627, 4294901760
        %v1629 = vsub.f32 %v1627, %v1628
        %v1630 = vand.u32 %v1629, 4294901760
        %1631 = vmatpush1.msra.mxu0 %v1630
        %1632 = vmatprep.subr.mxu0 0.0
        %v1633 = vand.u32 %v408, 4294901760
        %v1634 = vsub.f32 %v408, %v1633
        %v1635 = vand.u32 %v1634, 4294901760
        %v1636 = vsub.f32 %v1634, %v1635
        %v1637 = vand.u32 %v1636, 4294901760
        %1638 = vmatpush1.msra.mxu0 %v1637
        %1639 = vmatprep.subr.mxu0 0.0
        %v1640 = vand.u32 %v409, 4294901760
        %v1641 = vsub.f32 %v409, %v1640
        %v1642 = vand.u32 %v1641, 4294901760
        %v1643 = vsub.f32 %v1641, %v1642
        %v1644 = vand.u32 %v1643, 4294901760
        %1645 = vmatpush1.msra.mxu0 %v1644
        %1646 = vmatprep.subr.mxu0 0.0
        %v1647 = vand.u32 %v410, 4294901760
        %v1648 = vsub.f32 %v410, %v1647
        %v1649 = vand.u32 %v1648, 4294901760
        %v1650 = vsub.f32 %v1648, %v1649
        %v1651 = vand.u32 %v1650, 4294901760
        %1652 = vmatpush1.msra.mxu0 %v1651
        %1653 = vmatprep.subr.mxu0 0.0
        %v1654 = vand.u32 %v411, 4294901760
        %v1655 = vsub.f32 %v411, %v1654
        %v1656 = vand.u32 %v1655, 4294901760
        %v1657 = vsub.f32 %v1655, %v1656
        %v1658 = vand.u32 %v1657, 4294901760
        %1659 = vmatpush1.msra.mxu0 %v1658
        %1660 = vmatprep.subr.mxu0 0.0
        %v1661 = vand.u32 %v412, 4294901760
        %v1662 = vsub.f32 %v412, %v1661
        %v1663 = vand.u32 %v1662, 4294901760
        %v1664 = vsub.f32 %v1662, %v1663
        %v1665 = vand.u32 %v1664, 4294901760
        %1666 = vmatpush1.msra.mxu0 %v1665
        %1667 = vmatprep.subr.mxu0 0.0
        %v1668 = vand.u32 %v413, 4294901760
        %v1669 = vsub.f32 %v413, %v1668
        %v1670 = vand.u32 %v1669, 4294901760
        %v1671 = vsub.f32 %v1669, %v1670
        %v1672 = vand.u32 %v1671, 4294901760
        %1673 = vmatpush1.msra.mxu0 %v1672
        %1674 = vmatprep.subr.mxu0 0.0
        %v1675 = vand.u32 %v414, 4294901760
        %v1676 = vsub.f32 %v414, %v1675
        %v1677 = vand.u32 %v1676, 4294901760
        %v1678 = vsub.f32 %v1676, %v1677
        %v1679 = vand.u32 %v1678, 4294901760
        %1680 = vmatpush1.msra.mxu0 %v1679
        %1681 = vmatprep.subr.mxu0 0.0
        %v1682 = vand.u32 %v415, 4294901760
        %v1683 = vsub.f32 %v415, %v1682
        %v1684 = vand.u32 %v1683, 4294901760
        %v1685 = vsub.f32 %v1683, %v1684
        %v1686 = vand.u32 %v1685, 4294901760
        %1687 = vmatpush1.msra.mxu0 %v1686
        %1688 = vmatprep.subr.mxu0 0.0
        %v1689 = vand.u32 %v416, 4294901760
        %v1690 = vsub.f32 %v416, %v1689
        %v1691 = vand.u32 %v1690, 4294901760
        %v1692 = vsub.f32 %v1690, %v1691
        %v1693 = vand.u32 %v1692, 4294901760
        %1694 = vmatpush1.msra.mxu0 %v1693
        %1695 = vmatprep.subr.mxu0 0.0
        %v1696 = vand.u32 %v417, 4294901760
        %v1697 = vsub.f32 %v417, %v1696
        %v1698 = vand.u32 %v1697, 4294901760
        %v1699 = vsub.f32 %v1697, %v1698
        %v1700 = vand.u32 %v1699, 4294901760
        %1701 = vmatpush1.msra.mxu0 %v1700
        %1702 = vmatprep.subr.mxu0 0.0
        %v1703 = vand.u32 %v418, 4294901760
        %v1704 = vsub.f32 %v418, %v1703
        %v1705 = vand.u32 %v1704, 4294901760
        %v1706 = vsub.f32 %v1704, %v1705
        %v1707 = vand.u32 %v1706, 4294901760
        %1708 = vmatpush1.msra.mxu0 %v1707
        %1709 = vmatprep.subr.mxu0 0.0
        %v1710 = vand.u32 %v419, 4294901760
        %v1711 = vsub.f32 %v419, %v1710
        %v1712 = vand.u32 %v1711, 4294901760
        %v1713 = vsub.f32 %v1711, %v1712
        %v1714 = vand.u32 %v1713, 4294901760
        %1715 = vmatpush1.msra.mxu0 %v1714
        %1716 = vmatprep.subr.mxu0 0.0
        %v1717 = vand.u32 %v420, 4294901760
        %v1718 = vsub.f32 %v420, %v1717
        %v1719 = vand.u32 %v1718, 4294901760
        %v1720 = vsub.f32 %v1718, %v1719
        %v1721 = vand.u32 %v1720, 4294901760
        %1722 = vmatpush1.msra.mxu0 %v1721
        %v1723 = vand.u32 %v348, 4294901760
        %1724 = vmatprep.mubr.f32.mxu0 %v1723
        %v1725 = vand.u32 %v347, 4294901760
        %1726 = vmatmul.mubr.f32.gmra.mrb[0].mxu0 %v1725
        %v1727 = vpop.f32.mrb[0].mxu0
        %v1728 = vadd.f32 %v1481, %v1727
        %v1729 = vpop.f32.mrb[0].mxu0
        %v1730 = vand.u32 %v354, 4294901760
        %1731 = vmatprep.mubr.f32.mxu0 %v1730
        %v1732 = vand.u32 %v353, 4294901760
        %1733 = vmatmul.mubr.f32.gmra.mrb[0].mxu0 %v1732
        %v1734 = vpop.f32.mrb[0].mxu0
        %v1735 = vadd.f32 %v1496, %v1734
        %v1736 = vpop.f32.mrb[0].mxu0
        %1737 = vdwg.mxu0
        %1738 = vmatprep.subr.mxu0 0.0
        %v1739 = vand.u32 %v389, 4294901760
        %v1740 = vsub.f32 %v389, %v1739
        %1741 = vmatpush1.msra.mxu0 %v1740
        %1742 = vmatprep.subr.mxu0 0.0
        %v1743 = vand.u32 %v390, 4294901760
        %v1744 = vsub.f32 %v390, %v1743
        %1745 = vmatpush1.msra.mxu0 %v1744
        %1746 = vmatprep.subr.mxu0 0.0
        %v1747 = vand.u32 %v391, 4294901760
        %v1748 = vsub.f32 %v391, %v1747
        %1749 = vmatpush1.msra.mxu0 %v1748
        %1750 = vmatprep.subr.mxu0 0.0
        %v1751 = vand.u32 %v392, 4294901760
        %v1752 = vsub.f32 %v392, %v1751
        %1753 = vmatpush1.msra.mxu0 %v1752
        %1754 = vmatprep.subr.mxu0 0.0
        %v1755 = vand.u32 %v393, 4294901760
        %v1756 = vsub.f32 %v393, %v1755
        %1757 = vmatpush1.msra.mxu0 %v1756
        %1758 = vmatprep.subr.mxu0 0.0
        %v1759 = vand.u32 %v394, 4294901760
        %v1760 = vsub.f32 %v394, %v1759
        %1761 = vmatpush1.msra.mxu0 %v1760
        %1762 = vmatprep.subr.mxu0 0.0
        %v1763 = vand.u32 %v395, 4294901760
        %v1764 = vsub.f32 %v395, %v1763
        %1765 = vmatpush1.msra.mxu0 %v1764
        %1766 = vmatprep.subr.mxu0 0.0
        %v1767 = vand.u32 %v396, 4294901760
        %v1768 = vsub.f32 %v396, %v1767
        %1769 = vmatpush1.msra.mxu0 %v1768
        %1770 = vmatprep.subr.mxu0 0.0
        %v1771 = vand.u32 %v397, 4294901760
        %v1772 = vsub.f32 %v397, %v1771
        %1773 = vmatpush1.msra.mxu0 %v1772
        %1774 = vmatprep.subr.mxu0 0.0
        %v1775 = vand.u32 %v398, 4294901760
        %v1776 = vsub.f32 %v398, %v1775
        %1777 = vmatpush1.msra.mxu0 %v1776
        %1778 = vmatprep.subr.mxu0 0.0
        %v1779 = vand.u32 %v399, 4294901760
        %v1780 = vsub.f32 %v399, %v1779
        %1781 = vmatpush1.msra.mxu0 %v1780
        %1782 = vmatprep.subr.mxu0 0.0
        %v1783 = vand.u32 %v400, 4294901760
        %v1784 = vsub.f32 %v400, %v1783
        %1785 = vmatpush1.msra.mxu0 %v1784
        %1786 = vmatprep.subr.mxu0 0.0
        %v1787 = vand.u32 %v401, 4294901760
        %v1788 = vsub.f32 %v401, %v1787
        %1789 = vmatpush1.msra.mxu0 %v1788
        %1790 = vmatprep.subr.mxu0 0.0
        %v1791 = vand.u32 %v402, 4294901760
        %v1792 = vsub.f32 %v402, %v1791
        %1793 = vmatpush1.msra.mxu0 %v1792
        %1794 = vmatprep.subr.mxu0 0.0
        %v1795 = vand.u32 %v403, 4294901760
        %v1796 = vsub.f32 %v403, %v1795
        %1797 = vmatpush1.msra.mxu0 %v1796
        %1798 = vmatprep.subr.mxu0 0.0
        %v1799 = vand.u32 %v404, 4294901760
        %v1800 = vsub.f32 %v404, %v1799
        %1801 = vmatpush1.msra.mxu0 %v1800
        %1802 = vmatprep.subr.mxu0 0.0
        %v1803 = vand.u32 %v405, 4294901760
        %v1804 = vsub.f32 %v405, %v1803
        %1805 = vmatpush1.msra.mxu0 %v1804
        %1806 = vmatprep.subr.mxu0 0.0
        %v1807 = vand.u32 %v406, 4294901760
        %v1808 = vsub.f32 %v406, %v1807
        %1809 = vmatpush1.msra.mxu0 %v1808
        %1810 = vmatprep.subr.mxu0 0.0
        %v1811 = vand.u32 %v407, 4294901760
        %v1812 = vsub.f32 %v407, %v1811
        %1813 = vmatpush1.msra.mxu0 %v1812
        %1814 = vmatprep.subr.mxu0 0.0
        %v1815 = vand.u32 %v408, 4294901760
        %v1816 = vsub.f32 %v408, %v1815
        %1817 = vmatpush1.msra.mxu0 %v1816
        %1818 = vmatprep.subr.mxu0 0.0
        %v1819 = vand.u32 %v409, 4294901760
        %v1820 = vsub.f32 %v409, %v1819
        %1821 = vmatpush1.msra.mxu0 %v1820
        %1822 = vmatprep.subr.mxu0 0.0
        %v1823 = vand.u32 %v410, 4294901760
        %v1824 = vsub.f32 %v410, %v1823
        %1825 = vmatpush1.msra.mxu0 %v1824
        %1826 = vmatprep.subr.mxu0 0.0
        %v1827 = vand.u32 %v411, 4294901760
        %v1828 = vsub.f32 %v411, %v1827
        %1829 = vmatpush1.msra.mxu0 %v1828
        %1830 = vmatprep.subr.mxu0 0.0
        %v1831 = vand.u32 %v412, 4294901760
        %v1832 = vsub.f32 %v412, %v1831
        %1833 = vmatpush1.msra.mxu0 %v1832
        %1834 = vmatprep.subr.mxu0 0.0
        %v1835 = vand.u32 %v413, 4294901760
        %v1836 = vsub.f32 %v413, %v1835
        %1837 = vmatpush1.msra.mxu0 %v1836
        %1838 = vmatprep.subr.mxu0 0.0
        %v1839 = vand.u32 %v414, 4294901760
        %v1840 = vsub.f32 %v414, %v1839
        %1841 = vmatpush1.msra.mxu0 %v1840
        %1842 = vmatprep.subr.mxu0 0.0
        %v1843 = vand.u32 %v415, 4294901760
        %v1844 = vsub.f32 %v415, %v1843
        %1845 = vmatpush1.msra.mxu0 %v1844
        %1846 = vmatprep.subr.mxu0 0.0
        %v1847 = vand.u32 %v416, 4294901760
        %v1848 = vsub.f32 %v416, %v1847
        %1849 = vmatpush1.msra.mxu0 %v1848
        %1850 = vmatprep.subr.mxu0 0.0
        %v1851 = vand.u32 %v417, 4294901760
        %v1852 = vsub.f32 %v417, %v1851
        %1853 = vmatpush1.msra.mxu0 %v1852
        %1854 = vmatprep.subr.mxu0 0.0
        %v1855 = vand.u32 %v418, 4294901760
        %v1856 = vsub.f32 %v418, %v1855
        %1857 = vmatpush1.msra.mxu0 %v1856
        %1858 = vmatprep.subr.mxu0 0.0
        %v1859 = vand.u32 %v419, 4294901760
        %v1860 = vsub.f32 %v419, %v1859
        %1861 = vmatpush1.msra.mxu0 %v1860
        %1862 = vmatprep.subr.mxu0 0.0
        %v1863 = vand.u32 %v420, 4294901760
        %v1864 = vsub.f32 %v420, %v1863
        %1865 = vmatpush1.msra.mxu0 %v1864
        %v1866 = vand.u32 %v348, 4294901760
        %v1867 = vsub.f32 %v348, %v1866
        %1868 = vmatprep.mubr.f32.mxu0 %v1867
        %v1869 = vand.u32 %v347, 4294901760
        %v1870 = vsub.f32 %v347, %v1869
        %1871 = vmatmul.mubr.f32.gmra.mrb[0].mxu0 %v1870
        %v1872 = vpop.f32.mrb[0].mxu0
        %v1873 = vadd.f32 %v1728, %v1872
        %v1874 = vpop.f32.mrb[0].mxu0
        %v1875 = vand.u32 %v354, 4294901760
        %v1876 = vsub.f32 %v354, %v1875
        %1877 = vmatprep.mubr.f32.mxu0 %v1876
        %v1878 = vand.u32 %v353, 4294901760
        %v1879 = vsub.f32 %v353, %v1878
        %1880 = vmatmul.mubr.f32.gmra.mrb[0].mxu0 %v1879
        %v1881 = vpop.f32.mrb[0].mxu0
        %v1882 = vadd.f32 %v1735, %v1881
        %v1883 = vpop.f32.mrb[0].mxu0
        %1884 = vdwg.mxu0
        %1885 = vmatprep.subr.mxu0 0.0
        %v1886 = vand.u32 %v389, 4294901760
        %1887 = vmatpush1.msra.mxu0 %v1886
        %1888 = vmatprep.subr.mxu0 0.0
        %v1889 = vand.u32 %v390, 4294901760
        %1890 = vmatpush1.msra.mxu0 %v1889
        %1891 = vmatprep.subr.mxu0 0.0
        %v1892 = vand.u32 %v391, 4294901760
        %1893 = vmatpush1.msra.mxu0 %v1892
        %1894 = vmatprep.subr.mxu0 0.0
        %v1895 = vand.u32 %v392, 4294901760
        %1896 = vmatpush1.msra.mxu0 %v1895
        %1897 = vmatprep.subr.mxu0 0.0
        %v1898 = vand.u32 %v393, 4294901760
        %1899 = vmatpush1.msra.mxu0 %v1898
        %1900 = vmatprep.subr.mxu0 0.0
        %v1901 = vand.u32 %v394, 4294901760
        %1902 = vmatpush1.msra.mxu0 %v1901
        %1903 = vmatprep.subr.mxu0 0.0
        %v1904 = vand.u32 %v395, 4294901760
        %1905 = vmatpush1.msra.mxu0 %v1904
        %1906 = vmatprep.subr.mxu0 0.0
        %v1907 = vand.u32 %v396, 4294901760
        %1908 = vmatpush1.msra.mxu0 %v1907
        %1909 = vmatprep.subr.mxu0 0.0
        %v1910 = vand.u32 %v397, 4294901760
        %1911 = vmatpush1.msra.mxu0 %v1910
        %1912 = vmatprep.subr.mxu0 0.0
        %v1913 = vand.u32 %v398, 4294901760
        %1914 = vmatpush1.msra.mxu0 %v1913
        %1915 = vmatprep.subr.mxu0 0.0
        %v1916 = vand.u32 %v399, 4294901760
        %1917 = vmatpush1.msra.mxu0 %v1916
        %1918 = vmatprep.subr.mxu0 0.0
        %v1919 = vand.u32 %v400, 4294901760
        %1920 = vmatpush1.msra.mxu0 %v1919
        %1921 = vmatprep.subr.mxu0 0.0
        %v1922 = vand.u32 %v401, 4294901760
        %1923 = vmatpush1.msra.mxu0 %v1922
        %1924 = vmatprep.subr.mxu0 0.0
        %v1925 = vand.u32 %v402, 4294901760
        %1926 = vmatpush1.msra.mxu0 %v1925
        %1927 = vmatprep.subr.mxu0 0.0
        %v1928 = vand.u32 %v403, 4294901760
        %1929 = vmatpush1.msra.mxu0 %v1928
        %1930 = vmatprep.subr.mxu0 0.0
        %v1931 = vand.u32 %v404, 4294901760
        %1932 = vmatpush1.msra.mxu0 %v1931
        %1933 = vmatprep.subr.mxu0 0.0
        %v1934 = vand.u32 %v405, 4294901760
        %1935 = vmatpush1.msra.mxu0 %v1934
        %1936 = vmatprep.subr.mxu0 0.0
        %v1937 = vand.u32 %v406, 4294901760
        %1938 = vmatpush1.msra.mxu0 %v1937
        %1939 = vmatprep.subr.mxu0 0.0
        %v1940 = vand.u32 %v407, 4294901760
        %1941 = vmatpush1.msra.mxu0 %v1940
        %1942 = vmatprep.subr.mxu0 0.0
        %v1943 = vand.u32 %v408, 4294901760
        %1944 = vmatpush1.msra.mxu0 %v1943
        %1945 = vmatprep.subr.mxu0 0.0
        %v1946 = vand.u32 %v409, 4294901760
        %1947 = vmatpush1.msra.mxu0 %v1946
        %1948 = vmatprep.subr.mxu0 0.0
        %v1949 = vand.u32 %v410, 4294901760
        %1950 = vmatpush1.msra.mxu0 %v1949
        %1951 = vmatprep.subr.mxu0 0.0
        %v1952 = vand.u32 %v411, 4294901760
        %1953 = vmatpush1.msra.mxu0 %v1952
        %1954 = vmatprep.subr.mxu0 0.0
        %v1955 = vand.u32 %v412, 4294901760
        %1956 = vmatpush1.msra.mxu0 %v1955
        %1957 = vmatprep.subr.mxu0 0.0
        %v1958 = vand.u32 %v413, 4294901760
        %1959 = vmatpush1.msra.mxu0 %v1958
        %1960 = vmatprep.subr.mxu0 0.0
        %v1961 = vand.u32 %v414, 4294901760
        %1962 = vmatpush1.msra.mxu0 %v1961
        %1963 = vmatprep.subr.mxu0 0.0
        %v1964 = vand.u32 %v415, 4294901760
        %1965 = vmatpush1.msra.mxu0 %v1964
        %1966 = vmatprep.subr.mxu0 0.0
        %v1967 = vand.u32 %v416, 4294901760
        %1968 = vmatpush1.msra.mxu0 %v1967
        %1969 = vmatprep.subr.mxu0 0.0
        %v1970 = vand.u32 %v417, 4294901760
        %1971 = vmatpush1.msra.mxu0 %v1970
        %1972 = vmatprep.subr.mxu0 0.0
        %v1973 = vand.u32 %v418, 4294901760
        %1974 = vmatpush1.msra.mxu0 %v1973
        %1975 = vmatprep.subr.mxu0 0.0
        %v1976 = vand.u32 %v419, 4294901760
        %1977 = vmatpush1.msra.mxu0 %v1976
        %1978 = vmatprep.subr.mxu0 0.0
        %v1979 = vand.u32 %v420, 4294901760
        %1980 = vmatpush1.msra.mxu0 %v1979
        %v1981 = vand.u32 %v348, 4294901760
        %v1982 = vsub.f32 %v348, %v1981
        %v1983 = vand.u32 %v1982, 4294901760
        %1984 = vmatprep.mubr.f32.mxu0 %v1983
        %v1985 = vand.u32 %v347, 4294901760
        %v1986 = vsub.f32 %v347, %v1985
        %v1987 = vand.u32 %v1986, 4294901760
        %1988 = vmatmul.mubr.f32.gmra.mrb[0].mxu0 %v1987
        %v1989 = vpop.f32.mrb[0].mxu0
        %v1990 = vadd.f32 %v1873, %v1989
        %v1991 = vpop.f32.mrb[0].mxu0
        %v1992 = vand.u32 %v354, 4294901760
        %v1993 = vsub.f32 %v354, %v1992
        %v1994 = vand.u32 %v1993, 4294901760
        %1995 = vmatprep.mubr.f32.mxu0 %v1994
        %v1996 = vand.u32 %v353, 4294901760
        %v1997 = vsub.f32 %v353, %v1996
        %v1998 = vand.u32 %v1997, 4294901760
        %1999 = vmatmul.mubr.f32.gmra.mrb[0].mxu0 %v1998
        %v2000 = vpop.f32.mrb[0].mxu0
        %v2001 = vadd.f32 %v1882, %v2000
        %v2002 = vpop.f32.mrb[0].mxu0
        %2003 = vdwg.mxu0
        %2004 = vmatprep.subr.mxu0 0.0
        %v2005 = vand.u32 %v389, 4294901760
        %v2006 = vsub.f32 %v389, %v2005
        %v2007 = vand.u32 %v2006, 4294901760
        %2008 = vmatpush1.msra.mxu0 %v2007
        %2009 = vmatprep.subr.mxu0 0.0
        %v2010 = vand.u32 %v390, 4294901760
        %v2011 = vsub.f32 %v390, %v2010
        %v2012 = vand.u32 %v2011, 4294901760
        %2013 = vmatpush1.msra.mxu0 %v2012
        %2014 = vmatprep.subr.mxu0 0.0
        %v2015 = vand.u32 %v391, 4294901760
        %v2016 = vsub.f32 %v391, %v2015
        %v2017 = vand.u32 %v2016, 4294901760
        %2018 = vmatpush1.msra.mxu0 %v2017
        %2019 = vmatprep.subr.mxu0 0.0
        %v2020 = vand.u32 %v392, 4294901760
        %v2021 = vsub.f32 %v392, %v2020
        %v2022 = vand.u32 %v2021, 4294901760
        %2023 = vmatpush1.msra.mxu0 %v2022
        %2024 = vmatprep.subr.mxu0 0.0
        %v2025 = vand.u32 %v393, 4294901760
        %v2026 = vsub.f32 %v393, %v2025
        %v2027 = vand.u32 %v2026, 4294901760
        %2028 = vmatpush1.msra.mxu0 %v2027
        %2029 = vmatprep.subr.mxu0 0.0
        %v2030 = vand.u32 %v394, 4294901760
        %v2031 = vsub.f32 %v394, %v2030
        %v2032 = vand.u32 %v2031, 4294901760
        %2033 = vmatpush1.msra.mxu0 %v2032
        %2034 = vmatprep.subr.mxu0 0.0
        %v2035 = vand.u32 %v395, 4294901760
        %v2036 = vsub.f32 %v395, %v2035
        %v2037 = vand.u32 %v2036, 4294901760
        %2038 = vmatpush1.msra.mxu0 %v2037
        %2039 = vmatprep.subr.mxu0 0.0
        %v2040 = vand.u32 %v396, 4294901760
        %v2041 = vsub.f32 %v396, %v2040
        %v2042 = vand.u32 %v2041, 4294901760
        %2043 = vmatpush1.msra.mxu0 %v2042
        %2044 = vmatprep.subr.mxu0 0.0
        %v2045 = vand.u32 %v397, 4294901760
        %v2046 = vsub.f32 %v397, %v2045
        %v2047 = vand.u32 %v2046, 4294901760
        %2048 = vmatpush1.msra.mxu0 %v2047
        %2049 = vmatprep.subr.mxu0 0.0
        %v2050 = vand.u32 %v398, 4294901760
        %v2051 = vsub.f32 %v398, %v2050
        %v2052 = vand.u32 %v2051, 4294901760
        %2053 = vmatpush1.msra.mxu0 %v2052
        %2054 = vmatprep.subr.mxu0 0.0
        %v2055 = vand.u32 %v399, 4294901760
        %v2056 = vsub.f32 %v399, %v2055
        %v2057 = vand.u32 %v2056, 4294901760
        %2058 = vmatpush1.msra.mxu0 %v2057
        %2059 = vmatprep.subr.mxu0 0.0
        %v2060 = vand.u32 %v400, 4294901760
        %v2061 = vsub.f32 %v400, %v2060
        %v2062 = vand.u32 %v2061, 4294901760
        %2063 = vmatpush1.msra.mxu0 %v2062
        %2064 = vmatprep.subr.mxu0 0.0
        %v2065 = vand.u32 %v401, 4294901760
        %v2066 = vsub.f32 %v401, %v2065
        %v2067 = vand.u32 %v2066, 4294901760
        %2068 = vmatpush1.msra.mxu0 %v2067
        %2069 = vmatprep.subr.mxu0 0.0
        %v2070 = vand.u32 %v402, 4294901760
        %v2071 = vsub.f32 %v402, %v2070
        %v2072 = vand.u32 %v2071, 4294901760
        %2073 = vmatpush1.msra.mxu0 %v2072
        %2074 = vmatprep.subr.mxu0 0.0
        %v2075 = vand.u32 %v403, 4294901760
        %v2076 = vsub.f32 %v403, %v2075
        %v2077 = vand.u32 %v2076, 4294901760
        %2078 = vmatpush1.msra.mxu0 %v2077
        %2079 = vmatprep.subr.mxu0 0.0
        %v2080 = vand.u32 %v404, 4294901760
        %v2081 = vsub.f32 %v404, %v2080
        %v2082 = vand.u32 %v2081, 4294901760
        %2083 = vmatpush1.msra.mxu0 %v2082
        %2084 = vmatprep.subr.mxu0 0.0
        %v2085 = vand.u32 %v405, 4294901760
        %v2086 = vsub.f32 %v405, %v2085
        %v2087 = vand.u32 %v2086, 4294901760
        %2088 = vmatpush1.msra.mxu0 %v2087
        %2089 = vmatprep.subr.mxu0 0.0
        %v2090 = vand.u32 %v406, 4294901760
        %v2091 = vsub.f32 %v406, %v2090
        %v2092 = vand.u32 %v2091, 4294901760
        %2093 = vmatpush1.msra.mxu0 %v2092
        %2094 = vmatprep.subr.mxu0 0.0
        %v2095 = vand.u32 %v407, 4294901760
        %v2096 = vsub.f32 %v407, %v2095
        %v2097 = vand.u32 %v2096, 4294901760
        %2098 = vmatpush1.msra.mxu0 %v2097
        %2099 = vmatprep.subr.mxu0 0.0
        %v2100 = vand.u32 %v408, 4294901760
        %v2101 = vsub.f32 %v408, %v2100
        %v2102 = vand.u32 %v2101, 4294901760
        %2103 = vmatpush1.msra.mxu0 %v2102
        %2104 = vmatprep.subr.mxu0 0.0
        %v2105 = vand.u32 %v409, 4294901760
        %v2106 = vsub.f32 %v409, %v2105
        %v2107 = vand.u32 %v2106, 4294901760
        %2108 = vmatpush1.msra.mxu0 %v2107
        %2109 = vmatprep.subr.mxu0 0.0
        %v2110 = vand.u32 %v410, 4294901760
        %v2111 = vsub.f32 %v410, %v2110
        %v2112 = vand.u32 %v2111, 4294901760
        %2113 = vmatpush1.msra.mxu0 %v2112
        %2114 = vmatprep.subr.mxu0 0.0
        %v2115 = vand.u32 %v411, 4294901760
        %v2116 = vsub.f32 %v411, %v2115
        %v2117 = vand.u32 %v2116, 4294901760
        %2118 = vmatpush1.msra.mxu0 %v2117
        %2119 = vmatprep.subr.mxu0 0.0
        %v2120 = vand.u32 %v412, 4294901760
        %v2121 = vsub.f32 %v412, %v2120
        %v2122 = vand.u32 %v2121, 4294901760
        %2123 = vmatpush1.msra.mxu0 %v2122
        %2124 = vmatprep.subr.mxu0 0.0
        %v2125 = vand.u32 %v413, 4294901760
        %v2126 = vsub.f32 %v413, %v2125
        %v2127 = vand.u32 %v2126, 4294901760
        %2128 = vmatpush1.msra.mxu0 %v2127
        %2129 = vmatprep.subr.mxu0 0.0
        %v2130 = vand.u32 %v414, 4294901760
        %v2131 = vsub.f32 %v414, %v2130
        %v2132 = vand.u32 %v2131, 4294901760
        %2133 = vmatpush1.msra.mxu0 %v2132
        %2134 = vmatprep.subr.mxu0 0.0
        %v2135 = vand.u32 %v415, 4294901760
        %v2136 = vsub.f32 %v415, %v2135
        %v2137 = vand.u32 %v2136, 4294901760
        %2138 = vmatpush1.msra.mxu0 %v2137
        %2139 = vmatprep.subr.mxu0 0.0
        %v2140 = vand.u32 %v416, 4294901760
        %v2141 = vsub.f32 %v416, %v2140
        %v2142 = vand.u32 %v2141, 4294901760
        %2143 = vmatpush1.msra.mxu0 %v2142
        %2144 = vmatprep.subr.mxu0 0.0
        %v2145 = vand.u32 %v417, 4294901760
        %v2146 = vsub.f32 %v417, %v2145
        %v2147 = vand.u32 %v2146, 4294901760
        %2148 = vmatpush1.msra.mxu0 %v2147
        %2149 = vmatprep.subr.mxu0 0.0
        %v2150 = vand.u32 %v418, 4294901760
        %v2151 = vsub.f32 %v418, %v2150
        %v2152 = vand.u32 %v2151, 4294901760
        %2153 = vmatpush1.msra.mxu0 %v2152
        %2154 = vmatprep.subr.mxu0 0.0
        %v2155 = vand.u32 %v419, 4294901760
        %v2156 = vsub.f32 %v419, %v2155
        %v2157 = vand.u32 %v2156, 4294901760
        %2158 = vmatpush1.msra.mxu0 %v2157
        %2159 = vmatprep.subr.mxu0 0.0
        %v2160 = vand.u32 %v420, 4294901760
        %v2161 = vsub.f32 %v420, %v2160
        %v2162 = vand.u32 %v2161, 4294901760
        %2163 = vmatpush1.msra.mxu0 %v2162
        %v2164 = vand.u32 %v348, 4294901760
        %2165 = vmatprep.mubr.f32.mxu0 %v2164
        %v2166 = vand.u32 %v347, 4294901760
        %2167 = vmatmul.mubr.f32.gmra.mrb[0].mxu0 %v2166
        %v2168 = vpop.f32.mrb[0].mxu0
        %v2169 = vadd.f32 %v1990, %v2168
        %v2170 = vpop.f32.mrb[0].mxu0
        %v2171 = vand.u32 %v354, 4294901760
        %2172 = vmatprep.mubr.f32.mxu0 %v2171
        %v2173 = vand.u32 %v353, 4294901760
        %2174 = vmatmul.mubr.f32.gmra.mrb[0].mxu0 %v2173
        %v2175 = vpop.f32.mrb[0].mxu0
        %v2176 = vadd.f32 %v2001, %v2175
        %v2177 = vpop.f32.mrb[0].mxu0
        %2178 = vdwg.mxu0
        %2179 = vmatprep.subr.mxu0 0.0
        %v2180 = vand.u32 %v389, 4294901760
        %2181 = vmatpush1.msra.mxu0 %v2180
        %2182 = vmatprep.subr.mxu0 0.0
        %v2183 = vand.u32 %v390, 4294901760
        %2184 = vmatpush1.msra.mxu0 %v2183
        %2185 = vmatprep.subr.mxu0 0.0
        %v2186 = vand.u32 %v391, 4294901760
        %2187 = vmatpush1.msra.mxu0 %v2186
        %2188 = vmatprep.subr.mxu0 0.0
        %v2189 = vand.u32 %v392, 4294901760
        %2190 = vmatpush1.msra.mxu0 %v2189
        %2191 = vmatprep.subr.mxu0 0.0
        %v2192 = vand.u32 %v393, 4294901760
        %2193 = vmatpush1.msra.mxu0 %v2192
        %2194 = vmatprep.subr.mxu0 0.0
        %v2195 = vand.u32 %v394, 4294901760
        %2196 = vmatpush1.msra.mxu0 %v2195
        %2197 = vmatprep.subr.mxu0 0.0
        %v2198 = vand.u32 %v395, 4294901760
        %2199 = vmatpush1.msra.mxu0 %v2198
        %2200 = vmatprep.subr.mxu0 0.0
        %v2201 = vand.u32 %v396, 4294901760
        %2202 = vmatpush1.msra.mxu0 %v2201
        %2203 = vmatprep.subr.mxu0 0.0
        %v2204 = vand.u32 %v397, 4294901760
        %2205 = vmatpush1.msra.mxu0 %v2204
        %2206 = vmatprep.subr.mxu0 0.0
        %v2207 = vand.u32 %v398, 4294901760
        %2208 = vmatpush1.msra.mxu0 %v2207
        %2209 = vmatprep.subr.mxu0 0.0
        %v2210 = vand.u32 %v399, 4294901760
        %2211 = vmatpush1.msra.mxu0 %v2210
        %2212 = vmatprep.subr.mxu0 0.0
        %v2213 = vand.u32 %v400, 4294901760
        %2214 = vmatpush1.msra.mxu0 %v2213
        %2215 = vmatprep.subr.mxu0 0.0
        %v2216 = vand.u32 %v401, 4294901760
        %2217 = vmatpush1.msra.mxu0 %v2216
        %2218 = vmatprep.subr.mxu0 0.0
        %v2219 = vand.u32 %v402, 4294901760
        %2220 = vmatpush1.msra.mxu0 %v2219
        %2221 = vmatprep.subr.mxu0 0.0
        %v2222 = vand.u32 %v403, 4294901760
        %2223 = vmatpush1.msra.mxu0 %v2222
        %2224 = vmatprep.subr.mxu0 0.0
        %v2225 = vand.u32 %v404, 4294901760
        %2226 = vmatpush1.msra.mxu0 %v2225
        %2227 = vmatprep.subr.mxu0 0.0
        %v2228 = vand.u32 %v405, 4294901760
        %2229 = vmatpush1.msra.mxu0 %v2228
        %2230 = vmatprep.subr.mxu0 0.0
        %v2231 = vand.u32 %v406, 4294901760
        %2232 = vmatpush1.msra.mxu0 %v2231
        %2233 = vmatprep.subr.mxu0 0.0
        %v2234 = vand.u32 %v407, 4294901760
        %2235 = vmatpush1.msra.mxu0 %v2234
        %2236 = vmatprep.subr.mxu0 0.0
        %v2237 = vand.u32 %v408, 4294901760
        %2238 = vmatpush1.msra.mxu0 %v2237
        %2239 = vmatprep.subr.mxu0 0.0
        %v2240 = vand.u32 %v409, 4294901760
        %2241 = vmatpush1.msra.mxu0 %v2240
        %2242 = vmatprep.subr.mxu0 0.0
        %v2243 = vand.u32 %v410, 4294901760
        %2244 = vmatpush1.msra.mxu0 %v2243
        %2245 = vmatprep.subr.mxu0 0.0
        %v2246 = vand.u32 %v411, 4294901760
        %2247 = vmatpush1.msra.mxu0 %v2246
        %2248 = vmatprep.subr.mxu0 0.0
        %v2249 = vand.u32 %v412, 4294901760
        %2250 = vmatpush1.msra.mxu0 %v2249
        %2251 = vmatprep.subr.mxu0 0.0
        %v2252 = vand.u32 %v413, 4294901760
        %2253 = vmatpush1.msra.mxu0 %v2252
        %2254 = vmatprep.subr.mxu0 0.0
        %v2255 = vand.u32 %v414, 4294901760
        %2256 = vmatpush1.msra.mxu0 %v2255
        %2257 = vmatprep.subr.mxu0 0.0
        %v2258 = vand.u32 %v415, 4294901760
        %2259 = vmatpush1.msra.mxu0 %v2258
        %2260 = vmatprep.subr.mxu0 0.0
        %v2261 = vand.u32 %v416, 4294901760
        %2262 = vmatpush1.msra.mxu0 %v2261
        %2263 = vmatprep.subr.mxu0 0.0
        %v2264 = vand.u32 %v417, 4294901760
        %2265 = vmatpush1.msra.mxu0 %v2264
        %2266 = vmatprep.subr.mxu0 0.0
        %v2267 = vand.u32 %v418, 4294901760
        %2268 = vmatpush1.msra.mxu0 %v2267
        %2269 = vmatprep.subr.mxu0 0.0
        %v2270 = vand.u32 %v419, 4294901760
        %2271 = vmatpush1.msra.mxu0 %v2270
        %2272 = vmatprep.subr.mxu0 0.0
        %v2273 = vand.u32 %v420, 4294901760
        %2274 = vmatpush1.msra.mxu0 %v2273
        %v2275 = vand.u32 %v348, 4294901760
        %2276 = vmatprep.mubr.f32.mxu0 %v2275
        %v2277 = vand.u32 %v347, 4294901760
        %2278 = vmatmul.mubr.f32.gmra.mrb[0].mxu0 %v2277
        %v2279 = vpop.f32.mrb[0].mxu0
        %v2280 = vadd.f32 %v2169, %v2279
        %v2281 = vpop.f32.mrb[0].mxu0
        %v2282 = vand.u32 %v354, 4294901760
        %2283 = vmatprep.mubr.f32.mxu0 %v2282
        %v2284 = vand.u32 %v353, 4294901760
        %2285 = vmatmul.mubr.f32.gmra.mrb[0].mxu0 %v2284
        %v2286 = vpop.f32.mrb[0].mxu0
        %v2287 = vadd.f32 %v2176, %v2286
        %v2288 = vpop.f32.mrb[0].mxu0
        %2289 = vdwg.mxu0
        %2290 = vmatprep.subr.mxu0 0.0
        %v2291 = vand.u32 %v421, 4294901760
        %2292 = vmatpush1.msra.mxu0 %v2291
        %2293 = vmatprep.subr.mxu0 0.0
        %v2294 = vand.u32 %v422, 4294901760
        %2295 = vmatpush1.msra.mxu0 %v2294
        %2296 = vmatprep.subr.mxu0 0.0
        %v2297 = vand.u32 %v423, 4294901760
        %2298 = vmatpush1.msra.mxu0 %v2297
        %2299 = vmatprep.subr.mxu0 0.0
        %v2300 = vand.u32 %v424, 4294901760
        %2301 = vmatpush1.msra.mxu0 %v2300
        %2302 = vmatprep.subr.mxu0 0.0
        %v2303 = vand.u32 %v425, 4294901760
        %2304 = vmatpush1.msra.mxu0 %v2303
        %2305 = vmatprep.subr.mxu0 0.0
        %v2306 = vand.u32 %v426, 4294901760
        %2307 = vmatpush1.msra.mxu0 %v2306
        %2308 = vmatprep.subr.mxu0 0.0
        %v2309 = vand.u32 %v427, 4294901760
        %2310 = vmatpush1.msra.mxu0 %v2309
        %2311 = vmatprep.subr.mxu0 0.0
        %v2312 = vand.u32 %v428, 4294901760
        %2313 = vmatpush1.msra.mxu0 %v2312
        %2314 = vmatprep.subr.mxu0 0.0
        %v2315 = vand.u32 %v429, 4294901760
        %2316 = vmatpush1.msra.mxu0 %v2315
        %2317 = vmatprep.subr.mxu0 0.0
        %v2318 = vand.u32 %v430, 4294901760
        %2319 = vmatpush1.msra.mxu0 %v2318
        %2320 = vmatprep.subr.mxu0 0.0
        %v2321 = vand.u32 %v431, 4294901760
        %2322 = vmatpush1.msra.mxu0 %v2321
        %2323 = vmatprep.subr.mxu0 0.0
        %v2324 = vand.u32 %v432, 4294901760
        %2325 = vmatpush1.msra.mxu0 %v2324
        %2326 = vmatprep.subr.mxu0 0.0
        %v2327 = vand.u32 %v433, 4294901760
        %2328 = vmatpush1.msra.mxu0 %v2327
        %2329 = vmatprep.subr.mxu0 0.0
        %v2330 = vand.u32 %v434, 4294901760
        %2331 = vmatpush1.msra.mxu0 %v2330
        %2332 = vmatprep.subr.mxu0 0.0
        %v2333 = vand.u32 %v435, 4294901760
        %2334 = vmatpush1.msra.mxu0 %v2333
        %2335 = vmatprep.subr.mxu0 0.0
        %v2336 = vand.u32 %v436, 4294901760
        %2337 = vmatpush1.msra.mxu0 %v2336
        %2338 = vmatprep.subr.mxu0 0.0
        %v2339 = vand.u32 %v437, 4294901760
        %2340 = vmatpush1.msra.mxu0 %v2339
        %2341 = vmatprep.subr.mxu0 0.0
        %v2342 = vand.u32 %v438, 4294901760
        %2343 = vmatpush1.msra.mxu0 %v2342
        %2344 = vmatprep.subr.mxu0 0.0
        %v2345 = vand.u32 %v439, 4294901760
        %2346 = vmatpush1.msra.mxu0 %v2345
        %2347 = vmatprep.subr.mxu0 0.0
        %v2348 = vand.u32 %v440, 4294901760
        %2349 = vmatpush1.msra.mxu0 %v2348
        %2350 = vmatprep.subr.mxu0 0.0
        %v2351 = vand.u32 %v441, 4294901760
        %2352 = vmatpush1.msra.mxu0 %v2351
        %2353 = vmatprep.subr.mxu0 0.0
        %v2354 = vand.u32 %v442, 4294901760
        %2355 = vmatpush1.msra.mxu0 %v2354
        %2356 = vmatprep.subr.mxu0 0.0
        %v2357 = vand.u32 %v443, 4294901760
        %2358 = vmatpush1.msra.mxu0 %v2357
        %2359 = vmatprep.subr.mxu0 0.0
        %v2360 = vand.u32 %v444, 4294901760
        %2361 = vmatpush1.msra.mxu0 %v2360
        %2362 = vmatprep.subr.mxu0 0.0
        %v2363 = vand.u32 %v445, 4294901760
        %2364 = vmatpush1.msra.mxu0 %v2363
        %2365 = vmatprep.subr.mxu0 0.0
        %v2366 = vand.u32 %v446, 4294901760
        %2367 = vmatpush1.msra.mxu0 %v2366
        %2368 = vmatprep.subr.mxu0 0.0
        %v2369 = vand.u32 %v447, 4294901760
        %2370 = vmatpush1.msra.mxu0 %v2369
        %2371 = vmatprep.subr.mxu0 0.0
        %v2372 = vand.u32 %v448, 4294901760
        %2373 = vmatpush1.msra.mxu0 %v2372
        %2374 = vmatprep.subr.mxu0 0.0
        %v2375 = vand.u32 %v449, 4294901760
        %2376 = vmatpush1.msra.mxu0 %v2375
        %2377 = vmatprep.subr.mxu0 0.0
        %v2378 = vand.u32 %v450, 4294901760
        %2379 = vmatpush1.msra.mxu0 %v2378
        %2380 = vmatprep.subr.mxu0 0.0
        %v2381 = vand.u32 %v451, 4294901760
        %2382 = vmatpush1.msra.mxu0 %v2381
        %2383 = vmatprep.subr.mxu0 0.0
        %v2384 = vand.u32 %v452, 4294901760
        %2385 = vmatpush1.msra.mxu0 %v2384
        %v2386 = vand.u32 %v350, 4294901760
        %v2387 = vsub.f32 %v350, %v2386
        %v2388 = vand.u32 %v2387, 4294901760
        %v2389 = vsub.f32 %v2387, %v2388
        %v2390 = vand.u32 %v2389, 4294901760
        %2391 = vmatprep.mubr.f32.mxu0 %v2390
        %v2392 = vand.u32 %v349, 4294901760
        %v2393 = vsub.f32 %v349, %v2392
        %v2394 = vand.u32 %v2393, 4294901760
        %v2395 = vsub.f32 %v2393, %v2394
        %v2396 = vand.u32 %v2395, 4294901760
        %2397 = vmatmul.mubr.f32.gmra.mrb[0].mxu0 %v2396
        %v2398 = vpop.f32.mrb[0].mxu0
        %v2399 = vadd.f32 %v2280, %v2398
        %v2400 = vpop.f32.mrb[0].mxu0
        %v2401 = vand.u32 %v356, 4294901760
        %v2402 = vsub.f32 %v356, %v2401
        %v2403 = vand.u32 %v2402, 4294901760
        %v2404 = vsub.f32 %v2402, %v2403
        %v2405 = vand.u32 %v2404, 4294901760
        %2406 = vmatprep.mubr.f32.mxu0 %v2405
        %v2407 = vand.u32 %v355, 4294901760
        %v2408 = vsub.f32 %v355, %v2407
        %v2409 = vand.u32 %v2408, 4294901760
        %v2410 = vsub.f32 %v2408, %v2409
        %v2411 = vand.u32 %v2410, 4294901760
        %2412 = vmatmul.mubr.f32.gmra.mrb[0].mxu0 %v2411
        %v2413 = vpop.f32.mrb[0].mxu0
        %v2414 = vadd.f32 %v2287, %v2413
        %v2415 = vpop.f32.mrb[0].mxu0
        %2416 = vdwg.mxu0
        %2417 = vmatprep.subr.mxu0 0.0
        %v2418 = vand.u32 %v421, 4294901760
        %v2419 = vsub.f32 %v421, %v2418
        %v2420 = vand.u32 %v2419, 4294901760
        %v2421 = vsub.f32 %v2419, %v2420
        %v2422 = vand.u32 %v2421, 4294901760
        %2423 = vmatpush1.msra.mxu0 %v2422
        %2424 = vmatprep.subr.mxu0 0.0
        %v2425 = vand.u32 %v422, 4294901760
        %v2426 = vsub.f32 %v422, %v2425
        %v2427 = vand.u32 %v2426, 4294901760
        %v2428 = vsub.f32 %v2426, %v2427
        %v2429 = vand.u32 %v2428, 4294901760
        %2430 = vmatpush1.msra.mxu0 %v2429
        %2431 = vmatprep.subr.mxu0 0.0
        %v2432 = vand.u32 %v423, 4294901760
        %v2433 = vsub.f32 %v423, %v2432
        %v2434 = vand.u32 %v2433, 4294901760
        %v2435 = vsub.f32 %v2433, %v2434
        %v2436 = vand.u32 %v2435, 4294901760
        %2437 = vmatpush1.msra.mxu0 %v2436
        %2438 = vmatprep.subr.mxu0 0.0
        %v2439 = vand.u32 %v424, 4294901760
        %v2440 = vsub.f32 %v424, %v2439
        %v2441 = vand.u32 %v2440, 4294901760
        %v2442 = vsub.f32 %v2440, %v2441
        %v2443 = vand.u32 %v2442, 4294901760
        %2444 = vmatpush1.msra.mxu0 %v2443
        %2445 = vmatprep.subr.mxu0 0.0
        %v2446 = vand.u32 %v425, 4294901760
        %v2447 = vsub.f32 %v425, %v2446
        %v2448 = vand.u32 %v2447, 4294901760
        %v2449 = vsub.f32 %v2447, %v2448
        %v2450 = vand.u32 %v2449, 4294901760
        %2451 = vmatpush1.msra.mxu0 %v2450
        %2452 = vmatprep.subr.mxu0 0.0
        %v2453 = vand.u32 %v426, 4294901760
        %v2454 = vsub.f32 %v426, %v2453
        %v2455 = vand.u32 %v2454, 4294901760
        %v2456 = vsub.f32 %v2454, %v2455
        %v2457 = vand.u32 %v2456, 4294901760
        %2458 = vmatpush1.msra.mxu0 %v2457
        %2459 = vmatprep.subr.mxu0 0.0
        %v2460 = vand.u32 %v427, 4294901760
        %v2461 = vsub.f32 %v427, %v2460
        %v2462 = vand.u32 %v2461, 4294901760
        %v2463 = vsub.f32 %v2461, %v2462
        %v2464 = vand.u32 %v2463, 4294901760
        %2465 = vmatpush1.msra.mxu0 %v2464
        %2466 = vmatprep.subr.mxu0 0.0
        %v2467 = vand.u32 %v428, 4294901760
        %v2468 = vsub.f32 %v428, %v2467
        %v2469 = vand.u32 %v2468, 4294901760
        %v2470 = vsub.f32 %v2468, %v2469
        %v2471 = vand.u32 %v2470, 4294901760
        %2472 = vmatpush1.msra.mxu0 %v2471
        %2473 = vmatprep.subr.mxu0 0.0
        %v2474 = vand.u32 %v429, 4294901760
        %v2475 = vsub.f32 %v429, %v2474
        %v2476 = vand.u32 %v2475, 4294901760
        %v2477 = vsub.f32 %v2475, %v2476
        %v2478 = vand.u32 %v2477, 4294901760
        %2479 = vmatpush1.msra.mxu0 %v2478
        %2480 = vmatprep.subr.mxu0 0.0
        %v2481 = vand.u32 %v430, 4294901760
        %v2482 = vsub.f32 %v430, %v2481
        %v2483 = vand.u32 %v2482, 4294901760
        %v2484 = vsub.f32 %v2482, %v2483
        %v2485 = vand.u32 %v2484, 4294901760
        %2486 = vmatpush1.msra.mxu0 %v2485
        %2487 = vmatprep.subr.mxu0 0.0
        %v2488 = vand.u32 %v431, 4294901760
        %v2489 = vsub.f32 %v431, %v2488
        %v2490 = vand.u32 %v2489, 4294901760
        %v2491 = vsub.f32 %v2489, %v2490
        %v2492 = vand.u32 %v2491, 4294901760
        %2493 = vmatpush1.msra.mxu0 %v2492
        %2494 = vmatprep.subr.mxu0 0.0
        %v2495 = vand.u32 %v432, 4294901760
        %v2496 = vsub.f32 %v432, %v2495
        %v2497 = vand.u32 %v2496, 4294901760
        %v2498 = vsub.f32 %v2496, %v2497
        %v2499 = vand.u32 %v2498, 4294901760
        %2500 = vmatpush1.msra.mxu0 %v2499
        %2501 = vmatprep.subr.mxu0 0.0
        %v2502 = vand.u32 %v433, 4294901760
        %v2503 = vsub.f32 %v433, %v2502
        %v2504 = vand.u32 %v2503, 4294901760
        %v2505 = vsub.f32 %v2503, %v2504
        %v2506 = vand.u32 %v2505, 4294901760
        %2507 = vmatpush1.msra.mxu0 %v2506
        %2508 = vmatprep.subr.mxu0 0.0
        %v2509 = vand.u32 %v434, 4294901760
        %v2510 = vsub.f32 %v434, %v2509
        %v2511 = vand.u32 %v2510, 4294901760
        %v2512 = vsub.f32 %v2510, %v2511
        %v2513 = vand.u32 %v2512, 4294901760
        %2514 = vmatpush1.msra.mxu0 %v2513
        %2515 = vmatprep.subr.mxu0 0.0
        %v2516 = vand.u32 %v435, 4294901760
        %v2517 = vsub.f32 %v435, %v2516
        %v2518 = vand.u32 %v2517, 4294901760
        %v2519 = vsub.f32 %v2517, %v2518
        %v2520 = vand.u32 %v2519, 4294901760
        %2521 = vmatpush1.msra.mxu0 %v2520
        %2522 = vmatprep.subr.mxu0 0.0
        %v2523 = vand.u32 %v436, 4294901760
        %v2524 = vsub.f32 %v436, %v2523
        %v2525 = vand.u32 %v2524, 4294901760
        %v2526 = vsub.f32 %v2524, %v2525
        %v2527 = vand.u32 %v2526, 4294901760
        %2528 = vmatpush1.msra.mxu0 %v2527
        %2529 = vmatprep.subr.mxu0 0.0
        %v2530 = vand.u32 %v437, 4294901760
        %v2531 = vsub.f32 %v437, %v2530
        %v2532 = vand.u32 %v2531, 4294901760
        %v2533 = vsub.f32 %v2531, %v2532
        %v2534 = vand.u32 %v2533, 4294901760
        %2535 = vmatpush1.msra.mxu0 %v2534
        %2536 = vmatprep.subr.mxu0 0.0
        %v2537 = vand.u32 %v438, 4294901760
        %v2538 = vsub.f32 %v438, %v2537
        %v2539 = vand.u32 %v2538, 4294901760
        %v2540 = vsub.f32 %v2538, %v2539
        %v2541 = vand.u32 %v2540, 4294901760
        %2542 = vmatpush1.msra.mxu0 %v2541
        %2543 = vmatprep.subr.mxu0 0.0
        %v2544 = vand.u32 %v439, 4294901760
        %v2545 = vsub.f32 %v439, %v2544
        %v2546 = vand.u32 %v2545, 4294901760
        %v2547 = vsub.f32 %v2545, %v2546
        %v2548 = vand.u32 %v2547, 4294901760
        %2549 = vmatpush1.msra.mxu0 %v2548
        %2550 = vmatprep.subr.mxu0 0.0
        %v2551 = vand.u32 %v440, 4294901760
        %v2552 = vsub.f32 %v440, %v2551
        %v2553 = vand.u32 %v2552, 4294901760
        %v2554 = vsub.f32 %v2552, %v2553
        %v2555 = vand.u32 %v2554, 4294901760
        %2556 = vmatpush1.msra.mxu0 %v2555
        %2557 = vmatprep.subr.mxu0 0.0
        %v2558 = vand.u32 %v441, 4294901760
        %v2559 = vsub.f32 %v441, %v2558
        %v2560 = vand.u32 %v2559, 4294901760
        %v2561 = vsub.f32 %v2559, %v2560
        %v2562 = vand.u32 %v2561, 4294901760
        %2563 = vmatpush1.msra.mxu0 %v2562
        %2564 = vmatprep.subr.mxu0 0.0
        %v2565 = vand.u32 %v442, 4294901760
        %v2566 = vsub.f32 %v442, %v2565
        %v2567 = vand.u32 %v2566, 4294901760
        %v2568 = vsub.f32 %v2566, %v2567
        %v2569 = vand.u32 %v2568, 4294901760
        %2570 = vmatpush1.msra.mxu0 %v2569
        %2571 = vmatprep.subr.mxu0 0.0
        %v2572 = vand.u32 %v443, 4294901760
        %v2573 = vsub.f32 %v443, %v2572
        %v2574 = vand.u32 %v2573, 4294901760
        %v2575 = vsub.f32 %v2573, %v2574
        %v2576 = vand.u32 %v2575, 4294901760
        %2577 = vmatpush1.msra.mxu0 %v2576
        %2578 = vmatprep.subr.mxu0 0.0
        %v2579 = vand.u32 %v444, 4294901760
        %v2580 = vsub.f32 %v444, %v2579
        %v2581 = vand.u32 %v2580, 4294901760
        %v2582 = vsub.f32 %v2580, %v2581
        %v2583 = vand.u32 %v2582, 4294901760
        %2584 = vmatpush1.msra.mxu0 %v2583
        %2585 = vmatprep.subr.mxu0 0.0
        %v2586 = vand.u32 %v445, 4294901760
        %v2587 = vsub.f32 %v445, %v2586
        %v2588 = vand.u32 %v2587, 4294901760
        %v2589 = vsub.f32 %v2587, %v2588
        %v2590 = vand.u32 %v2589, 4294901760
        %2591 = vmatpush1.msra.mxu0 %v2590
        %2592 = vmatprep.subr.mxu0 0.0
        %v2593 = vand.u32 %v446, 4294901760
        %v2594 = vsub.f32 %v446, %v2593
        %v2595 = vand.u32 %v2594, 4294901760
        %v2596 = vsub.f32 %v2594, %v2595
        %v2597 = vand.u32 %v2596, 4294901760
        %2598 = vmatpush1.msra.mxu0 %v2597
        %2599 = vmatprep.subr.mxu0 0.0
        %v2600 = vand.u32 %v447, 4294901760
        %v2601 = vsub.f32 %v447, %v2600
        %v2602 = vand.u32 %v2601, 4294901760
        %v2603 = vsub.f32 %v2601, %v2602
        %v2604 = vand.u32 %v2603, 4294901760
        %2605 = vmatpush1.msra.mxu0 %v2604
        %2606 = vmatprep.subr.mxu0 0.0
        %v2607 = vand.u32 %v448, 4294901760
        %v2608 = vsub.f32 %v448, %v2607
        %v2609 = vand.u32 %v2608, 4294901760
        %v2610 = vsub.f32 %v2608, %v2609
        %v2611 = vand.u32 %v2610, 4294901760
        %2612 = vmatpush1.msra.mxu0 %v2611
        %2613 = vmatprep.subr.mxu0 0.0
        %v2614 = vand.u32 %v449, 4294901760
        %v2615 = vsub.f32 %v449, %v2614
        %v2616 = vand.u32 %v2615, 4294901760
        %v2617 = vsub.f32 %v2615, %v2616
        %v2618 = vand.u32 %v2617, 4294901760
        %2619 = vmatpush1.msra.mxu0 %v2618
        %2620 = vmatprep.subr.mxu0 0.0
        %v2621 = vand.u32 %v450, 4294901760
        %v2622 = vsub.f32 %v450, %v2621
        %v2623 = vand.u32 %v2622, 4294901760
        %v2624 = vsub.f32 %v2622, %v2623
        %v2625 = vand.u32 %v2624, 4294901760
        %2626 = vmatpush1.msra.mxu0 %v2625
        %2627 = vmatprep.subr.mxu0 0.0
        %v2628 = vand.u32 %v451, 4294901760
        %v2629 = vsub.f32 %v451, %v2628
        %v2630 = vand.u32 %v2629, 4294901760
        %v2631 = vsub.f32 %v2629, %v2630
        %v2632 = vand.u32 %v2631, 4294901760
        %2633 = vmatpush1.msra.mxu0 %v2632
        %2634 = vmatprep.subr.mxu0 0.0
        %v2635 = vand.u32 %v452, 4294901760
        %v2636 = vsub.f32 %v452, %v2635
        %v2637 = vand.u32 %v2636, 4294901760
        %v2638 = vsub.f32 %v2636, %v2637
        %v2639 = vand.u32 %v2638, 4294901760
        %2640 = vmatpush1.msra.mxu0 %v2639
        %v2641 = vand.u32 %v350, 4294901760
        %2642 = vmatprep.mubr.f32.mxu0 %v2641
        %v2643 = vand.u32 %v349, 4294901760
        %2644 = vmatmul.mubr.f32.gmra.mrb[0].mxu0 %v2643
        %v2645 = vpop.f32.mrb[0].mxu0
        %v2646 = vadd.f32 %v2399, %v2645
        %v2647 = vpop.f32.mrb[0].mxu0
        %v2648 = vand.u32 %v356, 4294901760
        %2649 = vmatprep.mubr.f32.mxu0 %v2648
        %v2650 = vand.u32 %v355, 4294901760
        %2651 = vmatmul.mubr.f32.gmra.mrb[0].mxu0 %v2650
        %v2652 = vpop.f32.mrb[0].mxu0
        %v2653 = vadd.f32 %v2414, %v2652
        %v2654 = vpop.f32.mrb[0].mxu0
        %2655 = vdwg.mxu0
        %2656 = vmatprep.subr.mxu0 0.0
        %v2657 = vand.u32 %v421, 4294901760
        %v2658 = vsub.f32 %v421, %v2657
        %2659 = vmatpush1.msra.mxu0 %v2658
        %2660 = vmatprep.subr.mxu0 0.0
        %v2661 = vand.u32 %v422, 4294901760
        %v2662 = vsub.f32 %v422, %v2661
        %2663 = vmatpush1.msra.mxu0 %v2662
        %2664 = vmatprep.subr.mxu0 0.0
        %v2665 = vand.u32 %v423, 4294901760
        %v2666 = vsub.f32 %v423, %v2665
        %2667 = vmatpush1.msra.mxu0 %v2666
        %2668 = vmatprep.subr.mxu0 0.0
        %v2669 = vand.u32 %v424, 4294901760
        %v2670 = vsub.f32 %v424, %v2669
        %2671 = vmatpush1.msra.mxu0 %v2670
        %2672 = vmatprep.subr.mxu0 0.0
        %v2673 = vand.u32 %v425, 4294901760
        %v2674 = vsub.f32 %v425, %v2673
        %2675 = vmatpush1.msra.mxu0 %v2674
        %2676 = vmatprep.subr.mxu0 0.0
        %v2677 = vand.u32 %v426, 4294901760
        %v2678 = vsub.f32 %v426, %v2677
        %2679 = vmatpush1.msra.mxu0 %v2678
        %2680 = vmatprep.subr.mxu0 0.0
        %v2681 = vand.u32 %v427, 4294901760
        %v2682 = vsub.f32 %v427, %v2681
        %2683 = vmatpush1.msra.mxu0 %v2682
        %2684 = vmatprep.subr.mxu0 0.0
        %v2685 = vand.u32 %v428, 4294901760
        %v2686 = vsub.f32 %v428, %v2685
        %2687 = vmatpush1.msra.mxu0 %v2686
        %2688 = vmatprep.subr.mxu0 0.0
        %v2689 = vand.u32 %v429, 4294901760
        %v2690 = vsub.f32 %v429, %v2689
        %2691 = vmatpush1.msra.mxu0 %v2690
        %2692 = vmatprep.subr.mxu0 0.0
        %v2693 = vand.u32 %v430, 4294901760
        %v2694 = vsub.f32 %v430, %v2693
        %2695 = vmatpush1.msra.mxu0 %v2694
        %2696 = vmatprep.subr.mxu0 0.0
        %v2697 = vand.u32 %v431, 4294901760
        %v2698 = vsub.f32 %v431, %v2697
        %2699 = vmatpush1.msra.mxu0 %v2698
        %2700 = vmatprep.subr.mxu0 0.0
        %v2701 = vand.u32 %v432, 4294901760
        %v2702 = vsub.f32 %v432, %v2701
        %2703 = vmatpush1.msra.mxu0 %v2702
        %2704 = vmatprep.subr.mxu0 0.0
        %v2705 = vand.u32 %v433, 4294901760
        %v2706 = vsub.f32 %v433, %v2705
        %2707 = vmatpush1.msra.mxu0 %v2706
        %2708 = vmatprep.subr.mxu0 0.0
        %v2709 = vand.u32 %v434, 4294901760
        %v2710 = vsub.f32 %v434, %v2709
        %2711 = vmatpush1.msra.mxu0 %v2710
        %2712 = vmatprep.subr.mxu0 0.0
        %v2713 = vand.u32 %v435, 4294901760
        %v2714 = vsub.f32 %v435, %v2713
        %2715 = vmatpush1.msra.mxu0 %v2714
        %2716 = vmatprep.subr.mxu0 0.0
        %v2717 = vand.u32 %v436, 4294901760
        %v2718 = vsub.f32 %v436, %v2717
        %2719 = vmatpush1.msra.mxu0 %v2718
        %2720 = vmatprep.subr.mxu0 0.0
        %v2721 = vand.u32 %v437, 4294901760
        %v2722 = vsub.f32 %v437, %v2721
        %2723 = vmatpush1.msra.mxu0 %v2722
        %2724 = vmatprep.subr.mxu0 0.0
        %v2725 = vand.u32 %v438, 4294901760
        %v2726 = vsub.f32 %v438, %v2725
        %2727 = vmatpush1.msra.mxu0 %v2726
        %2728 = vmatprep.subr.mxu0 0.0
        %v2729 = vand.u32 %v439, 4294901760
        %v2730 = vsub.f32 %v439, %v2729
        %2731 = vmatpush1.msra.mxu0 %v2730
        %2732 = vmatprep.subr.mxu0 0.0
        %v2733 = vand.u32 %v440, 4294901760
        %v2734 = vsub.f32 %v440, %v2733
        %2735 = vmatpush1.msra.mxu0 %v2734
        %2736 = vmatprep.subr.mxu0 0.0
        %v2737 = vand.u32 %v441, 4294901760
        %v2738 = vsub.f32 %v441, %v2737
        %2739 = vmatpush1.msra.mxu0 %v2738
        %2740 = vmatprep.subr.mxu0 0.0
        %v2741 = vand.u32 %v442, 4294901760
        %v2742 = vsub.f32 %v442, %v2741
        %2743 = vmatpush1.msra.mxu0 %v2742
        %2744 = vmatprep.subr.mxu0 0.0
        %v2745 = vand.u32 %v443, 4294901760
        %v2746 = vsub.f32 %v443, %v2745
        %2747 = vmatpush1.msra.mxu0 %v2746
        %2748 = vmatprep.subr.mxu0 0.0
        %v2749 = vand.u32 %v444, 4294901760
        %v2750 = vsub.f32 %v444, %v2749
        %2751 = vmatpush1.msra.mxu0 %v2750
        %2752 = vmatprep.subr.mxu0 0.0
        %v2753 = vand.u32 %v445, 4294901760
        %v2754 = vsub.f32 %v445, %v2753
        %2755 = vmatpush1.msra.mxu0 %v2754
        %2756 = vmatprep.subr.mxu0 0.0
        %v2757 = vand.u32 %v446, 4294901760
        %v2758 = vsub.f32 %v446, %v2757
        %2759 = vmatpush1.msra.mxu0 %v2758
        %2760 = vmatprep.subr.mxu0 0.0
        %v2761 = vand.u32 %v447, 4294901760
        %v2762 = vsub.f32 %v447, %v2761
        %2763 = vmatpush1.msra.mxu0 %v2762
        %2764 = vmatprep.subr.mxu0 0.0
        %v2765 = vand.u32 %v448, 4294901760
        %v2766 = vsub.f32 %v448, %v2765
        %2767 = vmatpush1.msra.mxu0 %v2766
        %2768 = vmatprep.subr.mxu0 0.0
        %v2769 = vand.u32 %v449, 4294901760
        %v2770 = vsub.f32 %v449, %v2769
        %2771 = vmatpush1.msra.mxu0 %v2770
        %2772 = vmatprep.subr.mxu0 0.0
        %v2773 = vand.u32 %v450, 4294901760
        %v2774 = vsub.f32 %v450, %v2773
        %2775 = vmatpush1.msra.mxu0 %v2774
        %2776 = vmatprep.subr.mxu0 0.0
        %v2777 = vand.u32 %v451, 4294901760
        %v2778 = vsub.f32 %v451, %v2777
        %2779 = vmatpush1.msra.mxu0 %v2778
        %2780 = vmatprep.subr.mxu0 0.0
        %v2781 = vand.u32 %v452, 4294901760
        %v2782 = vsub.f32 %v452, %v2781
        %2783 = vmatpush1.msra.mxu0 %v2782
        %v2784 = vand.u32 %v350, 4294901760
        %v2785 = vsub.f32 %v350, %v2784
        %2786 = vmatprep.mubr.f32.mxu0 %v2785
        %v2787 = vand.u32 %v349, 4294901760
        %v2788 = vsub.f32 %v349, %v2787
        %2789 = vmatmul.mubr.f32.gmra.mrb[0].mxu0 %v2788
        %v2790 = vpop.f32.mrb[0].mxu0
        %v2791 = vadd.f32 %v2646, %v2790
        %v2792 = vpop.f32.mrb[0].mxu0
        %v2793 = vand.u32 %v356, 4294901760
        %v2794 = vsub.f32 %v356, %v2793
        %2795 = vmatprep.mubr.f32.mxu0 %v2794
        %v2796 = vand.u32 %v355, 4294901760
        %v2797 = vsub.f32 %v355, %v2796
        %2798 = vmatmul.mubr.f32.gmra.mrb[0].mxu0 %v2797
        %v2799 = vpop.f32.mrb[0].mxu0
        %v2800 = vadd.f32 %v2653, %v2799
        %v2801 = vpop.f32.mrb[0].mxu0
        %2802 = vdwg.mxu0
        %2803 = vmatprep.subr.mxu0 0.0
        %v2804 = vand.u32 %v421, 4294901760
        %2805 = vmatpush1.msra.mxu0 %v2804
        %2806 = vmatprep.subr.mxu0 0.0
        %v2807 = vand.u32 %v422, 4294901760
        %2808 = vmatpush1.msra.mxu0 %v2807
        %2809 = vmatprep.subr.mxu0 0.0
        %v2810 = vand.u32 %v423, 4294901760
        %2811 = vmatpush1.msra.mxu0 %v2810
        %2812 = vmatprep.subr.mxu0 0.0
        %v2813 = vand.u32 %v424, 4294901760
        %2814 = vmatpush1.msra.mxu0 %v2813
        %2815 = vmatprep.subr.mxu0 0.0
        %v2816 = vand.u32 %v425, 4294901760
        %2817 = vmatpush1.msra.mxu0 %v2816
        %2818 = vmatprep.subr.mxu0 0.0
        %v2819 = vand.u32 %v426, 4294901760
        %2820 = vmatpush1.msra.mxu0 %v2819
        %2821 = vmatprep.subr.mxu0 0.0
        %v2822 = vand.u32 %v427, 4294901760
        %2823 = vmatpush1.msra.mxu0 %v2822
        %2824 = vmatprep.subr.mxu0 0.0
        %v2825 = vand.u32 %v428, 4294901760
        %2826 = vmatpush1.msra.mxu0 %v2825
        %2827 = vmatprep.subr.mxu0 0.0
        %v2828 = vand.u32 %v429, 4294901760
        %2829 = vmatpush1.msra.mxu0 %v2828
        %2830 = vmatprep.subr.mxu0 0.0
        %v2831 = vand.u32 %v430, 4294901760
        %2832 = vmatpush1.msra.mxu0 %v2831
        %2833 = vmatprep.subr.mxu0 0.0
        %v2834 = vand.u32 %v431, 4294901760
        %2835 = vmatpush1.msra.mxu0 %v2834
        %2836 = vmatprep.subr.mxu0 0.0
        %v2837 = vand.u32 %v432, 4294901760
        %2838 = vmatpush1.msra.mxu0 %v2837
        %2839 = vmatprep.subr.mxu0 0.0
        %v2840 = vand.u32 %v433, 4294901760
        %2841 = vmatpush1.msra.mxu0 %v2840
        %2842 = vmatprep.subr.mxu0 0.0
        %v2843 = vand.u32 %v434, 4294901760
        %2844 = vmatpush1.msra.mxu0 %v2843
        %2845 = vmatprep.subr.mxu0 0.0
        %v2846 = vand.u32 %v435, 4294901760
        %2847 = vmatpush1.msra.mxu0 %v2846
        %2848 = vmatprep.subr.mxu0 0.0
        %v2849 = vand.u32 %v436, 4294901760
        %2850 = vmatpush1.msra.mxu0 %v2849
        %2851 = vmatprep.subr.mxu0 0.0
        %v2852 = vand.u32 %v437, 4294901760
        %2853 = vmatpush1.msra.mxu0 %v2852
        %2854 = vmatprep.subr.mxu0 0.0
        %v2855 = vand.u32 %v438, 4294901760
        %2856 = vmatpush1.msra.mxu0 %v2855
        %2857 = vmatprep.subr.mxu0 0.0
        %v2858 = vand.u32 %v439, 4294901760
        %2859 = vmatpush1.msra.mxu0 %v2858
        %2860 = vmatprep.subr.mxu0 0.0
        %v2861 = vand.u32 %v440, 4294901760
        %2862 = vmatpush1.msra.mxu0 %v2861
        %2863 = vmatprep.subr.mxu0 0.0
        %v2864 = vand.u32 %v441, 4294901760
        %2865 = vmatpush1.msra.mxu0 %v2864
        %2866 = vmatprep.subr.mxu0 0.0
        %v2867 = vand.u32 %v442, 4294901760
        %2868 = vmatpush1.msra.mxu0 %v2867
        %2869 = vmatprep.subr.mxu0 0.0
        %v2870 = vand.u32 %v443, 4294901760
        %2871 = vmatpush1.msra.mxu0 %v2870
        %2872 = vmatprep.subr.mxu0 0.0
        %v2873 = vand.u32 %v444, 4294901760
        %2874 = vmatpush1.msra.mxu0 %v2873
        %2875 = vmatprep.subr.mxu0 0.0
        %v2876 = vand.u32 %v445, 4294901760
        %2877 = vmatpush1.msra.mxu0 %v2876
        %2878 = vmatprep.subr.mxu0 0.0
        %v2879 = vand.u32 %v446, 4294901760
        %2880 = vmatpush1.msra.mxu0 %v2879
        %2881 = vmatprep.subr.mxu0 0.0
        %v2882 = vand.u32 %v447, 4294901760
        %2883 = vmatpush1.msra.mxu0 %v2882
        %2884 = vmatprep.subr.mxu0 0.0
        %v2885 = vand.u32 %v448, 4294901760
        %2886 = vmatpush1.msra.mxu0 %v2885
        %2887 = vmatprep.subr.mxu0 0.0
        %v2888 = vand.u32 %v449, 4294901760
        %2889 = vmatpush1.msra.mxu0 %v2888
        %2890 = vmatprep.subr.mxu0 0.0
        %v2891 = vand.u32 %v450, 4294901760
        %2892 = vmatpush1.msra.mxu0 %v2891
        %2893 = vmatprep.subr.mxu0 0.0
        %v2894 = vand.u32 %v451, 4294901760
        %2895 = vmatpush1.msra.mxu0 %v2894
        %2896 = vmatprep.subr.mxu0 0.0
        %v2897 = vand.u32 %v452, 4294901760
        %2898 = vmatpush1.msra.mxu0 %v2897
        %v2899 = vand.u32 %v350, 4294901760
        %v2900 = vsub.f32 %v350, %v2899
        %v2901 = vand.u32 %v2900, 4294901760
        %2902 = vmatprep.mubr.f32.mxu0 %v2901
        %v2903 = vand.u32 %v349, 4294901760
        %v2904 = vsub.f32 %v349, %v2903
        %v2905 = vand.u32 %v2904, 4294901760
        %2906 = vmatmul.mubr.f32.gmra.mrb[0].mxu0 %v2905
        %v2907 = vpop.f32.mrb[0].mxu0
        %v2908 = vadd.f32 %v2791, %v2907
        %v2909 = vpop.f32.mrb[0].mxu0
        %v2910 = vand.u32 %v356, 4294901760
        %v2911 = vsub.f32 %v356, %v2910
        %v2912 = vand.u32 %v2911, 4294901760
        %2913 = vmatprep.mubr.f32.mxu0 %v2912
        %v2914 = vand.u32 %v355, 4294901760
        %v2915 = vsub.f32 %v355, %v2914
        %v2916 = vand.u32 %v2915, 4294901760
        %2917 = vmatmul.mubr.f32.gmra.mrb[0].mxu0 %v2916
        %v2918 = vpop.f32.mrb[0].mxu0
        %v2919 = vadd.f32 %v2800, %v2918
        %v2920 = vpop.f32.mrb[0].mxu0
        %2921 = vdwg.mxu0
        %2922 = vmatprep.subr.mxu0 0.0
        %v2923 = vand.u32 %v421, 4294901760
        %v2924 = vsub.f32 %v421, %v2923
        %v2925 = vand.u32 %v2924, 4294901760
        %2926 = vmatpush1.msra.mxu0 %v2925
        %2927 = vmatprep.subr.mxu0 0.0
        %v2928 = vand.u32 %v422, 4294901760
        %v2929 = vsub.f32 %v422, %v2928
        %v2930 = vand.u32 %v2929, 4294901760
        %2931 = vmatpush1.msra.mxu0 %v2930
        %2932 = vmatprep.subr.mxu0 0.0
        %v2933 = vand.u32 %v423, 4294901760
        %v2934 = vsub.f32 %v423, %v2933
        %v2935 = vand.u32 %v2934, 4294901760
        %2936 = vmatpush1.msra.mxu0 %v2935
        %2937 = vmatprep.subr.mxu0 0.0
        %v2938 = vand.u32 %v424, 4294901760
        %v2939 = vsub.f32 %v424, %v2938
        %v2940 = vand.u32 %v2939, 4294901760
        %2941 = vmatpush1.msra.mxu0 %v2940
        %2942 = vmatprep.subr.mxu0 0.0
        %v2943 = vand.u32 %v425, 4294901760
        %v2944 = vsub.f32 %v425, %v2943
        %v2945 = vand.u32 %v2944, 4294901760
        %2946 = vmatpush1.msra.mxu0 %v2945
        %2947 = vmatprep.subr.mxu0 0.0
        %v2948 = vand.u32 %v426, 4294901760
        %v2949 = vsub.f32 %v426, %v2948
        %v2950 = vand.u32 %v2949, 4294901760
        %2951 = vmatpush1.msra.mxu0 %v2950
        %2952 = vmatprep.subr.mxu0 0.0
        %v2953 = vand.u32 %v427, 4294901760
        %v2954 = vsub.f32 %v427, %v2953
        %v2955 = vand.u32 %v2954, 4294901760
        %2956 = vmatpush1.msra.mxu0 %v2955
        %2957 = vmatprep.subr.mxu0 0.0
        %v2958 = vand.u32 %v428, 4294901760
        %v2959 = vsub.f32 %v428, %v2958
        %v2960 = vand.u32 %v2959, 4294901760
        %2961 = vmatpush1.msra.mxu0 %v2960
        %2962 = vmatprep.subr.mxu0 0.0
        %v2963 = vand.u32 %v429, 4294901760
        %v2964 = vsub.f32 %v429, %v2963
        %v2965 = vand.u32 %v2964, 4294901760
        %2966 = vmatpush1.msra.mxu0 %v2965
        %2967 = vmatprep.subr.mxu0 0.0
        %v2968 = vand.u32 %v430, 4294901760
        %v2969 = vsub.f32 %v430, %v2968
        %v2970 = vand.u32 %v2969, 4294901760
        %2971 = vmatpush1.msra.mxu0 %v2970
        %2972 = vmatprep.subr.mxu0 0.0
        %v2973 = vand.u32 %v431, 4294901760
        %v2974 = vsub.f32 %v431, %v2973
        %v2975 = vand.u32 %v2974, 4294901760
        %2976 = vmatpush1.msra.mxu0 %v2975
        %2977 = vmatprep.subr.mxu0 0.0
        %v2978 = vand.u32 %v432, 4294901760
        %v2979 = vsub.f32 %v432, %v2978
        %v2980 = vand.u32 %v2979, 4294901760
        %2981 = vmatpush1.msra.mxu0 %v2980
        %2982 = vmatprep.subr.mxu0 0.0
        %v2983 = vand.u32 %v433, 4294901760
        %v2984 = vsub.f32 %v433, %v2983
        %v2985 = vand.u32 %v2984, 4294901760
        %2986 = vmatpush1.msra.mxu0 %v2985
        %2987 = vmatprep.subr.mxu0 0.0
        %v2988 = vand.u32 %v434, 4294901760
        %v2989 = vsub.f32 %v434, %v2988
        %v2990 = vand.u32 %v2989, 4294901760
        %2991 = vmatpush1.msra.mxu0 %v2990
        %2992 = vmatprep.subr.mxu0 0.0
        %v2993 = vand.u32 %v435, 4294901760
        %v2994 = vsub.f32 %v435, %v2993
        %v2995 = vand.u32 %v2994, 4294901760
        %2996 = vmatpush1.msra.mxu0 %v2995
        %2997 = vmatprep.subr.mxu0 0.0
        %v2998 = vand.u32 %v436, 4294901760
        %v2999 = vsub.f32 %v436, %v2998
        %v3000 = vand.u32 %v2999, 4294901760
        %3001 = vmatpush1.msra.mxu0 %v3000
        %3002 = vmatprep.subr.mxu0 0.0
        %v3003 = vand.u32 %v437, 4294901760
        %v3004 = vsub.f32 %v437, %v3003
        %v3005 = vand.u32 %v3004, 4294901760
        %3006 = vmatpush1.msra.mxu0 %v3005
        %3007 = vmatprep.subr.mxu0 0.0
        %v3008 = vand.u32 %v438, 4294901760
        %v3009 = vsub.f32 %v438, %v3008
        %v3010 = vand.u32 %v3009, 4294901760
        %3011 = vmatpush1.msra.mxu0 %v3010
        %3012 = vmatprep.subr.mxu0 0.0
        %v3013 = vand.u32 %v439, 4294901760
        %v3014 = vsub.f32 %v439, %v3013
        %v3015 = vand.u32 %v3014, 4294901760
        %3016 = vmatpush1.msra.mxu0 %v3015
        %3017 = vmatprep.subr.mxu0 0.0
        %v3018 = vand.u32 %v440, 4294901760
        %v3019 = vsub.f32 %v440, %v3018
        %v3020 = vand.u32 %v3019, 4294901760
        %3021 = vmatpush1.msra.mxu0 %v3020
        %3022 = vmatprep.subr.mxu0 0.0
        %v3023 = vand.u32 %v441, 4294901760
        %v3024 = vsub.f32 %v441, %v3023
        %v3025 = vand.u32 %v3024, 4294901760
        %3026 = vmatpush1.msra.mxu0 %v3025
        %3027 = vmatprep.subr.mxu0 0.0
        %v3028 = vand.u32 %v442, 4294901760
        %v3029 = vsub.f32 %v442, %v3028
        %v3030 = vand.u32 %v3029, 4294901760
        %3031 = vmatpush1.msra.mxu0 %v3030
        %3032 = vmatprep.subr.mxu0 0.0
        %v3033 = vand.u32 %v443, 4294901760
        %v3034 = vsub.f32 %v443, %v3033
        %v3035 = vand.u32 %v3034, 4294901760
        %3036 = vmatpush1.msra.mxu0 %v3035
        %3037 = vmatprep.subr.mxu0 0.0
        %v3038 = vand.u32 %v444, 4294901760
        %v3039 = vsub.f32 %v444, %v3038
        %v3040 = vand.u32 %v3039, 4294901760
        %3041 = vmatpush1.msra.mxu0 %v3040
        %3042 = vmatprep.subr.mxu0 0.0
        %v3043 = vand.u32 %v445, 4294901760
        %v3044 = vsub.f32 %v445, %v3043
        %v3045 = vand.u32 %v3044, 4294901760
        %3046 = vmatpush1.msra.mxu0 %v3045
        %3047 = vmatprep.subr.mxu0 0.0
        %v3048 = vand.u32 %v446, 4294901760
        %v3049 = vsub.f32 %v446, %v3048
        %v3050 = vand.u32 %v3049, 4294901760
        %3051 = vmatpush1.msra.mxu0 %v3050
        %3052 = vmatprep.subr.mxu0 0.0
        %v3053 = vand.u32 %v447, 4294901760
        %v3054 = vsub.f32 %v447, %v3053
        %v3055 = vand.u32 %v3054, 4294901760
        %3056 = vmatpush1.msra.mxu0 %v3055
        %3057 = vmatprep.subr.mxu0 0.0
        %v3058 = vand.u32 %v448, 4294901760
        %v3059 = vsub.f32 %v448, %v3058
        %v3060 = vand.u32 %v3059, 4294901760
        %3061 = vmatpush1.msra.mxu0 %v3060
        %3062 = vmatprep.subr.mxu0 0.0
        %v3063 = vand.u32 %v449, 4294901760
        %v3064 = vsub.f32 %v449, %v3063
        %v3065 = vand.u32 %v3064, 4294901760
        %3066 = vmatpush1.msra.mxu0 %v3065
        %3067 = vmatprep.subr.mxu0 0.0
        %v3068 = vand.u32 %v450, 4294901760
        %v3069 = vsub.f32 %v450, %v3068
        %v3070 = vand.u32 %v3069, 4294901760
        %3071 = vmatpush1.msra.mxu0 %v3070
        %3072 = vmatprep.subr.mxu0 0.0
        %v3073 = vand.u32 %v451, 4294901760
        %v3074 = vsub.f32 %v451, %v3073
        %v3075 = vand.u32 %v3074, 4294901760
        %3076 = vmatpush1.msra.mxu0 %v3075
        %3077 = vmatprep.subr.mxu0 0.0
        %v3078 = vand.u32 %v452, 4294901760
        %v3079 = vsub.f32 %v452, %v3078
        %v3080 = vand.u32 %v3079, 4294901760
        %3081 = vmatpush1.msra.mxu0 %v3080
        %v3082 = vand.u32 %v350, 4294901760
        %3083 = vmatprep.mubr.f32.mxu0 %v3082
        %v3084 = vand.u32 %v349, 4294901760
        %3085 = vmatmul.mubr.f32.gmra.mrb[0].mxu0 %v3084
        %v3086 = vpop.f32.mrb[0].mxu0
        %v3087 = vadd.f32 %v2908, %v3086
        %v3088 = vpop.f32.mrb[0].mxu0
        %v3089 = vand.u32 %v356, 4294901760
        %3090 = vmatprep.mubr.f32.mxu0 %v3089
        %v3091 = vand.u32 %v355, 4294901760
        %3092 = vmatmul.mubr.f32.gmra.mrb[0].mxu0 %v3091
        %v3093 = vpop.f32.mrb[0].mxu0
        %v3094 = vadd.f32 %v2919, %v3093
        %v3095 = vpop.f32.mrb[0].mxu0
        %3096 = vdwg.mxu0
        %3097 = vmatprep.subr.mxu0 0.0
        %v3098 = vand.u32 %v421, 4294901760
        %3099 = vmatpush1.msra.mxu0 %v3098
        %3100 = vmatprep.subr.mxu0 0.0
        %v3101 = vand.u32 %v422, 4294901760
        %3102 = vmatpush1.msra.mxu0 %v3101
        %3103 = vmatprep.subr.mxu0 0.0
        %v3104 = vand.u32 %v423, 4294901760
        %3105 = vmatpush1.msra.mxu0 %v3104
        %3106 = vmatprep.subr.mxu0 0.0
        %v3107 = vand.u32 %v424, 4294901760
        %3108 = vmatpush1.msra.mxu0 %v3107
        %3109 = vmatprep.subr.mxu0 0.0
        %v3110 = vand.u32 %v425, 4294901760
        %3111 = vmatpush1.msra.mxu0 %v3110
        %3112 = vmatprep.subr.mxu0 0.0
        %v3113 = vand.u32 %v426, 4294901760
        %3114 = vmatpush1.msra.mxu0 %v3113
        %3115 = vmatprep.subr.mxu0 0.0
        %v3116 = vand.u32 %v427, 4294901760
        %3117 = vmatpush1.msra.mxu0 %v3116
        %3118 = vmatprep.subr.mxu0 0.0
        %v3119 = vand.u32 %v428, 4294901760
        %3120 = vmatpush1.msra.mxu0 %v3119
        %3121 = vmatprep.subr.mxu0 0.0
        %v3122 = vand.u32 %v429, 4294901760
        %3123 = vmatpush1.msra.mxu0 %v3122
        %3124 = vmatprep.subr.mxu0 0.0
        %v3125 = vand.u32 %v430, 4294901760
        %3126 = vmatpush1.msra.mxu0 %v3125
        %3127 = vmatprep.subr.mxu0 0.0
        %v3128 = vand.u32 %v431, 4294901760
        %3129 = vmatpush1.msra.mxu0 %v3128
        %3130 = vmatprep.subr.mxu0 0.0
        %v3131 = vand.u32 %v432, 4294901760
        %3132 = vmatpush1.msra.mxu0 %v3131
        %3133 = vmatprep.subr.mxu0 0.0
        %v3134 = vand.u32 %v433, 4294901760
        %3135 = vmatpush1.msra.mxu0 %v3134
        %3136 = vmatprep.subr.mxu0 0.0
        %v3137 = vand.u32 %v434, 4294901760
        %3138 = vmatpush1.msra.mxu0 %v3137
        %3139 = vmatprep.subr.mxu0 0.0
        %v3140 = vand.u32 %v435, 4294901760
        %3141 = vmatpush1.msra.mxu0 %v3140
        %3142 = vmatprep.subr.mxu0 0.0
        %v3143 = vand.u32 %v436, 4294901760
        %3144 = vmatpush1.msra.mxu0 %v3143
        %3145 = vmatprep.subr.mxu0 0.0
        %v3146 = vand.u32 %v437, 4294901760
        %3147 = vmatpush1.msra.mxu0 %v3146
        %3148 = vmatprep.subr.mxu0 0.0
        %v3149 = vand.u32 %v438, 4294901760
        %3150 = vmatpush1.msra.mxu0 %v3149
        %3151 = vmatprep.subr.mxu0 0.0
        %v3152 = vand.u32 %v439, 4294901760
        %3153 = vmatpush1.msra.mxu0 %v3152
        %3154 = vmatprep.subr.mxu0 0.0
        %v3155 = vand.u32 %v440, 4294901760
        %3156 = vmatpush1.msra.mxu0 %v3155
        %3157 = vmatprep.subr.mxu0 0.0
        %v3158 = vand.u32 %v441, 4294901760
        %3159 = vmatpush1.msra.mxu0 %v3158
        %3160 = vmatprep.subr.mxu0 0.0
        %v3161 = vand.u32 %v442, 4294901760
        %3162 = vmatpush1.msra.mxu0 %v3161
        %3163 = vmatprep.subr.mxu0 0.0
        %v3164 = vand.u32 %v443, 4294901760
        %3165 = vmatpush1.msra.mxu0 %v3164
        %3166 = vmatprep.subr.mxu0 0.0
        %v3167 = vand.u32 %v444, 4294901760
        %3168 = vmatpush1.msra.mxu0 %v3167
        %3169 = vmatprep.subr.mxu0 0.0
        %v3170 = vand.u32 %v445, 4294901760
        %3171 = vmatpush1.msra.mxu0 %v3170
        %3172 = vmatprep.subr.mxu0 0.0
        %v3173 = vand.u32 %v446, 4294901760
        %3174 = vmatpush1.msra.mxu0 %v3173
        %3175 = vmatprep.subr.mxu0 0.0
        %v3176 = vand.u32 %v447, 4294901760
        %3177 = vmatpush1.msra.mxu0 %v3176
        %3178 = vmatprep.subr.mxu0 0.0
        %v3179 = vand.u32 %v448, 4294901760
        %3180 = vmatpush1.msra.mxu0 %v3179
        %3181 = vmatprep.subr.mxu0 0.0
        %v3182 = vand.u32 %v449, 4294901760
        %3183 = vmatpush1.msra.mxu0 %v3182
        %3184 = vmatprep.subr.mxu0 0.0
        %v3185 = vand.u32 %v450, 4294901760
        %3186 = vmatpush1.msra.mxu0 %v3185
        %3187 = vmatprep.subr.mxu0 0.0
        %v3188 = vand.u32 %v451, 4294901760
        %3189 = vmatpush1.msra.mxu0 %v3188
        %3190 = vmatprep.subr.mxu0 0.0
        %v3191 = vand.u32 %v452, 4294901760
        %3192 = vmatpush1.msra.mxu0 %v3191
        %v3193 = vand.u32 %v350, 4294901760
        %3194 = vmatprep.mubr.f32.mxu0 %v3193
        %v3195 = vand.u32 %v349, 4294901760
        %3196 = vmatmul.mubr.f32.gmra.mrb[0].mxu0 %v3195
        %v3197 = vpop.f32.mrb[0].mxu0
        %v3198 = vadd.f32 %v3087, %v3197
        %v3199 = vpop.f32.mrb[0].mxu0
        %v3200 = vand.u32 %v356, 4294901760
        %3201 = vmatprep.mubr.f32.mxu0 %v3200
        %v3202 = vand.u32 %v355, 4294901760
        %3203 = vmatmul.mubr.f32.gmra.mrb[0].mxu0 %v3202
        %v3204 = vpop.f32.mrb[0].mxu0
        %v3205 = vadd.f32 %v3094, %v3204
        %v3206 = vpop.f32.mrb[0].mxu0
        %3207 = vdwg.mxu0
        %vm3208 = vcmp.ge.f32.partialorder %v3198, 0.0
        %vm3209 = vcmp.ge.f32.partialorder %v3205, 0.0
        %v3210 = vmul.f32 %v3198, 0.01
        %v3211 = vmul.f32 %v3205, 0.01
        %v3212 = vsel %vm3208, %v3198, %v3210
        %v3213 = vsel %vm3209, %v3205, %v3211
        %s3214 = smul.u32 %s24, 16
        %s3215 = scalar_lea.vmem [#allocation2], %s3214
        %3216 = vst [vmem:[%s3215] sm:$0xff] %v3212
        %3217 = vst [vmem:[%s3215 + $0x8] sm:$0xff] %v3213
        %p3218 = scmp.eq.s32.totalorder %s24, 1
        // Predicated region
        $region69: #{tpu_custom_call.1} parent=47 // pred_check
          %p3219 = pneg %p3218
        $region70: #{tpu_custom_call.1} parent=47 // pred_check_branch
          %3221 = sbr.rel (%p3219) target = $region72
        $region71: #{tpu_custom_call.1} parent=47 // pred_region
          %v3222 = vlaneseq
          %v3223 = vshrl.u32 %v3222, 7
          %v3224 = vadd.s32 %v3223, 8
          %v3225 = vadd.s32 %v3223, 16
          %v3226 = vadd.s32 %v3223, 24
          %vm3227 = vcmp.lt.s32.totalorder %v3223, 27
          %vm3228 = vcmp.lt.s32.totalorder %v3224, 27
          %vm3229 = vcmp.lt.s32.totalorder %v3225, 27
          %vm3230 = vcmp.lt.s32.totalorder %v3226, 27
          %v3231 = vsel %vm3227, 1, 0
          %v3232 = vsel %vm3228, 1, 0
          %v3233 = vsel %vm3229, 1, 0
          %v3234 = vsel %vm3230, 1, 0
          %v3235 = vcvt.s32.f32 %v3231
          %v3236 = vcvt.s32.f32 %v3232
          %v3237 = vcvt.s32.f32 %v3233
          %v3238 = vcvt.s32.f32 %v3234
          %v3239 = vld [vmem:[#allocation2] sm:$0xff]
          %v3240 = vld [vmem:[#allocation2 + $0x8] sm:$0xff]
          %v3241 = vld [vmem:[#allocation2 + $0x10] sm:$0xff]
          %v3242 = vld [vmem:[#allocation2 + $0x18] sm:$0xff]
          %v3243 = vld [vmem:[%s6 + $0x1] ss:$0 sm:$0xff]
          %v3244 = vld [vmem:[%s6 + $0x2] ss:$0 sm:$0xff]
          %v3245 = vmul.f32 %v3239, %v3235
          %v3246 = vmul.f32 %v3240, %v3236
          %v3247 = vmul.f32 %v3241, %v3237
          %v3248 = vmul.f32 %v3242, %v3238
          %v3249 = vadd.f32 %v3245, %v3246
          %v3250 = vadd.f32 %v3249, %v3247
          %v3251 = vadd.f32 %v3250, %v3248
          %v3252 = vrot.slane %v3251, 4
          %v3253 = vadd.f32 %v3251, %v3252
          %v3254 = vrot.slane %v3253, 2
          %v3255 = vadd.f32 %v3253, %v3254
          %v3256 = vrot.slane %v3255, 1
          %v3257 = vadd.f32 %v3255, %v3256
          %v3258 = vmul.f32 %v3257, 0.037037037
          %v3259 = vsub.f32 %v3239, %v3258
          %v3260 = vsub.f32 %v3240, %v3258
          %v3261 = vsub.f32 %v3241, %v3258
          %v3262 = vsub.f32 %v3242, %v3258
          %v3263 = vmul.f32 %v3259, %v3259
          %v3264 = vmul.f32 %v3260, %v3260
          %v3265 = vmul.f32 %v3261, %v3261
          %v3266 = vmul.f32 %v3262, %v3262
          %v3267 = vmul.f32 %v3263, %v3235
          %v3268 = vmul.f32 %v3264, %v3236
          %v3269 = vmul.f32 %v3265, %v3237
          %v3270 = vmul.f32 %v3266, %v3238
          %v3271 = vadd.f32 %v3267, %v3268
          %v3272 = vadd.f32 %v3271, %v3269
          %v3273 = vadd.f32 %v3272, %v3270
          %v3274 = vrot.slane %v3273, 4
          %v3275 = vadd.f32 %v3273, %v3274
          %v3276 = vrot.slane %v3275, 2
          %v3277 = vadd.f32 %v3275, %v3276
          %v3278 = vrot.slane %v3277, 1
          %v3279 = vadd.f32 %v3277, %v3278
          %v3280 = vmul.f32 %v3279, 0.037037037
          %v3281 = vadd.f32 %v3280, 1e-05
          %v3282 = vrsqrt.pop %v3281
          %v3283 = vmul.f32 %v3282, %v3243
          %v3284 = vmul.f32 %v3258, %v3283
          %v3285 = vsub.f32 %v3244, %v3284
          %v3286 = vmul.f32 %v3239, %v3283
          %v3287 = vmul.f32 %v3240, %v3283
          %v3288 = vmul.f32 %v3241, %v3283
          %v3289 = vmul.f32 %v3242, %v3283
          %v3290 = vadd.f32 %v3286, %v3285
          %v3291 = vadd.f32 %v3287, %v3285
          %v3292 = vadd.f32 %v3288, %v3285
          %v3293 = vadd.f32 %v3289, %v3285
          %v3294 = vld [vmem:[#allocation8] sm:$0xff]
          %v3295 = vld [vmem:[#allocation8 + $0x8] sm:$0xff]
          %v3296 = vld [vmem:[#allocation8 + $0x10] sm:$0xff]
          %v3297 = vld [vmem:[#allocation8 + $0x18] sm:$0xff]
          %v3298 = vld [vmem:[#allocation8 + $0x20] sm:$0xff]
          %v3299 = vld [vmem:[#allocation8 + $0x28] sm:$0xff]
          %v3300 = vld [vmem:[#allocation8 + $0x30] sm:$0xff]
          %v3301 = vld [vmem:[#allocation8 + $0x38] sm:$0xff]
          %v3302 = vld [vmem:[#allocation8 + $0x40] sm:$0xff]
          %v3303 = vld [vmem:[#allocation8 + $0x48] sm:$0xff]
          %v3304 = vld [vmem:[#allocation8 + $0x50] sm:$0xff]
          %v3305 = vld [vmem:[#allocation8 + $0x58] sm:$0xff]
          %v3306 = vld [vmem:[#allocation8 + $0x60] sm:$0xff]
          %v3307 = vld [vmem:[#allocation8 + $0x68] sm:$0xff]
          %v3308 = vld [vmem:[#allocation8 + $0x70] sm:$0xff]
          %v3309 = vld [vmem:[#allocation8 + $0x78] sm:$0xff]
          %v3310 = vld [vmem:[%s6 + $0x3] ss:$0 sm:$0xff]
          %3311 = vmatprep.subr.mxu0 0.0
          %v3312 = vand.u32 %v3294, 4294901760
          %3313 = vmatpush1.msra.mxu0 %v3312
          %3314 = vmatprep.subr.mxu0 0.0
          %v3315 = vand.u32 %v3295, 4294901760
          %3316 = vmatpush1.msra.mxu0 %v3315
          %3317 = vmatprep.subr.mxu0 0.0
          %v3318 = vand.u32 %v3296, 4294901760
          %3319 = vmatpush1.msra.mxu0 %v3318
          %3320 = vmatprep.subr.mxu0 0.0
          %v3321 = vand.u32 %v3297, 4294901760
          %3322 = vmatpush1.msra.mxu0 %v3321
          %3323 = vmatprep.subr.mxu0 0.0
          %v3324 = vand.u32 %v3298, 4294901760
          %3325 = vmatpush1.msra.mxu0 %v3324
          %3326 = vmatprep.subr.mxu0 0.0
          %v3327 = vand.u32 %v3299, 4294901760
          %3328 = vmatpush1.msra.mxu0 %v3327
          %3329 = vmatprep.subr.mxu0 0.0
          %v3330 = vand.u32 %v3300, 4294901760
          %3331 = vmatpush1.msra.mxu0 %v3330
          %3332 = vmatprep.subr.mxu0 0.0
          %v3333 = vand.u32 %v3301, 4294901760
          %3334 = vmatpush1.msra.mxu0 %v3333
          %3335 = vmatprep.subr.mxu0 0.0
          %v3336 = vand.u32 %v3302, 4294901760
          %3337 = vmatpush1.msra.mxu0 %v3336
          %3338 = vmatprep.subr.mxu0 0.0
          %v3339 = vand.u32 %v3303, 4294901760
          %3340 = vmatpush1.msra.mxu0 %v3339
          %3341 = vmatprep.subr.mxu0 0.0
          %v3342 = vand.u32 %v3304, 4294901760
          %3343 = vmatpush1.msra.mxu0 %v3342
          %3344 = vmatprep.subr.mxu0 0.0
          %v3345 = vand.u32 %v3305, 4294901760
          %3346 = vmatpush1.msra.mxu0 %v3345
          %3347 = vmatprep.subr.mxu0 0.0
          %v3348 = vand.u32 %v3306, 4294901760
          %3349 = vmatpush1.msra.mxu0 %v3348
          %3350 = vmatprep.subr.mxu0 0.0
          %v3351 = vand.u32 %v3307, 4294901760
          %3352 = vmatpush1.msra.mxu0 %v3351
          %3353 = vmatprep.subr.mxu0 0.0
          %v3354 = vand.u32 %v3308, 4294901760
          %3355 = vmatpush1.msra.mxu0 %v3354
          %3356 = vmatprep.subr.mxu0 0.0
          %v3357 = vand.u32 %v3309, 4294901760
          %3358 = vmatpush1.msra.mxu0 %v3357
          %3359 = vmatprep.subr.mxu0 0.0
          %3360 = vmatpush1.msra.mxu0 0.0
          %3361 = vmatprep.subr.mxu0 0.0
          %3362 = vmatpush1.msra.mxu0 0.0
          %3363 = vmatprep.subr.mxu0 0.0
          %3364 = vmatpush1.msra.mxu0 0.0
          %3365 = vmatprep.subr.mxu0 0.0
          %3366 = vmatpush1.msra.mxu0 0.0
          %3367 = vmatprep.subr.mxu0 0.0
          %3368 = vmatpush1.msra.mxu0 0.0
          %3369 = vmatprep.subr.mxu0 0.0
          %3370 = vmatpush1.msra.mxu0 0.0
          %3371 = vmatprep.subr.mxu0 0.0
          %3372 = vmatpush1.msra.mxu0 0.0
          %3373 = vmatprep.subr.mxu0 0.0
          %3374 = vmatpush1.msra.mxu0 0.0
          %3375 = vmatprep.subr.mxu0 0.0
          %3376 = vmatpush1.msra.mxu0 0.0
          %3377 = vmatprep.subr.mxu0 0.0
          %3378 = vmatpush1.msra.mxu0 0.0
          %3379 = vmatprep.subr.mxu0 0.0
          %3380 = vmatpush1.msra.mxu0 0.0
          %3381 = vmatprep.subr.mxu0 0.0
          %3382 = vmatpush1.msra.mxu0 0.0
          %3383 = vmatprep.subr.mxu0 0.0
          %3384 = vmatpush1.msra.mxu0 0.0
          %3385 = vmatprep.subr.mxu0 0.0
          %3386 = vmatpush1.msra.mxu0 0.0
          %3387 = vmatprep.subr.mxu0 0.0
          %3388 = vmatpush1.msra.mxu0 0.0
          %3389 = vmatprep.subr.mxu0 0.0
          %3390 = vmatpush1.msra.mxu0 0.0
          %3391 = vmatprep.mubr.f32.mxu0 0.0
          %v3392 = vand.u32 %v3290, 4294901760
          %v3393 = vsub.f32 %v3290, %v3392
          %v3394 = vand.u32 %v3393, 4294901760
          %v3395 = vsub.f32 %v3393, %v3394
          %v3396 = vand.u32 %v3395, 4294901760
          %3397 = vmatmul.mubr.f32.gmra.mrb[0].mxu0 %v3396
          %v3398 = vpop.f32.mrb[0].mxu0
          %v3399 = vadd.f32 %v3310, %v3398
          %v3400 = vpop.f32.mrb[0].mxu0
          %3401 = vmatprep.mubr.f32.mxu0 0.0
          %v3402 = vand.u32 %v3291, 4294901760
          %v3403 = vsub.f32 %v3291, %v3402
          %v3404 = vand.u32 %v3403, 4294901760
          %v3405 = vsub.f32 %v3403, %v3404
          %v3406 = vand.u32 %v3405, 4294901760
          %3407 = vmatmul.mubr.f32.gmra.mrb[0].mxu0 %v3406
          %v3408 = vpop.f32.mrb[0].mxu0
          %v3409 = vadd.f32 %v3310, %v3408
          %v3410 = vpop.f32.mrb[0].mxu0
          %3411 = vmatprep.mubr.f32.mxu0 0.0
          %v3412 = vand.u32 %v3292, 4294901760
          %v3413 = vsub.f32 %v3292, %v3412
          %v3414 = vand.u32 %v3413, 4294901760
          %v3415 = vsub.f32 %v3413, %v3414
          %v3416 = vand.u32 %v3415, 4294901760
          %3417 = vmatmul.mubr.f32.gmra.mrb[0].mxu0 %v3416
          %v3418 = vpop.f32.mrb[0].mxu0
          %v3419 = vadd.f32 %v3310, %v3418
          %v3420 = vpop.f32.mrb[0].mxu0
          %3421 = vmatprep.mubr.f32.mxu0 0.0
          %v3422 = vand.u32 %v3293, 4294901760
          %v3423 = vsub.f32 %v3293, %v3422
          %v3424 = vand.u32 %v3423, 4294901760
          %v3425 = vsub.f32 %v3423, %v3424
          %v3426 = vand.u32 %v3425, 4294901760
          %3427 = vmatmul.mubr.f32.gmra.mrb[0].mxu0 %v3426
          %v3428 = vpop.f32.mrb[0].mxu0
          %v3429 = vadd.f32 %v3310, %v3428
          %v3430 = vpop.f32.mrb[0].mxu0
          %3431 = vdwg.mxu0
          %3432 = vmatprep.subr.mxu0 0.0
          %v3433 = vand.u32 %v3294, 4294901760
          %v3434 = vsub.f32 %v3294, %v3433
          %v3435 = vand.u32 %v3434, 4294901760
          %v3436 = vsub.f32 %v3434, %v3435
          %v3437 = vand.u32 %v3436, 4294901760
          %3438 = vmatpush1.msra.mxu0 %v3437
          %3439 = vmatprep.subr.mxu0 0.0
          %v3440 = vand.u32 %v3295, 4294901760
          %v3441 = vsub.f32 %v3295, %v3440
          %v3442 = vand.u32 %v3441, 4294901760
          %v3443 = vsub.f32 %v3441, %v3442
          %v3444 = vand.u32 %v3443, 4294901760
          %3445 = vmatpush1.msra.mxu0 %v3444
          %3446 = vmatprep.subr.mxu0 0.0
          %v3447 = vand.u32 %v3296, 4294901760
          %v3448 = vsub.f32 %v3296, %v3447
          %v3449 = vand.u32 %v3448, 4294901760
          %v3450 = vsub.f32 %v3448, %v3449
          %v3451 = vand.u32 %v3450, 4294901760
          %3452 = vmatpush1.msra.mxu0 %v3451
          %3453 = vmatprep.subr.mxu0 0.0
          %v3454 = vand.u32 %v3297, 4294901760
          %v3455 = vsub.f32 %v3297, %v3454
          %v3456 = vand.u32 %v3455, 4294901760
          %v3457 = vsub.f32 %v3455, %v3456
          %v3458 = vand.u32 %v3457, 4294901760
          %3459 = vmatpush1.msra.mxu0 %v3458
          %3460 = vmatprep.subr.mxu0 0.0
          %v3461 = vand.u32 %v3298, 4294901760
          %v3462 = vsub.f32 %v3298, %v3461
          %v3463 = vand.u32 %v3462, 4294901760
          %v3464 = vsub.f32 %v3462, %v3463
          %v3465 = vand.u32 %v3464, 4294901760
          %3466 = vmatpush1.msra.mxu0 %v3465
          %3467 = vmatprep.subr.mxu0 0.0
          %v3468 = vand.u32 %v3299, 4294901760
          %v3469 = vsub.f32 %v3299, %v3468
          %v3470 = vand.u32 %v3469, 4294901760
          %v3471 = vsub.f32 %v3469, %v3470
          %v3472 = vand.u32 %v3471, 4294901760
          %3473 = vmatpush1.msra.mxu0 %v3472
          %3474 = vmatprep.subr.mxu0 0.0
          %v3475 = vand.u32 %v3300, 4294901760
          %v3476 = vsub.f32 %v3300, %v3475
          %v3477 = vand.u32 %v3476, 4294901760
          %v3478 = vsub.f32 %v3476, %v3477
          %v3479 = vand.u32 %v3478, 4294901760
          %3480 = vmatpush1.msra.mxu0 %v3479
          %3481 = vmatprep.subr.mxu0 0.0
          %v3482 = vand.u32 %v3301, 4294901760
          %v3483 = vsub.f32 %v3301, %v3482
          %v3484 = vand.u32 %v3483, 4294901760
          %v3485 = vsub.f32 %v3483, %v3484
          %v3486 = vand.u32 %v3485, 4294901760
          %3487 = vmatpush1.msra.mxu0 %v3486
          %3488 = vmatprep.subr.mxu0 0.0
          %v3489 = vand.u32 %v3302, 4294901760
          %v3490 = vsub.f32 %v3302, %v3489
          %v3491 = vand.u32 %v3490, 4294901760
          %v3492 = vsub.f32 %v3490, %v3491
          %v3493 = vand.u32 %v3492, 4294901760
          %3494 = vmatpush1.msra.mxu0 %v3493
          %3495 = vmatprep.subr.mxu0 0.0
          %v3496 = vand.u32 %v3303, 4294901760
          %v3497 = vsub.f32 %v3303, %v3496
          %v3498 = vand.u32 %v3497, 4294901760
          %v3499 = vsub.f32 %v3497, %v3498
          %v3500 = vand.u32 %v3499, 4294901760
          %3501 = vmatpush1.msra.mxu0 %v3500
          %3502 = vmatprep.subr.mxu0 0.0
          %v3503 = vand.u32 %v3304, 4294901760
          %v3504 = vsub.f32 %v3304, %v3503
          %v3505 = vand.u32 %v3504, 4294901760
          %v3506 = vsub.f32 %v3504, %v3505
          %v3507 = vand.u32 %v3506, 4294901760
          %3508 = vmatpush1.msra.mxu0 %v3507
          %3509 = vmatprep.subr.mxu0 0.0
          %v3510 = vand.u32 %v3305, 4294901760
          %v3511 = vsub.f32 %v3305, %v3510
          %v3512 = vand.u32 %v3511, 4294901760
          %v3513 = vsub.f32 %v3511, %v3512
          %v3514 = vand.u32 %v3513, 4294901760
          %3515 = vmatpush1.msra.mxu0 %v3514
          %3516 = vmatprep.subr.mxu0 0.0
          %v3517 = vand.u32 %v3306, 4294901760
          %v3518 = vsub.f32 %v3306, %v3517
          %v3519 = vand.u32 %v3518, 4294901760
          %v3520 = vsub.f32 %v3518, %v3519
          %v3521 = vand.u32 %v3520, 4294901760
          %3522 = vmatpush1.msra.mxu0 %v3521
          %3523 = vmatprep.subr.mxu0 0.0
          %v3524 = vand.u32 %v3307, 4294901760
          %v3525 = vsub.f32 %v3307, %v3524
          %v3526 = vand.u32 %v3525, 4294901760
          %v3527 = vsub.f32 %v3525, %v3526
          %v3528 = vand.u32 %v3527, 4294901760
          %3529 = vmatpush1.msra.mxu0 %v3528
          %3530 = vmatprep.subr.mxu0 0.0
          %v3531 = vand.u32 %v3308, 4294901760
          %v3532 = vsub.f32 %v3308, %v3531
          %v3533 = vand.u32 %v3532, 4294901760
          %v3534 = vsub.f32 %v3532, %v3533
          %v3535 = vand.u32 %v3534, 4294901760
          %3536 = vmatpush1.msra.mxu0 %v3535
          %3537 = vmatprep.subr.mxu0 0.0
          %v3538 = vand.u32 %v3309, 4294901760
          %v3539 = vsub.f32 %v3309, %v3538
          %v3540 = vand.u32 %v3539, 4294901760
          %v3541 = vsub.f32 %v3539, %v3540
          %v3542 = vand.u32 %v3541, 4294901760
          %3543 = vmatpush1.msra.mxu0 %v3542
          %3544 = vmatprep.subr.mxu0 0.0
          %3545 = vmatpush1.msra.mxu0 0.0
          %3546 = vmatprep.subr.mxu0 0.0
          %3547 = vmatpush1.msra.mxu0 0.0
          %3548 = vmatprep.subr.mxu0 0.0
          %3549 = vmatpush1.msra.mxu0 0.0
          %3550 = vmatprep.subr.mxu0 0.0
          %3551 = vmatpush1.msra.mxu0 0.0
          %3552 = vmatprep.subr.mxu0 0.0
          %3553 = vmatpush1.msra.mxu0 0.0
          %3554 = vmatprep.subr.mxu0 0.0
          %3555 = vmatpush1.msra.mxu0 0.0
          %3556 = vmatprep.subr.mxu0 0.0
          %3557 = vmatpush1.msra.mxu0 0.0
          %3558 = vmatprep.subr.mxu0 0.0
          %3559 = vmatpush1.msra.mxu0 0.0
          %3560 = vmatprep.subr.mxu0 0.0
          %3561 = vmatpush1.msra.mxu0 0.0
          %3562 = vmatprep.subr.mxu0 0.0
          %3563 = vmatpush1.msra.mxu0 0.0
          %3564 = vmatprep.subr.mxu0 0.0
          %3565 = vmatpush1.msra.mxu0 0.0
          %3566 = vmatprep.subr.mxu0 0.0
          %3567 = vmatpush1.msra.mxu0 0.0
          %3568 = vmatprep.subr.mxu0 0.0
          %3569 = vmatpush1.msra.mxu0 0.0
          %3570 = vmatprep.subr.mxu0 0.0
          %3571 = vmatpush1.msra.mxu0 0.0
          %3572 = vmatprep.subr.mxu0 0.0
          %3573 = vmatpush1.msra.mxu0 0.0
          %3574 = vmatprep.subr.mxu0 0.0
          %3575 = vmatpush1.msra.mxu0 0.0
          %3576 = vmatprep.mubr.f32.mxu0 0.0
          %v3577 = vand.u32 %v3290, 4294901760
          %3578 = vmatmul.mubr.f32.gmra.mrb[0].mxu0 %v3577
          %v3579 = vpop.f32.mrb[0].mxu0
          %v3580 = vadd.f32 %v3399, %v3579
          %v3581 = vpop.f32.mrb[0].mxu0
          %3582 = vmatprep.mubr.f32.mxu0 0.0
          %v3583 = vand.u32 %v3291, 4294901760
          %3584 = vmatmul.mubr.f32.gmra.mrb[0].mxu0 %v3583
          %v3585 = vpop.f32.mrb[0].mxu0
          %v3586 = vadd.f32 %v3409, %v3585
          %v3587 = vpop.f32.mrb[0].mxu0
          %3588 = vmatprep.mubr.f32.mxu0 0.0
          %v3589 = vand.u32 %v3292, 4294901760
          %3590 = vmatmul.mubr.f32.gmra.mrb[0].mxu0 %v3589
          %v3591 = vpop.f32.mrb[0].mxu0
          %v3592 = vadd.f32 %v3419, %v3591
          %v3593 = vpop.f32.mrb[0].mxu0
          %3594 = vmatprep.mubr.f32.mxu0 0.0
          %v3595 = vand.u32 %v3293, 4294901760
          %3596 = vmatmul.mubr.f32.gmra.mrb[0].mxu0 %v3595
          %v3597 = vpop.f32.mrb[0].mxu0
          %v3598 = vadd.f32 %v3429, %v3597
          %v3599 = vpop.f32.mrb[0].mxu0
          %3600 = vdwg.mxu0
          %3601 = vmatprep.subr.mxu0 0.0
          %v3602 = vand.u32 %v3294, 4294901760
          %v3603 = vsub.f32 %v3294, %v3602
          %3604 = vmatpush1.msra.mxu0 %v3603
          %3605 = vmatprep.subr.mxu0 0.0
          %v3606 = vand.u32 %v3295, 4294901760
          %v3607 = vsub.f32 %v3295, %v3606
          %3608 = vmatpush1.msra.mxu0 %v3607
          %3609 = vmatprep.subr.mxu0 0.0
          %v3610 = vand.u32 %v3296, 4294901760
          %v3611 = vsub.f32 %v3296, %v3610
          %3612 = vmatpush1.msra.mxu0 %v3611
          %3613 = vmatprep.subr.mxu0 0.0
          %v3614 = vand.u32 %v3297, 4294901760
          %v3615 = vsub.f32 %v3297, %v3614
          %3616 = vmatpush1.msra.mxu0 %v3615
          %3617 = vmatprep.subr.mxu0 0.0
          %v3618 = vand.u32 %v3298, 4294901760
          %v3619 = vsub.f32 %v3298, %v3618
          %3620 = vmatpush1.msra.mxu0 %v3619
          %3621 = vmatprep.subr.mxu0 0.0
          %v3622 = vand.u32 %v3299, 4294901760
          %v3623 = vsub.f32 %v3299, %v3622
          %3624 = vmatpush1.msra.mxu0 %v3623
          %3625 = vmatprep.subr.mxu0 0.0
          %v3626 = vand.u32 %v3300, 4294901760
          %v3627 = vsub.f32 %v3300, %v3626
          %3628 = vmatpush1.msra.mxu0 %v3627
          %3629 = vmatprep.subr.mxu0 0.0
          %v3630 = vand.u32 %v3301, 4294901760
          %v3631 = vsub.f32 %v3301, %v3630
          %3632 = vmatpush1.msra.mxu0 %v3631
          %3633 = vmatprep.subr.mxu0 0.0
          %v3634 = vand.u32 %v3302, 4294901760
          %v3635 = vsub.f32 %v3302, %v3634
          %3636 = vmatpush1.msra.mxu0 %v3635
          %3637 = vmatprep.subr.mxu0 0.0
          %v3638 = vand.u32 %v3303, 4294901760
          %v3639 = vsub.f32 %v3303, %v3638
          %3640 = vmatpush1.msra.mxu0 %v3639
          %3641 = vmatprep.subr.mxu0 0.0
          %v3642 = vand.u32 %v3304, 4294901760
          %v3643 = vsub.f32 %v3304, %v3642
          %3644 = vmatpush1.msra.mxu0 %v3643
          %3645 = vmatprep.subr.mxu0 0.0
          %v3646 = vand.u32 %v3305, 4294901760
          %v3647 = vsub.f32 %v3305, %v3646
          %3648 = vmatpush1.msra.mxu0 %v3647
          %3649 = vmatprep.subr.mxu0 0.0
          %v3650 = vand.u32 %v3306, 4294901760
          %v3651 = vsub.f32 %v3306, %v3650
          %3652 = vmatpush1.msra.mxu0 %v3651
          %3653 = vmatprep.subr.mxu0 0.0
          %v3654 = vand.u32 %v3307, 4294901760
          %v3655 = vsub.f32 %v3307, %v3654
          %3656 = vmatpush1.msra.mxu0 %v3655
          %3657 = vmatprep.subr.mxu0 0.0
          %v3658 = vand.u32 %v3308, 4294901760
          %v3659 = vsub.f32 %v3308, %v3658
          %3660 = vmatpush1.msra.mxu0 %v3659
          %3661 = vmatprep.subr.mxu0 0.0
          %v3662 = vand.u32 %v3309, 4294901760
          %v3663 = vsub.f32 %v3309, %v3662
          %3664 = vmatpush1.msra.mxu0 %v3663
          %3665 = vmatprep.subr.mxu0 0.0
          %3666 = vmatpush1.msra.mxu0 0.0
          %3667 = vmatprep.subr.mxu0 0.0
          %3668 = vmatpush1.msra.mxu0 0.0
          %3669 = vmatprep.subr.mxu0 0.0
          %3670 = vmatpush1.msra.mxu0 0.0
          %3671 = vmatprep.subr.mxu0 0.0
          %3672 = vmatpush1.msra.mxu0 0.0
          %3673 = vmatprep.subr.mxu0 0.0
          %3674 = vmatpush1.msra.mxu0 0.0
          %3675 = vmatprep.subr.mxu0 0.0
          %3676 = vmatpush1.msra.mxu0 0.0
          %3677 = vmatprep.subr.mxu0 0.0
          %3678 = vmatpush1.msra.mxu0 0.0
          %3679 = vmatprep.subr.mxu0 0.0
          %3680 = vmatpush1.msra.mxu0 0.0
          %3681 = vmatprep.subr.mxu0 0.0
          %3682 = vmatpush1.msra.mxu0 0.0
          %3683 = vmatprep.subr.mxu0 0.0
          %3684 = vmatpush1.msra.mxu0 0.0
          %3685 = vmatprep.subr.mxu0 0.0
          %3686 = vmatpush1.msra.mxu0 0.0
          %3687 = vmatprep.subr.mxu0 0.0
          %3688 = vmatpush1.msra.mxu0 0.0
          %3689 = vmatprep.subr.mxu0 0.0
          %3690 = vmatpush1.msra.mxu0 0.0
          %3691 = vmatprep.subr.mxu0 0.0
          %3692 = vmatpush1.msra.mxu0 0.0
          %3693 = vmatprep.subr.mxu0 0.0
          %3694 = vmatpush1.msra.mxu0 0.0
          %3695 = vmatprep.subr.mxu0 0.0
          %3696 = vmatpush1.msra.mxu0 0.0
          %3697 = vmatprep.mubr.f32.mxu0 0.0
          %v3698 = vand.u32 %v3290, 4294901760
          %v3699 = vsub.f32 %v3290, %v3698
          %3700 = vmatmul.mubr.f32.gmra.mrb[0].mxu0 %v3699
          %v3701 = vpop.f32.mrb[0].mxu0
          %v3702 = vadd.f32 %v3580, %v3701
          %v3703 = vpop.f32.mrb[0].mxu0
          %3704 = vmatprep.mubr.f32.mxu0 0.0
          %v3705 = vand.u32 %v3291, 4294901760
          %v3706 = vsub.f32 %v3291, %v3705
          %3707 = vmatmul.mubr.f32.gmra.mrb[0].mxu0 %v3706
          %v3708 = vpop.f32.mrb[0].mxu0
          %v3709 = vadd.f32 %v3586, %v3708
          %v3710 = vpop.f32.mrb[0].mxu0
          %3711 = vmatprep.mubr.f32.mxu0 0.0
          %v3712 = vand.u32 %v3292, 4294901760
          %v3713 = vsub.f32 %v3292, %v3712
          %3714 = vmatmul.mubr.f32.gmra.mrb[0].mxu0 %v3713
          %v3715 = vpop.f32.mrb[0].mxu0
          %v3716 = vadd.f32 %v3592, %v3715
          %v3717 = vpop.f32.mrb[0].mxu0
          %3718 = vmatprep.mubr.f32.mxu0 0.0
          %v3719 = vand.u32 %v3293, 4294901760
          %v3720 = vsub.f32 %v3293, %v3719
          %3721 = vmatmul.mubr.f32.gmra.mrb[0].mxu0 %v3720
          %v3722 = vpop.f32.mrb[0].mxu0
          %v3723 = vadd.f32 %v3598, %v3722
          %v3724 = vpop.f32.mrb[0].mxu0
          %3725 = vdwg.mxu0
          %3726 = vmatprep.subr.mxu0 0.0
          %v3727 = vand.u32 %v3294, 4294901760
          %3728 = vmatpush1.msra.mxu0 %v3727
          %3729 = vmatprep.subr.mxu0 0.0
          %v3730 = vand.u32 %v3295, 4294901760
          %3731 = vmatpush1.msra.mxu0 %v3730
          %3732 = vmatprep.subr.mxu0 0.0
          %v3733 = vand.u32 %v3296, 4294901760
          %3734 = vmatpush1.msra.mxu0 %v3733
          %3735 = vmatprep.subr.mxu0 0.0
          %v3736 = vand.u32 %v3297, 4294901760
          %3737 = vmatpush1.msra.mxu0 %v3736
          %3738 = vmatprep.subr.mxu0 0.0
          %v3739 = vand.u32 %v3298, 4294901760
          %3740 = vmatpush1.msra.mxu0 %v3739
          %3741 = vmatprep.subr.mxu0 0.0
          %v3742 = vand.u32 %v3299, 4294901760
          %3743 = vmatpush1.msra.mxu0 %v3742
          %3744 = vmatprep.subr.mxu0 0.0
          %v3745 = vand.u32 %v3300, 4294901760
          %3746 = vmatpush1.msra.mxu0 %v3745
          %3747 = vmatprep.subr.mxu0 0.0
          %v3748 = vand.u32 %v3301, 4294901760
          %3749 = vmatpush1.msra.mxu0 %v3748
          %3750 = vmatprep.subr.mxu0 0.0
          %v3751 = vand.u32 %v3302, 4294901760
          %3752 = vmatpush1.msra.mxu0 %v3751
          %3753 = vmatprep.subr.mxu0 0.0
          %v3754 = vand.u32 %v3303, 4294901760
          %3755 = vmatpush1.msra.mxu0 %v3754
          %3756 = vmatprep.subr.mxu0 0.0
          %v3757 = vand.u32 %v3304, 4294901760
          %3758 = vmatpush1.msra.mxu0 %v3757
          %3759 = vmatprep.subr.mxu0 0.0
          %v3760 = vand.u32 %v3305, 4294901760
          %3761 = vmatpush1.msra.mxu0 %v3760
          %3762 = vmatprep.subr.mxu0 0.0
          %v3763 = vand.u32 %v3306, 4294901760
          %3764 = vmatpush1.msra.mxu0 %v3763
          %3765 = vmatprep.subr.mxu0 0.0
          %v3766 = vand.u32 %v3307, 4294901760
          %3767 = vmatpush1.msra.mxu0 %v3766
          %3768 = vmatprep.subr.mxu0 0.0
          %v3769 = vand.u32 %v3308, 4294901760
          %3770 = vmatpush1.msra.mxu0 %v3769
          %3771 = vmatprep.subr.mxu0 0.0
          %v3772 = vand.u32 %v3309, 4294901760
          %3773 = vmatpush1.msra.mxu0 %v3772
          %3774 = vmatprep.subr.mxu0 0.0
          %3775 = vmatpush1.msra.mxu0 0.0
          %3776 = vmatprep.subr.mxu0 0.0
          %3777 = vmatpush1.msra.mxu0 0.0
          %3778 = vmatprep.subr.mxu0 0.0
          %3779 = vmatpush1.msra.mxu0 0.0
          %3780 = vmatprep.subr.mxu0 0.0
          %3781 = vmatpush1.msra.mxu0 0.0
          %3782 = vmatprep.subr.mxu0 0.0
          %3783 = vmatpush1.msra.mxu0 0.0
          %3784 = vmatprep.subr.mxu0 0.0
          %3785 = vmatpush1.msra.mxu0 0.0
          %3786 = vmatprep.subr.mxu0 0.0
          %3787 = vmatpush1.msra.mxu0 0.0
          %3788 = vmatprep.subr.mxu0 0.0
          %3789 = vmatpush1.msra.mxu0 0.0
          %3790 = vmatprep.subr.mxu0 0.0
          %3791 = vmatpush1.msra.mxu0 0.0
          %3792 = vmatprep.subr.mxu0 0.0
          %3793 = vmatpush1.msra.mxu0 0.0
          %3794 = vmatprep.subr.mxu0 0.0
          %3795 = vmatpush1.msra.mxu0 0.0
          %3796 = vmatprep.subr.mxu0 0.0
          %3797 = vmatpush1.msra.mxu0 0.0
          %3798 = vmatprep.subr.mxu0 0.0
          %3799 = vmatpush1.msra.mxu0 0.0
          %3800 = vmatprep.subr.mxu0 0.0
          %3801 = vmatpush1.msra.mxu0 0.0
          %3802 = vmatprep.subr.mxu0 0.0
          %3803 = vmatpush1.msra.mxu0 0.0
          %3804 = vmatprep.subr.mxu0 0.0
          %3805 = vmatpush1.msra.mxu0 0.0
          %3806 = vmatprep.mubr.f32.mxu0 0.0
          %v3807 = vand.u32 %v3290, 4294901760
          %v3808 = vsub.f32 %v3290, %v3807
          %v3809 = vand.u32 %v3808, 4294901760
          %3810 = vmatmul.mubr.f32.gmra.mrb[0].mxu0 %v3809
          %v3811 = vpop.f32.mrb[0].mxu0
          %v3812 = vadd.f32 %v3702, %v3811
          %v3813 = vpop.f32.mrb[0].mxu0
          %3814 = vmatprep.mubr.f32.mxu0 0.0
          %v3815 = vand.u32 %v3291, 4294901760
          %v3816 = vsub.f32 %v3291, %v3815
          %v3817 = vand.u32 %v3816, 4294901760
          %3818 = vmatmul.mubr.f32.gmra.mrb[0].mxu0 %v3817
          %v3819 = vpop.f32.mrb[0].mxu0
          %v3820 = vadd.f32 %v3709, %v3819
          %v3821 = vpop.f32.mrb[0].mxu0
          %3822 = vmatprep.mubr.f32.mxu0 0.0
          %v3823 = vand.u32 %v3292, 4294901760
          %v3824 = vsub.f32 %v3292, %v3823
          %v3825 = vand.u32 %v3824, 4294901760
          %3826 = vmatmul.mubr.f32.gmra.mrb[0].mxu0 %v3825
          %v3827 = vpop.f32.mrb[0].mxu0
          %v3828 = vadd.f32 %v3716, %v3827
          %v3829 = vpop.f32.mrb[0].mxu0
          %3830 = vmatprep.mubr.f32.mxu0 0.0
          %v3831 = vand.u32 %v3293, 4294901760
          %v3832 = vsub.f32 %v3293, %v3831
          %v3833 = vand.u32 %v3832, 4294901760
          %3834 = vmatmul.mubr.f32.gmra.mrb[0].mxu0 %v3833
          %v3835 = vpop.f32.mrb[0].mxu0
          %v3836 = vadd.f32 %v3723, %v3835
          %v3837 = vpop.f32.mrb[0].mxu0
          %3838 = vdwg.mxu0
          %3839 = vmatprep.subr.mxu0 0.0
          %v3840 = vand.u32 %v3294, 4294901760
          %v3841 = vsub.f32 %v3294, %v3840
          %v3842 = vand.u32 %v3841, 4294901760
          %3843 = vmatpush1.msra.mxu0 %v3842
          %3844 = vmatprep.subr.mxu0 0.0
          %v3845 = vand.u32 %v3295, 4294901760
          %v3846 = vsub.f32 %v3295, %v3845
          %v3847 = vand.u32 %v3846, 4294901760
          %3848 = vmatpush1.msra.mxu0 %v3847
          %3849 = vmatprep.subr.mxu0 0.0
          %v3850 = vand.u32 %v3296, 4294901760
          %v3851 = vsub.f32 %v3296, %v3850
          %v3852 = vand.u32 %v3851, 4294901760
          %3853 = vmatpush1.msra.mxu0 %v3852
          %3854 = vmatprep.subr.mxu0 0.0
          %v3855 = vand.u32 %v3297, 4294901760
          %v3856 = vsub.f32 %v3297, %v3855
          %v3857 = vand.u32 %v3856, 4294901760
          %3858 = vmatpush1.msra.mxu0 %v3857
          %3859 = vmatprep.subr.mxu0 0.0
          %v3860 = vand.u32 %v3298, 4294901760
          %v3861 = vsub.f32 %v3298, %v3860
          %v3862 = vand.u32 %v3861, 4294901760
          %3863 = vmatpush1.msra.mxu0 %v3862
          %3864 = vmatprep.subr.mxu0 0.0
          %v3865 = vand.u32 %v3299, 4294901760
          %v3866 = vsub.f32 %v3299, %v3865
          %v3867 = vand.u32 %v3866, 4294901760
          %3868 = vmatpush1.msra.mxu0 %v3867
          %3869 = vmatprep.subr.mxu0 0.0
          %v3870 = vand.u32 %v3300, 4294901760
          %v3871 = vsub.f32 %v3300, %v3870
          %v3872 = vand.u32 %v3871, 4294901760
          %3873 = vmatpush1.msra.mxu0 %v3872
          %3874 = vmatprep.subr.mxu0 0.0
          %v3875 = vand.u32 %v3301, 4294901760
          %v3876 = vsub.f32 %v3301, %v3875
          %v3877 = vand.u32 %v3876, 4294901760
          %3878 = vmatpush1.msra.mxu0 %v3877
          %3879 = vmatprep.subr.mxu0 0.0
          %v3880 = vand.u32 %v3302, 4294901760
          %v3881 = vsub.f32 %v3302, %v3880
          %v3882 = vand.u32 %v3881, 4294901760
          %3883 = vmatpush1.msra.mxu0 %v3882
          %3884 = vmatprep.subr.mxu0 0.0
          %v3885 = vand.u32 %v3303, 4294901760
          %v3886 = vsub.f32 %v3303, %v3885
          %v3887 = vand.u32 %v3886, 4294901760
          %3888 = vmatpush1.msra.mxu0 %v3887
          %3889 = vmatprep.subr.mxu0 0.0
          %v3890 = vand.u32 %v3304, 4294901760
          %v3891 = vsub.f32 %v3304, %v3890
          %v3892 = vand.u32 %v3891, 4294901760
          %3893 = vmatpush1.msra.mxu0 %v3892
          %3894 = vmatprep.subr.mxu0 0.0
          %v3895 = vand.u32 %v3305, 4294901760
          %v3896 = vsub.f32 %v3305, %v3895
          %v3897 = vand.u32 %v3896, 4294901760
          %3898 = vmatpush1.msra.mxu0 %v3897
          %3899 = vmatprep.subr.mxu0 0.0
          %v3900 = vand.u32 %v3306, 4294901760
          %v3901 = vsub.f32 %v3306, %v3900
          %v3902 = vand.u32 %v3901, 4294901760
          %3903 = vmatpush1.msra.mxu0 %v3902
          %3904 = vmatprep.subr.mxu0 0.0
          %v3905 = vand.u32 %v3307, 4294901760
          %v3906 = vsub.f32 %v3307, %v3905
          %v3907 = vand.u32 %v3906, 4294901760
          %3908 = vmatpush1.msra.mxu0 %v3907
          %3909 = vmatprep.subr.mxu0 0.0
          %v3910 = vand.u32 %v3308, 4294901760
          %v3911 = vsub.f32 %v3308, %v3910
          %v3912 = vand.u32 %v3911, 4294901760
          %3913 = vmatpush1.msra.mxu0 %v3912
          %3914 = vmatprep.subr.mxu0 0.0
          %v3915 = vand.u32 %v3309, 4294901760
          %v3916 = vsub.f32 %v3309, %v3915
          %v3917 = vand.u32 %v3916, 4294901760
          %3918 = vmatpush1.msra.mxu0 %v3917
          %3919 = vmatprep.subr.mxu0 0.0
          %3920 = vmatpush1.msra.mxu0 0.0
          %3921 = vmatprep.subr.mxu0 0.0
          %3922 = vmatpush1.msra.mxu0 0.0
          %3923 = vmatprep.subr.mxu0 0.0
          %3924 = vmatpush1.msra.mxu0 0.0
          %3925 = vmatprep.subr.mxu0 0.0
          %3926 = vmatpush1.msra.mxu0 0.0
          %3927 = vmatprep.subr.mxu0 0.0
          %3928 = vmatpush1.msra.mxu0 0.0
          %3929 = vmatprep.subr.mxu0 0.0
          %3930 = vmatpush1.msra.mxu0 0.0
          %3931 = vmatprep.subr.mxu0 0.0
          %3932 = vmatpush1.msra.mxu0 0.0
          %3933 = vmatprep.subr.mxu0 0.0
          %3934 = vmatpush1.msra.mxu0 0.0
          %3935 = vmatprep.subr.mxu0 0.0
          %3936 = vmatpush1.msra.mxu0 0.0
          %3937 = vmatprep.subr.mxu0 0.0
          %3938 = vmatpush1.msra.mxu0 0.0
          %3939 = vmatprep.subr.mxu0 0.0
          %3940 = vmatpush1.msra.mxu0 0.0
          %3941 = vmatprep.subr.mxu0 0.0
          %3942 = vmatpush1.msra.mxu0 0.0
          %3943 = vmatprep.subr.mxu0 0.0
          %3944 = vmatpush1.msra.mxu0 0.0
          %3945 = vmatprep.subr.mxu0 0.0
          %3946 = vmatpush1.msra.mxu0 0.0
          %3947 = vmatprep.subr.mxu0 0.0
          %3948 = vmatpush1.msra.mxu0 0.0
          %3949 = vmatprep.subr.mxu0 0.0
          %3950 = vmatpush1.msra.mxu0 0.0
          %3951 = vmatprep.mubr.f32.mxu0 0.0
          %v3952 = vand.u32 %v3290, 4294901760
          %3953 = vmatmul.mubr.f32.gmra.mrb[0].mxu0 %v3952
          %v3954 = vpop.f32.mrb[0].mxu0
          %v3955 = vadd.f32 %v3812, %v3954
          %v3956 = vpop.f32.mrb[0].mxu0
          %3957 = vmatprep.mubr.f32.mxu0 0.0
          %v3958 = vand.u32 %v3291, 4294901760
          %3959 = vmatmul.mubr.f32.gmra.mrb[0].mxu0 %v3958
          %v3960 = vpop.f32.mrb[0].mxu0
          %v3961 = vadd.f32 %v3820, %v3960
          %v3962 = vpop.f32.mrb[0].mxu0
          %3963 = vmatprep.mubr.f32.mxu0 0.0
          %v3964 = vand.u32 %v3292, 4294901760
          %3965 = vmatmul.mubr.f32.gmra.mrb[0].mxu0 %v3964
          %v3966 = vpop.f32.mrb[0].mxu0
          %v3967 = vadd.f32 %v3828, %v3966
          %v3968 = vpop.f32.mrb[0].mxu0
          %3969 = vmatprep.mubr.f32.mxu0 0.0
          %v3970 = vand.u32 %v3293, 4294901760
          %3971 = vmatmul.mubr.f32.gmra.mrb[0].mxu0 %v3970
          %v3972 = vpop.f32.mrb[0].mxu0
          %v3973 = vadd.f32 %v3836, %v3972
          %v3974 = vpop.f32.mrb[0].mxu0
          %3975 = vdwg.mxu0
          %3976 = vmatprep.subr.mxu0 0.0
          %v3977 = vand.u32 %v3294, 4294901760
          %3978 = vmatpush1.msra.mxu0 %v3977
          %3979 = vmatprep.subr.mxu0 0.0
          %v3980 = vand.u32 %v3295, 4294901760
          %3981 = vmatpush1.msra.mxu0 %v3980
          %3982 = vmatprep.subr.mxu0 0.0
          %v3983 = vand.u32 %v3296, 4294901760
          %3984 = vmatpush1.msra.mxu0 %v3983
          %3985 = vmatprep.subr.mxu0 0.0
          %v3986 = vand.u32 %v3297, 4294901760
          %3987 = vmatpush1.msra.mxu0 %v3986
          %3988 = vmatprep.subr.mxu0 0.0
          %v3989 = vand.u32 %v3298, 4294901760
          %3990 = vmatpush1.msra.mxu0 %v3989
          %3991 = vmatprep.subr.mxu0 0.0
          %v3992 = vand.u32 %v3299, 4294901760
          %3993 = vmatpush1.msra.mxu0 %v3992
          %3994 = vmatprep.subr.mxu0 0.0
          %v3995 = vand.u32 %v3300, 4294901760
          %3996 = vmatpush1.msra.mxu0 %v3995
          %3997 = vmatprep.subr.mxu0 0.0
          %v3998 = vand.u32 %v3301, 4294901760
          %3999 = vmatpush1.msra.mxu0 %v3998
          %4000 = vmatprep.subr.mxu0 0.0
          %v4001 = vand.u32 %v3302, 4294901760
          %4002 = vmatpush1.msra.mxu0 %v4001
          %4003 = vmatprep.subr.mxu0 0.0
          %v4004 = vand.u32 %v3303, 4294901760
          %4005 = vmatpush1.msra.mxu0 %v4004
          %4006 = vmatprep.subr.mxu0 0.0
          %v4007 = vand.u32 %v3304, 4294901760
          %4008 = vmatpush1.msra.mxu0 %v4007
          %4009 = vmatprep.subr.mxu0 0.0
          %v4010 = vand.u32 %v3305, 4294901760
          %4011 = vmatpush1.msra.mxu0 %v4010
          %4012 = vmatprep.subr.mxu0 0.0
          %v4013 = vand.u32 %v3306, 4294901760
          %4014 = vmatpush1.msra.mxu0 %v4013
          %4015 = vmatprep.subr.mxu0 0.0
          %v4016 = vand.u32 %v3307, 4294901760
          %4017 = vmatpush1.msra.mxu0 %v4016
          %4018 = vmatprep.subr.mxu0 0.0
          %v4019 = vand.u32 %v3308, 4294901760
          %4020 = vmatpush1.msra.mxu0 %v4019
          %4021 = vmatprep.subr.mxu0 0.0
          %v4022 = vand.u32 %v3309, 4294901760
          %4023 = vmatpush1.msra.mxu0 %v4022
          %4024 = vmatprep.subr.mxu0 0.0
          %4025 = vmatpush1.msra.mxu0 0.0
          %4026 = vmatprep.subr.mxu0 0.0
          %4027 = vmatpush1.msra.mxu0 0.0
          %4028 = vmatprep.subr.mxu0 0.0
          %4029 = vmatpush1.msra.mxu0 0.0
          %4030 = vmatprep.subr.mxu0 0.0
          %4031 = vmatpush1.msra.mxu0 0.0
          %4032 = vmatprep.subr.mxu0 0.0
          %4033 = vmatpush1.msra.mxu0 0.0
          %4034 = vmatprep.subr.mxu0 0.0
          %4035 = vmatpush1.msra.mxu0 0.0
          %4036 = vmatprep.subr.mxu0 0.0
          %4037 = vmatpush1.msra.mxu0 0.0
          %4038 = vmatprep.subr.mxu0 0.0
          %4039 = vmatpush1.msra.mxu0 0.0
          %4040 = vmatprep.subr.mxu0 0.0
          %4041 = vmatpush1.msra.mxu0 0.0
          %4042 = vmatprep.subr.mxu0 0.0
          %4043 = vmatpush1.msra.mxu0 0.0
          %4044 = vmatprep.subr.mxu0 0.0
          %4045 = vmatpush1.msra.mxu0 0.0
          %4046 = vmatprep.subr.mxu0 0.0
          %4047 = vmatpush1.msra.mxu0 0.0
          %4048 = vmatprep.subr.mxu0 0.0
          %4049 = vmatpush1.msra.mxu0 0.0
          %4050 = vmatprep.subr.mxu0 0.0
          %4051 = vmatpush1.msra.mxu0 0.0
          %4052 = vmatprep.subr.mxu0 0.0
          %4053 = vmatpush1.msra.mxu0 0.0
          %4054 = vmatprep.subr.mxu0 0.0
          %4055 = vmatpush1.msra.mxu0 0.0
          %4056 = vmatprep.mubr.f32.mxu0 0.0
          %v4057 = vand.u32 %v3290, 4294901760
          %4058 = vmatmul.mubr.f32.gmra.mrb[0].mxu0 %v4057
          %v4059 = vpop.f32.mrb[0].mxu0
          %v4060 = vadd.f32 %v3955, %v4059
          %v4061 = vpop.f32.mrb[0].mxu0
          %4062 = vmatprep.mubr.f32.mxu0 0.0
          %v4063 = vand.u32 %v3291, 4294901760
          %4064 = vmatmul.mubr.f32.gmra.mrb[0].mxu0 %v4063
          %v4065 = vpop.f32.mrb[0].mxu0
          %v4066 = vadd.f32 %v3961, %v4065
          %v4067 = vpop.f32.mrb[0].mxu0
          %4068 = vmatprep.mubr.f32.mxu0 0.0
          %v4069 = vand.u32 %v3292, 4294901760
          %4070 = vmatmul.mubr.f32.gmra.mrb[0].mxu0 %v4069
          %v4071 = vpop.f32.mrb[0].mxu0
          %v4072 = vadd.f32 %v3967, %v4071
          %v4073 = vpop.f32.mrb[0].mxu0
          %4074 = vmatprep.mubr.f32.mxu0 0.0
          %v4075 = vand.u32 %v3293, 4294901760
          %4076 = vmatmul.mubr.f32.gmra.mrb[0].mxu0 %v4075
          %v4077 = vpop.f32.mrb[0].mxu0
          %v4078 = vadd.f32 %v3973, %v4077
          %v4079 = vpop.f32.mrb[0].mxu0
          %4080 = vdwg.mxu0
          %vm4081 = vcmp.ge.f32.partialorder %v4060, 0.0
          %vm4082 = vcmp.ge.f32.partialorder %v4066, 0.0
          %vm4083 = vcmp.ge.f32.partialorder %v4072, 0.0
          %vm4084 = vcmp.ge.f32.partialorder %v4078, 0.0
          %v4085 = vmul.f32 %v4060, 0.01
          %v4086 = vmul.f32 %v4066, 0.01
          %v4087 = vmul.f32 %v4072, 0.01
          %v4088 = vmul.f32 %v4078, 0.01
          %v4089 = vsel %vm4081, %v4060, %v4085
          %v4090 = vsel %vm4082, %v4066, %v4086
          %v4091 = vsel %vm4083, %v4072, %v4087
          %v4092 = vsel %vm4084, %v4078, %v4088
          %v4093 = vld [vmem:[%s6 + $0x4] ss:$0 sm:$0xff]
          %v4094 = vld [vmem:[%s6 + $0x5] ss:$0 sm:$0xff]
          %v4095 = vmul.f32 %v4089, %v3235
          %v4096 = vmul.f32 %v4090, %v3236
          %v4097 = vmul.f32 %v4091, %v3237
          %v4098 = vmul.f32 %v4092, %v3238
          %v4099 = vadd.f32 %v4095, %v4096
          %v4100 = vadd.f32 %v4099, %v4097
          %v4101 = vadd.f32 %v4100, %v4098
          %v4102 = vrot.slane %v4101, 4
          %v4103 = vadd.f32 %v4101, %v4102
          %v4104 = vrot.slane %v4103, 2
          %v4105 = vadd.f32 %v4103, %v4104
          %v4106 = vrot.slane %v4105, 1
          %v4107 = vadd.f32 %v4105, %v4106
          %v4108 = vmul.f32 %v4107, 0.037037037
          %v4109 = vsub.f32 %v4089, %v4108
          %v4110 = vsub.f32 %v4090, %v4108
          %v4111 = vsub.f32 %v4091, %v4108
          %v4112 = vsub.f32 %v4092, %v4108
          %v4113 = vmul.f32 %v4109, %v4109
          %v4114 = vmul.f32 %v4110, %v4110
          %v4115 = vmul.f32 %v4111, %v4111
          %v4116 = vmul.f32 %v4112, %v4112
          %v4117 = vmul.f32 %v4113, %v3235
          %v4118 = vmul.f32 %v4114, %v3236
          %v4119 = vmul.f32 %v4115, %v3237
          %v4120 = vmul.f32 %v4116, %v3238
          %v4121 = vadd.f32 %v4117, %v4118
          %v4122 = vadd.f32 %v4121, %v4119
          %v4123 = vadd.f32 %v4122, %v4120
          %v4124 = vrot.slane %v4123, 4
          %v4125 = vadd.f32 %v4123, %v4124
          %v4126 = vrot.slane %v4125, 2
          %v4127 = vadd.f32 %v4125, %v4126
          %v4128 = vrot.slane %v4127, 1
          %v4129 = vadd.f32 %v4127, %v4128
          %v4130 = vmul.f32 %v4129, 0.037037037
          %v4131 = vadd.f32 %v4130, 1e-05
          %v4132 = vrsqrt.pop %v4131
          %v4133 = vmul.f32 %v4132, %v4093
          %v4134 = vmul.f32 %v4108, %v4133
          %v4135 = vsub.f32 %v4094, %v4134
          %v4136 = vmul.f32 %v4089, %v4133
          %v4137 = vmul.f32 %v4090, %v4133
          %v4138 = vmul.f32 %v4091, %v4133
          %v4139 = vmul.f32 %v4092, %v4133
          %v4140 = vadd.f32 %v4136, %v4135
          %v4141 = vadd.f32 %v4137, %v4135
          %v4142 = vadd.f32 %v4138, %v4135
          %v4143 = vadd.f32 %v4139, %v4135
          %v4144 = vld [vmem:[#allocation9] sm:$0xff]
          %v4145 = vld [vmem:[#allocation9 + $0x8] sm:$0xff]
          %v4146 = vld [vmem:[#allocation9 + $0x10] sm:$0xff]
          %v4147 = vld [vmem:[#allocation9 + $0x18] sm:$0xff]
          %v4148 = vld [vmem:[#allocation9 + $0x20] sm:$0xff]
          %v4149 = vld [vmem:[#allocation9 + $0x28] sm:$0xff]
          %v4150 = vld [vmem:[#allocation9 + $0x30] sm:$0xff]
          %v4151 = vld [vmem:[#allocation9 + $0x38] sm:$0xff]
          %v4152 = vld [vmem:[#allocation9 + $0x40] sm:$0xff]
          %v4153 = vld [vmem:[#allocation9 + $0x48] sm:$0xff]
          %v4154 = vld [vmem:[#allocation9 + $0x50] sm:$0xff]
          %v4155 = vld [vmem:[#allocation9 + $0x58] sm:$0xff]
          %v4156 = vld [vmem:[#allocation9 + $0x60] sm:$0xff]
          %v4157 = vld [vmem:[#allocation9 + $0x68] sm:$0xff]
          %v4158 = vld [vmem:[#allocation9 + $0x70] sm:$0xff]
          %v4159 = vld [vmem:[#allocation9 + $0x78] sm:$0xff]
          %v4160 = vld [vmem:[#allocation9 + $0x80] sm:$0xff]
          %v4161 = vld [vmem:[#allocation9 + $0x88] sm:$0xff]
          %v4162 = vld [vmem:[#allocation9 + $0x90] sm:$0xff]
          %v4163 = vld [vmem:[#allocation9 + $0x98] sm:$0xff]
          %v4164 = vld [vmem:[#allocation9 + $0xa0] sm:$0xff]
          %v4165 = vld [vmem:[#allocation9 + $0xa8] sm:$0xff]
          %v4166 = vld [vmem:[#allocation9 + $0xb0] sm:$0xff]
          %v4167 = vld [vmem:[#allocation9 + $0xb8] sm:$0xff]
          %v4168 = vld [vmem:[#allocation9 + $0xc0] sm:$0xff]
          %v4169 = vld [vmem:[#allocation9 + $0xc8] sm:$0xff]
          %v4170 = vld [vmem:[#allocation9 + $0xd0] sm:$0xff]
          %v4171 = vld [vmem:[#allocation9 + $0xd8] sm:$0xff]
          %v4172 = vld [vmem:[#allocation9 + $0xe0] sm:$0xff]
          %v4173 = vld [vmem:[#allocation9 + $0xe8] sm:$0xff]
          %v4174 = vld [vmem:[#allocation9 + $0xf0] sm:$0xff]
          %v4175 = vld [vmem:[#allocation9 + $0xf8] sm:$0xff]
          %s4176 = scalar_lea.vmem %s6, 6
          %v4177 = vld [vmem:[%s4176] ss:$8 sm:$0x3]
          %v4179 = vlaneseq
          %v4180 = vshrl.u32 %v4179, 7
          %v4181 = vsub.s32 0, %v4180
          %v4182 = vrot.slane %v4177, %v4181
          %v4183 = vlaneseq
          %v4184 = vshrl.u32 %v4183, 7
          %v4185 = vsub.s32 1, %v4184
          %v4186 = vrot.slane %v4177, %v4185
          %v4189 = vand.u32 %v4145, 4294901760
          %4190 = vmatprep.subr.mxu0 %v4189
          %v4191 = vand.u32 %v4144, 4294901760
          %4192 = vmatpush1.msra.mxu0 %v4191
          %v4193 = vand.u32 %v4147, 4294901760
          %4194 = vmatprep.subr.mxu0 %v4193
          %v4195 = vand.u32 %v4146, 4294901760
          %4196 = vmatpush1.msra.mxu0 %v4195
          %v4197 = vand.u32 %v4149, 4294901760
          %4198 = vmatprep.subr.mxu0 %v4197
          %v4199 = vand.u32 %v4148, 4294901760
          %4200 = vmatpush1.msra.mxu0 %v4199
          %v4201 = vand.u32 %v4151, 4294901760
          %4202 = vmatprep.subr.mxu0 %v4201
          %v4203 = vand.u32 %v4150, 4294901760
          %4204 = vmatpush1.msra.mxu0 %v4203
          %v4205 = vand.u32 %v4153, 4294901760
          %4206 = vmatprep.subr.mxu0 %v4205
          %v4207 = vand.u32 %v4152, 4294901760
          %4208 = vmatpush1.msra.mxu0 %v4207
          %v4209 = vand.u32 %v4155, 4294901760
          %4210 = vmatprep.subr.mxu0 %v4209
          %v4211 = vand.u32 %v4154, 4294901760
          %4212 = vmatpush1.msra.mxu0 %v4211
          %v4213 = vand.u32 %v4157, 4294901760
          %4214 = vmatprep.subr.mxu0 %v4213
          %v4215 = vand.u32 %v4156, 4294901760
          %4216 = vmatpush1.msra.mxu0 %v4215
          %v4217 = vand.u32 %v4159, 4294901760
          %4218 = vmatprep.subr.mxu0 %v4217
          %v4219 = vand.u32 %v4158, 4294901760
          %4220 = vmatpush1.msra.mxu0 %v4219
          %v4221 = vand.u32 %v4161, 4294901760
          %4222 = vmatprep.subr.mxu0 %v4221
          %v4223 = vand.u32 %v4160, 4294901760
          %4224 = vmatpush1.msra.mxu0 %v4223
          %v4225 = vand.u32 %v4163, 4294901760
          %4226 = vmatprep.subr.mxu0 %v4225
          %v4227 = vand.u32 %v4162, 4294901760
          %4228 = vmatpush1.msra.mxu0 %v4227
          %v4229 = vand.u32 %v4165, 4294901760
          %4230 = vmatprep.subr.mxu0 %v4229
          %v4231 = vand.u32 %v4164, 4294901760
          %4232 = vmatpush1.msra.mxu0 %v4231
          %v4233 = vand.u32 %v4167, 4294901760
          %4234 = vmatprep.subr.mxu0 %v4233
          %v4235 = vand.u32 %v4166, 4294901760
          %4236 = vmatpush1.msra.mxu0 %v4235
          %v4237 = vand.u32 %v4169, 4294901760
          %4238 = vmatprep.subr.mxu0 %v4237
          %v4239 = vand.u32 %v4168, 4294901760
          %4240 = vmatpush1.msra.mxu0 %v4239
          %v4241 = vand.u32 %v4171, 4294901760
          %4242 = vmatprep.subr.mxu0 %v4241
          %v4243 = vand.u32 %v4170, 4294901760
          %4244 = vmatpush1.msra.mxu0 %v4243
          %v4245 = vand.u32 %v4173, 4294901760
          %4246 = vmatprep.subr.mxu0 %v4245
          %v4247 = vand.u32 %v4172, 4294901760
          %4248 = vmatpush1.msra.mxu0 %v4247
          %v4249 = vand.u32 %v4175, 4294901760
          %4250 = vmatprep.subr.mxu0 %v4249
          %v4251 = vand.u32 %v4174, 4294901760
          %4252 = vmatpush1.msra.mxu0 %v4251
          %4253 = vmatprep.subr.mxu0 0.0
          %4254 = vmatpush1.msra.mxu0 0.0
          %4255 = vmatprep.subr.mxu0 0.0
          %4256 = vmatpush1.msra.mxu0 0.0
          %4257 = vmatprep.subr.mxu0 0.0
          %4258 = vmatpush1.msra.mxu0 0.0
          %4259 = vmatprep.subr.mxu0 0.0
          %4260 = vmatpush1.msra.mxu0 0.0
          %4261 = vmatprep.subr.mxu0 0.0
          %4262 = vmatpush1.msra.mxu0 0.0
          %4263 = vmatprep.subr.mxu0 0.0
          %4264 = vmatpush1.msra.mxu0 0.0
          %4265 = vmatprep.subr.mxu0 0.0
          %4266 = vmatpush1.msra.mxu0 0.0
          %4267 = vmatprep.subr.mxu0 0.0
          %4268 = vmatpush1.msra.mxu0 0.0
          %4269 = vmatprep.subr.mxu0 0.0
          %4270 = vmatpush1.msra.mxu0 0.0
          %4271 = vmatprep.subr.mxu0 0.0
          %4272 = vmatpush1.msra.mxu0 0.0
          %4273 = vmatprep.subr.mxu0 0.0
          %4274 = vmatpush1.msra.mxu0 0.0
          %4275 = vmatprep.subr.mxu0 0.0
          %4276 = vmatpush1.msra.mxu0 0.0
          %4277 = vmatprep.subr.mxu0 0.0
          %4278 = vmatpush1.msra.mxu0 0.0
          %4279 = vmatprep.subr.mxu0 0.0
          %4280 = vmatpush1.msra.mxu0 0.0
          %4281 = vmatprep.subr.mxu0 0.0
          %4282 = vmatpush1.msra.mxu0 0.0
          %4283 = vmatprep.subr.mxu0 0.0
          %4284 = vmatpush1.msra.mxu0 0.0
          %4285 = vmatprep.mubr.f32.mxu0 0.0
          %v4286 = vand.u32 %v4140, 4294901760
          %v4287 = vsub.f32 %v4140, %v4286
          %v4288 = vand.u32 %v4287, 4294901760
          %v4289 = vsub.f32 %v4287, %v4288
          %v4290 = vand.u32 %v4289, 4294901760
          %4291 = vmatmul.mubr.f32.gmra.mrb[0].mxu0 %v4290
          %v4292 = vpop.f32.mrb[0].mxu0
          %v4293 = vadd.f32 %v4182, %v4292
          %v4294 = vpop.f32.mrb[0].mxu0
          %v4295 = vadd.f32 %v4186, %v4294
          %4296 = vmatprep.mubr.f32.mxu0 0.0
          %v4297 = vand.u32 %v4141, 4294901760
          %v4298 = vsub.f32 %v4141, %v4297
          %v4299 = vand.u32 %v4298, 4294901760
          %v4300 = vsub.f32 %v4298, %v4299
          %v4301 = vand.u32 %v4300, 4294901760
          %4302 = vmatmul.mubr.f32.gmra.mrb[0].mxu0 %v4301
          %v4303 = vpop.f32.mrb[0].mxu0
          %v4304 = vadd.f32 %v4182, %v4303
          %v4305 = vpop.f32.mrb[0].mxu0
          %v4306 = vadd.f32 %v4186, %v4305
          %4307 = vmatprep.mubr.f32.mxu0 0.0
          %v4308 = vand.u32 %v4142, 4294901760
          %v4309 = vsub.f32 %v4142, %v4308
          %v4310 = vand.u32 %v4309, 4294901760
          %v4311 = vsub.f32 %v4309, %v4310
          %v4312 = vand.u32 %v4311, 4294901760
          %4313 = vmatmul.mubr.f32.gmra.mrb[0].mxu0 %v4312
          %v4314 = vpop.f32.mrb[0].mxu0
          %v4315 = vadd.f32 %v4182, %v4314
          %v4316 = vpop.f32.mrb[0].mxu0
          %v4317 = vadd.f32 %v4186, %v4316
          %4318 = vmatprep.mubr.f32.mxu0 0.0
          %v4319 = vand.u32 %v4143, 4294901760
          %v4320 = vsub.f32 %v4143, %v4319
          %v4321 = vand.u32 %v4320, 4294901760
          %v4322 = vsub.f32 %v4320, %v4321
          %v4323 = vand.u32 %v4322, 4294901760
          %4324 = vmatmul.mubr.f32.gmra.mrb[0].mxu0 %v4323
          %v4325 = vpop.f32.mrb[0].mxu0
          %v4326 = vadd.f32 %v4182, %v4325
          %v4327 = vpop.f32.mrb[0].mxu0
          %v4328 = vadd.f32 %v4186, %v4327
          %4329 = vdwg.mxu0
          %v4330 = vand.u32 %v4145, 4294901760
          %v4331 = vsub.f32 %v4145, %v4330
          %v4332 = vand.u32 %v4331, 4294901760
          %v4333 = vsub.f32 %v4331, %v4332
          %v4334 = vand.u32 %v4333, 4294901760
          %4335 = vmatprep.subr.mxu0 %v4334
          %v4336 = vand.u32 %v4144, 4294901760
          %v4337 = vsub.f32 %v4144, %v4336
          %v4338 = vand.u32 %v4337, 4294901760
          %v4339 = vsub.f32 %v4337, %v4338
          %v4340 = vand.u32 %v4339, 4294901760
          %4341 = vmatpush1.msra.mxu0 %v4340
          %v4342 = vand.u32 %v4147, 4294901760
          %v4343 = vsub.f32 %v4147, %v4342
          %v4344 = vand.u32 %v4343, 4294901760
          %v4345 = vsub.f32 %v4343, %v4344
          %v4346 = vand.u32 %v4345, 4294901760
          %4347 = vmatprep.subr.mxu0 %v4346
          %v4348 = vand.u32 %v4146, 4294901760
          %v4349 = vsub.f32 %v4146, %v4348
          %v4350 = vand.u32 %v4349, 4294901760
          %v4351 = vsub.f32 %v4349, %v4350
          %v4352 = vand.u32 %v4351, 4294901760
          %4353 = vmatpush1.msra.mxu0 %v4352
          %v4354 = vand.u32 %v4149, 4294901760
          %v4355 = vsub.f32 %v4149, %v4354
          %v4356 = vand.u32 %v4355, 4294901760
          %v4357 = vsub.f32 %v4355, %v4356
          %v4358 = vand.u32 %v4357, 4294901760
          %4359 = vmatprep.subr.mxu0 %v4358
          %v4360 = vand.u32 %v4148, 4294901760
          %v4361 = vsub.f32 %v4148, %v4360
          %v4362 = vand.u32 %v4361, 4294901760
          %v4363 = vsub.f32 %v4361, %v4362
          %v4364 = vand.u32 %v4363, 4294901760
          %4365 = vmatpush1.msra.mxu0 %v4364
          %v4366 = vand.u32 %v4151, 4294901760
          %v4367 = vsub.f32 %v4151, %v4366
          %v4368 = vand.u32 %v4367, 4294901760
          %v4369 = vsub.f32 %v4367, %v4368
          %v4370 = vand.u32 %v4369, 4294901760
          %4371 = vmatprep.subr.mxu0 %v4370
          %v4372 = vand.u32 %v4150, 4294901760
          %v4373 = vsub.f32 %v4150, %v4372
          %v4374 = vand.u32 %v4373, 4294901760
          %v4375 = vsub.f32 %v4373, %v4374
          %v4376 = vand.u32 %v4375, 4294901760
          %4377 = vmatpush1.msra.mxu0 %v4376
          %v4378 = vand.u32 %v4153, 4294901760
          %v4379 = vsub.f32 %v4153, %v4378
          %v4380 = vand.u32 %v4379, 4294901760
          %v4381 = vsub.f32 %v4379, %v4380
          %v4382 = vand.u32 %v4381, 4294901760
          %4383 = vmatprep.subr.mxu0 %v4382
          %v4384 = vand.u32 %v4152, 4294901760
          %v4385 = vsub.f32 %v4152, %v4384
          %v4386 = vand.u32 %v4385, 4294901760
          %v4387 = vsub.f32 %v4385, %v4386
          %v4388 = vand.u32 %v4387, 4294901760
          %4389 = vmatpush1.msra.mxu0 %v4388
          %v4390 = vand.u32 %v4155, 4294901760
          %v4391 = vsub.f32 %v4155, %v4390
          %v4392 = vand.u32 %v4391, 4294901760
          %v4393 = vsub.f32 %v4391, %v4392
          %v4394 = vand.u32 %v4393, 4294901760
          %4395 = vmatprep.subr.mxu0 %v4394
          %v4396 = vand.u32 %v4154, 4294901760
          %v4397 = vsub.f32 %v4154, %v4396
          %v4398 = vand.u32 %v4397, 4294901760
          %v4399 = vsub.f32 %v4397, %v4398
          %v4400 = vand.u32 %v4399, 4294901760
          %4401 = vmatpush1.msra.mxu0 %v4400
          %v4402 = vand.u32 %v4157, 4294901760
          %v4403 = vsub.f32 %v4157, %v4402
          %v4404 = vand.u32 %v4403, 4294901760
          %v4405 = vsub.f32 %v4403, %v4404
          %v4406 = vand.u32 %v4405, 4294901760
          %4407 = vmatprep.subr.mxu0 %v4406
          %v4408 = vand.u32 %v4156, 4294901760
          %v4409 = vsub.f32 %v4156, %v4408
          %v4410 = vand.u32 %v4409, 4294901760
          %v4411 = vsub.f32 %v4409, %v4410
          %v4412 = vand.u32 %v4411, 4294901760
          %4413 = vmatpush1.msra.mxu0 %v4412
          %v4414 = vand.u32 %v4159, 4294901760
          %v4415 = vsub.f32 %v4159, %v4414
          %v4416 = vand.u32 %v4415, 4294901760
          %v4417 = vsub.f32 %v4415, %v4416
          %v4418 = vand.u32 %v4417, 4294901760
          %4419 = vmatprep.subr.mxu0 %v4418
          %v4420 = vand.u32 %v4158, 4294901760
          %v4421 = vsub.f32 %v4158, %v4420
          %v4422 = vand.u32 %v4421, 4294901760
          %v4423 = vsub.f32 %v4421, %v4422
          %v4424 = vand.u32 %v4423, 4294901760
          %4425 = vmatpush1.msra.mxu0 %v4424
          %v4426 = vand.u32 %v4161, 4294901760
          %v4427 = vsub.f32 %v4161, %v4426
          %v4428 = vand.u32 %v4427, 4294901760
          %v4429 = vsub.f32 %v4427, %v4428
          %v4430 = vand.u32 %v4429, 4294901760
          %4431 = vmatprep.subr.mxu0 %v4430
          %v4432 = vand.u32 %v4160, 4294901760
          %v4433 = vsub.f32 %v4160, %v4432
          %v4434 = vand.u32 %v4433, 4294901760
          %v4435 = vsub.f32 %v4433, %v4434
          %v4436 = vand.u32 %v4435, 4294901760
          %4437 = vmatpush1.msra.mxu0 %v4436
          %v4438 = vand.u32 %v4163, 4294901760
          %v4439 = vsub.f32 %v4163, %v4438
          %v4440 = vand.u32 %v4439, 4294901760
          %v4441 = vsub.f32 %v4439, %v4440
          %v4442 = vand.u32 %v4441, 4294901760
          %4443 = vmatprep.subr.mxu0 %v4442
          %v4444 = vand.u32 %v4162, 4294901760
          %v4445 = vsub.f32 %v4162, %v4444
          %v4446 = vand.u32 %v4445, 4294901760
          %v4447 = vsub.f32 %v4445, %v4446
          %v4448 = vand.u32 %v4447, 4294901760
          %4449 = vmatpush1.msra.mxu0 %v4448
          %v4450 = vand.u32 %v4165, 4294901760
          %v4451 = vsub.f32 %v4165, %v4450
          %v4452 = vand.u32 %v4451, 4294901760
          %v4453 = vsub.f32 %v4451, %v4452
          %v4454 = vand.u32 %v4453, 4294901760
          %4455 = vmatprep.subr.mxu0 %v4454
          %v4456 = vand.u32 %v4164, 4294901760
          %v4457 = vsub.f32 %v4164, %v4456
          %v4458 = vand.u32 %v4457, 4294901760
          %v4459 = vsub.f32 %v4457, %v4458
          %v4460 = vand.u32 %v4459, 4294901760
          %4461 = vmatpush1.msra.mxu0 %v4460
          %v4462 = vand.u32 %v4167, 4294901760
          %v4463 = vsub.f32 %v4167, %v4462
          %v4464 = vand.u32 %v4463, 4294901760
          %v4465 = vsub.f32 %v4463, %v4464
          %v4466 = vand.u32 %v4465, 4294901760
          %4467 = vmatprep.subr.mxu0 %v4466
          %v4468 = vand.u32 %v4166, 4294901760
          %v4469 = vsub.f32 %v4166, %v4468
          %v4470 = vand.u32 %v4469, 4294901760
          %v4471 = vsub.f32 %v4469, %v4470
          %v4472 = vand.u32 %v4471, 4294901760
          %4473 = vmatpush1.msra.mxu0 %v4472
          %v4474 = vand.u32 %v4169, 4294901760
          %v4475 = vsub.f32 %v4169, %v4474
          %v4476 = vand.u32 %v4475, 4294901760
          %v4477 = vsub.f32 %v4475, %v4476
          %v4478 = vand.u32 %v4477, 4294901760
          %4479 = vmatprep.subr.mxu0 %v4478
          %v4480 = vand.u32 %v4168, 4294901760
          %v4481 = vsub.f32 %v4168, %v4480
          %v4482 = vand.u32 %v4481, 4294901760
          %v4483 = vsub.f32 %v4481, %v4482
          %v4484 = vand.u32 %v4483, 4294901760
          %4485 = vmatpush1.msra.mxu0 %v4484
          %v4486 = vand.u32 %v4171, 4294901760
          %v4487 = vsub.f32 %v4171, %v4486
          %v4488 = vand.u32 %v4487, 4294901760
          %v4489 = vsub.f32 %v4487, %v4488
          %v4490 = vand.u32 %v4489, 4294901760
          %4491 = vmatprep.subr.mxu0 %v4490
          %v4492 = vand.u32 %v4170, 4294901760
          %v4493 = vsub.f32 %v4170, %v4492
          %v4494 = vand.u32 %v4493, 4294901760
          %v4495 = vsub.f32 %v4493, %v4494
          %v4496 = vand.u32 %v4495, 4294901760
          %4497 = vmatpush1.msra.mxu0 %v4496
          %v4498 = vand.u32 %v4173, 4294901760
          %v4499 = vsub.f32 %v4173, %v4498
          %v4500 = vand.u32 %v4499, 4294901760
          %v4501 = vsub.f32 %v4499, %v4500
          %v4502 = vand.u32 %v4501, 4294901760
          %4503 = vmatprep.subr.mxu0 %v4502
          %v4504 = vand.u32 %v4172, 4294901760
          %v4505 = vsub.f32 %v4172, %v4504
          %v4506 = vand.u32 %v4505, 4294901760
          %v4507 = vsub.f32 %v4505, %v4506
          %v4508 = vand.u32 %v4507, 4294901760
          %4509 = vmatpush1.msra.mxu0 %v4508
          %v4510 = vand.u32 %v4175, 4294901760
          %v4511 = vsub.f32 %v4175, %v4510
          %v4512 = vand.u32 %v4511, 4294901760
          %v4513 = vsub.f32 %v4511, %v4512
          %v4514 = vand.u32 %v4513, 4294901760
          %4515 = vmatprep.subr.mxu0 %v4514
          %v4516 = vand.u32 %v4174, 4294901760
          %v4517 = vsub.f32 %v4174, %v4516
          %v4518 = vand.u32 %v4517, 4294901760
          %v4519 = vsub.f32 %v4517, %v4518
          %v4520 = vand.u32 %v4519, 4294901760
          %4521 = vmatpush1.msra.mxu0 %v4520
          %4522 = vmatprep.subr.mxu0 0.0
          %4523 = vmatpush1.msra.mxu0 0.0
          %4524 = vmatprep.subr.mxu0 0.0
          %4525 = vmatpush1.msra.mxu0 0.0
          %4526 = vmatprep.subr.mxu0 0.0
          %4527 = vmatpush1.msra.mxu0 0.0
          %4528 = vmatprep.subr.mxu0 0.0
          %4529 = vmatpush1.msra.mxu0 0.0
          %4530 = vmatprep.subr.mxu0 0.0
          %4531 = vmatpush1.msra.mxu0 0.0
          %4532 = vmatprep.subr.mxu0 0.0
          %4533 = vmatpush1.msra.mxu0 0.0
          %4534 = vmatprep.subr.mxu0 0.0
          %4535 = vmatpush1.msra.mxu0 0.0
          %4536 = vmatprep.subr.mxu0 0.0
          %4537 = vmatpush1.msra.mxu0 0.0
          %4538 = vmatprep.subr.mxu0 0.0
          %4539 = vmatpush1.msra.mxu0 0.0
          %4540 = vmatprep.subr.mxu0 0.0
          %4541 = vmatpush1.msra.mxu0 0.0
          %4542 = vmatprep.subr.mxu0 0.0
          %4543 = vmatpush1.msra.mxu0 0.0
          %4544 = vmatprep.subr.mxu0 0.0
          %4545 = vmatpush1.msra.mxu0 0.0
          %4546 = vmatprep.subr.mxu0 0.0
          %4547 = vmatpush1.msra.mxu0 0.0
          %4548 = vmatprep.subr.mxu0 0.0
          %4549 = vmatpush1.msra.mxu0 0.0
          %4550 = vmatprep.subr.mxu0 0.0
          %4551 = vmatpush1.msra.mxu0 0.0
          %4552 = vmatprep.subr.mxu0 0.0
          %4553 = vmatpush1.msra.mxu0 0.0
          %4554 = vmatprep.mubr.f32.mxu0 0.0
          %v4555 = vand.u32 %v4140, 4294901760
          %4556 = vmatmul.mubr.f32.gmra.mrb[0].mxu0 %v4555
          %v4557 = vpop.f32.mrb[0].mxu0
          %v4558 = vadd.f32 %v4293, %v4557
          %v4559 = vpop.f32.mrb[0].mxu0
          %v4560 = vadd.f32 %v4295, %v4559
          %4561 = vmatprep.mubr.f32.mxu0 0.0
          %v4562 = vand.u32 %v4141, 4294901760
          %4563 = vmatmul.mubr.f32.gmra.mrb[0].mxu0 %v4562
          %v4564 = vpop.f32.mrb[0].mxu0
          %v4565 = vadd.f32 %v4304, %v4564
          %v4566 = vpop.f32.mrb[0].mxu0
          %v4567 = vadd.f32 %v4306, %v4566
          %4568 = vmatprep.mubr.f32.mxu0 0.0
          %v4569 = vand.u32 %v4142, 4294901760
          %4570 = vmatmul.mubr.f32.gmra.mrb[0].mxu0 %v4569
          %v4571 = vpop.f32.mrb[0].mxu0
          %v4572 = vadd.f32 %v4315, %v4571
          %v4573 = vpop.f32.mrb[0].mxu0
          %v4574 = vadd.f32 %v4317, %v4573
          %4575 = vmatprep.mubr.f32.mxu0 0.0
          %v4576 = vand.u32 %v4143, 4294901760
          %4577 = vmatmul.mubr.f32.gmra.mrb[0].mxu0 %v4576
          %v4578 = vpop.f32.mrb[0].mxu0
          %v4579 = vadd.f32 %v4326, %v4578
          %v4580 = vpop.f32.mrb[0].mxu0
          %v4581 = vadd.f32 %v4328, %v4580
          %4582 = vdwg.mxu0
          %v4583 = vand.u32 %v4145, 4294901760
          %v4584 = vsub.f32 %v4145, %v4583
          %4585 = vmatprep.subr.mxu0 %v4584
          %v4586 = vand.u32 %v4144, 4294901760
          %v4587 = vsub.f32 %v4144, %v4586
          %4588 = vmatpush1.msra.mxu0 %v4587
          %v4589 = vand.u32 %v4147, 4294901760
          %v4590 = vsub.f32 %v4147, %v4589
          %4591 = vmatprep.subr.mxu0 %v4590
          %v4592 = vand.u32 %v4146, 4294901760
          %v4593 = vsub.f32 %v4146, %v4592
          %4594 = vmatpush1.msra.mxu0 %v4593
          %v4595 = vand.u32 %v4149, 4294901760
          %v4596 = vsub.f32 %v4149, %v4595
          %4597 = vmatprep.subr.mxu0 %v4596
          %v4598 = vand.u32 %v4148, 4294901760
          %v4599 = vsub.f32 %v4148, %v4598
          %4600 = vmatpush1.msra.mxu0 %v4599
          %v4601 = vand.u32 %v4151, 4294901760
          %v4602 = vsub.f32 %v4151, %v4601
          %4603 = vmatprep.subr.mxu0 %v4602
          %v4604 = vand.u32 %v4150, 4294901760
          %v4605 = vsub.f32 %v4150, %v4604
          %4606 = vmatpush1.msra.mxu0 %v4605
          %v4607 = vand.u32 %v4153, 4294901760
          %v4608 = vsub.f32 %v4153, %v4607
          %4609 = vmatprep.subr.mxu0 %v4608
          %v4610 = vand.u32 %v4152, 4294901760
          %v4611 = vsub.f32 %v4152, %v4610
          %4612 = vmatpush1.msra.mxu0 %v4611
          %v4613 = vand.u32 %v4155, 4294901760
          %v4614 = vsub.f32 %v4155, %v4613
          %4615 = vmatprep.subr.mxu0 %v4614
          %v4616 = vand.u32 %v4154, 4294901760
          %v4617 = vsub.f32 %v4154, %v4616
          %4618 = vmatpush1.msra.mxu0 %v4617
          %v4619 = vand.u32 %v4157, 4294901760
          %v4620 = vsub.f32 %v4157, %v4619
          %4621 = vmatprep.subr.mxu0 %v4620
          %v4622 = vand.u32 %v4156, 4294901760
          %v4623 = vsub.f32 %v4156, %v4622
          %4624 = vmatpush1.msra.mxu0 %v4623
          %v4625 = vand.u32 %v4159, 4294901760
          %v4626 = vsub.f32 %v4159, %v4625
          %4627 = vmatprep.subr.mxu0 %v4626
          %v4628 = vand.u32 %v4158, 4294901760
          %v4629 = vsub.f32 %v4158, %v4628
          %4630 = vmatpush1.msra.mxu0 %v4629
          %v4631 = vand.u32 %v4161, 4294901760
          %v4632 = vsub.f32 %v4161, %v4631
          %4633 = vmatprep.subr.mxu0 %v4632
          %v4634 = vand.u32 %v4160, 4294901760
          %v4635 = vsub.f32 %v4160, %v4634
          %4636 = vmatpush1.msra.mxu0 %v4635
          %v4637 = vand.u32 %v4163, 4294901760
          %v4638 = vsub.f32 %v4163, %v4637
          %4639 = vmatprep.subr.mxu0 %v4638
          %v4640 = vand.u32 %v4162, 4294901760
          %v4641 = vsub.f32 %v4162, %v4640
          %4642 = vmatpush1.msra.mxu0 %v4641
          %v4643 = vand.u32 %v4165, 4294901760
          %v4644 = vsub.f32 %v4165, %v4643
          %4645 = vmatprep.subr.mxu0 %v4644
          %v4646 = vand.u32 %v4164, 4294901760
          %v4647 = vsub.f32 %v4164, %v4646
          %4648 = vmatpush1.msra.mxu0 %v4647
          %v4649 = vand.u32 %v4167, 4294901760
          %v4650 = vsub.f32 %v4167, %v4649
          %4651 = vmatprep.subr.mxu0 %v4650
          %v4652 = vand.u32 %v4166, 4294901760
          %v4653 = vsub.f32 %v4166, %v4652
          %4654 = vmatpush1.msra.mxu0 %v4653
          %v4655 = vand.u32 %v4169, 4294901760
          %v4656 = vsub.f32 %v4169, %v4655
          %4657 = vmatprep.subr.mxu0 %v4656
          %v4658 = vand.u32 %v4168, 4294901760
          %v4659 = vsub.f32 %v4168, %v4658
          %4660 = vmatpush1.msra.mxu0 %v4659
          %v4661 = vand.u32 %v4171, 4294901760
          %v4662 = vsub.f32 %v4171, %v4661
          %4663 = vmatprep.subr.mxu0 %v4662
          %v4664 = vand.u32 %v4170, 4294901760
          %v4665 = vsub.f32 %v4170, %v4664
          %4666 = vmatpush1.msra.mxu0 %v4665
          %v4667 = vand.u32 %v4173, 4294901760
          %v4668 = vsub.f32 %v4173, %v4667
          %4669 = vmatprep.subr.mxu0 %v4668
          %v4670 = vand.u32 %v4172, 4294901760
          %v4671 = vsub.f32 %v4172, %v4670
          %4672 = vmatpush1.msra.mxu0 %v4671
          %v4673 = vand.u32 %v4175, 4294901760
          %v4674 = vsub.f32 %v4175, %v4673
          %4675 = vmatprep.subr.mxu0 %v4674
          %v4676 = vand.u32 %v4174, 4294901760
          %v4677 = vsub.f32 %v4174, %v4676
          %4678 = vmatpush1.msra.mxu0 %v4677
          %4679 = vmatprep.subr.mxu0 0.0
          %4680 = vmatpush1.msra.mxu0 0.0
          %4681 = vmatprep.subr.mxu0 0.0
          %4682 = vmatpush1.msra.mxu0 0.0
          %4683 = vmatprep.subr.mxu0 0.0
          %4684 = vmatpush1.msra.mxu0 0.0
          %4685 = vmatprep.subr.mxu0 0.0
          %4686 = vmatpush1.msra.mxu0 0.0
          %4687 = vmatprep.subr.mxu0 0.0
          %4688 = vmatpush1.msra.mxu0 0.0
          %4689 = vmatprep.subr.mxu0 0.0
          %4690 = vmatpush1.msra.mxu0 0.0
          %4691 = vmatprep.subr.mxu0 0.0
          %4692 = vmatpush1.msra.mxu0 0.0
          %4693 = vmatprep.subr.mxu0 0.0
          %4694 = vmatpush1.msra.mxu0 0.0
          %4695 = vmatprep.subr.mxu0 0.0
          %4696 = vmatpush1.msra.mxu0 0.0
          %4697 = vmatprep.subr.mxu0 0.0
          %4698 = vmatpush1.msra.mxu0 0.0
          %4699 = vmatprep.subr.mxu0 0.0
          %4700 = vmatpush1.msra.mxu0 0.0
          %4701 = vmatprep.subr.mxu0 0.0
          %4702 = vmatpush1.msra.mxu0 0.0
          %4703 = vmatprep.subr.mxu0 0.0
          %4704 = vmatpush1.msra.mxu0 0.0
          %4705 = vmatprep.subr.mxu0 0.0
          %4706 = vmatpush1.msra.mxu0 0.0
          %4707 = vmatprep.subr.mxu0 0.0
          %4708 = vmatpush1.msra.mxu0 0.0
          %4709 = vmatprep.subr.mxu0 0.0
          %4710 = vmatpush1.msra.mxu0 0.0
          %4711 = vmatprep.mubr.f32.mxu0 0.0
          %v4712 = vand.u32 %v4140, 4294901760
          %v4713 = vsub.f32 %v4140, %v4712
          %4714 = vmatmul.mubr.f32.gmra.mrb[0].mxu0 %v4713
          %v4715 = vpop.f32.mrb[0].mxu0
          %v4716 = vadd.f32 %v4558, %v4715
          %v4717 = vpop.f32.mrb[0].mxu0
          %v4718 = vadd.f32 %v4560, %v4717
          %4719 = vmatprep.mubr.f32.mxu0 0.0
          %v4720 = vand.u32 %v4141, 4294901760
          %v4721 = vsub.f32 %v4141, %v4720
          %4722 = vmatmul.mubr.f32.gmra.mrb[0].mxu0 %v4721
          %v4723 = vpop.f32.mrb[0].mxu0
          %v4724 = vadd.f32 %v4565, %v4723
          %v4725 = vpop.f32.mrb[0].mxu0
          %v4726 = vadd.f32 %v4567, %v4725
          %4727 = vmatprep.mubr.f32.mxu0 0.0
          %v4728 = vand.u32 %v4142, 4294901760
          %v4729 = vsub.f32 %v4142, %v4728
          %4730 = vmatmul.mubr.f32.gmra.mrb[0].mxu0 %v4729
          %v4731 = vpop.f32.mrb[0].mxu0
          %v4732 = vadd.f32 %v4572, %v4731
          %v4733 = vpop.f32.mrb[0].mxu0
          %v4734 = vadd.f32 %v4574, %v4733
          %4735 = vmatprep.mubr.f32.mxu0 0.0
          %v4736 = vand.u32 %v4143, 4294901760
          %v4737 = vsub.f32 %v4143, %v4736
          %4738 = vmatmul.mubr.f32.gmra.mrb[0].mxu0 %v4737
          %v4739 = vpop.f32.mrb[0].mxu0
          %v4740 = vadd.f32 %v4579, %v4739
          %v4741 = vpop.f32.mrb[0].mxu0
          %v4742 = vadd.f32 %v4581, %v4741
          %4743 = vdwg.mxu0
          %v4744 = vand.u32 %v4145, 4294901760
          %4745 = vmatprep.subr.mxu0 %v4744
          %v4746 = vand.u32 %v4144, 4294901760
          %4747 = vmatpush1.msra.mxu0 %v4746
          %v4748 = vand.u32 %v4147, 4294901760
          %4749 = vmatprep.subr.mxu0 %v4748
          %v4750 = vand.u32 %v4146, 4294901760
          %4751 = vmatpush1.msra.mxu0 %v4750
          %v4752 = vand.u32 %v4149, 4294901760
          %4753 = vmatprep.subr.mxu0 %v4752
          %v4754 = vand.u32 %v4148, 4294901760
          %4755 = vmatpush1.msra.mxu0 %v4754
          %v4756 = vand.u32 %v4151, 4294901760
          %4757 = vmatprep.subr.mxu0 %v4756
          %v4758 = vand.u32 %v4150, 4294901760
          %4759 = vmatpush1.msra.mxu0 %v4758
          %v4760 = vand.u32 %v4153, 4294901760
          %4761 = vmatprep.subr.mxu0 %v4760
          %v4762 = vand.u32 %v4152, 4294901760
          %4763 = vmatpush1.msra.mxu0 %v4762
          %v4764 = vand.u32 %v4155, 4294901760
          %4765 = vmatprep.subr.mxu0 %v4764
          %v4766 = vand.u32 %v4154, 4294901760
          %4767 = vmatpush1.msra.mxu0 %v4766
          %v4768 = vand.u32 %v4157, 4294901760
          %4769 = vmatprep.subr.mxu0 %v4768
          %v4770 = vand.u32 %v4156, 4294901760
          %4771 = vmatpush1.msra.mxu0 %v4770
          %v4772 = vand.u32 %v4159, 4294901760
          %4773 = vmatprep.subr.mxu0 %v4772
          %v4774 = vand.u32 %v4158, 4294901760
          %4775 = vmatpush1.msra.mxu0 %v4774
          %v4776 = vand.u32 %v4161, 4294901760
          %4777 = vmatprep.subr.mxu0 %v4776
          %v4778 = vand.u32 %v4160, 4294901760
          %4779 = vmatpush1.msra.mxu0 %v4778
          %v4780 = vand.u32 %v4163, 4294901760
          %4781 = vmatprep.subr.mxu0 %v4780
          %v4782 = vand.u32 %v4162, 4294901760
          %4783 = vmatpush1.msra.mxu0 %v4782
          %v4784 = vand.u32 %v4165, 4294901760
          %4785 = vmatprep.subr.mxu0 %v4784
          %v4786 = vand.u32 %v4164, 4294901760
          %4787 = vmatpush1.msra.mxu0 %v4786
          %v4788 = vand.u32 %v4167, 4294901760
          %4789 = vmatprep.subr.mxu0 %v4788
          %v4790 = vand.u32 %v4166, 4294901760
          %4791 = vmatpush1.msra.mxu0 %v4790
          %v4792 = vand.u32 %v4169, 4294901760
          %4793 = vmatprep.subr.mxu0 %v4792
          %v4794 = vand.u32 %v4168, 4294901760
          %4795 = vmatpush1.msra.mxu0 %v4794
          %v4796 = vand.u32 %v4171, 4294901760
          %4797 = vmatprep.subr.mxu0 %v4796
          %v4798 = vand.u32 %v4170, 4294901760
          %4799 = vmatpush1.msra.mxu0 %v4798
          %v4800 = vand.u32 %v4173, 4294901760
          %4801 = vmatprep.subr.mxu0 %v4800
          %v4802 = vand.u32 %v4172, 4294901760
          %4803 = vmatpush1.msra.mxu0 %v4802
          %v4804 = vand.u32 %v4175, 4294901760
          %4805 = vmatprep.subr.mxu0 %v4804
          %v4806 = vand.u32 %v4174, 4294901760
          %4807 = vmatpush1.msra.mxu0 %v4806
          %4808 = vmatprep.subr.mxu0 0.0
          %4809 = vmatpush1.msra.mxu0 0.0
          %4810 = vmatprep.subr.mxu0 0.0
          %4811 = vmatpush1.msra.mxu0 0.0
          %4812 = vmatprep.subr.mxu0 0.0
          %4813 = vmatpush1.msra.mxu0 0.0
          %4814 = vmatprep.subr.mxu0 0.0
          %4815 = vmatpush1.msra.mxu0 0.0
          %4816 = vmatprep.subr.mxu0 0.0
          %4817 = vmatpush1.msra.mxu0 0.0
          %4818 = vmatprep.subr.mxu0 0.0
          %4819 = vmatpush1.msra.mxu0 0.0
          %4820 = vmatprep.subr.mxu0 0.0
          %4821 = vmatpush1.msra.mxu0 0.0
          %4822 = vmatprep.subr.mxu0 0.0
          %4823 = vmatpush1.msra.mxu0 0.0
          %4824 = vmatprep.subr.mxu0 0.0
          %4825 = vmatpush1.msra.mxu0 0.0
          %4826 = vmatprep.subr.mxu0 0.0
          %4827 = vmatpush1.msra.mxu0 0.0
          %4828 = vmatprep.subr.mxu0 0.0
          %4829 = vmatpush1.msra.mxu0 0.0
          %4830 = vmatprep.subr.mxu0 0.0
          %4831 = vmatpush1.msra.mxu0 0.0
          %4832 = vmatprep.subr.mxu0 0.0
          %4833 = vmatpush1.msra.mxu0 0.0
          %4834 = vmatprep.subr.mxu0 0.0
          %4835 = vmatpush1.msra.mxu0 0.0
          %4836 = vmatprep.subr.mxu0 0.0
          %4837 = vmatpush1.msra.mxu0 0.0
          %4838 = vmatprep.subr.mxu0 0.0
          %4839 = vmatpush1.msra.mxu0 0.0
          %4840 = vmatprep.mubr.f32.mxu0 0.0
          %v4841 = vand.u32 %v4140, 4294901760
          %v4842 = vsub.f32 %v4140, %v4841
          %v4843 = vand.u32 %v4842, 4294901760
          %4844 = vmatmul.mubr.f32.gmra.mrb[0].mxu0 %v4843
          %v4845 = vpop.f32.mrb[0].mxu0
          %v4846 = vadd.f32 %v4716, %v4845
          %v4847 = vpop.f32.mrb[0].mxu0
          %v4848 = vadd.f32 %v4718, %v4847
          %4849 = vmatprep.mubr.f32.mxu0 0.0
          %v4850 = vand.u32 %v4141, 4294901760
          %v4851 = vsub.f32 %v4141, %v4850
          %v4852 = vand.u32 %v4851, 4294901760
          %4853 = vmatmul.mubr.f32.gmra.mrb[0].mxu0 %v4852
          %v4854 = vpop.f32.mrb[0].mxu0
          %v4855 = vadd.f32 %v4724, %v4854
          %v4856 = vpop.f32.mrb[0].mxu0
          %v4857 = vadd.f32 %v4726, %v4856
          %4858 = vmatprep.mubr.f32.mxu0 0.0
          %v4859 = vand.u32 %v4142, 4294901760
          %v4860 = vsub.f32 %v4142, %v4859
          %v4861 = vand.u32 %v4860, 4294901760
          %4862 = vmatmul.mubr.f32.gmra.mrb[0].mxu0 %v4861
          %v4863 = vpop.f32.mrb[0].mxu0
          %v4864 = vadd.f32 %v4732, %v4863
          %v4865 = vpop.f32.mrb[0].mxu0
          %v4866 = vadd.f32 %v4734, %v4865
          %4867 = vmatprep.mubr.f32.mxu0 0.0
          %v4868 = vand.u32 %v4143, 4294901760
          %v4869 = vsub.f32 %v4143, %v4868
          %v4870 = vand.u32 %v4869, 4294901760
          %4871 = vmatmul.mubr.f32.gmra.mrb[0].mxu0 %v4870
          %v4872 = vpop.f32.mrb[0].mxu0
          %v4873 = vadd.f32 %v4740, %v4872
          %v4874 = vpop.f32.mrb[0].mxu0
          %v4875 = vadd.f32 %v4742, %v4874
          %4876 = vdwg.mxu0
          %v4877 = vand.u32 %v4145, 4294901760
          %v4878 = vsub.f32 %v4145, %v4877
          %v4879 = vand.u32 %v4878, 4294901760
          %4880 = vmatprep.subr.mxu0 %v4879
          %v4881 = vand.u32 %v4144, 4294901760
          %v4882 = vsub.f32 %v4144, %v4881
          %v4883 = vand.u32 %v4882, 4294901760
          %4884 = vmatpush1.msra.mxu0 %v4883
          %v4885 = vand.u32 %v4147, 4294901760
          %v4886 = vsub.f32 %v4147, %v4885
          %v4887 = vand.u32 %v4886, 4294901760
          %4888 = vmatprep.subr.mxu0 %v4887
          %v4889 = vand.u32 %v4146, 4294901760
          %v4890 = vsub.f32 %v4146, %v4889
          %v4891 = vand.u32 %v4890, 4294901760
          %4892 = vmatpush1.msra.mxu0 %v4891
          %v4893 = vand.u32 %v4149, 4294901760
          %v4894 = vsub.f32 %v4149, %v4893
          %v4895 = vand.u32 %v4894, 4294901760
          %4896 = vmatprep.subr.mxu0 %v4895
          %v4897 = vand.u32 %v4148, 4294901760
          %v4898 = vsub.f32 %v4148, %v4897
          %v4899 = vand.u32 %v4898, 4294901760
          %4900 = vmatpush1.msra.mxu0 %v4899
          %v4901 = vand.u32 %v4151, 4294901760
          %v4902 = vsub.f32 %v4151, %v4901
          %v4903 = vand.u32 %v4902, 4294901760
          %4904 = vmatprep.subr.mxu0 %v4903
          %v4905 = vand.u32 %v4150, 4294901760
          %v4906 = vsub.f32 %v4150, %v4905
          %v4907 = vand.u32 %v4906, 4294901760
          %4908 = vmatpush1.msra.mxu0 %v4907
          %v4909 = vand.u32 %v4153, 4294901760
          %v4910 = vsub.f32 %v4153, %v4909
          %v4911 = vand.u32 %v4910, 4294901760
          %4912 = vmatprep.subr.mxu0 %v4911
          %v4913 = vand.u32 %v4152, 4294901760
          %v4914 = vsub.f32 %v4152, %v4913
          %v4915 = vand.u32 %v4914, 4294901760
          %4916 = vmatpush1.msra.mxu0 %v4915
          %v4917 = vand.u32 %v4155, 4294901760
          %v4918 = vsub.f32 %v4155, %v4917
          %v4919 = vand.u32 %v4918, 4294901760
          %4920 = vmatprep.subr.mxu0 %v4919
          %v4921 = vand.u32 %v4154, 4294901760
          %v4922 = vsub.f32 %v4154, %v4921
          %v4923 = vand.u32 %v4922, 4294901760
          %4924 = vmatpush1.msra.mxu0 %v4923
          %v4925 = vand.u32 %v4157, 4294901760
          %v4926 = vsub.f32 %v4157, %v4925
          %v4927 = vand.u32 %v4926, 4294901760
          %4928 = vmatprep.subr.mxu0 %v4927
          %v4929 = vand.u32 %v4156, 4294901760
          %v4930 = vsub.f32 %v4156, %v4929
          %v4931 = vand.u32 %v4930, 4294901760
          %4932 = vmatpush1.msra.mxu0 %v4931
          %v4933 = vand.u32 %v4159, 4294901760
          %v4934 = vsub.f32 %v4159, %v4933
          %v4935 = vand.u32 %v4934, 4294901760
          %4936 = vmatprep.subr.mxu0 %v4935
          %v4937 = vand.u32 %v4158, 4294901760
          %v4938 = vsub.f32 %v4158, %v4937
          %v4939 = vand.u32 %v4938, 4294901760
          %4940 = vmatpush1.msra.mxu0 %v4939
          %v4941 = vand.u32 %v4161, 4294901760
          %v4942 = vsub.f32 %v4161, %v4941
          %v4943 = vand.u32 %v4942, 4294901760
          %4944 = vmatprep.subr.mxu0 %v4943
          %v4945 = vand.u32 %v4160, 4294901760
          %v4946 = vsub.f32 %v4160, %v4945
          %v4947 = vand.u32 %v4946, 4294901760
          %4948 = vmatpush1.msra.mxu0 %v4947
          %v4949 = vand.u32 %v4163, 4294901760
          %v4950 = vsub.f32 %v4163, %v4949
          %v4951 = vand.u32 %v4950, 4294901760
          %4952 = vmatprep.subr.mxu0 %v4951
          %v4953 = vand.u32 %v4162, 4294901760
          %v4954 = vsub.f32 %v4162, %v4953
          %v4955 = vand.u32 %v4954, 4294901760
          %4956 = vmatpush1.msra.mxu0 %v4955
          %v4957 = vand.u32 %v4165, 4294901760
          %v4958 = vsub.f32 %v4165, %v4957
          %v4959 = vand.u32 %v4958, 4294901760
          %4960 = vmatprep.subr.mxu0 %v4959
          %v4961 = vand.u32 %v4164, 4294901760
          %v4962 = vsub.f32 %v4164, %v4961
          %v4963 = vand.u32 %v4962, 4294901760
          %4964 = vmatpush1.msra.mxu0 %v4963
          %v4965 = vand.u32 %v4167, 4294901760
          %v4966 = vsub.f32 %v4167, %v4965
          %v4967 = vand.u32 %v4966, 4294901760
          %4968 = vmatprep.subr.mxu0 %v4967
          %v4969 = vand.u32 %v4166, 4294901760
          %v4970 = vsub.f32 %v4166, %v4969
          %v4971 = vand.u32 %v4970, 4294901760
          %4972 = vmatpush1.msra.mxu0 %v4971
          %v4973 = vand.u32 %v4169, 4294901760
          %v4974 = vsub.f32 %v4169, %v4973
          %v4975 = vand.u32 %v4974, 4294901760
          %4976 = vmatprep.subr.mxu0 %v4975
          %v4977 = vand.u32 %v4168, 4294901760
          %v4978 = vsub.f32 %v4168, %v4977
          %v4979 = vand.u32 %v4978, 4294901760
          %4980 = vmatpush1.msra.mxu0 %v4979
          %v4981 = vand.u32 %v4171, 4294901760
          %v4982 = vsub.f32 %v4171, %v4981
          %v4983 = vand.u32 %v4982, 4294901760
          %4984 = vmatprep.subr.mxu0 %v4983
          %v4985 = vand.u32 %v4170, 4294901760
          %v4986 = vsub.f32 %v4170, %v4985
          %v4987 = vand.u32 %v4986, 4294901760
          %4988 = vmatpush1.msra.mxu0 %v4987
          %v4989 = vand.u32 %v4173, 4294901760
          %v4990 = vsub.f32 %v4173, %v4989
          %v4991 = vand.u32 %v4990, 4294901760
          %4992 = vmatprep.subr.mxu0 %v4991
          %v4993 = vand.u32 %v4172, 4294901760
          %v4994 = vsub.f32 %v4172, %v4993
          %v4995 = vand.u32 %v4994, 4294901760
          %4996 = vmatpush1.msra.mxu0 %v4995
          %v4997 = vand.u32 %v4175, 4294901760
          %v4998 = vsub.f32 %v4175, %v4997
          %v4999 = vand.u32 %v4998, 4294901760
          %5000 = vmatprep.subr.mxu0 %v4999
          %v5001 = vand.u32 %v4174, 4294901760
          %v5002 = vsub.f32 %v4174, %v5001
          %v5003 = vand.u32 %v5002, 4294901760
          %5004 = vmatpush1.msra.mxu0 %v5003
          %5005 = vmatprep.subr.mxu0 0.0
          %5006 = vmatpush1.msra.mxu0 0.0
          %5007 = vmatprep.subr.mxu0 0.0
          %5008 = vmatpush1.msra.mxu0 0.0
          %5009 = vmatprep.subr.mxu0 0.0
          %5010 = vmatpush1.msra.mxu0 0.0
          %5011 = vmatprep.subr.mxu0 0.0
          %5012 = vmatpush1.msra.mxu0 0.0
          %5013 = vmatprep.subr.mxu0 0.0
          %5014 = vmatpush1.msra.mxu0 0.0
          %5015 = vmatprep.subr.mxu0 0.0
          %5016 = vmatpush1.msra.mxu0 0.0
          %5017 = vmatprep.subr.mxu0 0.0
          %5018 = vmatpush1.msra.mxu0 0.0
          %5019 = vmatprep.subr.mxu0 0.0
          %5020 = vmatpush1.msra.mxu0 0.0
          %5021 = vmatprep.subr.mxu0 0.0
          %5022 = vmatpush1.msra.mxu0 0.0
          %5023 = vmatprep.subr.mxu0 0.0
          %5024 = vmatpush1.msra.mxu0 0.0
          %5025 = vmatprep.subr.mxu0 0.0
          %5026 = vmatpush1.msra.mxu0 0.0
          %5027 = vmatprep.subr.mxu0 0.0
          %5028 = vmatpush1.msra.mxu0 0.0
          %5029 = vmatprep.subr.mxu0 0.0
          %5030 = vmatpush1.msra.mxu0 0.0
          %5031 = vmatprep.subr.mxu0 0.0
          %5032 = vmatpush1.msra.mxu0 0.0
          %5033 = vmatprep.subr.mxu0 0.0
          %5034 = vmatpush1.msra.mxu0 0.0
          %5035 = vmatprep.subr.mxu0 0.0
          %5036 = vmatpush1.msra.mxu0 0.0
          %5037 = vmatprep.mubr.f32.mxu0 0.0
          %v5038 = vand.u32 %v4140, 4294901760
          %5039 = vmatmul.mubr.f32.gmra.mrb[0].mxu0 %v5038
          %v5040 = vpop.f32.mrb[0].mxu0
          %v5041 = vadd.f32 %v4846, %v5040
          %v5042 = vpop.f32.mrb[0].mxu0
          %v5043 = vadd.f32 %v4848, %v5042
          %5044 = vmatprep.mubr.f32.mxu0 0.0
          %v5045 = vand.u32 %v4141, 4294901760
          %5046 = vmatmul.mubr.f32.gmra.mrb[0].mxu0 %v5045
          %v5047 = vpop.f32.mrb[0].mxu0
          %v5048 = vadd.f32 %v4855, %v5047
          %v5049 = vpop.f32.mrb[0].mxu0
          %v5050 = vadd.f32 %v4857, %v5049
          %5051 = vmatprep.mubr.f32.mxu0 0.0
          %v5052 = vand.u32 %v4142, 4294901760
          %5053 = vmatmul.mubr.f32.gmra.mrb[0].mxu0 %v5052
          %v5054 = vpop.f32.mrb[0].mxu0
          %v5055 = vadd.f32 %v4864, %v5054
          %v5056 = vpop.f32.mrb[0].mxu0
          %v5057 = vadd.f32 %v4866, %v5056
          %5058 = vmatprep.mubr.f32.mxu0 0.0
          %v5059 = vand.u32 %v4143, 4294901760
          %5060 = vmatmul.mubr.f32.gmra.mrb[0].mxu0 %v5059
          %v5061 = vpop.f32.mrb[0].mxu0
          %v5062 = vadd.f32 %v4873, %v5061
          %v5063 = vpop.f32.mrb[0].mxu0
          %v5064 = vadd.f32 %v4875, %v5063
          %5065 = vdwg.mxu0
          %v5066 = vand.u32 %v4145, 4294901760
          %5067 = vmatprep.subr.mxu0 %v5066
          %v5068 = vand.u32 %v4144, 4294901760
          %5069 = vmatpush1.msra.mxu0 %v5068
          %v5070 = vand.u32 %v4147, 4294901760
          %5071 = vmatprep.subr.mxu0 %v5070
          %v5072 = vand.u32 %v4146, 4294901760
          %5073 = vmatpush1.msra.mxu0 %v5072
          %v5074 = vand.u32 %v4149, 4294901760
          %5075 = vmatprep.subr.mxu0 %v5074
          %v5076 = vand.u32 %v4148, 4294901760
          %5077 = vmatpush1.msra.mxu0 %v5076
          %v5078 = vand.u32 %v4151, 4294901760
          %5079 = vmatprep.subr.mxu0 %v5078
          %v5080 = vand.u32 %v4150, 4294901760
          %5081 = vmatpush1.msra.mxu0 %v5080
          %v5082 = vand.u32 %v4153, 4294901760
          %5083 = vmatprep.subr.mxu0 %v5082
          %v5084 = vand.u32 %v4152, 4294901760
          %5085 = vmatpush1.msra.mxu0 %v5084
          %v5086 = vand.u32 %v4155, 4294901760
          %5087 = vmatprep.subr.mxu0 %v5086
          %v5088 = vand.u32 %v4154, 4294901760
          %5089 = vmatpush1.msra.mxu0 %v5088
          %v5090 = vand.u32 %v4157, 4294901760
          %5091 = vmatprep.subr.mxu0 %v5090
          %v5092 = vand.u32 %v4156, 4294901760
          %5093 = vmatpush1.msra.mxu0 %v5092
          %v5094 = vand.u32 %v4159, 4294901760
          %5095 = vmatprep.subr.mxu0 %v5094
          %v5096 = vand.u32 %v4158, 4294901760
          %5097 = vmatpush1.msra.mxu0 %v5096
          %v5098 = vand.u32 %v4161, 4294901760
          %5099 = vmatprep.subr.mxu0 %v5098
          %v5100 = vand.u32 %v4160, 4294901760
          %5101 = vmatpush1.msra.mxu0 %v5100
          %v5102 = vand.u32 %v4163, 4294901760
          %5103 = vmatprep.subr.mxu0 %v5102
          %v5104 = vand.u32 %v4162, 4294901760
          %5105 = vmatpush1.msra.mxu0 %v5104
          %v5106 = vand.u32 %v4165, 4294901760
          %5107 = vmatprep.subr.mxu0 %v5106
          %v5108 = vand.u32 %v4164, 4294901760
          %5109 = vmatpush1.msra.mxu0 %v5108
          %v5110 = vand.u32 %v4167, 4294901760
          %5111 = vmatprep.subr.mxu0 %v5110
          %v5112 = vand.u32 %v4166, 4294901760
          %5113 = vmatpush1.msra.mxu0 %v5112
          %v5114 = vand.u32 %v4169, 4294901760
          %5115 = vmatprep.subr.mxu0 %v5114
          %v5116 = vand.u32 %v4168, 4294901760
          %5117 = vmatpush1.msra.mxu0 %v5116
          %v5118 = vand.u32 %v4171, 4294901760
          %5119 = vmatprep.subr.mxu0 %v5118
          %v5120 = vand.u32 %v4170, 4294901760
          %5121 = vmatpush1.msra.mxu0 %v5120
          %v5122 = vand.u32 %v4173, 4294901760
          %5123 = vmatprep.subr.mxu0 %v5122
          %v5124 = vand.u32 %v4172, 4294901760
          %5125 = vmatpush1.msra.mxu0 %v5124
          %v5126 = vand.u32 %v4175, 4294901760
          %5127 = vmatprep.subr.mxu0 %v5126
          %v5128 = vand.u32 %v4174, 4294901760
          %5129 = vmatpush1.msra.mxu0 %v5128
          %5130 = vmatprep.subr.mxu0 0.0
          %5131 = vmatpush1.msra.mxu0 0.0
          %5132 = vmatprep.subr.mxu0 0.0
          %5133 = vmatpush1.msra.mxu0 0.0
          %5134 = vmatprep.subr.mxu0 0.0
          %5135 = vmatpush1.msra.mxu0 0.0
          %5136 = vmatprep.subr.mxu0 0.0
          %5137 = vmatpush1.msra.mxu0 0.0
          %5138 = vmatprep.subr.mxu0 0.0
          %5139 = vmatpush1.msra.mxu0 0.0
          %5140 = vmatprep.subr.mxu0 0.0
          %5141 = vmatpush1.msra.mxu0 0.0
          %5142 = vmatprep.subr.mxu0 0.0
          %5143 = vmatpush1.msra.mxu0 0.0
          %5144 = vmatprep.subr.mxu0 0.0
          %5145 = vmatpush1.msra.mxu0 0.0
          %5146 = vmatprep.subr.mxu0 0.0
          %5147 = vmatpush1.msra.mxu0 0.0
          %5148 = vmatprep.subr.mxu0 0.0
          %5149 = vmatpush1.msra.mxu0 0.0
          %5150 = vmatprep.subr.mxu0 0.0
          %5151 = vmatpush1.msra.mxu0 0.0
          %5152 = vmatprep.subr.mxu0 0.0
          %5153 = vmatpush1.msra.mxu0 0.0
          %5154 = vmatprep.subr.mxu0 0.0
          %5155 = vmatpush1.msra.mxu0 0.0
          %5156 = vmatprep.subr.mxu0 0.0
          %5157 = vmatpush1.msra.mxu0 0.0
          %5158 = vmatprep.subr.mxu0 0.0
          %5159 = vmatpush1.msra.mxu0 0.0
          %5160 = vmatprep.subr.mxu0 0.0
          %5161 = vmatpush1.msra.mxu0 0.0
          %5162 = vmatprep.mubr.f32.mxu0 0.0
          %v5163 = vand.u32 %v4140, 4294901760
          %5164 = vmatmul.mubr.f32.gmra.mrb[0].mxu0 %v5163
          %v5165 = vpop.f32.mrb[0].mxu0
          %v5166 = vadd.f32 %v5041, %v5165
          %v5167 = vpop.f32.mrb[0].mxu0
          %v5168 = vadd.f32 %v5043, %v5167
          %5169 = vmatprep.mubr.f32.mxu0 0.0
          %v5170 = vand.u32 %v4141, 4294901760
          %5171 = vmatmul.mubr.f32.gmra.mrb[0].mxu0 %v5170
          %v5172 = vpop.f32.mrb[0].mxu0
          %v5173 = vadd.f32 %v5048, %v5172
          %v5174 = vpop.f32.mrb[0].mxu0
          %v5175 = vadd.f32 %v5050, %v5174
          %5176 = vmatprep.mubr.f32.mxu0 0.0
          %v5177 = vand.u32 %v4142, 4294901760
          %5178 = vmatmul.mubr.f32.gmra.mrb[0].mxu0 %v5177
          %v5179 = vpop.f32.mrb[0].mxu0
          %v5180 = vadd.f32 %v5055, %v5179
          %v5181 = vpop.f32.mrb[0].mxu0
          %v5182 = vadd.f32 %v5057, %v5181
          %5183 = vmatprep.mubr.f32.mxu0 0.0
          %v5184 = vand.u32 %v4143, 4294901760
          %5185 = vmatmul.mubr.f32.gmra.mrb[0].mxu0 %v5184
          %v5186 = vpop.f32.mrb[0].mxu0
          %v5187 = vadd.f32 %v5062, %v5186
          %v5188 = vpop.f32.mrb[0].mxu0
          %v5189 = vadd.f32 %v5064, %v5188
          %5190 = vdwg.mxu0
          %vm5191 = vcmp.ge.f32.partialorder %v5166, 0.0
          %vm5192 = vcmp.ge.f32.partialorder %v5168, 0.0
          %vm5193 = vcmp.ge.f32.partialorder %v5173, 0.0
          %vm5194 = vcmp.ge.f32.partialorder %v5175, 0.0
          %vm5195 = vcmp.ge.f32.partialorder %v5180, 0.0
          %vm5196 = vcmp.ge.f32.partialorder %v5182, 0.0
          %vm5197 = vcmp.ge.f32.partialorder %v5187, 0.0
          %vm5198 = vcmp.ge.f32.partialorder %v5189, 0.0
          %v5199 = vmul.f32 %v5166, 0.01
          %v5200 = vmul.f32 %v5168, 0.01
          %v5201 = vmul.f32 %v5173, 0.01
          %v5202 = vmul.f32 %v5175, 0.01
          %v5203 = vmul.f32 %v5180, 0.01
          %v5204 = vmul.f32 %v5182, 0.01
          %v5205 = vmul.f32 %v5187, 0.01
          %v5206 = vmul.f32 %v5189, 0.01
          %v5207 = vsel %vm5191, %v5166, %v5199
          %v5208 = vsel %vm5192, %v5168, %v5200
          %v5209 = vsel %vm5193, %v5173, %v5201
          %v5210 = vsel %vm5194, %v5175, %v5202
          %v5211 = vsel %vm5195, %v5180, %v5203
          %v5212 = vsel %vm5196, %v5182, %v5204
          %v5213 = vsel %vm5197, %v5187, %v5205
          %v5214 = vsel %vm5198, %v5189, %v5206
          %s5215 = scalar_lea.vmem %s6, 7
          %v5216 = vld [vmem:[%s5215] ss:$8 sm:$0x3]
          %s5217 = scalar_lea.vmem %s6, 16
          %v5218 = vld [vmem:[%s5217] ss:$8 sm:$0x3]
          %v5219 = vmul.f32 %v5207, %v3235
          %v5220 = vmul.f32 %v5208, %v3235
          %v5221 = vmul.f32 %v5209, %v3236
          %v5222 = vmul.f32 %v5210, %v3236
          %v5223 = vmul.f32 %v5211, %v3237
          %v5224 = vmul.f32 %v5212, %v3237
          %v5225 = vmul.f32 %v5213, %v3238
          %v5226 = vmul.f32 %v5214, %v3238
          %v5227 = vadd.f32 %v5219, %v5221
          %v5228 = vadd.f32 %v5227, %v5223
          %v5229 = vadd.f32 %v5228, %v5225
          %v5230 = vrot.slane %v5229, 4
          %v5231 = vadd.f32 %v5229, %v5230
          %v5232 = vrot.slane %v5231, 2
          %v5233 = vadd.f32 %v5231, %v5232
          %v5234 = vrot.slane %v5233, 1
          %v5235 = vadd.f32 %v5233, %v5234
          %v5236 = vadd.f32 %v5220, %v5222
          %v5237 = vadd.f32 %v5236, %v5224
          %v5238 = vadd.f32 %v5237, %v5226
          %v5239 = vrot.slane %v5238, 4
          %v5240 = vadd.f32 %v5238, %v5239
          %v5241 = vrot.slane %v5240, 2
          %v5242 = vadd.f32 %v5240, %v5241
          %v5243 = vrot.slane %v5242, 1
          %v5244 = vadd.f32 %v5242, %v5243
          %v5245 = vmul.f32 %v5235, 0.037037037
          %v5246 = vmul.f32 %v5244, 0.037037037
          %v5247 = vsub.f32 %v5207, %v5245
          %v5248 = vsub.f32 %v5208, %v5246
          %v5249 = vsub.f32 %v5209, %v5245
          %v5250 = vsub.f32 %v5210, %v5246
          %v5251 = vsub.f32 %v5211, %v5245
          %v5252 = vsub.f32 %v5212, %v5246
          %v5253 = vsub.f32 %v5213, %v5245
          %v5254 = vsub.f32 %v5214, %v5246
          %v5255 = vmul.f32 %v5247, %v5247
          %v5256 = vmul.f32 %v5248, %v5248
          %v5257 = vmul.f32 %v5249, %v5249
          %v5258 = vmul.f32 %v5250, %v5250
          %v5259 = vmul.f32 %v5251, %v5251
          %v5260 = vmul.f32 %v5252, %v5252
          %v5261 = vmul.f32 %v5253, %v5253
          %v5262 = vmul.f32 %v5254, %v5254
          %v5263 = vmul.f32 %v5255, %v3235
          %v5264 = vmul.f32 %v5256, %v3235
          %v5265 = vmul.f32 %v5257, %v3236
          %v5266 = vmul.f32 %v5258, %v3236
          %v5267 = vmul.f32 %v5259, %v3237
          %v5268 = vmul.f32 %v5260, %v3237
          %v5269 = vmul.f32 %v5261, %v3238
          %v5270 = vmul.f32 %v5262, %v3238
          %v5271 = vadd.f32 %v5263, %v5265
          %v5272 = vadd.f32 %v5271, %v5267
          %v5273 = vadd.f32 %v5272, %v5269
          %v5274 = vrot.slane %v5273, 4
          %v5275 = vadd.f32 %v5273, %v5274
          %v5276 = vrot.slane %v5275, 2
          %v5277 = vadd.f32 %v5275, %v5276
          %v5278 = vrot.slane %v5277, 1
          %v5279 = vadd.f32 %v5277, %v5278
          %v5280 = vadd.f32 %v5264, %v5266
          %v5281 = vadd.f32 %v5280, %v5268
          %v5282 = vadd.f32 %v5281, %v5270
          %v5283 = vrot.slane %v5282, 4
          %v5284 = vadd.f32 %v5282, %v5283
          %v5285 = vrot.slane %v5284, 2
          %v5286 = vadd.f32 %v5284, %v5285
          %v5287 = vrot.slane %v5286, 1
          %v5288 = vadd.f32 %v5286, %v5287
          %v5289 = vmul.f32 %v5279, 0.037037037
          %v5290 = vmul.f32 %v5288, 0.037037037
          %v5291 = vadd.f32 %v5289, 1e-05
          %v5292 = vadd.f32 %v5290, 1e-05
          %v5293 = vrsqrt.pop %v5291
          %v5294 = vrsqrt.pop %v5292
          %v5296 = vlaneseq
          %v5297 = vshrl.u32 %v5296, 7
          %v5298 = vsub.s32 0, %v5297
          %v5299 = vrot.slane %v5216, %v5298
          %v5300 = vlaneseq
          %v5301 = vshrl.u32 %v5300, 7
          %v5302 = vsub.s32 1, %v5301
          %v5303 = vrot.slane %v5216, %v5302
          %v5306 = vmul.f32 %v5293, %v5299
          %v5307 = vmul.f32 %v5294, %v5303
          %v5308 = vmul.f32 %v5245, %v5306
          %v5309 = vmul.f32 %v5246, %v5307
          %v5312 = vcombine.low %v5308, %v5309
          %v5314 = vunpack.c.l.s4 1966171168
          %v5315 = vunpack.c.0.s8 %v5314
          %v5316 = vlaneseq
          %v5317 = vshrl.u32 %v5316, 7
          %v5318 = vsub.s32 %v5315, %v5317
          %v5319 = vrot.slane %v5312, %v5318
          %v5321 = vunpack.c.l.s4 1966171168
          %v5322 = vunpack.c.0.s8 %v5321
          %v5323 = vlaneseq
          %v5324 = vshrl.u32 %v5323, 7
          %v5325 = vsub.s32 %v5322, %v5324
          %v5326 = vrot.slane %v5319, %v5325
          %v5328 = vsub.f32 %v5218, %v5326
          %v5329 = vlaneseq
          %v5330 = vshrl.u32 %v5329, 7
          %v5331 = vsub.s32 0, %v5330
          %v5332 = vrot.slane %v5306, %v5331
          %v5333 = vlaneseq
          %v5334 = vshrl.u32 %v5333, 7
          %v5335 = vsub.s32 0, %v5334
          %v5336 = vrot.slane %v5307, %v5335
          %v5337 = vmul.f32 %v5207, %v5332
          %v5338 = vmul.f32 %v5208, %v5336
          %v5339 = vmul.f32 %v5209, %v5332
          %v5340 = vmul.f32 %v5210, %v5336
          %v5341 = vmul.f32 %v5211, %v5332
          %v5342 = vmul.f32 %v5212, %v5336
          %v5343 = vmul.f32 %v5213, %v5332
          %v5344 = vmul.f32 %v5214, %v5336
          %v5346 = vlaneseq
          %v5347 = vshrl.u32 %v5346, 7
          %v5348 = vsub.s32 0, %v5347
          %v5349 = vrot.slane %v5328, %v5348
          %v5350 = vlaneseq
          %v5351 = vshrl.u32 %v5350, 7
          %v5352 = vsub.s32 1, %v5351
          %v5353 = vrot.slane %v5328, %v5352
          %v5356 = vadd.f32 %v5337, %v5349
          %v5357 = vadd.f32 %v5338, %v5353
          %v5358 = vadd.f32 %v5339, %v5349
          %v5359 = vadd.f32 %v5340, %v5353
          %v5360 = vadd.f32 %v5341, %v5349
          %v5361 = vadd.f32 %v5342, %v5353
          %v5362 = vadd.f32 %v5343, %v5349
          %v5363 = vadd.f32 %v5344, %v5353
          %v5364 = vld [vmem:[#allocation11] sm:$0xff]
          %v5365 = vld [vmem:[#allocation11 + $0x8] sm:$0xff]
          %v5366 = vld [vmem:[#allocation11 + $0x10] sm:$0xff]
          %v5367 = vld [vmem:[#allocation11 + $0x18] sm:$0xff]
          %v5368 = vld [vmem:[#allocation11 + $0x20] sm:$0xff]
          %v5369 = vld [vmem:[#allocation11 + $0x28] sm:$0xff]
          %v5370 = vld [vmem:[#allocation11 + $0x30] sm:$0xff]
          %v5371 = vld [vmem:[#allocation11 + $0x38] sm:$0xff]
          %v5372 = vld [vmem:[#allocation11 + $0x40] sm:$0xff]
          %v5373 = vld [vmem:[#allocation11 + $0x48] sm:$0xff]
          %v5374 = vld [vmem:[#allocation11 + $0x50] sm:$0xff]
          %v5375 = vld [vmem:[#allocation11 + $0x58] sm:$0xff]
          %v5376 = vld [vmem:[#allocation11 + $0x60] sm:$0xff]
          %v5377 = vld [vmem:[#allocation11 + $0x68] sm:$0xff]
          %v5378 = vld [vmem:[#allocation11 + $0x70] sm:$0xff]
          %v5379 = vld [vmem:[#allocation11 + $0x78] sm:$0xff]
          %v5380 = vld [vmem:[#allocation11 + $0x80] sm:$0xff]
          %v5381 = vld [vmem:[#allocation11 + $0x88] sm:$0xff]
          %v5382 = vld [vmem:[#allocation11 + $0x90] sm:$0xff]
          %v5383 = vld [vmem:[#allocation11 + $0x98] sm:$0xff]
          %v5384 = vld [vmem:[#allocation11 + $0xa0] sm:$0xff]
          %v5385 = vld [vmem:[#allocation11 + $0xa8] sm:$0xff]
          %v5386 = vld [vmem:[#allocation11 + $0xb0] sm:$0xff]
          %v5387 = vld [vmem:[#allocation11 + $0xb8] sm:$0xff]
          %v5388 = vld [vmem:[#allocation11 + $0xc0] sm:$0xff]
          %v5389 = vld [vmem:[#allocation11 + $0xc8] sm:$0xff]
          %v5390 = vld [vmem:[#allocation11 + $0xd0] sm:$0xff]
          %v5391 = vld [vmem:[#allocation11 + $0xd8] sm:$0xff]
          %v5392 = vld [vmem:[#allocation11 + $0xe0] sm:$0xff]
          %v5393 = vld [vmem:[#allocation11 + $0xe8] sm:$0xff]
          %v5394 = vld [vmem:[#allocation11 + $0xf0] sm:$0xff]
          %v5395 = vld [vmem:[#allocation11 + $0xf8] sm:$0xff]
          %v5396 = vld [vmem:[%s6 + $0x11] ss:$0 sm:$0xff]
          %5397 = vmatprep.subr.mxu0 0.0
          %v5398 = vand.u32 %v5364, 4294901760
          %5399 = vmatpush1.msra.mxu0 %v5398
          %5400 = vmatprep.subr.mxu0 0.0
          %v5401 = vand.u32 %v5365, 4294901760
          %5402 = vmatpush1.msra.mxu0 %v5401
          %5403 = vmatprep.subr.mxu0 0.0
          %v5404 = vand.u32 %v5366, 4294901760
          %5405 = vmatpush1.msra.mxu0 %v5404
          %5406 = vmatprep.subr.mxu0 0.0
          %v5407 = vand.u32 %v5367, 4294901760
          %5408 = vmatpush1.msra.mxu0 %v5407
          %5409 = vmatprep.subr.mxu0 0.0
          %v5410 = vand.u32 %v5368, 4294901760
          %5411 = vmatpush1.msra.mxu0 %v5410
          %5412 = vmatprep.subr.mxu0 0.0
          %v5413 = vand.u32 %v5369, 4294901760
          %5414 = vmatpush1.msra.mxu0 %v5413
          %5415 = vmatprep.subr.mxu0 0.0
          %v5416 = vand.u32 %v5370, 4294901760
          %5417 = vmatpush1.msra.mxu0 %v5416
          %5418 = vmatprep.subr.mxu0 0.0
          %v5419 = vand.u32 %v5371, 4294901760
          %5420 = vmatpush1.msra.mxu0 %v5419
          %5421 = vmatprep.subr.mxu0 0.0
          %v5422 = vand.u32 %v5372, 4294901760
          %5423 = vmatpush1.msra.mxu0 %v5422
          %5424 = vmatprep.subr.mxu0 0.0
          %v5425 = vand.u32 %v5373, 4294901760
          %5426 = vmatpush1.msra.mxu0 %v5425
          %5427 = vmatprep.subr.mxu0 0.0
          %v5428 = vand.u32 %v5374, 4294901760
          %5429 = vmatpush1.msra.mxu0 %v5428
          %5430 = vmatprep.subr.mxu0 0.0
          %v5431 = vand.u32 %v5375, 4294901760
          %5432 = vmatpush1.msra.mxu0 %v5431
          %5433 = vmatprep.subr.mxu0 0.0
          %v5434 = vand.u32 %v5376, 4294901760
          %5435 = vmatpush1.msra.mxu0 %v5434
          %5436 = vmatprep.subr.mxu0 0.0
          %v5437 = vand.u32 %v5377, 4294901760
          %5438 = vmatpush1.msra.mxu0 %v5437
          %5439 = vmatprep.subr.mxu0 0.0
          %v5440 = vand.u32 %v5378, 4294901760
          %5441 = vmatpush1.msra.mxu0 %v5440
          %5442 = vmatprep.subr.mxu0 0.0
          %v5443 = vand.u32 %v5379, 4294901760
          %5444 = vmatpush1.msra.mxu0 %v5443
          %5445 = vmatprep.subr.mxu0 0.0
          %v5446 = vand.u32 %v5380, 4294901760
          %5447 = vmatpush1.msra.mxu0 %v5446
          %5448 = vmatprep.subr.mxu0 0.0
          %v5449 = vand.u32 %v5381, 4294901760
          %5450 = vmatpush1.msra.mxu0 %v5449
          %5451 = vmatprep.subr.mxu0 0.0
          %v5452 = vand.u32 %v5382, 4294901760
          %5453 = vmatpush1.msra.mxu0 %v5452
          %5454 = vmatprep.subr.mxu0 0.0
          %v5455 = vand.u32 %v5383, 4294901760
          %5456 = vmatpush1.msra.mxu0 %v5455
          %5457 = vmatprep.subr.mxu0 0.0
          %v5458 = vand.u32 %v5384, 4294901760
          %5459 = vmatpush1.msra.mxu0 %v5458
          %5460 = vmatprep.subr.mxu0 0.0
          %v5461 = vand.u32 %v5385, 4294901760
          %5462 = vmatpush1.msra.mxu0 %v5461
          %5463 = vmatprep.subr.mxu0 0.0
          %v5464 = vand.u32 %v5386, 4294901760
          %5465 = vmatpush1.msra.mxu0 %v5464
          %5466 = vmatprep.subr.mxu0 0.0
          %v5467 = vand.u32 %v5387, 4294901760
          %5468 = vmatpush1.msra.mxu0 %v5467
          %5469 = vmatprep.subr.mxu0 0.0
          %v5470 = vand.u32 %v5388, 4294901760
          %5471 = vmatpush1.msra.mxu0 %v5470
          %5472 = vmatprep.subr.mxu0 0.0
          %v5473 = vand.u32 %v5389, 4294901760
          %5474 = vmatpush1.msra.mxu0 %v5473
          %5475 = vmatprep.subr.mxu0 0.0
          %v5476 = vand.u32 %v5390, 4294901760
          %5477 = vmatpush1.msra.mxu0 %v5476
          %5478 = vmatprep.subr.mxu0 0.0
          %v5479 = vand.u32 %v5391, 4294901760
          %5480 = vmatpush1.msra.mxu0 %v5479
          %5481 = vmatprep.subr.mxu0 0.0
          %v5482 = vand.u32 %v5392, 4294901760
          %5483 = vmatpush1.msra.mxu0 %v5482
          %5484 = vmatprep.subr.mxu0 0.0
          %v5485 = vand.u32 %v5393, 4294901760
          %5486 = vmatpush1.msra.mxu0 %v5485
          %5487 = vmatprep.subr.mxu0 0.0
          %v5488 = vand.u32 %v5394, 4294901760
          %5489 = vmatpush1.msra.mxu0 %v5488
          %5490 = vmatprep.subr.mxu0 0.0
          %v5491 = vand.u32 %v5395, 4294901760
          %5492 = vmatpush1.msra.mxu0 %v5491
          %v5493 = vand.u32 %v5357, 4294901760
          %v5494 = vsub.f32 %v5357, %v5493
          %v5495 = vand.u32 %v5494, 4294901760
          %v5496 = vsub.f32 %v5494, %v5495
          %v5497 = vand.u32 %v5496, 4294901760
          %5498 = vmatprep.mubr.f32.mxu0 %v5497
          %v5499 = vand.u32 %v5356, 4294901760
          %v5500 = vsub.f32 %v5356, %v5499
          %v5501 = vand.u32 %v5500, 4294901760
          %v5502 = vsub.f32 %v5500, %v5501
          %v5503 = vand.u32 %v5502, 4294901760
          %5504 = vmatmul.mubr.f32.gmra.mrb[0].mxu0 %v5503
          %v5505 = vpop.f32.mrb[0].mxu0
          %v5506 = vadd.f32 %v5396, %v5505
          %v5507 = vpop.f32.mrb[0].mxu0
          %v5508 = vand.u32 %v5359, 4294901760
          %v5509 = vsub.f32 %v5359, %v5508
          %v5510 = vand.u32 %v5509, 4294901760
          %v5511 = vsub.f32 %v5509, %v5510
          %v5512 = vand.u32 %v5511, 4294901760
          %5513 = vmatprep.mubr.f32.mxu0 %v5512
          %v5514 = vand.u32 %v5358, 4294901760
          %v5515 = vsub.f32 %v5358, %v5514
          %v5516 = vand.u32 %v5515, 4294901760
          %v5517 = vsub.f32 %v5515, %v5516
          %v5518 = vand.u32 %v5517, 4294901760
          %5519 = vmatmul.mubr.f32.gmra.mrb[0].mxu0 %v5518
          %v5520 = vpop.f32.mrb[0].mxu0
          %v5521 = vadd.f32 %v5396, %v5520
          %v5522 = vpop.f32.mrb[0].mxu0
          %v5523 = vand.u32 %v5361, 4294901760
          %v5524 = vsub.f32 %v5361, %v5523
          %v5525 = vand.u32 %v5524, 4294901760
          %v5526 = vsub.f32 %v5524, %v5525
          %v5527 = vand.u32 %v5526, 4294901760
          %5528 = vmatprep.mubr.f32.mxu0 %v5527
          %v5529 = vand.u32 %v5360, 4294901760
          %v5530 = vsub.f32 %v5360, %v5529
          %v5531 = vand.u32 %v5530, 4294901760
          %v5532 = vsub.f32 %v5530, %v5531
          %v5533 = vand.u32 %v5532, 4294901760
          %5534 = vmatmul.mubr.f32.gmra.mrb[0].mxu0 %v5533
          %v5535 = vpop.f32.mrb[0].mxu0
          %v5536 = vadd.f32 %v5396, %v5535
          %v5537 = vpop.f32.mrb[0].mxu0
          %v5538 = vand.u32 %v5363, 4294901760
          %v5539 = vsub.f32 %v5363, %v5538
          %v5540 = vand.u32 %v5539, 4294901760
          %v5541 = vsub.f32 %v5539, %v5540
          %v5542 = vand.u32 %v5541, 4294901760
          %5543 = vmatprep.mubr.f32.mxu0 %v5542
          %v5544 = vand.u32 %v5362, 4294901760
          %v5545 = vsub.f32 %v5362, %v5544
          %v5546 = vand.u32 %v5545, 4294901760
          %v5547 = vsub.f32 %v5545, %v5546
          %v5548 = vand.u32 %v5547, 4294901760
          %5549 = vmatmul.mubr.f32.gmra.mrb[0].mxu0 %v5548
          %v5550 = vpop.f32.mrb[0].mxu0
          %v5551 = vadd.f32 %v5396, %v5550
          %v5552 = vpop.f32.mrb[0].mxu0
          %5553 = vdwg.mxu0
          %5554 = vmatprep.subr.mxu0 0.0
          %v5555 = vand.u32 %v5364, 4294901760
          %v5556 = vsub.f32 %v5364, %v5555
          %v5557 = vand.u32 %v5556, 4294901760
          %v5558 = vsub.f32 %v5556, %v5557
          %v5559 = vand.u32 %v5558, 4294901760
          %5560 = vmatpush1.msra.mxu0 %v5559
          %5561 = vmatprep.subr.mxu0 0.0
          %v5562 = vand.u32 %v5365, 4294901760
          %v5563 = vsub.f32 %v5365, %v5562
          %v5564 = vand.u32 %v5563, 4294901760
          %v5565 = vsub.f32 %v5563, %v5564
          %v5566 = vand.u32 %v5565, 4294901760
          %5567 = vmatpush1.msra.mxu0 %v5566
          %5568 = vmatprep.subr.mxu0 0.0
          %v5569 = vand.u32 %v5366, 4294901760
          %v5570 = vsub.f32 %v5366, %v5569
          %v5571 = vand.u32 %v5570, 4294901760
          %v5572 = vsub.f32 %v5570, %v5571
          %v5573 = vand.u32 %v5572, 4294901760
          %5574 = vmatpush1.msra.mxu0 %v5573
          %5575 = vmatprep.subr.mxu0 0.0
          %v5576 = vand.u32 %v5367, 4294901760
          %v5577 = vsub.f32 %v5367, %v5576
          %v5578 = vand.u32 %v5577, 4294901760
          %v5579 = vsub.f32 %v5577, %v5578
          %v5580 = vand.u32 %v5579, 4294901760
          %5581 = vmatpush1.msra.mxu0 %v5580
          %5582 = vmatprep.subr.mxu0 0.0
          %v5583 = vand.u32 %v5368, 4294901760
          %v5584 = vsub.f32 %v5368, %v5583
          %v5585 = vand.u32 %v5584, 4294901760
          %v5586 = vsub.f32 %v5584, %v5585
          %v5587 = vand.u32 %v5586, 4294901760
          %5588 = vmatpush1.msra.mxu0 %v5587
          %5589 = vmatprep.subr.mxu0 0.0
          %v5590 = vand.u32 %v5369, 4294901760
          %v5591 = vsub.f32 %v5369, %v5590
          %v5592 = vand.u32 %v5591, 4294901760
          %v5593 = vsub.f32 %v5591, %v5592
          %v5594 = vand.u32 %v5593, 4294901760
          %5595 = vmatpush1.msra.mxu0 %v5594
          %5596 = vmatprep.subr.mxu0 0.0
          %v5597 = vand.u32 %v5370, 4294901760
          %v5598 = vsub.f32 %v5370, %v5597
          %v5599 = vand.u32 %v5598, 4294901760
          %v5600 = vsub.f32 %v5598, %v5599
          %v5601 = vand.u32 %v5600, 4294901760
          %5602 = vmatpush1.msra.mxu0 %v5601
          %5603 = vmatprep.subr.mxu0 0.0
          %v5604 = vand.u32 %v5371, 4294901760
          %v5605 = vsub.f32 %v5371, %v5604
          %v5606 = vand.u32 %v5605, 4294901760
          %v5607 = vsub.f32 %v5605, %v5606
          %v5608 = vand.u32 %v5607, 4294901760
          %5609 = vmatpush1.msra.mxu0 %v5608
          %5610 = vmatprep.subr.mxu0 0.0
          %v5611 = vand.u32 %v5372, 4294901760
          %v5612 = vsub.f32 %v5372, %v5611
          %v5613 = vand.u32 %v5612, 4294901760
          %v5614 = vsub.f32 %v5612, %v5613
          %v5615 = vand.u32 %v5614, 4294901760
          %5616 = vmatpush1.msra.mxu0 %v5615
          %5617 = vmatprep.subr.mxu0 0.0
          %v5618 = vand.u32 %v5373, 4294901760
          %v5619 = vsub.f32 %v5373, %v5618
          %v5620 = vand.u32 %v5619, 4294901760
          %v5621 = vsub.f32 %v5619, %v5620
          %v5622 = vand.u32 %v5621, 4294901760
          %5623 = vmatpush1.msra.mxu0 %v5622
          %5624 = vmatprep.subr.mxu0 0.0
          %v5625 = vand.u32 %v5374, 4294901760
          %v5626 = vsub.f32 %v5374, %v5625
          %v5627 = vand.u32 %v5626, 4294901760
          %v5628 = vsub.f32 %v5626, %v5627
          %v5629 = vand.u32 %v5628, 4294901760
          %5630 = vmatpush1.msra.mxu0 %v5629
          %5631 = vmatprep.subr.mxu0 0.0
          %v5632 = vand.u32 %v5375, 4294901760
          %v5633 = vsub.f32 %v5375, %v5632
          %v5634 = vand.u32 %v5633, 4294901760
          %v5635 = vsub.f32 %v5633, %v5634
          %v5636 = vand.u32 %v5635, 4294901760
          %5637 = vmatpush1.msra.mxu0 %v5636
          %5638 = vmatprep.subr.mxu0 0.0
          %v5639 = vand.u32 %v5376, 4294901760
          %v5640 = vsub.f32 %v5376, %v5639
          %v5641 = vand.u32 %v5640, 4294901760
          %v5642 = vsub.f32 %v5640, %v5641
          %v5643 = vand.u32 %v5642, 4294901760
          %5644 = vmatpush1.msra.mxu0 %v5643
          %5645 = vmatprep.subr.mxu0 0.0
          %v5646 = vand.u32 %v5377, 4294901760
          %v5647 = vsub.f32 %v5377, %v5646
          %v5648 = vand.u32 %v5647, 4294901760
          %v5649 = vsub.f32 %v5647, %v5648
          %v5650 = vand.u32 %v5649, 4294901760
          %5651 = vmatpush1.msra.mxu0 %v5650
          %5652 = vmatprep.subr.mxu0 0.0
          %v5653 = vand.u32 %v5378, 4294901760
          %v5654 = vsub.f32 %v5378, %v5653
          %v5655 = vand.u32 %v5654, 4294901760
          %v5656 = vsub.f32 %v5654, %v5655
          %v5657 = vand.u32 %v5656, 4294901760
          %5658 = vmatpush1.msra.mxu0 %v5657
          %5659 = vmatprep.subr.mxu0 0.0
          %v5660 = vand.u32 %v5379, 4294901760
          %v5661 = vsub.f32 %v5379, %v5660
          %v5662 = vand.u32 %v5661, 4294901760
          %v5663 = vsub.f32 %v5661, %v5662
          %v5664 = vand.u32 %v5663, 4294901760
          %5665 = vmatpush1.msra.mxu0 %v5664
          %5666 = vmatprep.subr.mxu0 0.0
          %v5667 = vand.u32 %v5380, 4294901760
          %v5668 = vsub.f32 %v5380, %v5667
          %v5669 = vand.u32 %v5668, 4294901760
          %v5670 = vsub.f32 %v5668, %v5669
          %v5671 = vand.u32 %v5670, 4294901760
          %5672 = vmatpush1.msra.mxu0 %v5671
          %5673 = vmatprep.subr.mxu0 0.0
          %v5674 = vand.u32 %v5381, 4294901760
          %v5675 = vsub.f32 %v5381, %v5674
          %v5676 = vand.u32 %v5675, 4294901760
          %v5677 = vsub.f32 %v5675, %v5676
          %v5678 = vand.u32 %v5677, 4294901760
          %5679 = vmatpush1.msra.mxu0 %v5678
          %5680 = vmatprep.subr.mxu0 0.0
          %v5681 = vand.u32 %v5382, 4294901760
          %v5682 = vsub.f32 %v5382, %v5681
          %v5683 = vand.u32 %v5682, 4294901760
          %v5684 = vsub.f32 %v5682, %v5683
          %v5685 = vand.u32 %v5684, 4294901760
          %5686 = vmatpush1.msra.mxu0 %v5685
          %5687 = vmatprep.subr.mxu0 0.0
          %v5688 = vand.u32 %v5383, 4294901760
          %v5689 = vsub.f32 %v5383, %v5688
          %v5690 = vand.u32 %v5689, 4294901760
          %v5691 = vsub.f32 %v5689, %v5690
          %v5692 = vand.u32 %v5691, 4294901760
          %5693 = vmatpush1.msra.mxu0 %v5692
          %5694 = vmatprep.subr.mxu0 0.0
          %v5695 = vand.u32 %v5384, 4294901760
          %v5696 = vsub.f32 %v5384, %v5695
          %v5697 = vand.u32 %v5696, 4294901760
          %v5698 = vsub.f32 %v5696, %v5697
          %v5699 = vand.u32 %v5698, 4294901760
          %5700 = vmatpush1.msra.mxu0 %v5699
          %5701 = vmatprep.subr.mxu0 0.0
          %v5702 = vand.u32 %v5385, 4294901760
          %v5703 = vsub.f32 %v5385, %v5702
          %v5704 = vand.u32 %v5703, 4294901760
          %v5705 = vsub.f32 %v5703, %v5704
          %v5706 = vand.u32 %v5705, 4294901760
          %5707 = vmatpush1.msra.mxu0 %v5706
          %5708 = vmatprep.subr.mxu0 0.0
          %v5709 = vand.u32 %v5386, 4294901760
          %v5710 = vsub.f32 %v5386, %v5709
          %v5711 = vand.u32 %v5710, 4294901760
          %v5712 = vsub.f32 %v5710, %v5711
          %v5713 = vand.u32 %v5712, 4294901760
          %5714 = vmatpush1.msra.mxu0 %v5713
          %5715 = vmatprep.subr.mxu0 0.0
          %v5716 = vand.u32 %v5387, 4294901760
          %v5717 = vsub.f32 %v5387, %v5716
          %v5718 = vand.u32 %v5717, 4294901760
          %v5719 = vsub.f32 %v5717, %v5718
          %v5720 = vand.u32 %v5719, 4294901760
          %5721 = vmatpush1.msra.mxu0 %v5720
          %5722 = vmatprep.subr.mxu0 0.0
          %v5723 = vand.u32 %v5388, 4294901760
          %v5724 = vsub.f32 %v5388, %v5723
          %v5725 = vand.u32 %v5724, 4294901760
          %v5726 = vsub.f32 %v5724, %v5725
          %v5727 = vand.u32 %v5726, 4294901760
          %5728 = vmatpush1.msra.mxu0 %v5727
          %5729 = vmatprep.subr.mxu0 0.0
          %v5730 = vand.u32 %v5389, 4294901760
          %v5731 = vsub.f32 %v5389, %v5730
          %v5732 = vand.u32 %v5731, 4294901760
          %v5733 = vsub.f32 %v5731, %v5732
          %v5734 = vand.u32 %v5733, 4294901760
          %5735 = vmatpush1.msra.mxu0 %v5734
          %5736 = vmatprep.subr.mxu0 0.0
          %v5737 = vand.u32 %v5390, 4294901760
          %v5738 = vsub.f32 %v5390, %v5737
          %v5739 = vand.u32 %v5738, 4294901760
          %v5740 = vsub.f32 %v5738, %v5739
          %v5741 = vand.u32 %v5740, 4294901760
          %5742 = vmatpush1.msra.mxu0 %v5741
          %5743 = vmatprep.subr.mxu0 0.0
          %v5744 = vand.u32 %v5391, 4294901760
          %v5745 = vsub.f32 %v5391, %v5744
          %v5746 = vand.u32 %v5745, 4294901760
          %v5747 = vsub.f32 %v5745, %v5746
          %v5748 = vand.u32 %v5747, 4294901760
          %5749 = vmatpush1.msra.mxu0 %v5748
          %5750 = vmatprep.subr.mxu0 0.0
          %v5751 = vand.u32 %v5392, 4294901760
          %v5752 = vsub.f32 %v5392, %v5751
          %v5753 = vand.u32 %v5752, 4294901760
          %v5754 = vsub.f32 %v5752, %v5753
          %v5755 = vand.u32 %v5754, 4294901760
          %5756 = vmatpush1.msra.mxu0 %v5755
          %5757 = vmatprep.subr.mxu0 0.0
          %v5758 = vand.u32 %v5393, 4294901760
          %v5759 = vsub.f32 %v5393, %v5758
          %v5760 = vand.u32 %v5759, 4294901760
          %v5761 = vsub.f32 %v5759, %v5760
          %v5762 = vand.u32 %v5761, 4294901760
          %5763 = vmatpush1.msra.mxu0 %v5762
          %5764 = vmatprep.subr.mxu0 0.0
          %v5765 = vand.u32 %v5394, 4294901760
          %v5766 = vsub.f32 %v5394, %v5765
          %v5767 = vand.u32 %v5766, 4294901760
          %v5768 = vsub.f32 %v5766, %v5767
          %v5769 = vand.u32 %v5768, 4294901760
          %5770 = vmatpush1.msra.mxu0 %v5769
          %5771 = vmatprep.subr.mxu0 0.0
          %v5772 = vand.u32 %v5395, 4294901760
          %v5773 = vsub.f32 %v5395, %v5772
          %v5774 = vand.u32 %v5773, 4294901760
          %v5775 = vsub.f32 %v5773, %v5774
          %v5776 = vand.u32 %v5775, 4294901760
          %5777 = vmatpush1.msra.mxu0 %v5776
          %v5778 = vand.u32 %v5357, 4294901760
          %5779 = vmatprep.mubr.f32.mxu0 %v5778
          %v5780 = vand.u32 %v5356, 4294901760
          %5781 = vmatmul.mubr.f32.gmra.mrb[0].mxu0 %v5780
          %v5782 = vpop.f32.mrb[0].mxu0
          %v5783 = vadd.f32 %v5506, %v5782
          %v5784 = vpop.f32.mrb[0].mxu0
          %v5785 = vand.u32 %v5359, 4294901760
          %5786 = vmatprep.mubr.f32.mxu0 %v5785
          %v5787 = vand.u32 %v5358, 4294901760
          %5788 = vmatmul.mubr.f32.gmra.mrb[0].mxu0 %v5787
          %v5789 = vpop.f32.mrb[0].mxu0
          %v5790 = vadd.f32 %v5521, %v5789
          %v5791 = vpop.f32.mrb[0].mxu0
          %v5792 = vand.u32 %v5361, 4294901760
          %5793 = vmatprep.mubr.f32.mxu0 %v5792
          %v5794 = vand.u32 %v5360, 4294901760
          %5795 = vmatmul.mubr.f32.gmra.mrb[0].mxu0 %v5794
          %v5796 = vpop.f32.mrb[0].mxu0
          %v5797 = vadd.f32 %v5536, %v5796
          %v5798 = vpop.f32.mrb[0].mxu0
          %v5799 = vand.u32 %v5363, 4294901760
          %5800 = vmatprep.mubr.f32.mxu0 %v5799
          %v5801 = vand.u32 %v5362, 4294901760
          %5802 = vmatmul.mubr.f32.gmra.mrb[0].mxu0 %v5801
          %v5803 = vpop.f32.mrb[0].mxu0
          %v5804 = vadd.f32 %v5551, %v5803
          %v5805 = vpop.f32.mrb[0].mxu0
          %5806 = vdwg.mxu0
          %5807 = vmatprep.subr.mxu0 0.0
          %v5808 = vand.u32 %v5364, 4294901760
          %v5809 = vsub.f32 %v5364, %v5808
          %5810 = vmatpush1.msra.mxu0 %v5809
          %5811 = vmatprep.subr.mxu0 0.0
          %v5812 = vand.u32 %v5365, 4294901760
          %v5813 = vsub.f32 %v5365, %v5812
          %5814 = vmatpush1.msra.mxu0 %v5813
          %5815 = vmatprep.subr.mxu0 0.0
          %v5816 = vand.u32 %v5366, 4294901760
          %v5817 = vsub.f32 %v5366, %v5816
          %5818 = vmatpush1.msra.mxu0 %v5817
          %5819 = vmatprep.subr.mxu0 0.0
          %v5820 = vand.u32 %v5367, 4294901760
          %v5821 = vsub.f32 %v5367, %v5820
          %5822 = vmatpush1.msra.mxu0 %v5821
          %5823 = vmatprep.subr.mxu0 0.0
          %v5824 = vand.u32 %v5368, 4294901760
          %v5825 = vsub.f32 %v5368, %v5824
          %5826 = vmatpush1.msra.mxu0 %v5825
          %5827 = vmatprep.subr.mxu0 0.0
          %v5828 = vand.u32 %v5369, 4294901760
          %v5829 = vsub.f32 %v5369, %v5828
          %5830 = vmatpush1.msra.mxu0 %v5829
          %5831 = vmatprep.subr.mxu0 0.0
          %v5832 = vand.u32 %v5370, 4294901760
          %v5833 = vsub.f32 %v5370, %v5832
          %5834 = vmatpush1.msra.mxu0 %v5833
          %5835 = vmatprep.subr.mxu0 0.0
          %v5836 = vand.u32 %v5371, 4294901760
          %v5837 = vsub.f32 %v5371, %v5836
          %5838 = vmatpush1.msra.mxu0 %v5837
          %5839 = vmatprep.subr.mxu0 0.0
          %v5840 = vand.u32 %v5372, 4294901760
          %v5841 = vsub.f32 %v5372, %v5840
          %5842 = vmatpush1.msra.mxu0 %v5841
          %5843 = vmatprep.subr.mxu0 0.0
          %v5844 = vand.u32 %v5373, 4294901760
          %v5845 = vsub.f32 %v5373, %v5844
          %5846 = vmatpush1.msra.mxu0 %v5845
          %5847 = vmatprep.subr.mxu0 0.0
          %v5848 = vand.u32 %v5374, 4294901760
          %v5849 = vsub.f32 %v5374, %v5848
          %5850 = vmatpush1.msra.mxu0 %v5849
          %5851 = vmatprep.subr.mxu0 0.0
          %v5852 = vand.u32 %v5375, 4294901760
          %v5853 = vsub.f32 %v5375, %v5852
          %5854 = vmatpush1.msra.mxu0 %v5853
          %5855 = vmatprep.subr.mxu0 0.0
          %v5856 = vand.u32 %v5376, 4294901760
          %v5857 = vsub.f32 %v5376, %v5856
          %5858 = vmatpush1.msra.mxu0 %v5857
          %5859 = vmatprep.subr.mxu0 0.0
          %v5860 = vand.u32 %v5377, 4294901760
          %v5861 = vsub.f32 %v5377, %v5860
          %5862 = vmatpush1.msra.mxu0 %v5861
          %5863 = vmatprep.subr.mxu0 0.0
          %v5864 = vand.u32 %v5378, 4294901760
          %v5865 = vsub.f32 %v5378, %v5864
          %5866 = vmatpush1.msra.mxu0 %v5865
          %5867 = vmatprep.subr.mxu0 0.0
          %v5868 = vand.u32 %v5379, 4294901760
          %v5869 = vsub.f32 %v5379, %v5868
          %5870 = vmatpush1.msra.mxu0 %v5869
          %5871 = vmatprep.subr.mxu0 0.0
          %v5872 = vand.u32 %v5380, 4294901760
          %v5873 = vsub.f32 %v5380, %v5872
          %5874 = vmatpush1.msra.mxu0 %v5873
          %5875 = vmatprep.subr.mxu0 0.0
          %v5876 = vand.u32 %v5381, 4294901760
          %v5877 = vsub.f32 %v5381, %v5876
          %5878 = vmatpush1.msra.mxu0 %v5877
          %5879 = vmatprep.subr.mxu0 0.0
          %v5880 = vand.u32 %v5382, 4294901760
          %v5881 = vsub.f32 %v5382, %v5880
          %5882 = vmatpush1.msra.mxu0 %v5881
          %5883 = vmatprep.subr.mxu0 0.0
          %v5884 = vand.u32 %v5383, 4294901760
          %v5885 = vsub.f32 %v5383, %v5884
          %5886 = vmatpush1.msra.mxu0 %v5885
          %5887 = vmatprep.subr.mxu0 0.0
          %v5888 = vand.u32 %v5384, 4294901760
          %v5889 = vsub.f32 %v5384, %v5888
          %5890 = vmatpush1.msra.mxu0 %v5889
          %5891 = vmatprep.subr.mxu0 0.0
          %v5892 = vand.u32 %v5385, 4294901760
          %v5893 = vsub.f32 %v5385, %v5892
          %5894 = vmatpush1.msra.mxu0 %v5893
          %5895 = vmatprep.subr.mxu0 0.0
          %v5896 = vand.u32 %v5386, 4294901760
          %v5897 = vsub.f32 %v5386, %v5896
          %5898 = vmatpush1.msra.mxu0 %v5897
          %5899 = vmatprep.subr.mxu0 0.0
          %v5900 = vand.u32 %v5387, 4294901760
          %v5901 = vsub.f32 %v5387, %v5900
          %5902 = vmatpush1.msra.mxu0 %v5901
          %5903 = vmatprep.subr.mxu0 0.0
          %v5904 = vand.u32 %v5388, 4294901760
          %v5905 = vsub.f32 %v5388, %v5904
          %5906 = vmatpush1.msra.mxu0 %v5905
          %5907 = vmatprep.subr.mxu0 0.0
          %v5908 = vand.u32 %v5389, 4294901760
          %v5909 = vsub.f32 %v5389, %v5908
          %5910 = vmatpush1.msra.mxu0 %v5909
          %5911 = vmatprep.subr.mxu0 0.0
          %v5912 = vand.u32 %v5390, 4294901760
          %v5913 = vsub.f32 %v5390, %v5912
          %5914 = vmatpush1.msra.mxu0 %v5913
          %5915 = vmatprep.subr.mxu0 0.0
          %v5916 = vand.u32 %v5391, 4294901760
          %v5917 = vsub.f32 %v5391, %v5916
          %5918 = vmatpush1.msra.mxu0 %v5917
          %5919 = vmatprep.subr.mxu0 0.0
          %v5920 = vand.u32 %v5392, 4294901760
          %v5921 = vsub.f32 %v5392, %v5920
          %5922 = vmatpush1.msra.mxu0 %v5921
          %5923 = vmatprep.subr.mxu0 0.0
          %v5924 = vand.u32 %v5393, 4294901760
          %v5925 = vsub.f32 %v5393, %v5924
          %5926 = vmatpush1.msra.mxu0 %v5925
          %5927 = vmatprep.subr.mxu0 0.0
          %v5928 = vand.u32 %v5394, 4294901760
          %v5929 = vsub.f32 %v5394, %v5928
          %5930 = vmatpush1.msra.mxu0 %v5929
          %5931 = vmatprep.subr.mxu0 0.0
          %v5932 = vand.u32 %v5395, 4294901760
          %v5933 = vsub.f32 %v5395, %v5932
          %5934 = vmatpush1.msra.mxu0 %v5933
          %v5935 = vand.u32 %v5357, 4294901760
          %v5936 = vsub.f32 %v5357, %v5935
          %5937 = vmatprep.mubr.f32.mxu0 %v5936
          %v5938 = vand.u32 %v5356, 4294901760
          %v5939 = vsub.f32 %v5356, %v5938
          %5940 = vmatmul.mubr.f32.gmra.mrb[0].mxu0 %v5939
          %v5941 = vpop.f32.mrb[0].mxu0
          %v5942 = vadd.f32 %v5783, %v5941
          %v5943 = vpop.f32.mrb[0].mxu0
          %v5944 = vand.u32 %v5359, 4294901760
          %v5945 = vsub.f32 %v5359, %v5944
          %5946 = vmatprep.mubr.f32.mxu0 %v5945
          %v5947 = vand.u32 %v5358, 4294901760
          %v5948 = vsub.f32 %v5358, %v5947
          %5949 = vmatmul.mubr.f32.gmra.mrb[0].mxu0 %v5948
          %v5950 = vpop.f32.mrb[0].mxu0
          %v5951 = vadd.f32 %v5790, %v5950
          %v5952 = vpop.f32.mrb[0].mxu0
          %v5953 = vand.u32 %v5361, 4294901760
          %v5954 = vsub.f32 %v5361, %v5953
          %5955 = vmatprep.mubr.f32.mxu0 %v5954
          %v5956 = vand.u32 %v5360, 4294901760
          %v5957 = vsub.f32 %v5360, %v5956
          %5958 = vmatmul.mubr.f32.gmra.mrb[0].mxu0 %v5957
          %v5959 = vpop.f32.mrb[0].mxu0
          %v5960 = vadd.f32 %v5797, %v5959
          %v5961 = vpop.f32.mrb[0].mxu0
          %v5962 = vand.u32 %v5363, 4294901760
          %v5963 = vsub.f32 %v5363, %v5962
          %5964 = vmatprep.mubr.f32.mxu0 %v5963
          %v5965 = vand.u32 %v5362, 4294901760
          %v5966 = vsub.f32 %v5362, %v5965
          %5967 = vmatmul.mubr.f32.gmra.mrb[0].mxu0 %v5966
          %v5968 = vpop.f32.mrb[0].mxu0
          %v5969 = vadd.f32 %v5804, %v5968
          %v5970 = vpop.f32.mrb[0].mxu0
          %5971 = vdwg.mxu0
          %5972 = vmatprep.subr.mxu0 0.0
          %v5973 = vand.u32 %v5364, 4294901760
          %5974 = vmatpush1.msra.mxu0 %v5973
          %5975 = vmatprep.subr.mxu0 0.0
          %v5976 = vand.u32 %v5365, 4294901760
          %5977 = vmatpush1.msra.mxu0 %v5976
          %5978 = vmatprep.subr.mxu0 0.0
          %v5979 = vand.u32 %v5366, 4294901760
          %5980 = vmatpush1.msra.mxu0 %v5979
          %5981 = vmatprep.subr.mxu0 0.0
          %v5982 = vand.u32 %v5367, 4294901760
          %5983 = vmatpush1.msra.mxu0 %v5982
          %5984 = vmatprep.subr.mxu0 0.0
          %v5985 = vand.u32 %v5368, 4294901760
          %5986 = vmatpush1.msra.mxu0 %v5985
          %5987 = vmatprep.subr.mxu0 0.0
          %v5988 = vand.u32 %v5369, 4294901760
          %5989 = vmatpush1.msra.mxu0 %v5988
          %5990 = vmatprep.subr.mxu0 0.0
          %v5991 = vand.u32 %v5370, 4294901760
          %5992 = vmatpush1.msra.mxu0 %v5991
          %5993 = vmatprep.subr.mxu0 0.0
          %v5994 = vand.u32 %v5371, 4294901760
          %5995 = vmatpush1.msra.mxu0 %v5994
          %5996 = vmatprep.subr.mxu0 0.0
          %v5997 = vand.u32 %v5372, 4294901760
          %5998 = vmatpush1.msra.mxu0 %v5997
          %5999 = vmatprep.subr.mxu0 0.0
          %v6000 = vand.u32 %v5373, 4294901760
          %6001 = vmatpush1.msra.mxu0 %v6000
          %6002 = vmatprep.subr.mxu0 0.0
          %v6003 = vand.u32 %v5374, 4294901760
          %6004 = vmatpush1.msra.mxu0 %v6003
          %6005 = vmatprep.subr.mxu0 0.0
          %v6006 = vand.u32 %v5375, 4294901760
          %6007 = vmatpush1.msra.mxu0 %v6006
          %6008 = vmatprep.subr.mxu0 0.0
          %v6009 = vand.u32 %v5376, 4294901760
          %6010 = vmatpush1.msra.mxu0 %v6009
          %6011 = vmatprep.subr.mxu0 0.0
          %v6012 = vand.u32 %v5377, 4294901760
          %6013 = vmatpush1.msra.mxu0 %v6012
          %6014 = vmatprep.subr.mxu0 0.0
          %v6015 = vand.u32 %v5378, 4294901760
          %6016 = vmatpush1.msra.mxu0 %v6015
          %6017 = vmatprep.subr.mxu0 0.0
          %v6018 = vand.u32 %v5379, 4294901760
          %6019 = vmatpush1.msra.mxu0 %v6018
          %6020 = vmatprep.subr.mxu0 0.0
          %v6021 = vand.u32 %v5380, 4294901760
          %6022 = vmatpush1.msra.mxu0 %v6021
          %6023 = vmatprep.subr.mxu0 0.0
          %v6024 = vand.u32 %v5381, 4294901760
          %6025 = vmatpush1.msra.mxu0 %v6024
          %6026 = vmatprep.subr.mxu0 0.0
          %v6027 = vand.u32 %v5382, 4294901760
          %6028 = vmatpush1.msra.mxu0 %v6027
          %6029 = vmatprep.subr.mxu0 0.0
          %v6030 = vand.u32 %v5383, 4294901760
          %6031 = vmatpush1.msra.mxu0 %v6030
          %6032 = vmatprep.subr.mxu0 0.0
          %v6033 = vand.u32 %v5384, 4294901760
          %6034 = vmatpush1.msra.mxu0 %v6033
          %6035 = vmatprep.subr.mxu0 0.0
          %v6036 = vand.u32 %v5385, 4294901760
          %6037 = vmatpush1.msra.mxu0 %v6036
          %6038 = vmatprep.subr.mxu0 0.0
          %v6039 = vand.u32 %v5386, 4294901760
          %6040 = vmatpush1.msra.mxu0 %v6039
          %6041 = vmatprep.subr.mxu0 0.0
          %v6042 = vand.u32 %v5387, 4294901760
          %6043 = vmatpush1.msra.mxu0 %v6042
          %6044 = vmatprep.subr.mxu0 0.0
          %v6045 = vand.u32 %v5388, 4294901760
          %6046 = vmatpush1.msra.mxu0 %v6045
          %6047 = vmatprep.subr.mxu0 0.0
          %v6048 = vand.u32 %v5389, 4294901760
          %6049 = vmatpush1.msra.mxu0 %v6048
          %6050 = vmatprep.subr.mxu0 0.0
          %v6051 = vand.u32 %v5390, 4294901760
          %6052 = vmatpush1.msra.mxu0 %v6051
          %6053 = vmatprep.subr.mxu0 0.0
          %v6054 = vand.u32 %v5391, 4294901760
          %6055 = vmatpush1.msra.mxu0 %v6054
          %6056 = vmatprep.subr.mxu0 0.0
          %v6057 = vand.u32 %v5392, 4294901760
          %6058 = vmatpush1.msra.mxu0 %v6057
          %6059 = vmatprep.subr.mxu0 0.0
          %v6060 = vand.u32 %v5393, 4294901760
          %6061 = vmatpush1.msra.mxu0 %v6060
          %6062 = vmatprep.subr.mxu0 0.0
          %v6063 = vand.u32 %v5394, 4294901760
          %6064 = vmatpush1.msra.mxu0 %v6063
          %6065 = vmatprep.subr.mxu0 0.0
          %v6066 = vand.u32 %v5395, 4294901760
          %6067 = vmatpush1.msra.mxu0 %v6066
          %v6068 = vand.u32 %v5357, 4294901760
          %v6069 = vsub.f32 %v5357, %v6068
          %v6070 = vand.u32 %v6069, 4294901760
          %6071 = vmatprep.mubr.f32.mxu0 %v6070
          %v6072 = vand.u32 %v5356, 4294901760
          %v6073 = vsub.f32 %v5356, %v6072
          %v6074 = vand.u32 %v6073, 4294901760
          %6075 = vmatmul.mubr.f32.gmra.mrb[0].mxu0 %v6074
          %v6076 = vpop.f32.mrb[0].mxu0
          %v6077 = vadd.f32 %v5942, %v6076
          %v6078 = vpop.f32.mrb[0].mxu0
          %v6079 = vand.u32 %v5359, 4294901760
          %v6080 = vsub.f32 %v5359, %v6079
          %v6081 = vand.u32 %v6080, 4294901760
          %6082 = vmatprep.mubr.f32.mxu0 %v6081
          %v6083 = vand.u32 %v5358, 4294901760
          %v6084 = vsub.f32 %v5358, %v6083
          %v6085 = vand.u32 %v6084, 4294901760
          %6086 = vmatmul.mubr.f32.gmra.mrb[0].mxu0 %v6085
          %v6087 = vpop.f32.mrb[0].mxu0
          %v6088 = vadd.f32 %v5951, %v6087
          %v6089 = vpop.f32.mrb[0].mxu0
          %v6090 = vand.u32 %v5361, 4294901760
          %v6091 = vsub.f32 %v5361, %v6090
          %v6092 = vand.u32 %v6091, 4294901760
          %6093 = vmatprep.mubr.f32.mxu0 %v6092
          %v6094 = vand.u32 %v5360, 4294901760
          %v6095 = vsub.f32 %v5360, %v6094
          %v6096 = vand.u32 %v6095, 4294901760
          %6097 = vmatmul.mubr.f32.gmra.mrb[0].mxu0 %v6096
          %v6098 = vpop.f32.mrb[0].mxu0
          %v6099 = vadd.f32 %v5960, %v6098
          %v6100 = vpop.f32.mrb[0].mxu0
          %v6101 = vand.u32 %v5363, 4294901760
          %v6102 = vsub.f32 %v5363, %v6101
          %v6103 = vand.u32 %v6102, 4294901760
          %6104 = vmatprep.mubr.f32.mxu0 %v6103
          %v6105 = vand.u32 %v5362, 4294901760
          %v6106 = vsub.f32 %v5362, %v6105
          %v6107 = vand.u32 %v6106, 4294901760
          %6108 = vmatmul.mubr.f32.gmra.mrb[0].mxu0 %v6107
          %v6109 = vpop.f32.mrb[0].mxu0
          %v6110 = vadd.f32 %v5969, %v6109
          %v6111 = vpop.f32.mrb[0].mxu0
          %6112 = vdwg.mxu0
          %6113 = vmatprep.subr.mxu0 0.0
          %v6114 = vand.u32 %v5364, 4294901760
          %v6115 = vsub.f32 %v5364, %v6114
          %v6116 = vand.u32 %v6115, 4294901760
          %6117 = vmatpush1.msra.mxu0 %v6116
          %6118 = vmatprep.subr.mxu0 0.0
          %v6119 = vand.u32 %v5365, 4294901760
          %v6120 = vsub.f32 %v5365, %v6119
          %v6121 = vand.u32 %v6120, 4294901760
          %6122 = vmatpush1.msra.mxu0 %v6121
          %6123 = vmatprep.subr.mxu0 0.0
          %v6124 = vand.u32 %v5366, 4294901760
          %v6125 = vsub.f32 %v5366, %v6124
          %v6126 = vand.u32 %v6125, 4294901760
          %6127 = vmatpush1.msra.mxu0 %v6126
          %6128 = vmatprep.subr.mxu0 0.0
          %v6129 = vand.u32 %v5367, 4294901760
          %v6130 = vsub.f32 %v5367, %v6129
          %v6131 = vand.u32 %v6130, 4294901760
          %6132 = vmatpush1.msra.mxu0 %v6131
          %6133 = vmatprep.subr.mxu0 0.0
          %v6134 = vand.u32 %v5368, 4294901760
          %v6135 = vsub.f32 %v5368, %v6134
          %v6136 = vand.u32 %v6135, 4294901760
          %6137 = vmatpush1.msra.mxu0 %v6136
          %6138 = vmatprep.subr.mxu0 0.0
          %v6139 = vand.u32 %v5369, 4294901760
          %v6140 = vsub.f32 %v5369, %v6139
          %v6141 = vand.u32 %v6140, 4294901760
          %6142 = vmatpush1.msra.mxu0 %v6141
          %6143 = vmatprep.subr.mxu0 0.0
          %v6144 = vand.u32 %v5370, 4294901760
          %v6145 = vsub.f32 %v5370, %v6144
          %v6146 = vand.u32 %v6145, 4294901760
          %6147 = vmatpush1.msra.mxu0 %v6146
          %6148 = vmatprep.subr.mxu0 0.0
          %v6149 = vand.u32 %v5371, 4294901760
          %v6150 = vsub.f32 %v5371, %v6149
          %v6151 = vand.u32 %v6150, 4294901760
          %6152 = vmatpush1.msra.mxu0 %v6151
          %6153 = vmatprep.subr.mxu0 0.0
          %v6154 = vand.u32 %v5372, 4294901760
          %v6155 = vsub.f32 %v5372, %v6154
          %v6156 = vand.u32 %v6155, 4294901760
          %6157 = vmatpush1.msra.mxu0 %v6156
          %6158 = vmatprep.subr.mxu0 0.0
          %v6159 = vand.u32 %v5373, 4294901760
          %v6160 = vsub.f32 %v5373, %v6159
          %v6161 = vand.u32 %v6160, 4294901760
          %6162 = vmatpush1.msra.mxu0 %v6161
          %6163 = vmatprep.subr.mxu0 0.0
          %v6164 = vand.u32 %v5374, 4294901760
          %v6165 = vsub.f32 %v5374, %v6164
          %v6166 = vand.u32 %v6165, 4294901760
          %6167 = vmatpush1.msra.mxu0 %v6166
          %6168 = vmatprep.subr.mxu0 0.0
          %v6169 = vand.u32 %v5375, 4294901760
          %v6170 = vsub.f32 %v5375, %v6169
          %v6171 = vand.u32 %v6170, 4294901760
          %6172 = vmatpush1.msra.mxu0 %v6171
          %6173 = vmatprep.subr.mxu0 0.0
          %v6174 = vand.u32 %v5376, 4294901760
          %v6175 = vsub.f32 %v5376, %v6174
          %v6176 = vand.u32 %v6175, 4294901760
          %6177 = vmatpush1.msra.mxu0 %v6176
          %6178 = vmatprep.subr.mxu0 0.0
          %v6179 = vand.u32 %v5377, 4294901760
          %v6180 = vsub.f32 %v5377, %v6179
          %v6181 = vand.u32 %v6180, 4294901760
          %6182 = vmatpush1.msra.mxu0 %v6181
          %6183 = vmatprep.subr.mxu0 0.0
          %v6184 = vand.u32 %v5378, 4294901760
          %v6185 = vsub.f32 %v5378, %v6184
          %v6186 = vand.u32 %v6185, 4294901760
          %6187 = vmatpush1.msra.mxu0 %v6186
          %6188 = vmatprep.subr.mxu0 0.0
          %v6189 = vand.u32 %v5379, 4294901760
          %v6190 = vsub.f32 %v5379, %v6189
          %v6191 = vand.u32 %v6190, 4294901760
          %6192 = vmatpush1.msra.mxu0 %v6191
          %6193 = vmatprep.subr.mxu0 0.0
          %v6194 = vand.u32 %v5380, 4294901760
          %v6195 = vsub.f32 %v5380, %v6194
          %v6196 = vand.u32 %v6195, 4294901760
          %6197 = vmatpush1.msra.mxu0 %v6196
          %6198 = vmatprep.subr.mxu0 0.0
          %v6199 = vand.u32 %v5381, 4294901760
          %v6200 = vsub.f32 %v5381, %v6199
          %v6201 = vand.u32 %v6200, 4294901760
          %6202 = vmatpush1.msra.mxu0 %v6201
          %6203 = vmatprep.subr.mxu0 0.0
          %v6204 = vand.u32 %v5382, 4294901760
          %v6205 = vsub.f32 %v5382, %v6204
          %v6206 = vand.u32 %v6205, 4294901760
          %6207 = vmatpush1.msra.mxu0 %v6206
          %6208 = vmatprep.subr.mxu0 0.0
          %v6209 = vand.u32 %v5383, 4294901760
          %v6210 = vsub.f32 %v5383, %v6209
          %v6211 = vand.u32 %v6210, 4294901760
          %6212 = vmatpush1.msra.mxu0 %v6211
          %6213 = vmatprep.subr.mxu0 0.0
          %v6214 = vand.u32 %v5384, 4294901760
          %v6215 = vsub.f32 %v5384, %v6214
          %v6216 = vand.u32 %v6215, 4294901760
          %6217 = vmatpush1.msra.mxu0 %v6216
          %6218 = vmatprep.subr.mxu0 0.0
          %v6219 = vand.u32 %v5385, 4294901760
          %v6220 = vsub.f32 %v5385, %v6219
          %v6221 = vand.u32 %v6220, 4294901760
          %6222 = vmatpush1.msra.mxu0 %v6221
          %6223 = vmatprep.subr.mxu0 0.0
          %v6224 = vand.u32 %v5386, 4294901760
          %v6225 = vsub.f32 %v5386, %v6224
          %v6226 = vand.u32 %v6225, 4294901760
          %6227 = vmatpush1.msra.mxu0 %v6226
          %6228 = vmatprep.subr.mxu0 0.0
          %v6229 = vand.u32 %v5387, 4294901760
          %v6230 = vsub.f32 %v5387, %v6229
          %v6231 = vand.u32 %v6230, 4294901760
          %6232 = vmatpush1.msra.mxu0 %v6231
          %6233 = vmatprep.subr.mxu0 0.0
          %v6234 = vand.u32 %v5388, 4294901760
          %v6235 = vsub.f32 %v5388, %v6234
          %v6236 = vand.u32 %v6235, 4294901760
          %6237 = vmatpush1.msra.mxu0 %v6236
          %6238 = vmatprep.subr.mxu0 0.0
          %v6239 = vand.u32 %v5389, 4294901760
          %v6240 = vsub.f32 %v5389, %v6239
          %v6241 = vand.u32 %v6240, 4294901760
          %6242 = vmatpush1.msra.mxu0 %v6241
          %6243 = vmatprep.subr.mxu0 0.0
          %v6244 = vand.u32 %v5390, 4294901760
          %v6245 = vsub.f32 %v5390, %v6244
          %v6246 = vand.u32 %v6245, 4294901760
          %6247 = vmatpush1.msra.mxu0 %v6246
          %6248 = vmatprep.subr.mxu0 0.0
          %v6249 = vand.u32 %v5391, 4294901760
          %v6250 = vsub.f32 %v5391, %v6249
          %v6251 = vand.u32 %v6250, 4294901760
          %6252 = vmatpush1.msra.mxu0 %v6251
          %6253 = vmatprep.subr.mxu0 0.0
          %v6254 = vand.u32 %v5392, 4294901760
          %v6255 = vsub.f32 %v5392, %v6254
          %v6256 = vand.u32 %v6255, 4294901760
          %6257 = vmatpush1.msra.mxu0 %v6256
          %6258 = vmatprep.subr.mxu0 0.0
          %v6259 = vand.u32 %v5393, 4294901760
          %v6260 = vsub.f32 %v5393, %v6259
          %v6261 = vand.u32 %v6260, 4294901760
          %6262 = vmatpush1.msra.mxu0 %v6261
          %6263 = vmatprep.subr.mxu0 0.0
          %v6264 = vand.u32 %v5394, 4294901760
          %v6265 = vsub.f32 %v5394, %v6264
          %v6266 = vand.u32 %v6265, 4294901760
          %6267 = vmatpush1.msra.mxu0 %v6266
          %6268 = vmatprep.subr.mxu0 0.0
          %v6269 = vand.u32 %v5395, 4294901760
          %v6270 = vsub.f32 %v5395, %v6269
          %v6271 = vand.u32 %v6270, 4294901760
          %6272 = vmatpush1.msra.mxu0 %v6271
          %v6273 = vand.u32 %v5357, 4294901760
          %6274 = vmatprep.mubr.f32.mxu0 %v6273
          %v6275 = vand.u32 %v5356, 4294901760
          %6276 = vmatmul.mubr.f32.gmra.mrb[0].mxu0 %v6275
          %v6277 = vpop.f32.mrb[0].mxu0
          %v6278 = vadd.f32 %v6077, %v6277
          %v6279 = vpop.f32.mrb[0].mxu0
          %v6280 = vand.u32 %v5359, 4294901760
          %6281 = vmatprep.mubr.f32.mxu0 %v6280
          %v6282 = vand.u32 %v5358, 4294901760
          %6283 = vmatmul.mubr.f32.gmra.mrb[0].mxu0 %v6282
          %v6284 = vpop.f32.mrb[0].mxu0
          %v6285 = vadd.f32 %v6088, %v6284
          %v6286 = vpop.f32.mrb[0].mxu0
          %v6287 = vand.u32 %v5361, 4294901760
          %6288 = vmatprep.mubr.f32.mxu0 %v6287
          %v6289 = vand.u32 %v5360, 4294901760
          %6290 = vmatmul.mubr.f32.gmra.mrb[0].mxu0 %v6289
          %v6291 = vpop.f32.mrb[0].mxu0
          %v6292 = vadd.f32 %v6099, %v6291
          %v6293 = vpop.f32.mrb[0].mxu0
          %v6294 = vand.u32 %v5363, 4294901760
          %6295 = vmatprep.mubr.f32.mxu0 %v6294
          %v6296 = vand.u32 %v5362, 4294901760
          %6297 = vmatmul.mubr.f32.gmra.mrb[0].mxu0 %v6296
          %v6298 = vpop.f32.mrb[0].mxu0
          %v6299 = vadd.f32 %v6110, %v6298
          %v6300 = vpop.f32.mrb[0].mxu0
          %6301 = vdwg.mxu0
          %6302 = vmatprep.subr.mxu0 0.0
          %v6303 = vand.u32 %v5364, 4294901760
          %6304 = vmatpush1.msra.mxu0 %v6303
          %6305 = vmatprep.subr.mxu0 0.0
          %v6306 = vand.u32 %v5365, 4294901760
          %6307 = vmatpush1.msra.mxu0 %v6306
          %6308 = vmatprep.subr.mxu0 0.0
          %v6309 = vand.u32 %v5366, 4294901760
          %6310 = vmatpush1.msra.mxu0 %v6309
          %6311 = vmatprep.subr.mxu0 0.0
          %v6312 = vand.u32 %v5367, 4294901760
          %6313 = vmatpush1.msra.mxu0 %v6312
          %6314 = vmatprep.subr.mxu0 0.0
          %v6315 = vand.u32 %v5368, 4294901760
          %6316 = vmatpush1.msra.mxu0 %v6315
          %6317 = vmatprep.subr.mxu0 0.0
          %v6318 = vand.u32 %v5369, 4294901760
          %6319 = vmatpush1.msra.mxu0 %v6318
          %6320 = vmatprep.subr.mxu0 0.0
          %v6321 = vand.u32 %v5370, 4294901760
          %6322 = vmatpush1.msra.mxu0 %v6321
          %6323 = vmatprep.subr.mxu0 0.0
          %v6324 = vand.u32 %v5371, 4294901760
          %6325 = vmatpush1.msra.mxu0 %v6324
          %6326 = vmatprep.subr.mxu0 0.0
          %v6327 = vand.u32 %v5372, 4294901760
          %6328 = vmatpush1.msra.mxu0 %v6327
          %6329 = vmatprep.subr.mxu0 0.0
          %v6330 = vand.u32 %v5373, 4294901760
          %6331 = vmatpush1.msra.mxu0 %v6330
          %6332 = vmatprep.subr.mxu0 0.0
          %v6333 = vand.u32 %v5374, 4294901760
          %6334 = vmatpush1.msra.mxu0 %v6333
          %6335 = vmatprep.subr.mxu0 0.0
          %v6336 = vand.u32 %v5375, 4294901760
          %6337 = vmatpush1.msra.mxu0 %v6336
          %6338 = vmatprep.subr.mxu0 0.0
          %v6339 = vand.u32 %v5376, 4294901760
          %6340 = vmatpush1.msra.mxu0 %v6339
          %6341 = vmatprep.subr.mxu0 0.0
          %v6342 = vand.u32 %v5377, 4294901760
          %6343 = vmatpush1.msra.mxu0 %v6342
          %6344 = vmatprep.subr.mxu0 0.0
          %v6345 = vand.u32 %v5378, 4294901760
          %6346 = vmatpush1.msra.mxu0 %v6345
          %6347 = vmatprep.subr.mxu0 0.0
          %v6348 = vand.u32 %v5379, 4294901760
          %6349 = vmatpush1.msra.mxu0 %v6348
          %6350 = vmatprep.subr.mxu0 0.0
          %v6351 = vand.u32 %v5380, 4294901760
          %6352 = vmatpush1.msra.mxu0 %v6351
          %6353 = vmatprep.subr.mxu0 0.0
          %v6354 = vand.u32 %v5381, 4294901760
          %6355 = vmatpush1.msra.mxu0 %v6354
          %6356 = vmatprep.subr.mxu0 0.0
          %v6357 = vand.u32 %v5382, 4294901760
          %6358 = vmatpush1.msra.mxu0 %v6357
          %6359 = vmatprep.subr.mxu0 0.0
          %v6360 = vand.u32 %v5383, 4294901760
          %6361 = vmatpush1.msra.mxu0 %v6360
          %6362 = vmatprep.subr.mxu0 0.0
          %v6363 = vand.u32 %v5384, 4294901760
          %6364 = vmatpush1.msra.mxu0 %v6363
          %6365 = vmatprep.subr.mxu0 0.0
          %v6366 = vand.u32 %v5385, 4294901760
          %6367 = vmatpush1.msra.mxu0 %v6366
          %6368 = vmatprep.subr.mxu0 0.0
          %v6369 = vand.u32 %v5386, 4294901760
          %6370 = vmatpush1.msra.mxu0 %v6369
          %6371 = vmatprep.subr.mxu0 0.0
          %v6372 = vand.u32 %v5387, 4294901760
          %6373 = vmatpush1.msra.mxu0 %v6372
          %6374 = vmatprep.subr.mxu0 0.0
          %v6375 = vand.u32 %v5388, 4294901760
          %6376 = vmatpush1.msra.mxu0 %v6375
          %6377 = vmatprep.subr.mxu0 0.0
          %v6378 = vand.u32 %v5389, 4294901760
          %6379 = vmatpush1.msra.mxu0 %v6378
          %6380 = vmatprep.subr.mxu0 0.0
          %v6381 = vand.u32 %v5390, 4294901760
          %6382 = vmatpush1.msra.mxu0 %v6381
          %6383 = vmatprep.subr.mxu0 0.0
          %v6384 = vand.u32 %v5391, 4294901760
          %6385 = vmatpush1.msra.mxu0 %v6384
          %6386 = vmatprep.subr.mxu0 0.0
          %v6387 = vand.u32 %v5392, 4294901760
          %6388 = vmatpush1.msra.mxu0 %v6387
          %6389 = vmatprep.subr.mxu0 0.0
          %v6390 = vand.u32 %v5393, 4294901760
          %6391 = vmatpush1.msra.mxu0 %v6390
          %6392 = vmatprep.subr.mxu0 0.0
          %v6393 = vand.u32 %v5394, 4294901760
          %6394 = vmatpush1.msra.mxu0 %v6393
          %6395 = vmatprep.subr.mxu0 0.0
          %v6396 = vand.u32 %v5395, 4294901760
          %6397 = vmatpush1.msra.mxu0 %v6396
          %v6398 = vand.u32 %v5357, 4294901760
          %6399 = vmatprep.mubr.f32.mxu0 %v6398
          %v6400 = vand.u32 %v5356, 4294901760
          %6401 = vmatmul.mubr.f32.gmra.mrb[0].mxu0 %v6400
          %v6402 = vpop.f32.mrb[0].mxu0
          %v6403 = vadd.f32 %v6278, %v6402
          %v6404 = vpop.f32.mrb[0].mxu0
          %v6405 = vand.u32 %v5359, 4294901760
          %6406 = vmatprep.mubr.f32.mxu0 %v6405
          %v6407 = vand.u32 %v5358, 4294901760
          %6408 = vmatmul.mubr.f32.gmra.mrb[0].mxu0 %v6407
          %v6409 = vpop.f32.mrb[0].mxu0
          %v6410 = vadd.f32 %v6285, %v6409
          %v6411 = vpop.f32.mrb[0].mxu0
          %v6412 = vand.u32 %v5361, 4294901760
          %6413 = vmatprep.mubr.f32.mxu0 %v6412
          %v6414 = vand.u32 %v5360, 4294901760
          %6415 = vmatmul.mubr.f32.gmra.mrb[0].mxu0 %v6414
          %v6416 = vpop.f32.mrb[0].mxu0
          %v6417 = vadd.f32 %v6292, %v6416
          %v6418 = vpop.f32.mrb[0].mxu0
          %v6419 = vand.u32 %v5363, 4294901760
          %6420 = vmatprep.mubr.f32.mxu0 %v6419
          %v6421 = vand.u32 %v5362, 4294901760
          %6422 = vmatmul.mubr.f32.gmra.mrb[0].mxu0 %v6421
          %v6423 = vpop.f32.mrb[0].mxu0
          %v6424 = vadd.f32 %v6299, %v6423
          %v6425 = vpop.f32.mrb[0].mxu0
          %6426 = vdwg.mxu0
          %v6427 = vld [vmem:[%s1] sm:$0xff]
          %v6428 = vld [vmem:[%s1 + $0x8] sm:$0xff]
          %v6429 = vld [vmem:[%s1 + $0x10] sm:$0xff]
          %v6430 = vld [vmem:[%s1 + $0x18] sm:$0xff]
          %v6431 = vld [vmem:[%s6 + $0x14] ss:$0 sm:$0xff]
          %6433 = vset.pattern.permute.xlu0 0
          %6434 = vperm.xlu0 %6433, %v6427
          %v6435 = vpop.permute.xlu0 %6434
          %6438 = vset.pattern.permute.xlu0 0
          %6439 = vperm.xlu0 %6438, %v6428
          %v6440 = vpop.permute.xlu0 %6439
          %6443 = vset.pattern.permute.xlu0 0
          %6444 = vperm.xlu0 %6443, %v6429
          %v6445 = vpop.permute.xlu0 %6444
          %6448 = vset.pattern.permute.xlu0 0
          %6449 = vperm.xlu0 %6448, %v6430
          %v6450 = vpop.permute.xlu0 %6449
          %v6452 = vmul.f32 %v6435, %v6431
          %v6453 = vmul.f32 %v6440, %v6431
          %v6454 = vmul.f32 %v6445, %v6431
          %v6455 = vmul.f32 %v6450, %v6431
          %v6456 = vld [vmem:[%s6 + $0x15] ss:$0 sm:$0xff]
          %6457 = vset.pattern.permute.xlu0 1
          %6458 = vperm.xlu0 %6457, %v6427
          %v6459 = vpop.permute.xlu0 %6458
          %6461 = vset.pattern.permute.xlu0 1
          %6462 = vperm.xlu0 %6461, %v6428
          %v6463 = vpop.permute.xlu0 %6462
          %6465 = vset.pattern.permute.xlu0 1
          %6466 = vperm.xlu0 %6465, %v6429
          %v6467 = vpop.permute.xlu0 %6466
          %6469 = vset.pattern.permute.xlu0 1
          %6470 = vperm.xlu0 %6469, %v6430
          %v6471 = vpop.permute.xlu0 %6470
          %v6473 = vmul.f32 %v6459, %v6456
          %v6474 = vmul.f32 %v6463, %v6456
          %v6475 = vmul.f32 %v6467, %v6456
          %v6476 = vmul.f32 %v6471, %v6456
          %v6477 = vadd.f32 %v6452, %v6473
          %v6478 = vadd.f32 %v6453, %v6474
          %v6479 = vadd.f32 %v6454, %v6475
          %v6480 = vadd.f32 %v6455, %v6476
          %v6481 = vadd.f32 %v6403, %v6477
          %v6482 = vadd.f32 %v6410, %v6478
          %v6483 = vadd.f32 %v6417, %v6479
          %v6484 = vadd.f32 %v6424, %v6480
          %vm6485 = vcmp.ge.f32.partialorder %v6481, 0.0
          %vm6486 = vcmp.ge.f32.partialorder %v6482, 0.0
          %vm6487 = vcmp.ge.f32.partialorder %v6483, 0.0
          %vm6488 = vcmp.ge.f32.partialorder %v6484, 0.0
          %v6489 = vmul.f32 %v6481, 0.01
          %v6490 = vmul.f32 %v6482, 0.01
          %v6491 = vmul.f32 %v6483, 0.01
          %v6492 = vmul.f32 %v6484, 0.01
          %v6493 = vsel %vm6485, %v6481, %v6489
          %v6494 = vsel %vm6486, %v6482, %v6490
          %v6495 = vsel %vm6487, %v6483, %v6491
          %v6496 = vsel %vm6488, %v6484, %v6492
          %v6497 = vld [vmem:[%s6 + $0x12] ss:$0 sm:$0xff]
          %v6498 = vld [vmem:[%s6 + $0x13] ss:$0 sm:$0xff]
          %v6499 = vmul.f32 %v6493, %v3235
          %v6500 = vmul.f32 %v6494, %v3236
          %v6501 = vmul.f32 %v6495, %v3237
          %v6502 = vmul.f32 %v6496, %v3238
          %v6503 = vadd.f32 %v6499, %v6500
          %v6504 = vadd.f32 %v6503, %v6501
          %v6505 = vadd.f32 %v6504, %v6502
          %v6506 = vrot.slane %v6505, 4
          %v6507 = vadd.f32 %v6505, %v6506
          %v6508 = vrot.slane %v6507, 2
          %v6509 = vadd.f32 %v6507, %v6508
          %v6510 = vrot.slane %v6509, 1
          %v6511 = vadd.f32 %v6509, %v6510
          %v6512 = vmul.f32 %v6511, 0.037037037
          %v6513 = vsub.f32 %v6493, %v6512
          %v6514 = vsub.f32 %v6494, %v6512
          %v6515 = vsub.f32 %v6495, %v6512
          %v6516 = vsub.f32 %v6496, %v6512
          %v6517 = vmul.f32 %v6513, %v6513
          %v6518 = vmul.f32 %v6514, %v6514
          %v6519 = vmul.f32 %v6515, %v6515
          %v6520 = vmul.f32 %v6516, %v6516
          %v6521 = vmul.f32 %v6517, %v3235
          %v6522 = vmul.f32 %v6518, %v3236
          %v6523 = vmul.f32 %v6519, %v3237
          %v6524 = vmul.f32 %v6520, %v3238
          %v6525 = vadd.f32 %v6521, %v6522
          %v6526 = vadd.f32 %v6525, %v6523
          %v6527 = vadd.f32 %v6526, %v6524
          %v6528 = vrot.slane %v6527, 4
          %v6529 = vadd.f32 %v6527, %v6528
          %v6530 = vrot.slane %v6529, 2
          %v6531 = vadd.f32 %v6529, %v6530
          %v6532 = vrot.slane %v6531, 1
          %v6533 = vadd.f32 %v6531, %v6532
          %v6534 = vmul.f32 %v6533, 0.037037037
          %v6535 = vadd.f32 %v6534, 1e-05
          %v6536 = vrsqrt.pop %v6535
          %v6537 = vmul.f32 %v6536, %v6497
          %v6538 = vmul.f32 %v6512, %v6537
          %v6539 = vsub.f32 %v6498, %v6538
          %v6540 = vmul.f32 %v6493, %v6537
          %v6541 = vmul.f32 %v6494, %v6537
          %v6542 = vmul.f32 %v6495, %v6537
          %v6543 = vmul.f32 %v6496, %v6537
          %v6544 = vadd.f32 %v6540, %v6539
          %v6545 = vadd.f32 %v6541, %v6539
          %v6546 = vadd.f32 %v6542, %v6539
          %v6547 = vadd.f32 %v6543, %v6539
          %6548 = vst [vmem:[#allocation12] sm:$0xff] %v6544
          %6549 = vst [vmem:[#allocation12 + $0x8] sm:$0xff] %v6545
          %6550 = vst [vmem:[#allocation12 + $0x10] sm:$0xff] %v6546
          %6551 = vst [vmem:[#allocation12 + $0x18] sm:$0xff] %v6547
        $region72: #{tpu_custom_call.1} parent=47 // pred_fallthru
          _
        // Predicated region
        $region73: #{tpu_custom_call.1} parent=47 // pred_check
          %p6552 = pneg %p189
        $region74: #{tpu_custom_call.1} parent=47 // pred_check_branch
          %6554 = sbr.rel (%p6552) target = $region76
        $region75: #{tpu_custom_call.1} parent=47 // pred_region
          %s6556 = ssub.s32 512, 512
          %6557 = vsyncadd [#allocation5], %s6556
          %s6558 = sshll.u32 [#allocation12], 4
          %s6559 = int_to_ptr.vmem [resolvable:$true] %s6558
          %6564 = dma.vmem_to_hbm [thread:$0]  %s6559, 512, %s7, [#allocation5], 128, 128, 8
        $region76: #{tpu_custom_call.1} parent=47 // pred_fallthru
          _
        // Predicated region
        $region77: #{tpu_custom_call.1} parent=47 // pred_check
          %p6565 = pneg %p189
        $region78: #{tpu_custom_call.1} parent=47 // pred_check_branch
          %6567 = sbr.rel (%p6565) target = $region80
        $region79: #{tpu_custom_call.1} parent=47 // pred_region
          %6568 = dma.done [#allocation5], 512
        $region80: #{tpu_custom_call.1} parent=47 // pred_fallthru
          _
      $region48: #{tpu_custom_call.1} parent=5 // pred_fallthru
        _
      %p6569 = scmp.le.s32.totalorder 2, %s19
      // Predicated region
      $region81: #{tpu_custom_call.1} parent=5 // pred_check
        %p6570 = pneg %p6569
      $region82: #{tpu_custom_call.1} parent=5 // pred_check_branch
        %6572 = sbr.rel (%p6570) target = $region84
      $region83: #{tpu_custom_call.1} parent=5 // pred_region
        %s6573 = ssub.s32 %s19, 2
      $region84: #{tpu_custom_call.1} parent=5 // pred_fallthru
        _
    $region6: #{tpu_custom_call.1} parent=1 // loop_footer
      %s23 = sadd.s32 1, %s19
    $region7: #{tpu_custom_call.1} parent=1 // loop_footer_branch
      %18 = sbr.rel target = $region3
    $region8: #{tpu_custom_call.1} parent=1 // loop_exit
      _
    %6574 = vsyncpa [#allocation4], 1
    %s6575 = scalar_lea.sflag [#allocation4], 1
    %6576 = vsyncpa %s6575, 1
    %6577 = vsyncpa [#allocation7], 1
    %6578 = vsyncpa [#allocation10], 1
    %6579 = vsyncpa [#allocation5], 1
    %s6580 = scalar_lea.sflag [#allocation5], 1
    %6581 = vsyncpa %s6580, 1

</llo_original>
